<compile_context>
chip_gen: v5e
topology: v5e:2x2
jax: 0.10.0
libtpu: 0.0.40
codegen_flags: <defaults>
</compile_context>

<pallas_src>
import functools

import jax
import jax.numpy as jnp
from jax.experimental import pallas as pl
from jax.experimental.pallas import tpu as pltpu

EPS = 1e-5
BF16 = jnp.bfloat16


def _default_vmem_limit():
    try:
        cap = int(pltpu.get_tpu_info().vmem_capacity_bytes)
        return min((cap * 3) // 4, 96 * 1024 * 1024)
    except Exception:
        return 48 * 1024 * 1024   # safe fallback on v5e/v6e (128 MiB) and v7x (64 MiB)


_VMEM_LIMIT = _default_vmem_limit()


def _pick_tb(b, cap=16):
    """Largest divisor of b <= cap, preferring an even number of grid steps
    (>= 2) so both v7x TensorCores are used; no-op cost on v5e/v6e."""
    divs = [d for d in range(1, min(b, cap) + 1) if b % d == 0]
    even = [d for d in divs if (b // d) % 2 == 0]
    if even:
        return max(even)
    multi = [d for d in divs if (b // d) >= 2]
    if multi:
        return max(multi)
    return max(divs)


def _mosaic_params():
    return pltpu.CompilerParams(
        dimension_semantics=("parallel",),
        vmem_limit_bytes=_VMEM_LIMIT,
    )


# Polyphase decomposition of a 3x3 / stride-2 / pad-1 / output-pad-1
# ConvTranspose2d: output parity phase p = 2*rp + cp uses these (kh, kw) weight
# taps, each reading input pixel (i+dy, j+dx) for output (2i+rp, 2j+cp).
_PHASE_TAPS = (
    (((1, 1), (0, 0)),),                                                        # ee
    (((1, 2), (0, 0)), ((1, 0), (0, 1))),                                       # eo
    (((2, 1), (0, 0)), ((0, 1), (1, 0))),                                       # oe
    (((2, 2), (0, 0)), ((2, 0), (0, 1)), ((0, 2), (1, 0)), ((0, 0), (1, 1))),   # oo
)


# ---------------------------------------------------------------------------
# Pallas kernels
# ---------------------------------------------------------------------------
def _l1_kernel(x_ref, wl_ref, wr_ref, b_ref, o_ref, sum_ref, ssq_ref):
    # x_ref : [TB, 64, 1024] bf16  rows = 8x8 grid; channels = 4 input taps x 256
    # wl_ref: [512, 256]  bf16     (x00|x01)           -> (ee|eo) phase blocks
    # wr_ref: [1024, 256] bf16     (x00|x01|x10|x11)   -> (oe|oo) phase blocks
    # b_ref : [1, 512]    f32      conv bias tiled over the 4 phase blocks
    # o_ref : [TB, 64, 512] bf16   packed phase output (pre-BN, post-ReLU)
    # sum/ssq: [1, 8, 512] f32     per-tile packed-channel sum / sum-of-squares
    tb, rows, _ = x_ref.shape
    x = x_ref[...].reshape(tb * rows, 1024)
    hl = jnp.dot(x[:, :512], wl_ref[...], preferred_element_type=jnp.float32)
    hr = jnp.dot(x, wr_ref[...], preferred_element_type=jnp.float32)
    h = jnp.maximum(jnp.concatenate([hl, hr], axis=-1) + b_ref[...], 0.0)
    hb = h.astype(o_ref.dtype)
    o_ref[...] = hb.reshape(tb, rows, 512)
    hf = hb.astype(jnp.float32)
    sum_ref[...] = jnp.broadcast_to(
        jnp.sum(hf, axis=0, keepdims=True)[:, None, :], sum_ref.shape)
    ssq_ref[...] = jnp.broadcast_to(
        jnp.sum(hf * hf, axis=0, keepdims=True)[:, None, :], ssq_ref.shape)


def _convs1_kernel(x_ref, w_ref, bmap_ref, o_ref, sum_ref, ssq_ref, y_ref, *,
                   start0, pre_rows, post_rows, col_lo, col_hi):
    # Stride-1 3x3 ConvT (as a SAME conv) with the 9 taps packed along N.
    # x_ref : [TB, 304, C_in]   bf16  19x16 padded grid, data at rows/cols 2..15
    # w_ref : [C_in, 9*C_out]   bf16  flipped + BN-scaled taps, tap-major in N
    # bmap  : [224, C_out]      f32   conv bias + folded BN shift of prev layer
    # o_ref : [TB, R_out, C_out] bf16 next layer's padded input layout
    # y_ref : [TB*304, 9*C_out] f32   scratch: per-tap matmul slabs
    tb, rin, cin = x_ref.shape
    ncol = w_ref.shape[1]
    cout = ncol // 9
    nrow = 224                                   # 14 output rows x 16 grid cols
    y_ref[...] = jnp.dot(x_ref[...].reshape(tb * rin, cin), w_ref[...],
                         preferred_element_type=jnp.float32)
    bias = bmap_ref[...]
    col = jax.lax.broadcasted_iota(jnp.int32, (nrow, 1), 0) % 16
    colmask = ((col >= col_lo) & (col < col_hi)).astype(jnp.float32)
    zpre = jnp.zeros((pre_rows, cout), o_ref.dtype) if pre_rows else None
    zpost = jnp.zeros((post_rows, cout), o_ref.dtype) if post_rows else None
    s_acc = jnp.zeros((1, cout), jnp.float32)
    q_acc = jnp.zeros((1, cout), jnp.float32)
    for t in range(tb):                          # static unroll over the tile
        base = t * rin
        acc = bias
        for k in range(9):                       # VPU shift-and-add of the slabs
            s = start0 + (k // 3) * 16 + (k % 3)
            acc = acc + y_ref[pl.ds(base + s, nrow), k * cout:(k + 1) * cout]
        h = jnp.maximum(acc, 0.0) * colmask      # ReLU + zero the border columns
        hb = h.astype(o_ref.dtype)
        if pre_rows:
            o_ref[t, pl.ds(0, pre_rows), :] = zpre
        o_ref[t, pl.ds(pre_rows, nrow), :] = hb
        if post_rows:
            o_ref[t, pl.ds(pre_rows + nrow, post_rows), :] = zpost
        hf = hb.astype(jnp.float32)
        s_acc = s_acc + jnp.sum(hf, axis=0, keepdims=True)
        q_acc = q_acc + jnp.sum(hf * hf, axis=0, keepdims=True)
    sum_ref[...] = jnp.broadcast_to(s_acc[:, None, :], sum_ref.shape)
    ssq_ref[...] = jnp.broadcast_to(q_acc[:, None, :], ssq_ref.shape)


def _l4_kernel(x_ref, w_ref, bmap_ref, o_ref):
    # Final ConvT(16->1, stride 2) as 4 polyphase columns; the layer is tiny so
    # bf16 input DMA + f32 accumulation is all that matters here.
    tb, rows, cin = x_ref.shape
    x = x_ref[...].astype(jnp.float32).reshape(tb * rows, cin)
    y = jnp.dot(x, w_ref[...], preferred_element_type=jnp.float32)
    y = y.reshape(tb, rows, 4) + bmap_ref[...][None, :, :]
    o_ref[...] = jnp.maximum(y, 0.0)


# ---------------------------------------------------------------------------
# pallas_call wrappers
# ---------------------------------------------------------------------------
def _l1_call(x4, wl, wr, bvec):
    b = x4.shape[0]
    tb = _pick_tb(b)
    nt = b // tb
    return pl.pallas_call(
        _l1_kernel,
        out_shape=(jax.ShapeDtypeStruct((b, 64, 512), BF16),
                   jax.ShapeDtypeStruct((nt, 8, 512), jnp.float32),
                   jax.ShapeDtypeStruct((nt, 8, 512), jnp.float32)),
        grid=(nt,),
        in_specs=[pl.BlockSpec((tb, 64, 1024), lambda i: (i, 0, 0)),
                  pl.BlockSpec((512, 256), lambda i: (0, 0)),
                  pl.BlockSpec((1024, 256), lambda i: (0, 0)),
                  pl.BlockSpec((1, 512), lambda i: (0, 0))],
        out_specs=(pl.BlockSpec((tb, 64, 512), lambda i: (i, 0, 0)),
                   pl.BlockSpec((1, 8, 512), lambda i: (i, 0, 0)),
                   pl.BlockSpec((1, 8, 512), lambda i: (i, 0, 0))),
        compiler_params=_mosaic_params(),
    )(x4, wl, wr, bvec)


def _convs1_call(xin, wcat, bmap, *, out_rows, pre, post, col_lo, col_hi, start0):
    b, rin, cin = xin.shape
    ncol = wcat.shape[1]
    cout = ncol // 9
    tb = _pick_tb(b)
    nt = b // tb
    kern = functools.partial(_convs1_kernel, start0=start0, pre_rows=pre,
                             post_rows=post, col_lo=col_lo, col_hi=col_hi)
    return pl.pallas_call(
        kern,
        out_shape=(jax.ShapeDtypeStruct((b, out_rows, cout), BF16),
                   jax.ShapeDtypeStruct((nt, 8, cout), jnp.float32),
                   jax.ShapeDtypeStruct((nt, 8, cout), jnp.float32)),
        grid=(nt,),
        in_specs=[pl.BlockSpec((tb, rin, cin), lambda i: (i, 0, 0)),
                  pl.BlockSpec((cin, ncol), lambda i: (0, 0)),
                  pl.BlockSpec((224, cout), lambda i: (0, 0))],
        out_specs=(pl.BlockSpec((tb, out_rows, cout), lambda i: (i, 0, 0)),
                   pl.BlockSpec((1, 8, cout), lambda i: (i, 0, 0)),
                   pl.BlockSpec((1, 8, cout), lambda i: (i, 0, 0))),
        scratch_shapes=[pltpu.VMEM((tb * rin, ncol), jnp.float32)],
        compiler_params=_mosaic_params(),
    )(xin, wcat, bmap)


def _l4_call(x4cat, w4, bm4):
    b = x4cat.shape[0]
    tb = _pick_tb(b)
    nt = b // tb
    return pl.pallas_call(
        _l4_kernel,
        out_shape=jax.ShapeDtypeStruct((b, 224, 4), jnp.float32),
        grid=(nt,),
        in_specs=[pl.BlockSpec((tb, 224, 64), lambda i: (i, 0, 0)),
                  pl.BlockSpec((64, 4), lambda i: (0, 0)),
                  pl.BlockSpec((224, 4), lambda i: (0, 0))],
        out_specs=pl.BlockSpec((tb, 224, 4), lambda i: (i, 0, 0)),
        compiler_params=_mosaic_params(),
    )(x4cat, w4, bm4)


# ---------------------------------------------------------------------------
# Plain-JAX glue: weight/bias-map prep and BatchNorm finalization (tiny tensors)
# ---------------------------------------------------------------------------
def _build_l1_input(x):
    # x: [B, 7, 7, 256] f32 -> [B, 64, 1024] bf16 with the 4 polyphase taps
    # (x[i,j], x[i,j+1], x[i+1,j], x[i+1,j+1]) packed along channels.
    b = x.shape[0]
    xp = jnp.pad(x, ((0, 0), (0, 2), (0, 2), (0, 0)))          # [B, 9, 9, 256]
    parts = [xp[:, 0:8, 0:8], xp[:, 0:8, 1:9], xp[:, 1:9, 0:8], xp[:, 1:9, 1:9]]
    return jnp.concatenate(parts, axis=-1).reshape(b, 64, 1024).astype(BF16)


def _prep_w1(w):
    # w: [256, 128, 3, 3] ConvTranspose2d weight -> two packed MXU matrices.
    wt = lambda kh, kw: w[:, :, kh, kw]                         # [256, 128]
    z = jnp.zeros_like(wt(0, 0))
    wl = jnp.concatenate([jnp.concatenate([wt(1, 1), wt(1, 2)], axis=1),
                          jnp.concatenate([z,        wt(1, 0)], axis=1)], axis=0)
    wr = jnp.concatenate([jnp.concatenate([wt(2, 1), wt(2, 2)], axis=1),
                          jnp.concatenate([z,        wt(2, 0)], axis=1),
                          jnp.concatenate([wt(0, 1), wt(0, 2)], axis=1),
                          jnp.concatenate([z,        wt(0, 0)], axis=1)], axis=0)
    return wl, wr                                               # [512,256], [1024,256]


def _flip_taps(w):
    # [C_in, C_out, 3, 3] -> [9, C_in, C_out] spatially flipped (conv-style) taps.
    wf = w[:, :, ::-1, ::-1]
    return jnp.transpose(wf, (2, 3, 0, 1)).reshape(9, w.shape[0], w.shape[1])


def _tap_cat(wf9, scale):
    # [9, C_in, C_out] * per-C_in BN scale -> [C_in, 9*C_out] (tap-major in N).
    c_in, c_out = wf9.shape[1], wf9.shape[2]
    w = wf9 * scale[None, :, None]
    return jnp.transpose(w, (1, 0, 2)).reshape(c_in, 9 * c_out)


def _interior_mask_304():
    idx = jnp.arange(304)
    yy, xx = idx // 16, idx % 16
    return ((yy >= 2) & (yy <= 15) & (xx >= 2) & (xx <= 15)).astype(jnp.float32)


def _bias_map_s1(wf9, bias, t_prev, m_in, start0):
    # Exact spatial bias map: conv bias + the previous BatchNorm's additive
    # shift pushed through the conv (only where the input pixel is real data).
    c_out = wf9.shape[2]
    tap = jnp.einsum("kio,i->ko", wf9, t_prev)                  # [9, C_out]
    bm = jnp.broadcast_to(bias.astype(jnp.float32)[None, :], (224, c_out))
    for k in range(9):
        s = start0 + (k // 3) * 16 + (k % 3)
        bm = bm + m_in[s:s + 224, None] * tap[k][None, :]
    return bm


def _prep_w4(w4, s3):
    # [16, 1, 3, 3] -> [64, 4]: rows = 4 shifted input copies x 16 channels
    # (BN3 scale folded in), cols = the 4 output parity phases.
    wm = jnp.zeros((64, 4), jnp.float32)
    for ph, taps in enumerate(_PHASE_TAPS):
        for (kh, kw), (dy, dx) in taps:
            blk = 2 * dy + dx
            wm = wm.at[blk * 16:(blk + 1) * 16, ph].set(w4[:, 0, kh, kw] * s3)
    return wm


def _bias_map_l4(w4, b4, t3):
    idx = jnp.arange(256)
    m4 = (((idx // 16) < 14) & ((idx % 16) < 14)).astype(jnp.float32)
    bm = jnp.full((224, 4), b4[0], jnp.float32)
    for ph, taps in enumerate(_PHASE_TAPS):
        for (kh, kw), (dy, dx) in taps:
            sh = dy * 16 + dx
            bm = bm.at[:, ph].add(m4[sh:sh + 224] * jnp.dot(t3, w4[:, 0, kh, kw]))
    return bm


def _bn_finalize(sum_c, ssq_c, count, gamma, beta):
    # Training-mode BatchNorm2d statistics (biased variance), one-pass form.
    # TODO(synk): one-pass E[x^2]-mean^2 in f32; a Welford/two-pass reduction
    # would be safer if var << mean^2.
    mean = sum_c / count
    var = jnp.maximum(ssq_c / count - mean * mean, 0.0)
    s = gamma * jax.lax.rsqrt(var + EPS)
    t = beta - mean * s
    return s, t


# ---------------------------------------------------------------------------
# Decoder forward (mirrors the PyTorch module, batch-stat BatchNorm)
# ---------------------------------------------------------------------------
def decoder_forward(x, params):
    b = x.shape[0]
    x = x.reshape(b, 256, 7, 7)                           # x.view(batch, 256, 7, 7)
    x = jnp.transpose(x, (0, 2, 3, 1))                    # single NCHW -> NHWC
    count = float(b * 14 * 14)

    # layer1a: ConvT(256->128, s2, p1, op1) + ReLU   (BN1 folded downstream)
    x4 = _build_l1_input(x)
    wl, wr = _prep_w1(params["w1"])
    b1 = jnp.tile(params["b1"].astype(jnp.float32), 4)[None, :]        # [1, 512]
    h1p, m1, q1 = _l1_call(x4, wl.astype(BF16), wr.astype(BF16), b1)
    # Junk rows of the 8x8 phase grid are exactly ReLU(bias): remove their
    # 15-per-image contribution analytically, then fold the 4 phase blocks.
    rb = jnp.maximum(params["b1"].astype(jnp.float32), 0.0)
    rb = rb.astype(BF16).astype(jnp.float32)
    rb4 = jnp.tile(rb, 4)
    sum_p = jnp.sum(m1[:, 0, :], axis=0) - (b * 15.0) * rb4
    ssq_p = jnp.sum(q1[:, 0, :], axis=0) - (b * 15.0) * rb4 * rb4
    s1, t1 = _bn_finalize(sum_p.reshape(4, 128).sum(0), ssq_p.reshape(4, 128).sum(0),
                          count, params["g1"], params["be1"])
    # Interleave phases to 14x14 and embed into layer 2's padded layout.
    # TODO(synk): this interleave+embed is the one remaining XLA layout op
    # between layers (the phase->spatial scatter is awkward to store in-kernel).
    h1 = h1p.reshape(b, 8, 8, 2, 2, 128)[:, :7, :7]
    h1 = jnp.transpose(h1, (0, 1, 3, 2, 4, 5)).reshape(b, 14, 14, 128)
    xin2 = jnp.zeros((b, 19, 16, 128), BF16).at[:, 2:16, 2:16, :].set(h1)
    xin2 = xin2.reshape(b, 304, 128)

    m_in = _interior_mask_304()

    # layer1b: ConvT(128->64, s1, p1) + ReLU   (BN1 folded in, BN2 folded out)
    wf2 = _flip_taps(params["w2"])                                     # [9,128,64]
    w2 = _tap_cat(wf2, s1).astype(BF16)                                # [128, 576]
    bm2 = _bias_map_s1(wf2, params["b2"], t1, m_in, start0=15)
    h2, m2, q2 = _convs1_call(xin2, w2, bm2, out_rows=304, pre=32, post=48,
                              col_lo=2, col_hi=16, start0=15)
    s2, t2 = _bn_finalize(jnp.sum(m2[:, 0, :], 0), jnp.sum(q2[:, 0, :], 0),
                          count, params["g2"], params["be2"])

    # layer2a: ConvT(64->16, s1, p1) + ReLU   (BN2 folded in, BN3 folded out)
    wf3 = _flip_taps(params["w3"])                                     # [9,64,16]
    w3 = _tap_cat(wf3, s2).astype(BF16)                                # [64, 144]
    bm3 = _bias_map_s1(wf3, params["b3"], t2, m_in, start0=17)
    h3, m3, q3 = _convs1_call(h2, w3, bm3, out_rows=256, pre=0, post=32,
                              col_lo=0, col_hi=14, start0=17)
    s3, t3 = _bn_finalize(jnp.sum(m3[:, 0, :], 0), jnp.sum(q3[:, 0, :], 0),
                          count, params["g3"], params["be3"])

    # layer2b: ConvT(16->1, s2, p1, op1) + ReLU   (BN3 folded in, no BN after)
    x4cat = jnp.concatenate([h3[:, s:s + 224, :] for s in (0, 1, 16, 17)], axis=-1)
    w4 = _prep_w4(params["w4"], s3)                                    # [64, 4]
    bm4 = _bias_map_l4(params["w4"], params["b4"], t3)                 # [224, 4]
    y4 = _l4_call(x4cat, w4, bm4)                                      # [B, 224, 4]
    y = y4.reshape(b, 14, 16, 2, 2)[:, :, :14]
    y = jnp.transpose(y, (0, 1, 3, 2, 4)).reshape(b, 28, 28)
    return y[:, None, :, :]                                            # [B, 1, 28, 28]


# ---------------------------------------------------------------------------
# Deterministic synthetic parameter init (shapes from the module's __init__)
# ---------------------------------------------------------------------------
def init_params(key):
    ks = jax.random.split(key, 8)

    def conv_t(kw, kb, cin, cout):
        scale = 1.0 / jnp.sqrt(float(cin * 9))
        w = jax.random.uniform(kw, (cin, cout, 3, 3), jnp.float32, -scale, scale)
        bias = jax.random.uniform(kb, (cout,), jnp.float32, -scale, scale)
        return w, bias

    w1, b1 = conv_t(ks[0], ks[1], 256, 128)
    w2, b2 = conv_t(ks[2], ks[3], 128, 64)
    w3, b3 = conv_t(ks[4], ks[5], 64, 16)
    w4, b4 = conv_t(ks[6], ks[7], 16, 1)
    # BatchNorm2d default init: weight=1, bias=0 (deterministic).
    return {
        "w1": w1, "b1": b1, "g1": jnp.ones((128,)), "be1": jnp.zeros((128,)),
        "w2": w2, "b2": b2, "g2": jnp.ones((64,)),  "be2": jnp.zeros((64,)),
        "w3": w3, "b3": b3, "g3": jnp.ones((16,)),  "be3": jnp.zeros((16,)),
        "w4": w4, "b4": b4,
    }


if __name__ == "__main__":
    key = jax.random.PRNGKey(0)
    kx, kp = jax.random.split(key)

    BATCH = 2  # small demo batch (module hard-codes 100; batch tiling scales it)
    x = jax.random.normal(kx, (BATCH, 256, 7, 7), jnp.float32)
    params = init_params(kp)

    fwd = jax.jit(decoder_forward)
    y = fwd(x, params)
    jax.block_until_ready(y)

    assert y.shape == (BATCH, 1, 28, 28), y.shape
    assert bool(jnp.all(jnp.isfinite(y)))
    assert bool(jnp.all(y >= 0.0))  # final ReLU
    print("KERNEL_OK")
</pallas_src>

<mosaic_0001>
module attributes {stable_mosaic.version = 11 : i64} {
  func.func @_l1_kernel(%arg0: i32, %arg1: memref<1x64x1024xbf16, #tpu.memory_space<vmem>>, %arg2: memref<512x256xbf16, #tpu.memory_space<vmem>>, %arg3: memref<1024x256xbf16, #tpu.memory_space<vmem>>, %arg4: memref<1x512xf32, #tpu.memory_space<vmem>>, %arg5: memref<1x64x512xbf16, #tpu.memory_space<vmem>>, %arg6: memref<1x8x512xf32, #tpu.memory_space<vmem>>, %arg7: memref<1x8x512xf32, #tpu.memory_space<vmem>>) attributes {dimension_semantics = [#tpu.dimension_semantics<parallel>], iteration_bounds = array<i64: 2>, scalar_prefetch = 0 : i64, scratch_operands = 0 : i64, tpu.core_type = #tpu.core_type<tc>, window_params = [{transform_indices = @transform_0, window_bounds = array<i64: 1, 64, 1024>}, {pipeline_mode = #tpu.pipeline_mode<synchronous>, transform_indices = @transform_1, window_bounds = array<i64: 512, 256>}, {pipeline_mode = #tpu.pipeline_mode<synchronous>, transform_indices = @transform_2, window_bounds = array<i64: 1024, 256>}, {pipeline_mode = #tpu.pipeline_mode<synchronous>, transform_indices = @transform_3, window_bounds = array<i64: 1, 512>}, {transform_indices = @transform_4, window_bounds = array<i64: 1, 64, 512>}, {transform_indices = @transform_5, window_bounds = array<i64: 1, 8, 512>}, {transform_indices = @transform_6, window_bounds = array<i64: 1, 8, 512>}]} {
    %c0 = arith.constant 0 : index
    %c0_0 = arith.constant 0 : index
    %c0_1 = arith.constant 0 : index
    %0 = vector.load %arg1[%c0, %c0_0, %c0_1] : memref<1x64x1024xbf16, #tpu.memory_space<vmem>>, vector<1x64x1024xbf16>
    %1 = vector.shape_cast %0 : vector<1x64x1024xbf16> to vector<64x1024xbf16>
    %2 = vector.extract_strided_slice %1 {offsets = [0, 0], sizes = [64, 512], strides = [1, 1]} : vector<64x1024xbf16> to vector<64x512xbf16>
    %c0_2 = arith.constant 0 : index
    %c0_3 = arith.constant 0 : index
    %3 = vector.load %arg2[%c0_2, %c0_3] : memref<512x256xbf16, #tpu.memory_space<vmem>>, vector<512x256xbf16>
    %cst = arith.constant dense<0.000000e+00> : vector<64x256xf32>
    %4 = tpu.matmul %2, %3, %cst {dimension_numbers = #tpu.dot_dimension_numbers<[1], [0], [0], [1], [0, 0, 1, 1], [], []>} : vector<64x512xbf16>, vector<512x256xbf16>, vector<64x256xf32> -> vector<64x256xf32>
    %c0_4 = arith.constant 0 : index
    %c0_5 = arith.constant 0 : index
    %5 = vector.load %arg3[%c0_4, %c0_5] : memref<1024x256xbf16, #tpu.memory_space<vmem>>, vector<1024x256xbf16>
    %cst_6 = arith.constant dense<0.000000e+00> : vector<64x256xf32>
    %6 = tpu.matmul %1, %5, %cst_6 {dimension_numbers = #tpu.dot_dimension_numbers<[1], [0], [0], [1], [0, 0, 1, 1], [], []>} : vector<64x1024xbf16>, vector<1024x256xbf16>, vector<64x256xf32> -> vector<64x256xf32>
    %7 = tpu.concatenate %4, %6 in 1 : vector<64x256xf32>, vector<64x256xf32> -> vector<64x512xf32>
    %c0_7 = arith.constant 0 : index
    %c0_8 = arith.constant 0 : index
    %8 = vector.load %arg4[%c0_7, %c0_8] : memref<1x512xf32, #tpu.memory_space<vmem>>, vector<1x512xf32>
    %9 = vector.broadcast %8 : vector<1x512xf32> to vector<64x512xf32>
    %10 = arith.addf %7, %9 : vector<64x512xf32>
    %cst_9 = arith.constant 0.000000e+00 : f32
    %11 = vector.broadcast %cst_9 : f32 to vector<64x512xf32>
    %12 = arith.maximumf %10, %11 : vector<64x512xf32>
    %13 = arith.truncf %12 : vector<64x512xf32> to vector<64x512xbf16>
    %14 = vector.shape_cast %13 : vector<64x512xbf16> to vector<1x64x512xbf16>
    %c0_10 = arith.constant 0 : index
    %c0_11 = arith.constant 0 : index
    %c0_12 = arith.constant 0 : index
    %15 = vector.load %arg5[%c0_10, %c0_11, %c0_12] : memref<1x64x512xbf16, #tpu.memory_space<vmem>>, vector<1x64x512xbf16>
    tpu.vector_store %arg5[%c0_10, %c0_11, %c0_12], %14 {strides = array<i32>} : memref<1x64x512xbf16, #tpu.memory_space<vmem>>, vector<1x64x512xbf16>,
    %16 = arith.extf %13 : vector<64x512xbf16> to vector<64x512xf32>
    %cst_13 = arith.constant dense<0.000000e+00> : vector<512xf32>
    %17 = vector.multi_reduction <add>, %16, %cst_13 [0] : vector<64x512xf32> to vector<512xf32>
    %18 = vector.shape_cast %17 : vector<512xf32> to vector<1x512xf32>
    %19 = vector.shape_cast %18 : vector<1x512xf32> to vector<1x1x512xf32>
    %20 = vector.shape_cast %19 : vector<1x1x512xf32> to vector<1x1x512xf32>
    %21 = vector.broadcast %20 : vector<1x1x512xf32> to vector<1x8x512xf32>
    %c0_14 = arith.constant 0 : index
    %c0_15 = arith.constant 0 : index
    %c0_16 = arith.constant 0 : index
    %22 = vector.load %arg6[%c0_14, %c0_15, %c0_16] : memref<1x8x512xf32, #tpu.memory_space<vmem>>, vector<1x8x512xf32>
    tpu.vector_store %arg6[%c0_14, %c0_15, %c0_16], %21 {strides = array<i32>} : memref<1x8x512xf32, #tpu.memory_space<vmem>>, vector<1x8x512xf32>,
    %23 = arith.mulf %16, %16 : vector<64x512xf32>
    %cst_17 = arith.constant dense<0.000000e+00> : vector<512xf32>
    %24 = vector.multi_reduction <add>, %23, %cst_17 [0] : vector<64x512xf32> to vector<512xf32>
    %25 = vector.shape_cast %24 : vector<512xf32> to vector<1x512xf32>
    %26 = vector.shape_cast %25 : vector<1x512xf32> to vector<1x1x512xf32>
    %27 = vector.shape_cast %26 : vector<1x1x512xf32> to vector<1x1x512xf32>
    %28 = vector.broadcast %27 : vector<1x1x512xf32> to vector<1x8x512xf32>
    %c0_18 = arith.constant 0 : index
    %c0_19 = arith.constant 0 : index
    %c0_20 = arith.constant 0 : index
    %29 = vector.load %arg7[%c0_18, %c0_19, %c0_20] : memref<1x8x512xf32, #tpu.memory_space<vmem>>, vector<1x8x512xf32>
    tpu.vector_store %arg7[%c0_18, %c0_19, %c0_20], %28 {strides = array<i32>} : memref<1x8x512xf32, #tpu.memory_space<vmem>>, vector<1x8x512xf32>,
    return
  }
  func.func @transform_0(%arg0: i32) -> (i32, i32, i32) {
    %c0_i32 = arith.constant 0 : i32
    %c0_i32_0 = arith.constant 0 : i32
    %c0_i32_1 = arith.constant 0 : i32
    return %arg0, %c0_i32, %c0_i32_0 : i32, i32, i32
  }
  func.func @transform_1(%arg0: i32) -> (i32, i32) {
    %c0_i32 = arith.constant 0 : i32
    %c0_i32_0 = arith.constant 0 : i32
    %c0_i32_1 = arith.constant 0 : i32
    return %c0_i32, %c0_i32_0 : i32, i32
  }
  func.func @transform_2(%arg0: i32) -> (i32, i32) {
    %c0_i32 = arith.constant 0 : i32
    %c0_i32_0 = arith.constant 0 : i32
    %c0_i32_1 = arith.constant 0 : i32
    return %c0_i32, %c0_i32_0 : i32, i32
  }
  func.func @transform_3(%arg0: i32) -> (i32, i32) {
    %c0_i32 = arith.constant 0 : i32
    %c0_i32_0 = arith.constant 0 : i32
    %c0_i32_1 = arith.constant 0 : i32
    return %c0_i32, %c0_i32_0 : i32, i32
  }
  func.func @transform_4(%arg0: i32) -> (i32, i32, i32) {
    %c0_i32 = arith.constant 0 : i32
    %c0_i32_0 = arith.constant 0 : i32
    %c0_i32_1 = arith.constant 0 : i32
    return %arg0, %c0_i32, %c0_i32_0 : i32, i32, i32
  }
  func.func @transform_5(%arg0: i32) -> (i32, i32, i32) {
    %c0_i32 = arith.constant 0 : i32
    %c0_i32_0 = arith.constant 0 : i32
    %c0_i32_1 = arith.constant 0 : i32
    return %arg0, %c0_i32, %c0_i32_0 : i32, i32, i32
  }
  func.func @transform_6(%arg0: i32) -> (i32, i32, i32) {
    %c0_i32 = arith.constant 0 : i32
    %c0_i32_0 = arith.constant 0 : i32
    %c0_i32_1 = arith.constant 0 : i32
    return %arg0, %c0_i32, %c0_i32_0 : i32, i32, i32
  }
}

module attributes {stable_mosaic.version = 11 : i64} {
  func.func @_convs1_kernel(%arg0: i32, %arg1: memref<1x304x128xbf16, #tpu.memory_space<vmem>>, %arg2: memref<128x576xbf16, #tpu.memory_space<vmem>>, %arg3: memref<224x64xf32, #tpu.memory_space<vmem>>, %arg4: memref<1x304x64xbf16, #tpu.memory_space<vmem>>, %arg5: memref<1x8x64xf32, #tpu.memory_space<vmem>>, %arg6: memref<1x8x64xf32, #tpu.memory_space<vmem>>, %arg7: memref<304x576xf32, #tpu.memory_space<vmem>>) attributes {dimension_semantics = [#tpu.dimension_semantics<parallel>], iteration_bounds = array<i64: 2>, scalar_prefetch = 0 : i64, scratch_operands = 1 : i64, tpu.core_type = #tpu.core_type<tc>, window_params = [{transform_indices = @transform_0, window_bounds = array<i64: 1, 304, 128>}, {pipeline_mode = #tpu.pipeline_mode<synchronous>, transform_indices = @transform_1, window_bounds = array<i64: 128, 576>}, {pipeline_mode = #tpu.pipeline_mode<synchronous>, transform_indices = @transform_2, window_bounds = array<i64: 224, 64>}, {transform_indices = @transform_3, window_bounds = array<i64: 1, 304, 64>}, {transform_indices = @transform_4, window_bounds = array<i64: 1, 8, 64>}, {transform_indices = @transform_5, window_bounds = array<i64: 1, 8, 64>}]} {
    %c0 = arith.constant 0 : index
    %c0_0 = arith.constant 0 : index
    %c0_1 = arith.constant 0 : index
    %0 = vector.load %arg1[%c0, %c0_0, %c0_1] : memref<1x304x128xbf16, #tpu.memory_space<vmem>>, vector<1x304x128xbf16>
    %1 = vector.shape_cast %0 : vector<1x304x128xbf16> to vector<304x128xbf16>
    %c0_2 = arith.constant 0 : index
    %c0_3 = arith.constant 0 : index
    %2 = vector.load %arg2[%c0_2, %c0_3] : memref<128x576xbf16, #tpu.memory_space<vmem>>, vector<128x576xbf16>
    %cst = arith.constant dense<0.000000e+00> : vector<304x576xf32>
    %3 = tpu.matmul %1, %2, %cst {dimension_numbers = #tpu.dot_dimension_numbers<[1], [0], [0], [1], [0, 0, 1, 1], [], []>} : vector<304x128xbf16>, vector<128x576xbf16>, vector<304x576xf32> -> vector<304x576xf32>
    %c0_4 = arith.constant 0 : index
    %c0_5 = arith.constant 0 : index
    %4 = vector.load %arg7[%c0_4, %c0_5] : memref<304x576xf32, #tpu.memory_space<vmem>>, vector<304x576xf32>
    tpu.vector_store %arg7[%c0_4, %c0_5], %3 {strides = array<i32>} : memref<304x576xf32, #tpu.memory_space<vmem>>, vector<304x576xf32>,
    %c0_6 = arith.constant 0 : index
    %c0_7 = arith.constant 0 : index
    %5 = vector.load %arg3[%c0_6, %c0_7] : memref<224x64xf32, #tpu.memory_space<vmem>>, vector<224x64xf32>
    %6 = tpu.iota {dimensions = array<i32: 0>} : vector<224x1xi32>
    %c16_i32 = arith.constant 16 : i32
    %c0_i32 = arith.constant 0 : i32
    %7 = arith.cmpi eq, %c16_i32, %c0_i32 : i32
    %c1_i32 = arith.constant 1 : i32
    %8 = arith.select %7, %c1_i32, %c16_i32 : i32
    %9 = vector.broadcast %8 : i32 to vector<224x1xi32>
    %10 = arith.remsi %6, %9 : vector<224x1xi32>
    %c0_i32_8 = arith.constant 0 : i32
    %11 = vector.broadcast %c0_i32_8 : i32 to vector<224x1xi32>
    %12 = arith.cmpi ne, %10, %11 : vector<224x1xi32>
    %c0_i32_9 = arith.constant 0 : i32
    %13 = vector.broadcast %c0_i32_9 : i32 to vector<224x1xi32>
    %14 = arith.cmpi slt, %10, %13 : vector<224x1xi32>
    %c0_i32_10 = arith.constant 0 : i32
    %15 = arith.cmpi slt, %8, %c0_i32_10 : i32
    %16 = vector.broadcast %15 : i1 to vector<224x1xi1>
    %17 = vector.broadcast %16 : vector<224x1xi1> to vector<224x1xi1>
    %18 = arith.xori %14, %17 : vector<224x1xi1>
    %19 = arith.andi %18, %12 : vector<224x1xi1>
    %20 = vector.broadcast %8 : i32 to vector<224x1xi32>
    %21 = arith.addi %10, %20 : vector<224x1xi32>
    %22 = arith.select %19, %21, %10 : vector<224x1xi1>, vector<224x1xi32>
    %c2_i32 = arith.constant 2 : i32
    %23 = vector.broadcast %c2_i32 : i32 to vector<224x1xi32>
    %24 = arith.cmpi sge, %22, %23 : vector<224x1xi32>
    %c16_i32_11 = arith.constant 16 : i32
    %25 = vector.broadcast %c16_i32_11 : i32 to vector<224x1xi32>
    %26 = arith.cmpi slt, %22, %25 : vector<224x1xi32>
    %27 = arith.andi %24, %26 : vector<224x1xi1>
    %28 = arith.extui %27 : vector<224x1xi1> to vector<224x1xi32>
    %29 = arith.sitofp %28 : vector<224x1xi32> to vector<224x1xf32>
    %cst_12 = arith.constant 0.000000e+00 : bf16
    %30 = vector.broadcast %cst_12 : bf16 to vector<32x64xbf16>
    %cst_13 = arith.constant 0.000000e+00 : bf16
    %31 = vector.broadcast %cst_13 : bf16 to vector<48x64xbf16>
    %cst_14 = arith.constant 0.000000e+00 : f32
    %32 = vector.broadcast %cst_14 : f32 to vector<1x64xf32>
    %cst_15 = arith.constant 0.000000e+00 : f32
    %33 = vector.broadcast %cst_15 : f32 to vector<1x64xf32>
    %c15 = arith.constant 15 : index
    %c0_16 = arith.constant 0 : index
    %34 = vector.load %arg7[%c15, %c0_16] : memref<304x576xf32, #tpu.memory_space<vmem>>, vector<224x64xf32>
    %35 = arith.addf %5, %34 : vector<224x64xf32>
    %c16 = arith.constant 16 : index
    %c64 = arith.constant 64 : index
    %36 = vector.load %arg7[%c16, %c64] : memref<304x576xf32, #tpu.memory_space<vmem>>, vector<224x64xf32>
    %37 = arith.addf %35, %36 : vector<224x64xf32>
    %c17 = arith.constant 17 : index
    %c128 = arith.constant 128 : index
    %38 = vector.load %arg7[%c17, %c128] : memref<304x576xf32, #tpu.memory_space<vmem>>, vector<224x64xf32>
    %39 = arith.addf %37, %38 : vector<224x64xf32>
    %c31 = arith.constant 31 : index
    %c192 = arith.constant 192 : index
    %40 = vector.load %arg7[%c31, %c192] : memref<304x576xf32, #tpu.memory_space<vmem>>, vector<224x64xf32>
    %41 = arith.addf %39, %40 : vector<224x64xf32>
    %c32 = arith.constant 32 : index
    %c256 = arith.constant 256 : index
    %42 = vector.load %arg7[%c32, %c256] : memref<304x576xf32, #tpu.memory_space<vmem>>, vector<224x64xf32>
    %43 = arith.addf %41, %42 : vector<224x64xf32>
    %c33 = arith.constant 33 : index
    %c320 = arith.constant 320 : index
    %44 = vector.load %arg7[%c33, %c320] : memref<304x576xf32, #tpu.memory_space<vmem>>, vector<224x64xf32>
    %45 = arith.addf %43, %44 : vector<224x64xf32>
    %c47 = arith.constant 47 : index
    %c384 = arith.constant 384 : index
    %46 = vector.load %arg7[%c47, %c384] : memref<304x576xf32, #tpu.memory_space<vmem>>, vector<224x64xf32>
    %47 = arith.addf %45, %46 : vector<224x64xf32>
    %c48 = arith.constant 48 : index
    %c448 = arith.constant 448 : index
    %48 = vector.load %arg7[%c48, %c448] : memref<304x576xf32, #tpu.memory_space<vmem>>, vector<224x64xf32>
    %49 = arith.addf %47, %48 : vector<224x64xf32>
    %c49 = arith.constant 49 : index
    %c512 = arith.constant 512 : index
    %50 = vector.load %arg7[%c49, %c512] : memref<304x576xf32, #tpu.memory_space<vmem>>, vector<224x64xf32>
    %51 = arith.addf %49, %50 : vector<224x64xf32>
    %cst_17 = arith.constant 0.000000e+00 : f32
    %52 = vector.broadcast %cst_17 : f32 to vector<224x64xf32>
    %53 = arith.maximumf %51, %52 : vector<224x64xf32>
    %54 = vector.broadcast %29 : vector<224x1xf32> to vector<224x64xf32>
    %55 = arith.mulf %53, %54 : vector<224x64xf32>
    %56 = arith.truncf %55 : vector<224x64xf32> to vector<224x64xbf16>
    %c0_18 = arith.constant 0 : index
    %c0_19 = arith.constant 0 : index
    %c0_20 = arith.constant 0 : index
    %57 = vector.load %arg4[%c0_18, %c0_19, %c0_20] : memref<1x304x64xbf16, #tpu.memory_space<vmem>>, vector<1x32x64xbf16>
    %58 = vector.shape_cast %57 : vector<1x32x64xbf16> to vector<32x64xbf16>
    %59 = vector.shape_cast %30 : vector<32x64xbf16> to vector<1x32x64xbf16>
    tpu.vector_store %arg4[%c0_18, %c0_19, %c0_20], %59 {strides = array<i32>} : memref<1x304x64xbf16, #tpu.memory_space<vmem>>, vector<1x32x64xbf16>,
    %c0_21 = arith.constant 0 : index
    %c32_22 = arith.constant 32 : index
    %c0_23 = arith.constant 0 : index
    %60 = vector.load %arg4[%c0_21, %c32_22, %c0_23] : memref<1x304x64xbf16, #tpu.memory_space<vmem>>, vector<1x224x64xbf16>
    %61 = vector.shape_cast %60 : vector<1x224x64xbf16> to vector<224x64xbf16>
    %62 = vector.shape_cast %56 : vector<224x64xbf16> to vector<1x224x64xbf16>
    tpu.vector_store %arg4[%c0_21, %c32_22, %c0_23], %62 {strides = array<i32>} : memref<1x304x64xbf16, #tpu.memory_space<vmem>>, vector<1x224x64xbf16>,
    %c0_24 = arith.constant 0 : index
    %c256_25 = arith.constant 256 : index
    %c0_26 = arith.constant 0 : index
    %63 = vector.load %arg4[%c0_24, %c256_25, %c0_26] : memref<1x304x64xbf16, #tpu.memory_space<vmem>>, vector<1x48x64xbf16>
    %64 = vector.shape_cast %63 : vector<1x48x64xbf16> to vector<48x64xbf16>
    %65 = vector.shape_cast %31 : vector<48x64xbf16> to vector<1x48x64xbf16>
    tpu.vector_store %arg4[%c0_24, %c256_25, %c0_26], %65 {strides = array<i32>} : memref<1x304x64xbf16, #tpu.memory_space<vmem>>, vector<1x48x64xbf16>,
    %66 = arith.extf %56 : vector<224x64xbf16> to vector<224x64xf32>
    %cst_27 = arith.constant dense<0.000000e+00> : vector<64xf32>
    %67 = vector.multi_reduction <add>, %66, %cst_27 [0] : vector<224x64xf32> to vector<64xf32>
    %68 = vector.shape_cast %67 : vector<64xf32> to vector<1x64xf32>
    %69 = arith.addf %32, %68 : vector<1x64xf32>
    %70 = arith.mulf %66, %66 : vector<224x64xf32>
    %cst_28 = arith.constant dense<0.000000e+00> : vector<64xf32>
    %71 = vector.multi_reduction <add>, %70, %cst_28 [0] : vector<224x64xf32> to vector<64xf32>
    %72 = vector.shape_cast %71 : vector<64xf32> to vector<1x64xf32>
    %73 = arith.addf %33, %72 : vector<1x64xf32>
    %74 = vector.shape_cast %69 : vector<1x64xf32> to vector<1x1x64xf32>
    %75 = vector.shape_cast %74 : vector<1x1x64xf32> to vector<1x1x64xf32>
    %76 = vector.broadcast %75 : vector<1x1x64xf32> to vector<1x8x64xf32>
    %c0_29 = arith.constant 0 : index
    %c0_30 = arith.constant 0 : index
    %c0_31 = arith.constant 0 : index
    %77 = vector.load %arg5[%c0_29, %c0_30, %c0_31] : memref<1x8x64xf32, #tpu.memory_space<vmem>>, vector<1x8x64xf32>
    tpu.vector_store %arg5[%c0_29, %c0_30, %c0_31], %76 {strides = array<i32>} : memref<1x8x64xf32, #tpu.memory_space<vmem>>, vector<1x8x64xf32>,
    %78 = vector.shape_cast %73 : vector<1x64xf32> to vector<1x1x64xf32>
    %79 = vector.shape_cast %78 : vector<1x1x64xf32> to vector<1x1x64xf32>
    %80 = vector.broadcast %79 : vector<1x1x64xf32> to vector<1x8x64xf32>
    %c0_32 = arith.constant 0 : index
    %c0_33 = arith.constant 0 : index
    %c0_34 = arith.constant 0 : index
    %81 = vector.load %arg6[%c0_32, %c0_33, %c0_34] : memref<1x8x64xf32, #tpu.memory_space<vmem>>, vector<1x8x64xf32>
    tpu.vector_store %arg6[%c0_32, %c0_33, %c0_34], %80 {strides = array<i32>} : memref<1x8x64xf32, #tpu.memory_space<vmem>>, vector<1x8x64xf32>,
    return
  }
  func.func @transform_0(%arg0: i32) -> (i32, i32, i32) {
    %c0_i32 = arith.constant 0 : i32
    %c0_i32_0 = arith.constant 0 : i32
    %c0_i32_1 = arith.constant 0 : i32
    return %arg0, %c0_i32, %c0_i32_0 : i32, i32, i32
  }
  func.func @transform_1(%arg0: i32) -> (i32, i32) {
    %c0_i32 = arith.constant 0 : i32
    %c0_i32_0 = arith.constant 0 : i32
    %c0_i32_1 = arith.constant 0 : i32
    return %c0_i32, %c0_i32_0 : i32, i32
  }
  func.func @transform_2(%arg0: i32) -> (i32, i32) {
    %c0_i32 = arith.constant 0 : i32
    %c0_i32_0 = arith.constant 0 : i32
    %c0_i32_1 = arith.constant 0 : i32
    return %c0_i32, %c0_i32_0 : i32, i32
  }
  func.func @transform_3(%arg0: i32) -> (i32, i32, i32) {
    %c0_i32 = arith.constant 0 : i32
    %c0_i32_0 = arith.constant 0 : i32
    %c0_i32_1 = arith.constant 0 : i32
    return %arg0, %c0_i32, %c0_i32_0 : i32, i32, i32
  }
  func.func @transform_4(%arg0: i32) -> (i32, i32, i32) {
    %c0_i32 = arith.constant 0 : i32
    %c0_i32_0 = arith.constant 0 : i32
    %c0_i32_1 = arith.constant 0 : i32
    return %arg0, %c0_i32, %c0_i32_0 : i32, i32, i32
  }
  func.func @transform_5(%arg0: i32) -> (i32, i32, i32) {
    %c0_i32 = arith.constant 0 : i32
    %c0_i32_0 = arith.constant 0 : i32
    %c0_i32_1 = arith.constant 0 : i32
    return %arg0, %c0_i32, %c0_i32_0 : i32, i32, i32
  }
}

module attributes {stable_mosaic.version = 11 : i64} {
  func.func @_convs1_kernel(%arg0: i32, %arg1: memref<1x304x64xbf16, #tpu.memory_space<vmem>>, %arg2: memref<64x144xbf16, #tpu.memory_space<vmem>>, %arg3: memref<224x16xf32, #tpu.memory_space<vmem>>, %arg4: memref<1x256x16xbf16, #tpu.memory_space<vmem>>, %arg5: memref<1x8x16xf32, #tpu.memory_space<vmem>>, %arg6: memref<1x8x16xf32, #tpu.memory_space<vmem>>, %arg7: memref<304x144xf32, #tpu.memory_space<vmem>>) attributes {dimension_semantics = [#tpu.dimension_semantics<parallel>], iteration_bounds = array<i64: 2>, scalar_prefetch = 0 : i64, scratch_operands = 1 : i64, tpu.core_type = #tpu.core_type<tc>, window_params = [{transform_indices = @transform_0, window_bounds = array<i64: 1, 304, 64>}, {pipeline_mode = #tpu.pipeline_mode<synchronous>, transform_indices = @transform_1, window_bounds = array<i64: 64, 144>}, {pipeline_mode = #tpu.pipeline_mode<synchronous>, transform_indices = @transform_2, window_bounds = array<i64: 224, 16>}, {transform_indices = @transform_3, window_bounds = array<i64: 1, 256, 16>}, {transform_indices = @transform_4, window_bounds = array<i64: 1, 8, 16>}, {transform_indices = @transform_5, window_bounds = array<i64: 1, 8, 16>}]} {
    %c0 = arith.constant 0 : index
    %c0_0 = arith.constant 0 : index
    %c0_1 = arith.constant 0 : index
    %0 = vector.load %arg1[%c0, %c0_0, %c0_1] : memref<1x304x64xbf16, #tpu.memory_space<vmem>>, vector<1x304x64xbf16>
    %1 = vector.shape_cast %0 : vector<1x304x64xbf16> to vector<304x64xbf16>
    %c0_2 = arith.constant 0 : index
    %c0_3 = arith.constant 0 : index
    %2 = vector.load %arg2[%c0_2, %c0_3] : memref<64x144xbf16, #tpu.memory_space<vmem>>, vector<64x144xbf16>
    %cst = arith.constant dense<0.000000e+00> : vector<304x144xf32>
    %3 = tpu.matmul %1, %2, %cst {dimension_numbers = #tpu.dot_dimension_numbers<[1], [0], [0], [1], [0, 0, 1, 1], [], []>} : vector<304x64xbf16>, vector<64x144xbf16>, vector<304x144xf32> -> vector<304x144xf32>
    %c0_4 = arith.constant 0 : index
    %c0_5 = arith.constant 0 : index
    %4 = vector.load %arg7[%c0_4, %c0_5] : memref<304x144xf32, #tpu.memory_space<vmem>>, vector<304x144xf32>
    tpu.vector_store %arg7[%c0_4, %c0_5], %3 {strides = array<i32>} : memref<304x144xf32, #tpu.memory_space<vmem>>, vector<304x144xf32>,
    %c0_6 = arith.constant 0 : index
    %c0_7 = arith.constant 0 : index
    %5 = vector.load %arg3[%c0_6, %c0_7] : memref<224x16xf32, #tpu.memory_space<vmem>>, vector<224x16xf32>
    %6 = tpu.iota {dimensions = array<i32: 0>} : vector<224x1xi32>
    %c16_i32 = arith.constant 16 : i32
    %c0_i32 = arith.constant 0 : i32
    %7 = arith.cmpi eq, %c16_i32, %c0_i32 : i32
    %c1_i32 = arith.constant 1 : i32
    %8 = arith.select %7, %c1_i32, %c16_i32 : i32
    %9 = vector.broadcast %8 : i32 to vector<224x1xi32>
    %10 = arith.remsi %6, %9 : vector<224x1xi32>
    %c0_i32_8 = arith.constant 0 : i32
    %11 = vector.broadcast %c0_i32_8 : i32 to vector<224x1xi32>
    %12 = arith.cmpi ne, %10, %11 : vector<224x1xi32>
    %c0_i32_9 = arith.constant 0 : i32
    %13 = vector.broadcast %c0_i32_9 : i32 to vector<224x1xi32>
    %14 = arith.cmpi slt, %10, %13 : vector<224x1xi32>
    %c0_i32_10 = arith.constant 0 : i32
    %15 = arith.cmpi slt, %8, %c0_i32_10 : i32
    %16 = vector.broadcast %15 : i1 to vector<224x1xi1>
    %17 = vector.broadcast %16 : vector<224x1xi1> to vector<224x1xi1>
    %18 = arith.xori %14, %17 : vector<224x1xi1>
    %19 = arith.andi %18, %12 : vector<224x1xi1>
    %20 = vector.broadcast %8 : i32 to vector<224x1xi32>
    %21 = arith.addi %10, %20 : vector<224x1xi32>
    %22 = arith.select %19, %21, %10 : vector<224x1xi1>, vector<224x1xi32>
    %c0_i32_11 = arith.constant 0 : i32
    %23 = vector.broadcast %c0_i32_11 : i32 to vector<224x1xi32>
    %24 = arith.cmpi sge, %22, %23 : vector<224x1xi32>
    %c14_i32 = arith.constant 14 : i32
    %25 = vector.broadcast %c14_i32 : i32 to vector<224x1xi32>
    %26 = arith.cmpi slt, %22, %25 : vector<224x1xi32>
    %27 = arith.andi %24, %26 : vector<224x1xi1>
    %28 = arith.extui %27 : vector<224x1xi1> to vector<224x1xi32>
    %29 = arith.sitofp %28 : vector<224x1xi32> to vector<224x1xf32>
    %cst_12 = arith.constant 0.000000e+00 : bf16
    %30 = vector.broadcast %cst_12 : bf16 to vector<32x16xbf16>
    %cst_13 = arith.constant 0.000000e+00 : f32
    %31 = vector.broadcast %cst_13 : f32 to vector<1x16xf32>
    %cst_14 = arith.constant 0.000000e+00 : f32
    %32 = vector.broadcast %cst_14 : f32 to vector<1x16xf32>
    %c17 = arith.constant 17 : index
    %c0_15 = arith.constant 0 : index
    %33 = vector.load %arg7[%c17, %c0_15] : memref<304x144xf32, #tpu.memory_space<vmem>>, vector<224x16xf32>
    %34 = arith.addf %5, %33 : vector<224x16xf32>
    %c18 = arith.constant 18 : index
    %c16 = arith.constant 16 : index
    %35 = vector.load %arg7[%c18, %c16] : memref<304x144xf32, #tpu.memory_space<vmem>>, vector<224x16xf32>
    %36 = arith.addf %34, %35 : vector<224x16xf32>
    %c19 = arith.constant 19 : index
    %c32 = arith.constant 32 : index
    %37 = vector.load %arg7[%c19, %c32] : memref<304x144xf32, #tpu.memory_space<vmem>>, vector<224x16xf32>
    %38 = arith.addf %36, %37 : vector<224x16xf32>
    %c33 = arith.constant 33 : index
    %c48 = arith.constant 48 : index
    %39 = vector.load %arg7[%c33, %c48] : memref<304x144xf32, #tpu.memory_space<vmem>>, vector<224x16xf32>
    %40 = arith.addf %38, %39 : vector<224x16xf32>
    %c34 = arith.constant 34 : index
    %c64 = arith.constant 64 : index
    %41 = vector.load %arg7[%c34, %c64] : memref<304x144xf32, #tpu.memory_space<vmem>>, vector<224x16xf32>
    %42 = arith.addf %40, %41 : vector<224x16xf32>
    %c35 = arith.constant 35 : index
    %c80 = arith.constant 80 : index
    %43 = vector.load %arg7[%c35, %c80] : memref<304x144xf32, #tpu.memory_space<vmem>>, vector<224x16xf32>
    %44 = arith.addf %42, %43 : vector<224x16xf32>
    %c49 = arith.constant 49 : index
    %c96 = arith.constant 96 : index
    %45 = vector.load %arg7[%c49, %c96] : memref<304x144xf32, #tpu.memory_space<vmem>>, vector<224x16xf32>
    %46 = arith.addf %44, %45 : vector<224x16xf32>
    %c50 = arith.constant 50 : index
    %c112 = arith.constant 112 : index
    %47 = vector.load %arg7[%c50, %c112] : memref<304x144xf32, #tpu.memory_space<vmem>>, vector<224x16xf32>
    %48 = arith.addf %46, %47 : vector<224x16xf32>
    %c51 = arith.constant 51 : index
    %c128 = arith.constant 128 : index
    %49 = vector.load %arg7[%c51, %c128] : memref<304x144xf32, #tpu.memory_space<vmem>>, vector<224x16xf32>
    %50 = arith.addf %48, %49 : vector<224x16xf32>
    %cst_16 = arith.constant 0.000000e+00 : f32
    %51 = vector.broadcast %cst_16 : f32 to vector<224x16xf32>
    %52 = arith.maximumf %50, %51 : vector<224x16xf32>
    %53 = vector.broadcast %29 : vector<224x1xf32> to vector<224x16xf32>
    %54 = arith.mulf %52, %53 : vector<224x16xf32>
    %55 = arith.truncf %54 : vector<224x16xf32> to vector<224x16xbf16>
    %c0_17 = arith.constant 0 : index
    %c0_18 = arith.constant 0 : index
    %c0_19 = arith.constant 0 : index
    %56 = vector.load %arg4[%c0_17, %c0_18, %c0_19] : memref<1x256x16xbf16, #tpu.memory_space<vmem>>, vector<1x224x16xbf16>
    %57 = vector.shape_cast %56 : vector<1x224x16xbf16> to vector<224x16xbf16>
    %58 = vector.shape_cast %55 : vector<224x16xbf16> to vector<1x224x16xbf16>
    tpu.vector_store %arg4[%c0_17, %c0_18, %c0_19], %58 {strides = array<i32>} : memref<1x256x16xbf16, #tpu.memory_space<vmem>>, vector<1x224x16xbf16>,
    %c0_20 = arith.constant 0 : index
    %c224 = arith.constant 224 : index
    %c0_21 = arith.constant 0 : index
    %59 = vector.load %arg4[%c0_20, %c224, %c0_21] : memref<1x256x16xbf16, #tpu.memory_space<vmem>>, vector<1x32x16xbf16>
    %60 = vector.shape_cast %59 : vector<1x32x16xbf16> to vector<32x16xbf16>
    %61 = vector.shape_cast %30 : vector<32x16xbf16> to vector<1x32x16xbf16>
    tpu.vector_store %arg4[%c0_20, %c224, %c0_21], %61 {strides = array<i32>} : memref<1x256x16xbf16, #tpu.memory_space<vmem>>, vector<1x32x16xbf16>,
    %62 = arith.extf %55 : vector<224x16xbf16> to vector<224x16xf32>
    %cst_22 = arith.constant dense<0.000000e+00> : vector<16xf32>
    %63 = vector.multi_reduction <add>, %62, %cst_22 [0] : vector<224x16xf32> to vector<16xf32>
    %64 = vector.shape_cast %63 : vector<16xf32> to vector<1x16xf32>
    %65 = arith.addf %31, %64 : vector<1x16xf32>
    %66 = arith.mulf %62, %62 : vector<224x16xf32>
    %cst_23 = arith.constant dense<0.000000e+00> : vector<16xf32>
    %67 = vector.multi_reduction <add>, %66, %cst_23 [0] : vector<224x16xf32> to vector<16xf32>
    %68 = vector.shape_cast %67 : vector<16xf32> to vector<1x16xf32>
    %69 = arith.addf %32, %68 : vector<1x16xf32>
    %70 = vector.shape_cast %65 : vector<1x16xf32> to vector<1x1x16xf32>
    %71 = vector.shape_cast %70 : vector<1x1x16xf32> to vector<1x1x16xf32>
    %72 = vector.broadcast %71 : vector<1x1x16xf32> to vector<1x8x16xf32>
    %c0_24 = arith.constant 0 : index
    %c0_25 = arith.constant 0 : index
    %c0_26 = arith.constant 0 : index
    %73 = vector.load %arg5[%c0_24, %c0_25, %c0_26] : memref<1x8x16xf32, #tpu.memory_space<vmem>>, vector<1x8x16xf32>
    tpu.vector_store %arg5[%c0_24, %c0_25, %c0_26], %72 {strides = array<i32>} : memref<1x8x16xf32, #tpu.memory_space<vmem>>, vector<1x8x16xf32>,
    %74 = vector.shape_cast %69 : vector<1x16xf32> to vector<1x1x16xf32>
    %75 = vector.shape_cast %74 : vector<1x1x16xf32> to vector<1x1x16xf32>
    %76 = vector.broadcast %75 : vector<1x1x16xf32> to vector<1x8x16xf32>
    %c0_27 = arith.constant 0 : index
    %c0_28 = arith.constant 0 : index
    %c0_29 = arith.constant 0 : index
    %77 = vector.load %arg6[%c0_27, %c0_28, %c0_29] : memref<1x8x16xf32, #tpu.memory_space<vmem>>, vector<1x8x16xf32>
    tpu.vector_store %arg6[%c0_27, %c0_28, %c0_29], %76 {strides = array<i32>} : memref<1x8x16xf32, #tpu.memory_space<vmem>>, vector<1x8x16xf32>,
    return
  }
  func.func @transform_0(%arg0: i32) -> (i32, i32, i32) {
    %c0_i32 = arith.constant 0 : i32
    %c0_i32_0 = arith.constant 0 : i32
    %c0_i32_1 = arith.constant 0 : i32
    return %arg0, %c0_i32, %c0_i32_0 : i32, i32, i32
  }
  func.func @transform_1(%arg0: i32) -> (i32, i32) {
    %c0_i32 = arith.constant 0 : i32
    %c0_i32_0 = arith.constant 0 : i32
    %c0_i32_1 = arith.constant 0 : i32
    return %c0_i32, %c0_i32_0 : i32, i32
  }
  func.func @transform_2(%arg0: i32) -> (i32, i32) {
    %c0_i32 = arith.constant 0 : i32
    %c0_i32_0 = arith.constant 0 : i32
    %c0_i32_1 = arith.constant 0 : i32
    return %c0_i32, %c0_i32_0 : i32, i32
  }
  func.func @transform_3(%arg0: i32) -> (i32, i32, i32) {
    %c0_i32 = arith.constant 0 : i32
    %c0_i32_0 = arith.constant 0 : i32
    %c0_i32_1 = arith.constant 0 : i32
    return %arg0, %c0_i32, %c0_i32_0 : i32, i32, i32
  }
  func.func @transform_4(%arg0: i32) -> (i32, i32, i32) {
    %c0_i32 = arith.constant 0 : i32
    %c0_i32_0 = arith.constant 0 : i32
    %c0_i32_1 = arith.constant 0 : i32
    return %arg0, %c0_i32, %c0_i32_0 : i32, i32, i32
  }
  func.func @transform_5(%arg0: i32) -> (i32, i32, i32) {
    %c0_i32 = arith.constant 0 : i32
    %c0_i32_0 = arith.constant 0 : i32
    %c0_i32_1 = arith.constant 0 : i32
    return %arg0, %c0_i32, %c0_i32_0 : i32, i32, i32
  }
}

module attributes {stable_mosaic.version = 11 : i64} {
  func.func @_l4_kernel(%arg0: i32, %arg1: memref<1x224x64xbf16, #tpu.memory_space<vmem>>, %arg2: memref<64x4xf32, #tpu.memory_space<vmem>>, %arg3: memref<224x4xf32, #tpu.memory_space<vmem>>, %arg4: memref<1x224x4xf32, #tpu.memory_space<vmem>>) attributes {dimension_semantics = [#tpu.dimension_semantics<parallel>], iteration_bounds = array<i64: 2>, scalar_prefetch = 0 : i64, scratch_operands = 0 : i64, tpu.core_type = #tpu.core_type<tc>, window_params = [{transform_indices = @transform_0, window_bounds = array<i64: 1, 224, 64>}, {pipeline_mode = #tpu.pipeline_mode<synchronous>, transform_indices = @transform_1, window_bounds = array<i64: 64, 4>}, {pipeline_mode = #tpu.pipeline_mode<synchronous>, transform_indices = @transform_2, window_bounds = array<i64: 224, 4>}, {transform_indices = @transform_3, window_bounds = array<i64: 1, 224, 4>}]} {
    %c0 = arith.constant 0 : index
    %c0_0 = arith.constant 0 : index
    %c0_1 = arith.constant 0 : index
    %0 = vector.load %arg1[%c0, %c0_0, %c0_1] : memref<1x224x64xbf16, #tpu.memory_space<vmem>>, vector<1x224x64xbf16>
    %1 = arith.extf %0 : vector<1x224x64xbf16> to vector<1x224x64xf32>
    %2 = vector.shape_cast %1 : vector<1x224x64xf32> to vector<224x64xf32>
    %c0_2 = arith.constant 0 : index
    %c0_3 = arith.constant 0 : index
    %3 = vector.load %arg2[%c0_2, %c0_3] : memref<64x4xf32, #tpu.memory_space<vmem>>, vector<64x4xf32>
    %cst = arith.constant dense<0.000000e+00> : vector<224x4xf32>
    %4 = tpu.matmul %2, %3, %cst {dimension_numbers = #tpu.dot_dimension_numbers<[1], [0], [0], [1], [0, 0, 1, 1], [], []>} : vector<224x64xf32>, vector<64x4xf32>, vector<224x4xf32> -> vector<224x4xf32>
    %5 = vector.shape_cast %4 : vector<224x4xf32> to vector<1x224x4xf32>
    %c0_4 = arith.constant 0 : index
    %c0_5 = arith.constant 0 : index
    %6 = vector.load %arg3[%c0_4, %c0_5] : memref<224x4xf32, #tpu.memory_space<vmem>>, vector<224x4xf32>
    %7 = vector.shape_cast %6 : vector<224x4xf32> to vector<1x224x4xf32>
    %8 = arith.addf %5, %7 : vector<1x224x4xf32>
    %cst_6 = arith.constant 0.000000e+00 : f32
    %9 = vector.broadcast %cst_6 : f32 to vector<1x224x4xf32>
    %10 = arith.maximumf %8, %9 : vector<1x224x4xf32>
    %c0_7 = arith.constant 0 : index
    %c0_8 = arith.constant 0 : index
    %c0_9 = arith.constant 0 : index
    %11 = vector.load %arg4[%c0_7, %c0_8, %c0_9] : memref<1x224x4xf32, #tpu.memory_space<vmem>>, vector<1x224x4xf32>
    tpu.vector_store %arg4[%c0_7, %c0_8, %c0_9], %10 {strides = array<i32>} : memref<1x224x4xf32, #tpu.memory_space<vmem>>, vector<1x224x4xf32>,
    return
  }
  func.func @transform_0(%arg0: i32) -> (i32, i32, i32) {
    %c0_i32 = arith.constant 0 : i32
    %c0_i32_0 = arith.constant 0 : i32
    %c0_i32_1 = arith.constant 0 : i32
    return %arg0, %c0_i32, %c0_i32_0 : i32, i32, i32
  }
  func.func @transform_1(%arg0: i32) -> (i32, i32) {
    %c0_i32 = arith.constant 0 : i32
    %c0_i32_0 = arith.constant 0 : i32
    %c0_i32_1 = arith.constant 0 : i32
    return %c0_i32, %c0_i32_0 : i32, i32
  }
  func.func @transform_2(%arg0: i32) -> (i32, i32) {
    %c0_i32 = arith.constant 0 : i32
    %c0_i32_0 = arith.constant 0 : i32
    %c0_i32_1 = arith.constant 0 : i32
    return %c0_i32, %c0_i32_0 : i32, i32
  }
  func.func @transform_3(%arg0: i32) -> (i32, i32, i32) {
    %c0_i32 = arith.constant 0 : i32
    %c0_i32_0 = arith.constant 0 : i32
    %c0_i32_1 = arith.constant 0 : i32
    return %arg0, %c0_i32, %c0_i32_0 : i32, i32, i32
  }
}

</mosaic_0001>

<llo_original>
// kernel: tile.13
$region0: #{tile.13}
  #allocation0 [shape = 's32[1]{0}', space=sflag, size = 0x4, scoped, tag = 'scoped memory for tile.13']
  %s0 = inlined_call_operand.vmem [shape: f32[128], index: 0, kind: input, shape index: {}]
  %s1 = inlined_call_operand.vmem [shape: f32[4,128], index: 1, kind: output, shape index: {}]
  // Predicated region
  $region2: #{tile.13} parent=0 // pred_check
    _
  $region3: #{tile.13} parent=0 // pred_check_branch
    %3 = sbr.rel (0) target = $region5
  $region4: #{tile.13} parent=0 // pred_region
    _
  $region5: #{tile.13} parent=0 // pred_fallthru
    _
  %v4 = vld [vmem:[%s0] ss:$0 sm:$0xff]
  %5 = vst [vmem:[%s1] sm:$0xf] %v4

// kernel: decoder_forward.4
$region0: #{decoder_forward.4}
  #allocation0 [shape = 'u32[]', space=smem, size = 0x4, offset = 0x4, fixed_abs, tag = 'smem constant byte address 0x4 - core index']
  #allocation1 [shape = 'u32[72,128]{1,0:T(1,128)}', space=vmem, size = 0x9000, scoped, tag = 'internal scratch']
  %s0 = inlined_call_operand.vmem [shape: bf16[2,64,1024], index: 0, kind: input, shape index: {}]
  %s1 = inlined_call_operand.vmem [shape: bf16[512,256], index: 1, kind: input, shape index: {}]
  %s2 = inlined_call_operand.vmem [shape: bf16[1024,256], index: 2, kind: input, shape index: {}]
  %s3 = inlined_call_operand.vmem [shape: f32[1,512], index: 3, kind: input, shape index: {}]
  %s4 = inlined_call_operand.vmem [shape: bf16[2,64,512], index: 4, kind: output, shape index: {0}]
  %s5 = inlined_call_operand.vmem [shape: f32[2,8,512], index: 5, kind: output, shape index: {1}]
  %s6 = inlined_call_operand.vmem [shape: f32[2,8,512], index: 6, kind: output, shape index: {2}]
  %7 = xla_tuple %s4, %s5, %s6
  %s8 = sld [smem:[#allocation0]]
  $region65: #{decoder_forward.4} parent=0
    _
  %s10 = ssub.s32 1, %s8
  %s11 = scalar_select 0, %s10, %s8
  loop: start=0, step=1, limit=4
  $region2: #{decoder_forward.4} parent=0 // loop_pre_header
    _
  $region3: #{decoder_forward.4} parent=0 // loop_header
    %s13 = sphi 0, %s17
    %p14 = scmp.ge.s32.totalorder %s13, 4
    %s23 = sphi 0, %s25
    %s26 = sphi 0, %s23
    %s27 = sphi 0, %s26
    %s43 = sphi 0, %s27
    %s47 = sphi 0, %s47
    %s49 = sphi 0, %s47
    %s50 = sphi 0, %s49
    %s64 = sphi 0, %s50
    %s68 = sphi 0, %s68
    %s70 = sphi 0, %s68
    %s71 = sphi 0, %s70
    %s85 = sphi 0, %s71
    %s89 = sphi 0, %s89
    %s91 = sphi 0, %s89
    %s92 = sphi 0, %s91
    %s106 = sphi 0, %s92
    %s112 = sphi 0, %s114
    %s115 = sphi 0, %s112
    %s116 = sphi 0, %s115
    %s132 = sphi 0, %s116
    %s138 = sphi 0, %s140
    %s141 = sphi 0, %s138
    %s142 = sphi 0, %s141
    %s158 = sphi 0, %s142
    %s164 = sphi 0, %s166
    %s167 = sphi 0, %s164
    %s168 = sphi 0, %s167
    %s184 = sphi 0, %s168
  $region4: #{decoder_forward.4} parent=0 // loop_header_branch
    %16 = sbr.rel (%p14) target = $region8
  $region5: #{decoder_forward.4} parent=0 // loop_body
    %s18 = ssub.s32 %s13, 1
    %s19 = ssub.s32 %s13, 2
    %s20 = sadd.s32 %s13, 1
    %s21 = ssub.s32 %s13, %s20
    %p22 = scmp.eq.s32.totalorder %s21, 0
    %s24 = sadd.s32 %s23, 1
    %s25 = scalar_select %p22, %s23, %s24
    %p28 = pneg %p22
    %p29 = scmp.eq.s32.totalorder %s13, 1
    %p30 = por %p28, %p29
    %p31 = scmp.ne.s32.totalorder %s23, %s26
    %p32 = scmp.eq.s32.totalorder %s13, 0
    %p33 = por %p31, %p32
    %p34 = scmp.ne.s32.totalorder %s23, %s26
    %p35 = scmp.eq.s32.totalorder %s18, 1
    %p36 = por %p34, %p35
    %p37 = scmp.ne.s32.totalorder %s26, %s27
    %p38 = scmp.eq.s32.totalorder %s18, 0
    %p39 = por %p37, %p38
    %p40 = scmp.ne.s32.totalorder %s26, %s27
    %p41 = scmp.eq.s32.totalorder %s19, 1
    %p42 = por %p40, %p41
    %p44 = scmp.ne.s32.totalorder %s27, %s43
    %p45 = scmp.eq.s32.totalorder %s19, 0
    %p46 = por %p44, %p45
    %s48 = sadd.s32 %s47, 1
    %p51 = scmp.eq.s32.totalorder %s13, 1
    %p52 = scmp.ne.s32.totalorder %s47, %s49
    %p53 = scmp.eq.s32.totalorder %s13, 0
    %p54 = por %p52, %p53
    %p55 = scmp.ne.s32.totalorder %s47, %s49
    %p56 = scmp.eq.s32.totalorder %s18, 1
    %p57 = por %p55, %p56
    %p58 = scmp.ne.s32.totalorder %s49, %s50
    %p59 = scmp.eq.s32.totalorder %s18, 0
    %p60 = por %p58, %p59
    %p61 = scmp.ne.s32.totalorder %s49, %s50
    %p62 = scmp.eq.s32.totalorder %s19, 1
    %p63 = por %p61, %p62
    %p65 = scmp.ne.s32.totalorder %s50, %s64
    %p66 = scmp.eq.s32.totalorder %s19, 0
    %p67 = por %p65, %p66
    %s69 = sadd.s32 %s68, 1
    %p72 = scmp.eq.s32.totalorder %s13, 1
    %p73 = scmp.ne.s32.totalorder %s68, %s70
    %p74 = scmp.eq.s32.totalorder %s13, 0
    %p75 = por %p73, %p74
    %p76 = scmp.ne.s32.totalorder %s68, %s70
    %p77 = scmp.eq.s32.totalorder %s18, 1
    %p78 = por %p76, %p77
    %p79 = scmp.ne.s32.totalorder %s70, %s71
    %p80 = scmp.eq.s32.totalorder %s18, 0
    %p81 = por %p79, %p80
    %p82 = scmp.ne.s32.totalorder %s70, %s71
    %p83 = scmp.eq.s32.totalorder %s19, 1
    %p84 = por %p82, %p83
    %p86 = scmp.ne.s32.totalorder %s71, %s85
    %p87 = scmp.eq.s32.totalorder %s19, 0
    %p88 = por %p86, %p87
    %s90 = sadd.s32 %s89, 1
    %p93 = scmp.eq.s32.totalorder %s13, 1
    %p94 = scmp.ne.s32.totalorder %s89, %s91
    %p95 = scmp.eq.s32.totalorder %s13, 0
    %p96 = por %p94, %p95
    %p97 = scmp.ne.s32.totalorder %s89, %s91
    %p98 = scmp.eq.s32.totalorder %s18, 1
    %p99 = por %p97, %p98
    %p100 = scmp.ne.s32.totalorder %s91, %s92
    %p101 = scmp.eq.s32.totalorder %s18, 0
    %p102 = por %p100, %p101
    %p103 = scmp.ne.s32.totalorder %s91, %s92
    %p104 = scmp.eq.s32.totalorder %s19, 1
    %p105 = por %p103, %p104
    %p107 = scmp.ne.s32.totalorder %s92, %s106
    %p108 = scmp.eq.s32.totalorder %s19, 0
    %p109 = por %p107, %p108
    %s110 = ssub.s32 %s13, %s20
    %p111 = scmp.eq.s32.totalorder %s110, 0
    %s113 = sadd.s32 %s112, 1
    %s114 = scalar_select %p111, %s112, %s113
    %p117 = pneg %p111
    %p118 = scmp.eq.s32.totalorder %s13, 1
    %p119 = por %p117, %p118
    %p120 = scmp.ne.s32.totalorder %s112, %s115
    %p121 = scmp.eq.s32.totalorder %s13, 0
    %p122 = por %p120, %p121
    %p123 = scmp.ne.s32.totalorder %s112, %s115
    %p124 = scmp.eq.s32.totalorder %s18, 1
    %p125 = por %p123, %p124
    %p126 = scmp.ne.s32.totalorder %s115, %s116
    %p127 = scmp.eq.s32.totalorder %s18, 0
    %p128 = por %p126, %p127
    %p129 = scmp.ne.s32.totalorder %s115, %s116
    %p130 = scmp.eq.s32.totalorder %s19, 1
    %p131 = por %p129, %p130
    %p133 = scmp.ne.s32.totalorder %s116, %s132
    %p134 = scmp.eq.s32.totalorder %s19, 0
    %p135 = por %p133, %p134
    %s136 = ssub.s32 %s13, %s20
    %p137 = scmp.eq.s32.totalorder %s136, 0
    %s139 = sadd.s32 %s138, 1
    %s140 = scalar_select %p137, %s138, %s139
    %p143 = pneg %p137
    %p144 = scmp.eq.s32.totalorder %s13, 1
    %p145 = por %p143, %p144
    %p146 = scmp.ne.s32.totalorder %s138, %s141
    %p147 = scmp.eq.s32.totalorder %s13, 0
    %p148 = por %p146, %p147
    %p149 = scmp.ne.s32.totalorder %s138, %s141
    %p150 = scmp.eq.s32.totalorder %s18, 1
    %p151 = por %p149, %p150
    %p152 = scmp.ne.s32.totalorder %s141, %s142
    %p153 = scmp.eq.s32.totalorder %s18, 0
    %p154 = por %p152, %p153
    %p155 = scmp.ne.s32.totalorder %s141, %s142
    %p156 = scmp.eq.s32.totalorder %s19, 1
    %p157 = por %p155, %p156
    %p159 = scmp.ne.s32.totalorder %s142, %s158
    %p160 = scmp.eq.s32.totalorder %s19, 0
    %p161 = por %p159, %p160
    %s162 = ssub.s32 %s13, %s20
    %p163 = scmp.eq.s32.totalorder %s162, 0
    %s165 = sadd.s32 %s164, 1
    %s166 = scalar_select %p163, %s164, %s165
    %p169 = pneg %p163
    %p170 = scmp.eq.s32.totalorder %s13, 1
    %p171 = por %p169, %p170
    %p172 = scmp.ne.s32.totalorder %s164, %s167
    %p173 = scmp.eq.s32.totalorder %s13, 0
    %p174 = por %p172, %p173
    %p175 = scmp.ne.s32.totalorder %s164, %s167
    %p176 = scmp.eq.s32.totalorder %s18, 1
    %p177 = por %p175, %p176
    %p178 = scmp.ne.s32.totalorder %s167, %s168
    %p179 = scmp.eq.s32.totalorder %s18, 0
    %p180 = por %p178, %p179
    %p181 = scmp.ne.s32.totalorder %s167, %s168
    %p182 = scmp.eq.s32.totalorder %s19, 1
    %p183 = por %p181, %p182
    %p185 = scmp.ne.s32.totalorder %s168, %s184
    %p186 = scmp.eq.s32.totalorder %s19, 0
    %p187 = por %p185, %p186
    %p188 = scmp.le.s32.totalorder 1, %s13
    %p189 = scmp.lt.s32.totalorder %s13, 3
    %p190 = pnand %p188, %p189
    %p191 = pneg %p190
    // Predicated region
    $region9: #{decoder_forward.4} parent=5 // pred_check
      _
    $region10: #{decoder_forward.4} parent=5 // pred_check_branch
      %193 = sbr.rel (%p190) target = $region12
    $region11: #{decoder_forward.4} parent=5 // pred_region
      %s194 = ssub.s32 %s13, 1
      // Predicated region
      $region13: #{decoder_forward.4} parent=11 // pred_check
        %p195 = pneg %p60
      $region14: #{decoder_forward.4} parent=11 // pred_check_branch
        %197 = sbr.rel (%p195) target = $region16
      $region15: #{decoder_forward.4} parent=11 // pred_region
        _
      $region16: #{decoder_forward.4} parent=11 // pred_fallthru
        _
      // Predicated region
      $region17: #{decoder_forward.4} parent=11 // pred_check
        %p198 = pneg %p81
      $region18: #{decoder_forward.4} parent=11 // pred_check_branch
        %200 = sbr.rel (%p198) target = $region20
      $region19: #{decoder_forward.4} parent=11 // pred_region
        _
      $region20: #{decoder_forward.4} parent=11 // pred_fallthru
        _
      // Predicated region
      $region21: #{decoder_forward.4} parent=11 // pred_check
        %p201 = pneg %p102
      $region22: #{decoder_forward.4} parent=11 // pred_check_branch
        %203 = sbr.rel (%p201) target = $region24
      $region23: #{decoder_forward.4} parent=11 // pred_region
        _
      $region24: #{decoder_forward.4} parent=11 // pred_fallthru
        _
    $region12: #{decoder_forward.4} parent=5 // pred_fallthru
      _
    %p204 = scmp.lt.s32.totalorder %s13, 2
    // Predicated region
    $region25: #{decoder_forward.4} parent=5 // pred_check
      %p205 = pneg %p204
    $region26: #{decoder_forward.4} parent=5 // pred_check_branch
      %207 = sbr.rel (%p205) target = $region28
    $region27: #{decoder_forward.4} parent=5 // pred_region
      // Predicated region
      $region29: #{decoder_forward.4} parent=27 // pred_check
        %p208 = pneg %p33
      $region30: #{decoder_forward.4} parent=27 // pred_check_branch
        %210 = sbr.rel (%p208) target = $region32
      $region31: #{decoder_forward.4} parent=27 // pred_region
        %p211 = scmp.lt.s32.totalorder %s13, 1
        %s212 = scalar_select %p211, %s13, 1
        %s213 = smul.addr %s212, 64
        %s214 = smul.addr %s213, 4
        %s215 = scalar_lea.vmem %s0, %s214
      $region32: #{decoder_forward.4} parent=27 // pred_fallthru
        _
    $region28: #{decoder_forward.4} parent=5 // pred_fallthru
      _
    %p216 = scmp.le.s32.totalorder 1, %s13
    %p217 = scmp.lt.s32.totalorder %s13, 3
    %p218 = pnand %p216, %p217
    %p219 = pneg %p218
    // Predicated region
    $region33: #{decoder_forward.4} parent=5 // pred_check
      _
    $region34: #{decoder_forward.4} parent=5 // pred_check_branch
      %221 = sbr.rel (%p218) target = $region36
    $region35: #{decoder_forward.4} parent=5 // pred_region
      %s222 = ssub.s32 %s13, 1
      %p223 = scmp.lt.s32.totalorder %s18, 1
      %s224 = scalar_select %p223, %s18, 1
      %s225 = smul.addr %s224, 64
      %s226 = smul.addr %s225, 4
      %s227 = scalar_lea.vmem %s0, %s226
      %p228 = pneg %p39
      %p229 = pneg %p36
      %p230 = pneg %p60
      %p231 = pneg %p57
      %p232 = pneg %p81
      %p233 = pneg %p78
      %p234 = pneg %p102
      %p235 = pneg %p99
      %p236 = pneg %p128
      %p237 = pneg %p125
      %p238 = scmp.lt.s32.totalorder %s18, 1
      %s239 = scalar_select %p238, %s18, 1
      %s240 = smul.addr %s239, 32
      %s241 = smul.addr %s240, 4
      %s242 = scalar_lea.vmem %s4, %s241
      %p243 = pneg %p154
      %p244 = pneg %p151
      %p245 = scmp.lt.s32.totalorder %s18, 1
      %s246 = scalar_select %p245, %s18, 1
      %s247 = smul.addr %s246, 4
      %s248 = smul.addr %s247, 8
      %s249 = scalar_lea.vmem %s5, %s248
      %p250 = pneg %p180
      %p251 = pneg %p177
      %p252 = scmp.lt.s32.totalorder %s18, 1
      %s253 = scalar_select %p252, %s18, 1
      %s254 = smul.addr %s253, 4
      %s255 = smul.addr %s254, 8
      %s256 = scalar_lea.vmem %s6, %s255
      %p257 = scmp.lt.s32.totalorder %s18, 1
      %s258 = scalar_select %p257, %s18, 1
      %s259 = smul.addr %s258, 64
      %s260 = smul.addr %s259, 4
      %s261 = scalar_lea.vmem %s0, %s260
      %p262 = scmp.lt.s32.totalorder %s18, 1
      %s263 = scalar_select %p262, %s18, 1
      %s264 = smul.addr %s263, 32
      %s265 = smul.addr %s264, 4
      %s266 = scalar_lea.vmem %s4, %s265
      %p267 = scmp.lt.s32.totalorder %s18, 1
      %s268 = scalar_select %p267, %s18, 1
      %s269 = smul.addr %s268, 4
      %s270 = smul.addr %s269, 8
      %s271 = scalar_lea.vmem %s5, %s270
      %p272 = scmp.lt.s32.totalorder %s18, 1
      %s273 = scalar_select %p272, %s18, 1
      %s274 = smul.addr %s273, 4
      %s275 = smul.addr %s274, 8
      %s276 = scalar_lea.vmem %s6, %s275
      %v277 = vld [vmem:[%s261] sm:$0xff]
      %v278 = vld [vmem:[%s261 + $0x8] sm:$0xff]
      %v279 = vld [vmem:[%s261 + $0x10] sm:$0xff]
      %v280 = vld [vmem:[%s261 + $0x18] sm:$0xff]
      %v281 = vld [vmem:[%s261 + $0x20] sm:$0xff]
      %v282 = vld [vmem:[%s261 + $0x28] sm:$0xff]
      %v283 = vld [vmem:[%s261 + $0x30] sm:$0xff]
      %v284 = vld [vmem:[%s261 + $0x38] sm:$0xff]
      %v285 = vld [vmem:[%s261 + $0x40] sm:$0xff]
      %v286 = vld [vmem:[%s261 + $0x48] sm:$0xff]
      %v287 = vld [vmem:[%s261 + $0x50] sm:$0xff]
      %v288 = vld [vmem:[%s261 + $0x58] sm:$0xff]
      %v289 = vld [vmem:[%s261 + $0x60] sm:$0xff]
      %v290 = vld [vmem:[%s261 + $0x68] sm:$0xff]
      %v291 = vld [vmem:[%s261 + $0x70] sm:$0xff]
      %v292 = vld [vmem:[%s261 + $0x78] sm:$0xff]
      %v293 = vld [vmem:[%s261 + $0x80] sm:$0xff]
      %v294 = vld [vmem:[%s261 + $0x88] sm:$0xff]
      %v295 = vld [vmem:[%s261 + $0x90] sm:$0xff]
      %v296 = vld [vmem:[%s261 + $0x98] sm:$0xff]
      %v297 = vld [vmem:[%s261 + $0xa0] sm:$0xff]
      %v298 = vld [vmem:[%s261 + $0xa8] sm:$0xff]
      %v299 = vld [vmem:[%s261 + $0xb0] sm:$0xff]
      %v300 = vld [vmem:[%s261 + $0xb8] sm:$0xff]
      %v301 = vld [vmem:[%s261 + $0xc0] sm:$0xff]
      %v302 = vld [vmem:[%s261 + $0xc8] sm:$0xff]
      %v303 = vld [vmem:[%s261 + $0xd0] sm:$0xff]
      %v304 = vld [vmem:[%s261 + $0xd8] sm:$0xff]
      %v305 = vld [vmem:[%s261 + $0xe0] sm:$0xff]
      %v306 = vld [vmem:[%s261 + $0xe8] sm:$0xff]
      %v307 = vld [vmem:[%s261 + $0xf0] sm:$0xff]
      %v308 = vld [vmem:[%s261 + $0xf8] sm:$0xff]
      %v309 = vld [vmem:[%s1] sm:$0xff]
      %v310 = vld [vmem:[%s1 + $0x8] sm:$0xff]
      %v311 = vld [vmem:[%s1 + $0x10] sm:$0xff]
      %v312 = vld [vmem:[%s1 + $0x18] sm:$0xff]
      %v313 = vld [vmem:[%s1 + $0x20] sm:$0xff]
      %v314 = vld [vmem:[%s1 + $0x28] sm:$0xff]
      %v315 = vld [vmem:[%s1 + $0x30] sm:$0xff]
      %v316 = vld [vmem:[%s1 + $0x38] sm:$0xff]
      %v317 = vld [vmem:[%s1 + $0x40] sm:$0xff]
      %v318 = vld [vmem:[%s1 + $0x48] sm:$0xff]
      %v319 = vld [vmem:[%s1 + $0x50] sm:$0xff]
      %v320 = vld [vmem:[%s1 + $0x58] sm:$0xff]
      %v321 = vld [vmem:[%s1 + $0x60] sm:$0xff]
      %v322 = vld [vmem:[%s1 + $0x68] sm:$0xff]
      %v323 = vld [vmem:[%s1 + $0x70] sm:$0xff]
      %v324 = vld [vmem:[%s1 + $0x78] sm:$0xff]
      %v325 = vld [vmem:[%s1 + $0x80] sm:$0xff]
      %v326 = vld [vmem:[%s1 + $0x88] sm:$0xff]
      %v327 = vld [vmem:[%s1 + $0x90] sm:$0xff]
      %v328 = vld [vmem:[%s1 + $0x98] sm:$0xff]
      %v329 = vld [vmem:[%s1 + $0xa0] sm:$0xff]
      %v330 = vld [vmem:[%s1 + $0xa8] sm:$0xff]
      %v331 = vld [vmem:[%s1 + $0xb0] sm:$0xff]
      %v332 = vld [vmem:[%s1 + $0xb8] sm:$0xff]
      %v333 = vld [vmem:[%s1 + $0xc0] sm:$0xff]
      %v334 = vld [vmem:[%s1 + $0xc8] sm:$0xff]
      %v335 = vld [vmem:[%s1 + $0xd0] sm:$0xff]
      %v336 = vld [vmem:[%s1 + $0xd8] sm:$0xff]
      %v337 = vld [vmem:[%s1 + $0xe0] sm:$0xff]
      %v338 = vld [vmem:[%s1 + $0xe8] sm:$0xff]
      %v339 = vld [vmem:[%s1 + $0xf0] sm:$0xff]
      %v340 = vld [vmem:[%s1 + $0xf8] sm:$0xff]
      %v341 = vld [vmem:[%s1 + $0x100] sm:$0xff]
      %v342 = vld [vmem:[%s1 + $0x108] sm:$0xff]
      %v343 = vld [vmem:[%s1 + $0x110] sm:$0xff]
      %v344 = vld [vmem:[%s1 + $0x118] sm:$0xff]
      %v345 = vld [vmem:[%s1 + $0x120] sm:$0xff]
      %v346 = vld [vmem:[%s1 + $0x128] sm:$0xff]
      %v347 = vld [vmem:[%s1 + $0x130] sm:$0xff]
      %v348 = vld [vmem:[%s1 + $0x138] sm:$0xff]
      %v349 = vld [vmem:[%s1 + $0x140] sm:$0xff]
      %v350 = vld [vmem:[%s1 + $0x148] sm:$0xff]
      %v351 = vld [vmem:[%s1 + $0x150] sm:$0xff]
      %v352 = vld [vmem:[%s1 + $0x158] sm:$0xff]
      %v353 = vld [vmem:[%s1 + $0x160] sm:$0xff]
      %v354 = vld [vmem:[%s1 + $0x168] sm:$0xff]
      %v355 = vld [vmem:[%s1 + $0x170] sm:$0xff]
      %v356 = vld [vmem:[%s1 + $0x178] sm:$0xff]
      %v357 = vld [vmem:[%s1 + $0x180] sm:$0xff]
      %v358 = vld [vmem:[%s1 + $0x188] sm:$0xff]
      %v359 = vld [vmem:[%s1 + $0x190] sm:$0xff]
      %v360 = vld [vmem:[%s1 + $0x198] sm:$0xff]
      %v361 = vld [vmem:[%s1 + $0x1a0] sm:$0xff]
      %v362 = vld [vmem:[%s1 + $0x1a8] sm:$0xff]
      %v363 = vld [vmem:[%s1 + $0x1b0] sm:$0xff]
      %v364 = vld [vmem:[%s1 + $0x1b8] sm:$0xff]
      %v365 = vld [vmem:[%s1 + $0x1c0] sm:$0xff]
      %v366 = vld [vmem:[%s1 + $0x1c8] sm:$0xff]
      %v367 = vld [vmem:[%s1 + $0x1d0] sm:$0xff]
      %v368 = vld [vmem:[%s1 + $0x1d8] sm:$0xff]
      %v369 = vld [vmem:[%s1 + $0x1e0] sm:$0xff]
      %v370 = vld [vmem:[%s1 + $0x1e8] sm:$0xff]
      %v371 = vld [vmem:[%s1 + $0x1f0] sm:$0xff]
      %v372 = vld [vmem:[%s1 + $0x1f8] sm:$0xff]
      %v389 = vunpack.c.l.b16 %v277
      %v390 = vunpack.c.h.b16 %v277
      %v391 = vunpack.c.l.b16 %v278
      %v392 = vunpack.c.h.b16 %v278
      %v393 = vunpack.c.l.b16 %v281
      %v394 = vunpack.c.h.b16 %v281
      %v395 = vunpack.c.l.b16 %v282
      %v396 = vunpack.c.h.b16 %v282
      %v397 = vunpack.c.l.b16 %v285
      %v398 = vunpack.c.h.b16 %v285
      %v399 = vunpack.c.l.b16 %v286
      %v400 = vunpack.c.h.b16 %v286
      %v401 = vunpack.c.l.b16 %v289
      %v402 = vunpack.c.h.b16 %v289
      %v403 = vunpack.c.l.b16 %v290
      %v404 = vunpack.c.h.b16 %v290
      %v405 = vunpack.c.l.b16 %v293
      %v406 = vunpack.c.h.b16 %v293
      %v407 = vunpack.c.l.b16 %v294
      %v408 = vunpack.c.h.b16 %v294
      %v409 = vunpack.c.l.b16 %v297
      %v410 = vunpack.c.h.b16 %v297
      %v411 = vunpack.c.l.b16 %v298
      %v412 = vunpack.c.h.b16 %v298
      %v413 = vunpack.c.l.b16 %v301
      %v414 = vunpack.c.h.b16 %v301
      %v415 = vunpack.c.l.b16 %v302
      %v416 = vunpack.c.h.b16 %v302
      %v417 = vunpack.c.l.b16 %v305
      %v418 = vunpack.c.h.b16 %v305
      %v419 = vunpack.c.l.b16 %v306
      %v420 = vunpack.c.h.b16 %v306
      %v421 = vpack.c.b16 %v393, %v389
      %v422 = vpack.c.b16 %v394, %v390
      %v423 = vpack.c.b16 %v395, %v391
      %v424 = vpack.c.b16 %v396, %v392
      %v425 = vpack.c.b16 %v401, %v397
      %v426 = vpack.c.b16 %v402, %v398
      %v427 = vpack.c.b16 %v403, %v399
      %v428 = vpack.c.b16 %v404, %v400
      %v429 = vpack.c.b16 %v409, %v405
      %v430 = vpack.c.b16 %v410, %v406
      %v431 = vpack.c.b16 %v411, %v407
      %v432 = vpack.c.b16 %v412, %v408
      %v433 = vpack.c.b16 %v417, %v413
      %v434 = vpack.c.b16 %v418, %v414
      %v435 = vpack.c.b16 %v419, %v415
      %v436 = vpack.c.b16 %v420, %v416
      %v517 = vunpack.c.l.b16 %v309
      %v518 = vunpack.c.h.b16 %v309
      %v519 = vunpack.c.l.b16 %v310
      %v520 = vunpack.c.h.b16 %v310
      %v521 = vunpack.c.l.b16 %v311
      %v522 = vunpack.c.h.b16 %v311
      %v523 = vunpack.c.l.b16 %v312
      %v524 = vunpack.c.h.b16 %v312
      %v525 = vunpack.c.l.b16 %v313
      %v526 = vunpack.c.h.b16 %v313
      %v527 = vunpack.c.l.b16 %v314
      %v528 = vunpack.c.h.b16 %v314
      %v529 = vunpack.c.l.b16 %v315
      %v530 = vunpack.c.h.b16 %v315
      %v531 = vunpack.c.l.b16 %v316
      %v532 = vunpack.c.h.b16 %v316
      %v533 = vunpack.c.l.b16 %v317
      %v534 = vunpack.c.h.b16 %v317
      %v535 = vunpack.c.l.b16 %v318
      %v536 = vunpack.c.h.b16 %v318
      %v537 = vunpack.c.l.b16 %v319
      %v538 = vunpack.c.h.b16 %v319
      %v539 = vunpack.c.l.b16 %v320
      %v540 = vunpack.c.h.b16 %v320
      %v541 = vunpack.c.l.b16 %v321
      %v542 = vunpack.c.h.b16 %v321
      %v543 = vunpack.c.l.b16 %v322
      %v544 = vunpack.c.h.b16 %v322
      %v545 = vunpack.c.l.b16 %v323
      %v546 = vunpack.c.h.b16 %v323
      %v547 = vunpack.c.l.b16 %v324
      %v548 = vunpack.c.h.b16 %v324
      %v549 = vunpack.c.l.b16 %v325
      %v550 = vunpack.c.h.b16 %v325
      %v551 = vunpack.c.l.b16 %v326
      %v552 = vunpack.c.h.b16 %v326
      %v553 = vunpack.c.l.b16 %v327
      %v554 = vunpack.c.h.b16 %v327
      %v555 = vunpack.c.l.b16 %v328
      %v556 = vunpack.c.h.b16 %v328
      %v557 = vunpack.c.l.b16 %v329
      %v558 = vunpack.c.h.b16 %v329
      %v559 = vunpack.c.l.b16 %v330
      %v560 = vunpack.c.h.b16 %v330
      %v561 = vunpack.c.l.b16 %v331
      %v562 = vunpack.c.h.b16 %v331
      %v563 = vunpack.c.l.b16 %v332
      %v564 = vunpack.c.h.b16 %v332
      %v565 = vunpack.c.l.b16 %v333
      %v566 = vunpack.c.h.b16 %v333
      %v567 = vunpack.c.l.b16 %v334
      %v568 = vunpack.c.h.b16 %v334
      %v569 = vunpack.c.l.b16 %v335
      %v570 = vunpack.c.h.b16 %v335
      %v571 = vunpack.c.l.b16 %v336
      %v572 = vunpack.c.h.b16 %v336
      %v573 = vunpack.c.l.b16 %v337
      %v574 = vunpack.c.h.b16 %v337
      %v575 = vunpack.c.l.b16 %v338
      %v576 = vunpack.c.h.b16 %v338
      %v577 = vunpack.c.l.b16 %v339
      %v578 = vunpack.c.h.b16 %v339
      %v579 = vunpack.c.l.b16 %v340
      %v580 = vunpack.c.h.b16 %v340
      %v581 = vunpack.c.l.b16 %v341
      %v582 = vunpack.c.h.b16 %v341
      %v583 = vunpack.c.l.b16 %v342
      %v584 = vunpack.c.h.b16 %v342
      %v585 = vunpack.c.l.b16 %v343
      %v586 = vunpack.c.h.b16 %v343
      %v587 = vunpack.c.l.b16 %v344
      %v588 = vunpack.c.h.b16 %v344
      %v589 = vunpack.c.l.b16 %v345
      %v590 = vunpack.c.h.b16 %v345
      %v591 = vunpack.c.l.b16 %v346
      %v592 = vunpack.c.h.b16 %v346
      %v593 = vunpack.c.l.b16 %v347
      %v594 = vunpack.c.h.b16 %v347
      %v595 = vunpack.c.l.b16 %v348
      %v596 = vunpack.c.h.b16 %v348
      %v597 = vunpack.c.l.b16 %v349
      %v598 = vunpack.c.h.b16 %v349
      %v599 = vunpack.c.l.b16 %v350
      %v600 = vunpack.c.h.b16 %v350
      %v601 = vunpack.c.l.b16 %v351
      %v602 = vunpack.c.h.b16 %v351
      %v603 = vunpack.c.l.b16 %v352
      %v604 = vunpack.c.h.b16 %v352
      %v605 = vunpack.c.l.b16 %v353
      %v606 = vunpack.c.h.b16 %v353
      %v607 = vunpack.c.l.b16 %v354
      %v608 = vunpack.c.h.b16 %v354
      %v609 = vunpack.c.l.b16 %v355
      %v610 = vunpack.c.h.b16 %v355
      %v611 = vunpack.c.l.b16 %v356
      %v612 = vunpack.c.h.b16 %v356
      %v613 = vunpack.c.l.b16 %v357
      %v614 = vunpack.c.h.b16 %v357
      %v615 = vunpack.c.l.b16 %v358
      %v616 = vunpack.c.h.b16 %v358
      %v617 = vunpack.c.l.b16 %v359
      %v618 = vunpack.c.h.b16 %v359
      %v619 = vunpack.c.l.b16 %v360
      %v620 = vunpack.c.h.b16 %v360
      %v621 = vunpack.c.l.b16 %v361
      %v622 = vunpack.c.h.b16 %v361
      %v623 = vunpack.c.l.b16 %v362
      %v624 = vunpack.c.h.b16 %v362
      %v625 = vunpack.c.l.b16 %v363
      %v626 = vunpack.c.h.b16 %v363
      %v627 = vunpack.c.l.b16 %v364
      %v628 = vunpack.c.h.b16 %v364
      %v629 = vunpack.c.l.b16 %v365
      %v630 = vunpack.c.h.b16 %v365
      %v631 = vunpack.c.l.b16 %v366
      %v632 = vunpack.c.h.b16 %v366
      %v633 = vunpack.c.l.b16 %v367
      %v634 = vunpack.c.h.b16 %v367
      %v635 = vunpack.c.l.b16 %v368
      %v636 = vunpack.c.h.b16 %v368
      %v637 = vunpack.c.l.b16 %v369
      %v638 = vunpack.c.h.b16 %v369
      %v639 = vunpack.c.l.b16 %v370
      %v640 = vunpack.c.h.b16 %v370
      %v641 = vunpack.c.l.b16 %v371
      %v642 = vunpack.c.h.b16 %v371
      %v643 = vunpack.c.l.b16 %v372
      %v644 = vunpack.c.h.b16 %v372
      %v645 = vpack.c.b16 %v519, %v517
      %v646 = vpack.c.b16 %v520, %v518
      %v647 = vpack.c.b16 %v523, %v521
      %v648 = vpack.c.b16 %v524, %v522
      %v649 = vpack.c.b16 %v527, %v525
      %v650 = vpack.c.b16 %v528, %v526
      %v651 = vpack.c.b16 %v531, %v529
      %v652 = vpack.c.b16 %v532, %v530
      %v653 = vpack.c.b16 %v535, %v533
      %v654 = vpack.c.b16 %v536, %v534
      %v655 = vpack.c.b16 %v539, %v537
      %v656 = vpack.c.b16 %v540, %v538
      %v657 = vpack.c.b16 %v543, %v541
      %v658 = vpack.c.b16 %v544, %v542
      %v659 = vpack.c.b16 %v547, %v545
      %v660 = vpack.c.b16 %v548, %v546
      %v661 = vpack.c.b16 %v551, %v549
      %v662 = vpack.c.b16 %v552, %v550
      %v663 = vpack.c.b16 %v555, %v553
      %v664 = vpack.c.b16 %v556, %v554
      %v665 = vpack.c.b16 %v559, %v557
      %v666 = vpack.c.b16 %v560, %v558
      %v667 = vpack.c.b16 %v563, %v561
      %v668 = vpack.c.b16 %v564, %v562
      %v669 = vpack.c.b16 %v567, %v565
      %v670 = vpack.c.b16 %v568, %v566
      %v671 = vpack.c.b16 %v571, %v569
      %v672 = vpack.c.b16 %v572, %v570
      %v673 = vpack.c.b16 %v575, %v573
      %v674 = vpack.c.b16 %v576, %v574
      %v675 = vpack.c.b16 %v579, %v577
      %v676 = vpack.c.b16 %v580, %v578
      %v677 = vpack.c.b16 %v583, %v581
      %v678 = vpack.c.b16 %v584, %v582
      %v679 = vpack.c.b16 %v587, %v585
      %v680 = vpack.c.b16 %v588, %v586
      %v681 = vpack.c.b16 %v591, %v589
      %v682 = vpack.c.b16 %v592, %v590
      %v683 = vpack.c.b16 %v595, %v593
      %v684 = vpack.c.b16 %v596, %v594
      %v685 = vpack.c.b16 %v599, %v597
      %v686 = vpack.c.b16 %v600, %v598
      %v687 = vpack.c.b16 %v603, %v601
      %v688 = vpack.c.b16 %v604, %v602
      %v689 = vpack.c.b16 %v607, %v605
      %v690 = vpack.c.b16 %v608, %v606
      %v691 = vpack.c.b16 %v611, %v609
      %v692 = vpack.c.b16 %v612, %v610
      %v693 = vpack.c.b16 %v615, %v613
      %v694 = vpack.c.b16 %v616, %v614
      %v695 = vpack.c.b16 %v619, %v617
      %v696 = vpack.c.b16 %v620, %v618
      %v697 = vpack.c.b16 %v623, %v621
      %v698 = vpack.c.b16 %v624, %v622
      %v699 = vpack.c.b16 %v627, %v625
      %v700 = vpack.c.b16 %v628, %v626
      %v701 = vpack.c.b16 %v631, %v629
      %v702 = vpack.c.b16 %v632, %v630
      %v703 = vpack.c.b16 %v635, %v633
      %v704 = vpack.c.b16 %v636, %v634
      %v705 = vpack.c.b16 %v639, %v637
      %v706 = vpack.c.b16 %v640, %v638
      %v707 = vpack.c.b16 %v643, %v641
      %v708 = vpack.c.b16 %v644, %v642
      %773 = vmatpush.bf16.msra.mxu0 %v659
      %774 = vmatpush.bf16.msra.mxu0 %v657
      %775 = vmatpush.bf16.msra.mxu0 %v655
      %776 = vmatpush.bf16.msra.mxu0 %v653
      %777 = vmatpush.bf16.msra.mxu0 %v651
      %778 = vmatpush.bf16.msra.mxu0 %v649
      %779 = vmatpush.bf16.msra.mxu0 %v647
      %780 = vmatpush.bf16.msra.mxu0 %v645
      %781 = vmatmul.bf16.gmra.mxu0 %v421
      %v782 = vpop.f32.mrf.mxu0
      %v783 = vadd.f32 0.0, %v782
      %v784 = vpop.f32.mrf.mxu0
      %v785 = vadd.f32 0.0, %v784
      %786 = vmatmul.bf16.gmra.mxu0 %v425
      %v787 = vpop.f32.mrf.mxu0
      %v788 = vadd.f32 0.0, %v787
      %v789 = vpop.f32.mrf.mxu0
      %v790 = vadd.f32 0.0, %v789
      %791 = vmatmul.bf16.gmra.mxu0 %v429
      %v792 = vpop.f32.mrf.mxu0
      %v793 = vadd.f32 0.0, %v792
      %v794 = vpop.f32.mrf.mxu0
      %v795 = vadd.f32 0.0, %v794
      %796 = vmatmul.bf16.gmra.mxu0 %v433
      %v797 = vpop.f32.mrf.mxu0
      %v798 = vadd.f32 0.0, %v797
      %v799 = vpop.f32.mrf.mxu0
      %v800 = vadd.f32 0.0, %v799
      %801 = vdwg.mxu0
      %802 = vmatpush.bf16.msra.mxu0 %v675
      %803 = vmatpush.bf16.msra.mxu0 %v673
      %804 = vmatpush.bf16.msra.mxu0 %v671
      %805 = vmatpush.bf16.msra.mxu0 %v669
      %806 = vmatpush.bf16.msra.mxu0 %v667
      %807 = vmatpush.bf16.msra.mxu0 %v665
      %808 = vmatpush.bf16.msra.mxu0 %v663
      %809 = vmatpush.bf16.msra.mxu0 %v661
      %810 = vmatmul.bf16.gmra.mxu0 %v422
      %v811 = vpop.f32.mrf.mxu0
      %v812 = vadd.f32 %v783, %v811
      %v813 = vpop.f32.mrf.mxu0
      %v814 = vadd.f32 %v785, %v813
      %815 = vmatmul.bf16.gmra.mxu0 %v426
      %v816 = vpop.f32.mrf.mxu0
      %v817 = vadd.f32 %v788, %v816
      %v818 = vpop.f32.mrf.mxu0
      %v819 = vadd.f32 %v790, %v818
      %820 = vmatmul.bf16.gmra.mxu0 %v430
      %v821 = vpop.f32.mrf.mxu0
      %v822 = vadd.f32 %v793, %v821
      %v823 = vpop.f32.mrf.mxu0
      %v824 = vadd.f32 %v795, %v823
      %825 = vmatmul.bf16.gmra.mxu0 %v434
      %v826 = vpop.f32.mrf.mxu0
      %v827 = vadd.f32 %v798, %v826
      %v828 = vpop.f32.mrf.mxu0
      %v829 = vadd.f32 %v800, %v828
      %830 = vdwg.mxu0
      %831 = vmatpush.bf16.msra.mxu0 %v691
      %832 = vmatpush.bf16.msra.mxu0 %v689
      %833 = vmatpush.bf16.msra.mxu0 %v687
      %834 = vmatpush.bf16.msra.mxu0 %v685
      %835 = vmatpush.bf16.msra.mxu0 %v683
      %836 = vmatpush.bf16.msra.mxu0 %v681
      %837 = vmatpush.bf16.msra.mxu0 %v679
      %838 = vmatpush.bf16.msra.mxu0 %v677
      %839 = vmatmul.bf16.gmra.mxu0 %v423
      %v840 = vpop.f32.mrf.mxu0
      %v841 = vadd.f32 %v812, %v840
      %v842 = vpop.f32.mrf.mxu0
      %v843 = vadd.f32 %v814, %v842
      %844 = vmatmul.bf16.gmra.mxu0 %v427
      %v845 = vpop.f32.mrf.mxu0
      %v846 = vadd.f32 %v817, %v845
      %v847 = vpop.f32.mrf.mxu0
      %v848 = vadd.f32 %v819, %v847
      %849 = vmatmul.bf16.gmra.mxu0 %v431
      %v850 = vpop.f32.mrf.mxu0
      %v851 = vadd.f32 %v822, %v850
      %v852 = vpop.f32.mrf.mxu0
      %v853 = vadd.f32 %v824, %v852
      %854 = vmatmul.bf16.gmra.mxu0 %v435
      %v855 = vpop.f32.mrf.mxu0
      %v856 = vadd.f32 %v827, %v855
      %v857 = vpop.f32.mrf.mxu0
      %v858 = vadd.f32 %v829, %v857
      %859 = vdwg.mxu0
      %860 = vmatpush.bf16.msra.mxu0 %v707
      %861 = vmatpush.bf16.msra.mxu0 %v705
      %862 = vmatpush.bf16.msra.mxu0 %v703
      %863 = vmatpush.bf16.msra.mxu0 %v701
      %864 = vmatpush.bf16.msra.mxu0 %v699
      %865 = vmatpush.bf16.msra.mxu0 %v697
      %866 = vmatpush.bf16.msra.mxu0 %v695
      %867 = vmatpush.bf16.msra.mxu0 %v693
      %868 = vmatmul.bf16.gmra.mxu0 %v424
      %v869 = vpop.f32.mrf.mxu0
      %v870 = vadd.f32 %v841, %v869
      %v871 = vpop.f32.mrf.mxu0
      %v872 = vadd.f32 %v843, %v871
      %873 = vmatmul.bf16.gmra.mxu0 %v428
      %v874 = vpop.f32.mrf.mxu0
      %v875 = vadd.f32 %v846, %v874
      %v876 = vpop.f32.mrf.mxu0
      %v877 = vadd.f32 %v848, %v876
      %878 = vmatmul.bf16.gmra.mxu0 %v432
      %v879 = vpop.f32.mrf.mxu0
      %v880 = vadd.f32 %v851, %v879
      %v881 = vpop.f32.mrf.mxu0
      %v882 = vadd.f32 %v853, %v881
      %883 = vmatmul.bf16.gmra.mxu0 %v436
      %v884 = vpop.f32.mrf.mxu0
      %v885 = vadd.f32 %v856, %v884
      %v886 = vpop.f32.mrf.mxu0
      %v887 = vadd.f32 %v858, %v886
      %888 = vdwg.mxu0
      %889 = vmatpush.bf16.msra.mxu0 %v660
      %890 = vmatpush.bf16.msra.mxu0 %v658
      %891 = vmatpush.bf16.msra.mxu0 %v656
      %892 = vmatpush.bf16.msra.mxu0 %v654
      %893 = vmatpush.bf16.msra.mxu0 %v652
      %894 = vmatpush.bf16.msra.mxu0 %v650
      %895 = vmatpush.bf16.msra.mxu0 %v648
      %896 = vmatpush.bf16.msra.mxu0 %v646
      %897 = vmatmul.bf16.gmra.mxu0 %v421
      %v898 = vpop.f32.mrf.mxu0
      %v899 = vadd.f32 0.0, %v898
      %v900 = vpop.f32.mrf.mxu0
      %v901 = vadd.f32 0.0, %v900
      %902 = vmatmul.bf16.gmra.mxu0 %v425
      %v903 = vpop.f32.mrf.mxu0
      %v904 = vadd.f32 0.0, %v903
      %v905 = vpop.f32.mrf.mxu0
      %v906 = vadd.f32 0.0, %v905
      %907 = vmatmul.bf16.gmra.mxu0 %v429
      %v908 = vpop.f32.mrf.mxu0
      %v909 = vadd.f32 0.0, %v908
      %v910 = vpop.f32.mrf.mxu0
      %v911 = vadd.f32 0.0, %v910
      %912 = vmatmul.bf16.gmra.mxu0 %v433
      %v913 = vpop.f32.mrf.mxu0
      %v914 = vadd.f32 0.0, %v913
      %v915 = vpop.f32.mrf.mxu0
      %v916 = vadd.f32 0.0, %v915
      %917 = vdwg.mxu0
      %918 = vmatpush.bf16.msra.mxu0 %v676
      %919 = vmatpush.bf16.msra.mxu0 %v674
      %920 = vmatpush.bf16.msra.mxu0 %v672
      %921 = vmatpush.bf16.msra.mxu0 %v670
      %922 = vmatpush.bf16.msra.mxu0 %v668
      %923 = vmatpush.bf16.msra.mxu0 %v666
      %924 = vmatpush.bf16.msra.mxu0 %v664
      %925 = vmatpush.bf16.msra.mxu0 %v662
      %926 = vmatmul.bf16.gmra.mxu0 %v422
      %v927 = vpop.f32.mrf.mxu0
      %v928 = vadd.f32 %v899, %v927
      %v929 = vpop.f32.mrf.mxu0
      %v930 = vadd.f32 %v901, %v929
      %931 = vmatmul.bf16.gmra.mxu0 %v426
      %v932 = vpop.f32.mrf.mxu0
      %v933 = vadd.f32 %v904, %v932
      %v934 = vpop.f32.mrf.mxu0
      %v935 = vadd.f32 %v906, %v934
      %936 = vmatmul.bf16.gmra.mxu0 %v430
      %v937 = vpop.f32.mrf.mxu0
      %v938 = vadd.f32 %v909, %v937
      %v939 = vpop.f32.mrf.mxu0
      %v940 = vadd.f32 %v911, %v939
      %941 = vmatmul.bf16.gmra.mxu0 %v434
      %v942 = vpop.f32.mrf.mxu0
      %v943 = vadd.f32 %v914, %v942
      %v944 = vpop.f32.mrf.mxu0
      %v945 = vadd.f32 %v916, %v944
      %946 = vdwg.mxu0
      %947 = vmatpush.bf16.msra.mxu0 %v692
      %948 = vmatpush.bf16.msra.mxu0 %v690
      %949 = vmatpush.bf16.msra.mxu0 %v688
      %950 = vmatpush.bf16.msra.mxu0 %v686
      %951 = vmatpush.bf16.msra.mxu0 %v684
      %952 = vmatpush.bf16.msra.mxu0 %v682
      %953 = vmatpush.bf16.msra.mxu0 %v680
      %954 = vmatpush.bf16.msra.mxu0 %v678
      %955 = vmatmul.bf16.gmra.mxu0 %v423
      %v956 = vpop.f32.mrf.mxu0
      %v957 = vadd.f32 %v928, %v956
      %v958 = vpop.f32.mrf.mxu0
      %v959 = vadd.f32 %v930, %v958
      %960 = vmatmul.bf16.gmra.mxu0 %v427
      %v961 = vpop.f32.mrf.mxu0
      %v962 = vadd.f32 %v933, %v961
      %v963 = vpop.f32.mrf.mxu0
      %v964 = vadd.f32 %v935, %v963
      %965 = vmatmul.bf16.gmra.mxu0 %v431
      %v966 = vpop.f32.mrf.mxu0
      %v967 = vadd.f32 %v938, %v966
      %v968 = vpop.f32.mrf.mxu0
      %v969 = vadd.f32 %v940, %v968
      %970 = vmatmul.bf16.gmra.mxu0 %v435
      %v971 = vpop.f32.mrf.mxu0
      %v972 = vadd.f32 %v943, %v971
      %v973 = vpop.f32.mrf.mxu0
      %v974 = vadd.f32 %v945, %v973
      %975 = vdwg.mxu0
      %976 = vmatpush.bf16.msra.mxu0 %v708
      %977 = vmatpush.bf16.msra.mxu0 %v706
      %978 = vmatpush.bf16.msra.mxu0 %v704
      %979 = vmatpush.bf16.msra.mxu0 %v702
      %980 = vmatpush.bf16.msra.mxu0 %v700
      %981 = vmatpush.bf16.msra.mxu0 %v698
      %982 = vmatpush.bf16.msra.mxu0 %v696
      %983 = vmatpush.bf16.msra.mxu0 %v694
      %984 = vmatmul.bf16.gmra.mxu0 %v424
      %v985 = vpop.f32.mrf.mxu0
      %v986 = vadd.f32 %v957, %v985
      %v987 = vpop.f32.mrf.mxu0
      %v988 = vadd.f32 %v959, %v987
      %989 = vmatmul.bf16.gmra.mxu0 %v428
      %v990 = vpop.f32.mrf.mxu0
      %v991 = vadd.f32 %v962, %v990
      %v992 = vpop.f32.mrf.mxu0
      %v993 = vadd.f32 %v964, %v992
      %994 = vmatmul.bf16.gmra.mxu0 %v432
      %v995 = vpop.f32.mrf.mxu0
      %v996 = vadd.f32 %v967, %v995
      %v997 = vpop.f32.mrf.mxu0
      %v998 = vadd.f32 %v969, %v997
      %999 = vmatmul.bf16.gmra.mxu0 %v436
      %v1000 = vpop.f32.mrf.mxu0
      %v1001 = vadd.f32 %v972, %v1000
      %v1002 = vpop.f32.mrf.mxu0
      %v1003 = vadd.f32 %v974, %v1002
      %1004 = vdwg.mxu0
      %v1005 = vld [vmem:[%s2] sm:$0xff]
      %v1006 = vld [vmem:[%s2 + $0x8] sm:$0xff]
      %v1007 = vld [vmem:[%s2 + $0x10] sm:$0xff]
      %v1008 = vld [vmem:[%s2 + $0x18] sm:$0xff]
      %v1009 = vld [vmem:[%s2 + $0x20] sm:$0xff]
      %v1010 = vld [vmem:[%s2 + $0x28] sm:$0xff]
      %v1011 = vld [vmem:[%s2 + $0x30] sm:$0xff]
      %v1012 = vld [vmem:[%s2 + $0x38] sm:$0xff]
      %v1013 = vld [vmem:[%s2 + $0x40] sm:$0xff]
      %v1014 = vld [vmem:[%s2 + $0x48] sm:$0xff]
      %v1015 = vld [vmem:[%s2 + $0x50] sm:$0xff]
      %v1016 = vld [vmem:[%s2 + $0x58] sm:$0xff]
      %v1017 = vld [vmem:[%s2 + $0x60] sm:$0xff]
      %v1018 = vld [vmem:[%s2 + $0x68] sm:$0xff]
      %v1019 = vld [vmem:[%s2 + $0x70] sm:$0xff]
      %v1020 = vld [vmem:[%s2 + $0x78] sm:$0xff]
      %v1021 = vld [vmem:[%s2 + $0x80] sm:$0xff]
      %v1022 = vld [vmem:[%s2 + $0x88] sm:$0xff]
      %v1023 = vld [vmem:[%s2 + $0x90] sm:$0xff]
      %v1024 = vld [vmem:[%s2 + $0x98] sm:$0xff]
      %v1025 = vld [vmem:[%s2 + $0xa0] sm:$0xff]
      %v1026 = vld [vmem:[%s2 + $0xa8] sm:$0xff]
      %v1027 = vld [vmem:[%s2 + $0xb0] sm:$0xff]
      %v1028 = vld [vmem:[%s2 + $0xb8] sm:$0xff]
      %v1029 = vld [vmem:[%s2 + $0xc0] sm:$0xff]
      %v1030 = vld [vmem:[%s2 + $0xc8] sm:$0xff]
      %v1031 = vld [vmem:[%s2 + $0xd0] sm:$0xff]
      %v1032 = vld [vmem:[%s2 + $0xd8] sm:$0xff]
      %v1033 = vld [vmem:[%s2 + $0xe0] sm:$0xff]
      %v1034 = vld [vmem:[%s2 + $0xe8] sm:$0xff]
      %v1035 = vld [vmem:[%s2 + $0xf0] sm:$0xff]
      %v1036 = vld [vmem:[%s2 + $0xf8] sm:$0xff]
      %v1037 = vld [vmem:[%s2 + $0x100] sm:$0xff]
      %v1038 = vld [vmem:[%s2 + $0x108] sm:$0xff]
      %v1039 = vld [vmem:[%s2 + $0x110] sm:$0xff]
      %v1040 = vld [vmem:[%s2 + $0x118] sm:$0xff]
      %v1041 = vld [vmem:[%s2 + $0x120] sm:$0xff]
      %v1042 = vld [vmem:[%s2 + $0x128] sm:$0xff]
      %v1043 = vld [vmem:[%s2 + $0x130] sm:$0xff]
      %v1044 = vld [vmem:[%s2 + $0x138] sm:$0xff]
      %v1045 = vld [vmem:[%s2 + $0x140] sm:$0xff]
      %v1046 = vld [vmem:[%s2 + $0x148] sm:$0xff]
      %v1047 = vld [vmem:[%s2 + $0x150] sm:$0xff]
      %v1048 = vld [vmem:[%s2 + $0x158] sm:$0xff]
      %v1049 = vld [vmem:[%s2 + $0x160] sm:$0xff]
      %v1050 = vld [vmem:[%s2 + $0x168] sm:$0xff]
      %v1051 = vld [vmem:[%s2 + $0x170] sm:$0xff]
      %v1052 = vld [vmem:[%s2 + $0x178] sm:$0xff]
      %v1053 = vld [vmem:[%s2 + $0x180] sm:$0xff]
      %v1054 = vld [vmem:[%s2 + $0x188] sm:$0xff]
      %v1055 = vld [vmem:[%s2 + $0x190] sm:$0xff]
      %v1056 = vld [vmem:[%s2 + $0x198] sm:$0xff]
      %v1057 = vld [vmem:[%s2 + $0x1a0] sm:$0xff]
      %v1058 = vld [vmem:[%s2 + $0x1a8] sm:$0xff]
      %v1059 = vld [vmem:[%s2 + $0x1b0] sm:$0xff]
      %v1060 = vld [vmem:[%s2 + $0x1b8] sm:$0xff]
      %v1061 = vld [vmem:[%s2 + $0x1c0] sm:$0xff]
      %v1062 = vld [vmem:[%s2 + $0x1c8] sm:$0xff]
      %v1063 = vld [vmem:[%s2 + $0x1d0] sm:$0xff]
      %v1064 = vld [vmem:[%s2 + $0x1d8] sm:$0xff]
      %v1065 = vld [vmem:[%s2 + $0x1e0] sm:$0xff]
      %v1066 = vld [vmem:[%s2 + $0x1e8] sm:$0xff]
      %v1067 = vld [vmem:[%s2 + $0x1f0] sm:$0xff]
      %v1068 = vld [vmem:[%s2 + $0x1f8] sm:$0xff]
      %v1069 = vld [vmem:[%s2 + $0x200] sm:$0xff]
      %v1070 = vld [vmem:[%s2 + $0x208] sm:$0xff]
      %v1071 = vld [vmem:[%s2 + $0x210] sm:$0xff]
      %v1072 = vld [vmem:[%s2 + $0x218] sm:$0xff]
      %v1073 = vld [vmem:[%s2 + $0x220] sm:$0xff]
      %v1074 = vld [vmem:[%s2 + $0x228] sm:$0xff]
      %v1075 = vld [vmem:[%s2 + $0x230] sm:$0xff]
      %v1076 = vld [vmem:[%s2 + $0x238] sm:$0xff]
      %v1077 = vld [vmem:[%s2 + $0x240] sm:$0xff]
      %v1078 = vld [vmem:[%s2 + $0x248] sm:$0xff]
      %v1079 = vld [vmem:[%s2 + $0x250] sm:$0xff]
      %v1080 = vld [vmem:[%s2 + $0x258] sm:$0xff]
      %v1081 = vld [vmem:[%s2 + $0x260] sm:$0xff]
      %v1082 = vld [vmem:[%s2 + $0x268] sm:$0xff]
      %v1083 = vld [vmem:[%s2 + $0x270] sm:$0xff]
      %v1084 = vld [vmem:[%s2 + $0x278] sm:$0xff]
      %v1085 = vld [vmem:[%s2 + $0x280] sm:$0xff]
      %v1086 = vld [vmem:[%s2 + $0x288] sm:$0xff]
      %v1087 = vld [vmem:[%s2 + $0x290] sm:$0xff]
      %v1088 = vld [vmem:[%s2 + $0x298] sm:$0xff]
      %v1089 = vld [vmem:[%s2 + $0x2a0] sm:$0xff]
      %v1090 = vld [vmem:[%s2 + $0x2a8] sm:$0xff]
      %v1091 = vld [vmem:[%s2 + $0x2b0] sm:$0xff]
      %v1092 = vld [vmem:[%s2 + $0x2b8] sm:$0xff]
      %v1093 = vld [vmem:[%s2 + $0x2c0] sm:$0xff]
      %v1094 = vld [vmem:[%s2 + $0x2c8] sm:$0xff]
      %v1095 = vld [vmem:[%s2 + $0x2d0] sm:$0xff]
      %v1096 = vld [vmem:[%s2 + $0x2d8] sm:$0xff]
      %v1097 = vld [vmem:[%s2 + $0x2e0] sm:$0xff]
      %v1098 = vld [vmem:[%s2 + $0x2e8] sm:$0xff]
      %v1099 = vld [vmem:[%s2 + $0x2f0] sm:$0xff]
      %v1100 = vld [vmem:[%s2 + $0x2f8] sm:$0xff]
      %v1101 = vld [vmem:[%s2 + $0x300] sm:$0xff]
      %v1102 = vld [vmem:[%s2 + $0x308] sm:$0xff]
      %v1103 = vld [vmem:[%s2 + $0x310] sm:$0xff]
      %v1104 = vld [vmem:[%s2 + $0x318] sm:$0xff]
      %v1105 = vld [vmem:[%s2 + $0x320] sm:$0xff]
      %v1106 = vld [vmem:[%s2 + $0x328] sm:$0xff]
      %v1107 = vld [vmem:[%s2 + $0x330] sm:$0xff]
      %v1108 = vld [vmem:[%s2 + $0x338] sm:$0xff]
      %v1109 = vld [vmem:[%s2 + $0x340] sm:$0xff]
      %v1110 = vld [vmem:[%s2 + $0x348] sm:$0xff]
      %v1111 = vld [vmem:[%s2 + $0x350] sm:$0xff]
      %v1112 = vld [vmem:[%s2 + $0x358] sm:$0xff]
      %v1113 = vld [vmem:[%s2 + $0x360] sm:$0xff]
      %v1114 = vld [vmem:[%s2 + $0x368] sm:$0xff]
      %v1115 = vld [vmem:[%s2 + $0x370] sm:$0xff]
      %v1116 = vld [vmem:[%s2 + $0x378] sm:$0xff]
      %v1117 = vld [vmem:[%s2 + $0x380] sm:$0xff]
      %v1118 = vld [vmem:[%s2 + $0x388] sm:$0xff]
      %v1119 = vld [vmem:[%s2 + $0x390] sm:$0xff]
      %v1120 = vld [vmem:[%s2 + $0x398] sm:$0xff]
      %v1121 = vld [vmem:[%s2 + $0x3a0] sm:$0xff]
      %v1122 = vld [vmem:[%s2 + $0x3a8] sm:$0xff]
      %v1123 = vld [vmem:[%s2 + $0x3b0] sm:$0xff]
      %v1124 = vld [vmem:[%s2 + $0x3b8] sm:$0xff]
      %v1125 = vld [vmem:[%s2 + $0x3c0] sm:$0xff]
      %v1126 = vld [vmem:[%s2 + $0x3c8] sm:$0xff]
      %v1127 = vld [vmem:[%s2 + $0x3d0] sm:$0xff]
      %v1128 = vld [vmem:[%s2 + $0x3d8] sm:$0xff]
      %v1129 = vld [vmem:[%s2 + $0x3e0] sm:$0xff]
      %v1130 = vld [vmem:[%s2 + $0x3e8] sm:$0xff]
      %v1131 = vld [vmem:[%s2 + $0x3f0] sm:$0xff]
      %v1132 = vld [vmem:[%s2 + $0x3f8] sm:$0xff]
      %v1149 = vunpack.c.l.b16 %v279
      %v1150 = vunpack.c.h.b16 %v279
      %v1151 = vunpack.c.l.b16 %v280
      %v1152 = vunpack.c.h.b16 %v280
      %v1153 = vunpack.c.l.b16 %v283
      %v1154 = vunpack.c.h.b16 %v283
      %v1155 = vunpack.c.l.b16 %v284
      %v1156 = vunpack.c.h.b16 %v284
      %v1157 = vunpack.c.l.b16 %v287
      %v1158 = vunpack.c.h.b16 %v287
      %v1159 = vunpack.c.l.b16 %v288
      %v1160 = vunpack.c.h.b16 %v288
      %v1161 = vunpack.c.l.b16 %v291
      %v1162 = vunpack.c.h.b16 %v291
      %v1163 = vunpack.c.l.b16 %v292
      %v1164 = vunpack.c.h.b16 %v292
      %v1165 = vunpack.c.l.b16 %v295
      %v1166 = vunpack.c.h.b16 %v295
      %v1167 = vunpack.c.l.b16 %v296
      %v1168 = vunpack.c.h.b16 %v296
      %v1169 = vunpack.c.l.b16 %v299
      %v1170 = vunpack.c.h.b16 %v299
      %v1171 = vunpack.c.l.b16 %v300
      %v1172 = vunpack.c.h.b16 %v300
      %v1173 = vunpack.c.l.b16 %v303
      %v1174 = vunpack.c.h.b16 %v303
      %v1175 = vunpack.c.l.b16 %v304
      %v1176 = vunpack.c.h.b16 %v304
      %v1177 = vunpack.c.l.b16 %v307
      %v1178 = vunpack.c.h.b16 %v307
      %v1179 = vunpack.c.l.b16 %v308
      %v1180 = vunpack.c.h.b16 %v308
      %v1181 = vpack.c.b16 %v1153, %v1149
      %v1182 = vpack.c.b16 %v1154, %v1150
      %v1183 = vpack.c.b16 %v1155, %v1151
      %v1184 = vpack.c.b16 %v1156, %v1152
      %v1185 = vpack.c.b16 %v1161, %v1157
      %v1186 = vpack.c.b16 %v1162, %v1158
      %v1187 = vpack.c.b16 %v1163, %v1159
      %v1188 = vpack.c.b16 %v1164, %v1160
      %v1189 = vpack.c.b16 %v1169, %v1165
      %v1190 = vpack.c.b16 %v1170, %v1166
      %v1191 = vpack.c.b16 %v1171, %v1167
      %v1192 = vpack.c.b16 %v1172, %v1168
      %v1193 = vpack.c.b16 %v1177, %v1173
      %v1194 = vpack.c.b16 %v1178, %v1174
      %v1195 = vpack.c.b16 %v1179, %v1175
      %v1196 = vpack.c.b16 %v1180, %v1176
      %v1341 = vunpack.c.l.b16 %v1005
      %v1342 = vunpack.c.h.b16 %v1005
      %v1343 = vunpack.c.l.b16 %v1006
      %v1344 = vunpack.c.h.b16 %v1006
      %v1345 = vunpack.c.l.b16 %v1007
      %v1346 = vunpack.c.h.b16 %v1007
      %v1347 = vunpack.c.l.b16 %v1008
      %v1348 = vunpack.c.h.b16 %v1008
      %v1349 = vunpack.c.l.b16 %v1009
      %v1350 = vunpack.c.h.b16 %v1009
      %v1351 = vunpack.c.l.b16 %v1010
      %v1352 = vunpack.c.h.b16 %v1010
      %v1353 = vunpack.c.l.b16 %v1011
      %v1354 = vunpack.c.h.b16 %v1011
      %v1355 = vunpack.c.l.b16 %v1012
      %v1356 = vunpack.c.h.b16 %v1012
      %v1357 = vunpack.c.l.b16 %v1013
      %v1358 = vunpack.c.h.b16 %v1013
      %v1359 = vunpack.c.l.b16 %v1014
      %v1360 = vunpack.c.h.b16 %v1014
      %v1361 = vunpack.c.l.b16 %v1015
      %v1362 = vunpack.c.h.b16 %v1015
      %v1363 = vunpack.c.l.b16 %v1016
      %v1364 = vunpack.c.h.b16 %v1016
      %v1365 = vunpack.c.l.b16 %v1017
      %v1366 = vunpack.c.h.b16 %v1017
      %v1367 = vunpack.c.l.b16 %v1018
      %v1368 = vunpack.c.h.b16 %v1018
      %v1369 = vunpack.c.l.b16 %v1019
      %v1370 = vunpack.c.h.b16 %v1019
      %v1371 = vunpack.c.l.b16 %v1020
      %v1372 = vunpack.c.h.b16 %v1020
      %v1373 = vunpack.c.l.b16 %v1021
      %v1374 = vunpack.c.h.b16 %v1021
      %v1375 = vunpack.c.l.b16 %v1022
      %v1376 = vunpack.c.h.b16 %v1022
      %v1377 = vunpack.c.l.b16 %v1023
      %v1378 = vunpack.c.h.b16 %v1023
      %v1379 = vunpack.c.l.b16 %v1024
      %v1380 = vunpack.c.h.b16 %v1024
      %v1381 = vunpack.c.l.b16 %v1025
      %v1382 = vunpack.c.h.b16 %v1025
      %v1383 = vunpack.c.l.b16 %v1026
      %v1384 = vunpack.c.h.b16 %v1026
      %v1385 = vunpack.c.l.b16 %v1027
      %v1386 = vunpack.c.h.b16 %v1027
      %v1387 = vunpack.c.l.b16 %v1028
      %v1388 = vunpack.c.h.b16 %v1028
      %v1389 = vunpack.c.l.b16 %v1029
      %v1390 = vunpack.c.h.b16 %v1029
      %v1391 = vunpack.c.l.b16 %v1030
      %v1392 = vunpack.c.h.b16 %v1030
      %v1393 = vunpack.c.l.b16 %v1031
      %v1394 = vunpack.c.h.b16 %v1031
      %v1395 = vunpack.c.l.b16 %v1032
      %v1396 = vunpack.c.h.b16 %v1032
      %v1397 = vunpack.c.l.b16 %v1033
      %v1398 = vunpack.c.h.b16 %v1033
      %v1399 = vunpack.c.l.b16 %v1034
      %v1400 = vunpack.c.h.b16 %v1034
      %v1401 = vunpack.c.l.b16 %v1035
      %v1402 = vunpack.c.h.b16 %v1035
      %v1403 = vunpack.c.l.b16 %v1036
      %v1404 = vunpack.c.h.b16 %v1036
      %v1405 = vunpack.c.l.b16 %v1037
      %v1406 = vunpack.c.h.b16 %v1037
      %v1407 = vunpack.c.l.b16 %v1038
      %v1408 = vunpack.c.h.b16 %v1038
      %v1409 = vunpack.c.l.b16 %v1039
      %v1410 = vunpack.c.h.b16 %v1039
      %v1411 = vunpack.c.l.b16 %v1040
      %v1412 = vunpack.c.h.b16 %v1040
      %v1413 = vunpack.c.l.b16 %v1041
      %v1414 = vunpack.c.h.b16 %v1041
      %v1415 = vunpack.c.l.b16 %v1042
      %v1416 = vunpack.c.h.b16 %v1042
      %v1417 = vunpack.c.l.b16 %v1043
      %v1418 = vunpack.c.h.b16 %v1043
      %v1419 = vunpack.c.l.b16 %v1044
      %v1420 = vunpack.c.h.b16 %v1044
      %v1421 = vunpack.c.l.b16 %v1045
      %v1422 = vunpack.c.h.b16 %v1045
      %v1423 = vunpack.c.l.b16 %v1046
      %v1424 = vunpack.c.h.b16 %v1046
      %v1425 = vunpack.c.l.b16 %v1047
      %v1426 = vunpack.c.h.b16 %v1047
      %v1427 = vunpack.c.l.b16 %v1048
      %v1428 = vunpack.c.h.b16 %v1048
      %v1429 = vunpack.c.l.b16 %v1049
      %v1430 = vunpack.c.h.b16 %v1049
      %v1431 = vunpack.c.l.b16 %v1050
      %v1432 = vunpack.c.h.b16 %v1050
      %v1433 = vunpack.c.l.b16 %v1051
      %v1434 = vunpack.c.h.b16 %v1051
      %v1435 = vunpack.c.l.b16 %v1052
      %v1436 = vunpack.c.h.b16 %v1052
      %v1437 = vunpack.c.l.b16 %v1053
      %v1438 = vunpack.c.h.b16 %v1053
      %v1439 = vunpack.c.l.b16 %v1054
      %v1440 = vunpack.c.h.b16 %v1054
      %v1441 = vunpack.c.l.b16 %v1055
      %v1442 = vunpack.c.h.b16 %v1055
      %v1443 = vunpack.c.l.b16 %v1056
      %v1444 = vunpack.c.h.b16 %v1056
      %v1445 = vunpack.c.l.b16 %v1057
      %v1446 = vunpack.c.h.b16 %v1057
      %v1447 = vunpack.c.l.b16 %v1058
      %v1448 = vunpack.c.h.b16 %v1058
      %v1449 = vunpack.c.l.b16 %v1059
      %v1450 = vunpack.c.h.b16 %v1059
      %v1451 = vunpack.c.l.b16 %v1060
      %v1452 = vunpack.c.h.b16 %v1060
      %v1453 = vunpack.c.l.b16 %v1061
      %v1454 = vunpack.c.h.b16 %v1061
      %v1455 = vunpack.c.l.b16 %v1062
      %v1456 = vunpack.c.h.b16 %v1062
      %v1457 = vunpack.c.l.b16 %v1063
      %v1458 = vunpack.c.h.b16 %v1063
      %v1459 = vunpack.c.l.b16 %v1064
      %v1460 = vunpack.c.h.b16 %v1064
      %v1461 = vunpack.c.l.b16 %v1065
      %v1462 = vunpack.c.h.b16 %v1065
      %v1463 = vunpack.c.l.b16 %v1066
      %v1464 = vunpack.c.h.b16 %v1066
      %v1465 = vunpack.c.l.b16 %v1067
      %v1466 = vunpack.c.h.b16 %v1067
      %v1467 = vunpack.c.l.b16 %v1068
      %v1468 = vunpack.c.h.b16 %v1068
      %v1469 = vunpack.c.l.b16 %v1069
      %v1470 = vunpack.c.h.b16 %v1069
      %v1471 = vunpack.c.l.b16 %v1070
      %v1472 = vunpack.c.h.b16 %v1070
      %v1473 = vunpack.c.l.b16 %v1071
      %v1474 = vunpack.c.h.b16 %v1071
      %v1475 = vunpack.c.l.b16 %v1072
      %v1476 = vunpack.c.h.b16 %v1072
      %v1477 = vunpack.c.l.b16 %v1073
      %v1478 = vunpack.c.h.b16 %v1073
      %v1479 = vunpack.c.l.b16 %v1074
      %v1480 = vunpack.c.h.b16 %v1074
      %v1481 = vunpack.c.l.b16 %v1075
      %v1482 = vunpack.c.h.b16 %v1075
      %v1483 = vunpack.c.l.b16 %v1076
      %v1484 = vunpack.c.h.b16 %v1076
      %v1485 = vunpack.c.l.b16 %v1077
      %v1486 = vunpack.c.h.b16 %v1077
      %v1487 = vunpack.c.l.b16 %v1078
      %v1488 = vunpack.c.h.b16 %v1078
      %v1489 = vunpack.c.l.b16 %v1079
      %v1490 = vunpack.c.h.b16 %v1079
      %v1491 = vunpack.c.l.b16 %v1080
      %v1492 = vunpack.c.h.b16 %v1080
      %v1493 = vunpack.c.l.b16 %v1081
      %v1494 = vunpack.c.h.b16 %v1081
      %v1495 = vunpack.c.l.b16 %v1082
      %v1496 = vunpack.c.h.b16 %v1082
      %v1497 = vunpack.c.l.b16 %v1083
      %v1498 = vunpack.c.h.b16 %v1083
      %v1499 = vunpack.c.l.b16 %v1084
      %v1500 = vunpack.c.h.b16 %v1084
      %v1501 = vunpack.c.l.b16 %v1085
      %v1502 = vunpack.c.h.b16 %v1085
      %v1503 = vunpack.c.l.b16 %v1086
      %v1504 = vunpack.c.h.b16 %v1086
      %v1505 = vunpack.c.l.b16 %v1087
      %v1506 = vunpack.c.h.b16 %v1087
      %v1507 = vunpack.c.l.b16 %v1088
      %v1508 = vunpack.c.h.b16 %v1088
      %v1509 = vunpack.c.l.b16 %v1089
      %v1510 = vunpack.c.h.b16 %v1089
      %v1511 = vunpack.c.l.b16 %v1090
      %v1512 = vunpack.c.h.b16 %v1090
      %v1513 = vunpack.c.l.b16 %v1091
      %v1514 = vunpack.c.h.b16 %v1091
      %v1515 = vunpack.c.l.b16 %v1092
      %v1516 = vunpack.c.h.b16 %v1092
      %v1517 = vunpack.c.l.b16 %v1093
      %v1518 = vunpack.c.h.b16 %v1093
      %v1519 = vunpack.c.l.b16 %v1094
      %v1520 = vunpack.c.h.b16 %v1094
      %v1521 = vunpack.c.l.b16 %v1095
      %v1522 = vunpack.c.h.b16 %v1095
      %v1523 = vunpack.c.l.b16 %v1096
      %v1524 = vunpack.c.h.b16 %v1096
      %v1525 = vunpack.c.l.b16 %v1097
      %v1526 = vunpack.c.h.b16 %v1097
      %v1527 = vunpack.c.l.b16 %v1098
      %v1528 = vunpack.c.h.b16 %v1098
      %v1529 = vunpack.c.l.b16 %v1099
      %v1530 = vunpack.c.h.b16 %v1099
      %v1531 = vunpack.c.l.b16 %v1100
      %v1532 = vunpack.c.h.b16 %v1100
      %v1533 = vunpack.c.l.b16 %v1101
      %v1534 = vunpack.c.h.b16 %v1101
      %v1535 = vunpack.c.l.b16 %v1102
      %v1536 = vunpack.c.h.b16 %v1102
      %v1537 = vunpack.c.l.b16 %v1103
      %v1538 = vunpack.c.h.b16 %v1103
      %v1539 = vunpack.c.l.b16 %v1104
      %v1540 = vunpack.c.h.b16 %v1104
      %v1541 = vunpack.c.l.b16 %v1105
      %v1542 = vunpack.c.h.b16 %v1105
      %v1543 = vunpack.c.l.b16 %v1106
      %v1544 = vunpack.c.h.b16 %v1106
      %v1545 = vunpack.c.l.b16 %v1107
      %v1546 = vunpack.c.h.b16 %v1107
      %v1547 = vunpack.c.l.b16 %v1108
      %v1548 = vunpack.c.h.b16 %v1108
      %v1549 = vunpack.c.l.b16 %v1109
      %v1550 = vunpack.c.h.b16 %v1109
      %v1551 = vunpack.c.l.b16 %v1110
      %v1552 = vunpack.c.h.b16 %v1110
      %v1553 = vunpack.c.l.b16 %v1111
      %v1554 = vunpack.c.h.b16 %v1111
      %v1555 = vunpack.c.l.b16 %v1112
      %v1556 = vunpack.c.h.b16 %v1112
      %v1557 = vunpack.c.l.b16 %v1113
      %v1558 = vunpack.c.h.b16 %v1113
      %v1559 = vunpack.c.l.b16 %v1114
      %v1560 = vunpack.c.h.b16 %v1114
      %v1561 = vunpack.c.l.b16 %v1115
      %v1562 = vunpack.c.h.b16 %v1115
      %v1563 = vunpack.c.l.b16 %v1116
      %v1564 = vunpack.c.h.b16 %v1116
      %v1565 = vunpack.c.l.b16 %v1117
      %v1566 = vunpack.c.h.b16 %v1117
      %v1567 = vunpack.c.l.b16 %v1118
      %v1568 = vunpack.c.h.b16 %v1118
      %v1569 = vunpack.c.l.b16 %v1119
      %v1570 = vunpack.c.h.b16 %v1119
      %v1571 = vunpack.c.l.b16 %v1120
      %v1572 = vunpack.c.h.b16 %v1120
      %v1573 = vunpack.c.l.b16 %v1121
      %v1574 = vunpack.c.h.b16 %v1121
      %v1575 = vunpack.c.l.b16 %v1122
      %v1576 = vunpack.c.h.b16 %v1122
      %v1577 = vunpack.c.l.b16 %v1123
      %v1578 = vunpack.c.h.b16 %v1123
      %v1579 = vunpack.c.l.b16 %v1124
      %v1580 = vunpack.c.h.b16 %v1124
      %v1581 = vunpack.c.l.b16 %v1125
      %v1582 = vunpack.c.h.b16 %v1125
      %v1583 = vunpack.c.l.b16 %v1126
      %v1584 = vunpack.c.h.b16 %v1126
      %v1585 = vunpack.c.l.b16 %v1127
      %v1586 = vunpack.c.h.b16 %v1127
      %v1587 = vunpack.c.l.b16 %v1128
      %v1588 = vunpack.c.h.b16 %v1128
      %v1589 = vunpack.c.l.b16 %v1129
      %v1590 = vunpack.c.h.b16 %v1129
      %v1591 = vunpack.c.l.b16 %v1130
      %v1592 = vunpack.c.h.b16 %v1130
      %v1593 = vunpack.c.l.b16 %v1131
      %v1594 = vunpack.c.h.b16 %v1131
      %v1595 = vunpack.c.l.b16 %v1132
      %v1596 = vunpack.c.h.b16 %v1132
      %v1597 = vpack.c.b16 %v1343, %v1341
      %v1598 = vpack.c.b16 %v1344, %v1342
      %v1599 = vpack.c.b16 %v1347, %v1345
      %v1600 = vpack.c.b16 %v1348, %v1346
      %v1601 = vpack.c.b16 %v1351, %v1349
      %v1602 = vpack.c.b16 %v1352, %v1350
      %v1603 = vpack.c.b16 %v1355, %v1353
      %v1604 = vpack.c.b16 %v1356, %v1354
      %v1605 = vpack.c.b16 %v1359, %v1357
      %v1606 = vpack.c.b16 %v1360, %v1358
      %v1607 = vpack.c.b16 %v1363, %v1361
      %v1608 = vpack.c.b16 %v1364, %v1362
      %v1609 = vpack.c.b16 %v1367, %v1365
      %v1610 = vpack.c.b16 %v1368, %v1366
      %v1611 = vpack.c.b16 %v1371, %v1369
      %v1612 = vpack.c.b16 %v1372, %v1370
      %v1613 = vpack.c.b16 %v1375, %v1373
      %v1614 = vpack.c.b16 %v1376, %v1374
      %v1615 = vpack.c.b16 %v1379, %v1377
      %v1616 = vpack.c.b16 %v1380, %v1378
      %v1617 = vpack.c.b16 %v1383, %v1381
      %v1618 = vpack.c.b16 %v1384, %v1382
      %v1619 = vpack.c.b16 %v1387, %v1385
      %v1620 = vpack.c.b16 %v1388, %v1386
      %v1621 = vpack.c.b16 %v1391, %v1389
      %v1622 = vpack.c.b16 %v1392, %v1390
      %v1623 = vpack.c.b16 %v1395, %v1393
      %v1624 = vpack.c.b16 %v1396, %v1394
      %v1625 = vpack.c.b16 %v1399, %v1397
      %v1626 = vpack.c.b16 %v1400, %v1398
      %v1627 = vpack.c.b16 %v1403, %v1401
      %v1628 = vpack.c.b16 %v1404, %v1402
      %v1629 = vpack.c.b16 %v1407, %v1405
      %v1630 = vpack.c.b16 %v1408, %v1406
      %v1631 = vpack.c.b16 %v1411, %v1409
      %v1632 = vpack.c.b16 %v1412, %v1410
      %v1633 = vpack.c.b16 %v1415, %v1413
      %v1634 = vpack.c.b16 %v1416, %v1414
      %v1635 = vpack.c.b16 %v1419, %v1417
      %v1636 = vpack.c.b16 %v1420, %v1418
      %v1637 = vpack.c.b16 %v1423, %v1421
      %v1638 = vpack.c.b16 %v1424, %v1422
      %v1639 = vpack.c.b16 %v1427, %v1425
      %v1640 = vpack.c.b16 %v1428, %v1426
      %v1641 = vpack.c.b16 %v1431, %v1429
      %v1642 = vpack.c.b16 %v1432, %v1430
      %v1643 = vpack.c.b16 %v1435, %v1433
      %v1644 = vpack.c.b16 %v1436, %v1434
      %v1645 = vpack.c.b16 %v1439, %v1437
      %v1646 = vpack.c.b16 %v1440, %v1438
      %v1647 = vpack.c.b16 %v1443, %v1441
      %v1648 = vpack.c.b16 %v1444, %v1442
      %v1649 = vpack.c.b16 %v1447, %v1445
      %v1650 = vpack.c.b16 %v1448, %v1446
      %v1651 = vpack.c.b16 %v1451, %v1449
      %v1652 = vpack.c.b16 %v1452, %v1450
      %v1653 = vpack.c.b16 %v1455, %v1453
      %v1654 = vpack.c.b16 %v1456, %v1454
      %v1655 = vpack.c.b16 %v1459, %v1457
      %v1656 = vpack.c.b16 %v1460, %v1458
      %v1657 = vpack.c.b16 %v1463, %v1461
      %v1658 = vpack.c.b16 %v1464, %v1462
      %v1659 = vpack.c.b16 %v1467, %v1465
      %v1660 = vpack.c.b16 %v1468, %v1466
      %v1661 = vpack.c.b16 %v1471, %v1469
      %v1662 = vpack.c.b16 %v1472, %v1470
      %v1663 = vpack.c.b16 %v1475, %v1473
      %v1664 = vpack.c.b16 %v1476, %v1474
      %v1665 = vpack.c.b16 %v1479, %v1477
      %v1666 = vpack.c.b16 %v1480, %v1478
      %v1667 = vpack.c.b16 %v1483, %v1481
      %v1668 = vpack.c.b16 %v1484, %v1482
      %v1669 = vpack.c.b16 %v1487, %v1485
      %v1670 = vpack.c.b16 %v1488, %v1486
      %v1671 = vpack.c.b16 %v1491, %v1489
      %v1672 = vpack.c.b16 %v1492, %v1490
      %v1673 = vpack.c.b16 %v1495, %v1493
      %v1674 = vpack.c.b16 %v1496, %v1494
      %v1675 = vpack.c.b16 %v1499, %v1497
      %v1676 = vpack.c.b16 %v1500, %v1498
      %v1677 = vpack.c.b16 %v1503, %v1501
      %v1678 = vpack.c.b16 %v1504, %v1502
      %v1679 = vpack.c.b16 %v1507, %v1505
      %v1680 = vpack.c.b16 %v1508, %v1506
      %v1681 = vpack.c.b16 %v1511, %v1509
      %v1682 = vpack.c.b16 %v1512, %v1510
      %v1683 = vpack.c.b16 %v1515, %v1513
      %v1684 = vpack.c.b16 %v1516, %v1514
      %v1685 = vpack.c.b16 %v1519, %v1517
      %v1686 = vpack.c.b16 %v1520, %v1518
      %v1687 = vpack.c.b16 %v1523, %v1521
      %v1688 = vpack.c.b16 %v1524, %v1522
      %v1689 = vpack.c.b16 %v1527, %v1525
      %v1690 = vpack.c.b16 %v1528, %v1526
      %v1691 = vpack.c.b16 %v1531, %v1529
      %v1692 = vpack.c.b16 %v1532, %v1530
      %v1693 = vpack.c.b16 %v1535, %v1533
      %v1694 = vpack.c.b16 %v1536, %v1534
      %v1695 = vpack.c.b16 %v1539, %v1537
      %v1696 = vpack.c.b16 %v1540, %v1538
      %v1697 = vpack.c.b16 %v1543, %v1541
      %v1698 = vpack.c.b16 %v1544, %v1542
      %v1699 = vpack.c.b16 %v1547, %v1545
      %v1700 = vpack.c.b16 %v1548, %v1546
      %v1701 = vpack.c.b16 %v1551, %v1549
      %v1702 = vpack.c.b16 %v1552, %v1550
      %v1703 = vpack.c.b16 %v1555, %v1553
      %v1704 = vpack.c.b16 %v1556, %v1554
      %v1705 = vpack.c.b16 %v1559, %v1557
      %v1706 = vpack.c.b16 %v1560, %v1558
      %v1707 = vpack.c.b16 %v1563, %v1561
      %v1708 = vpack.c.b16 %v1564, %v1562
      %v1709 = vpack.c.b16 %v1567, %v1565
      %v1710 = vpack.c.b16 %v1568, %v1566
      %v1711 = vpack.c.b16 %v1571, %v1569
      %v1712 = vpack.c.b16 %v1572, %v1570
      %v1713 = vpack.c.b16 %v1575, %v1573
      %v1714 = vpack.c.b16 %v1576, %v1574
      %v1715 = vpack.c.b16 %v1579, %v1577
      %v1716 = vpack.c.b16 %v1580, %v1578
      %v1717 = vpack.c.b16 %v1583, %v1581
      %v1718 = vpack.c.b16 %v1584, %v1582
      %v1719 = vpack.c.b16 %v1587, %v1585
      %v1720 = vpack.c.b16 %v1588, %v1586
      %v1721 = vpack.c.b16 %v1591, %v1589
      %v1722 = vpack.c.b16 %v1592, %v1590
      %v1723 = vpack.c.b16 %v1595, %v1593
      %v1724 = vpack.c.b16 %v1596, %v1594
      %1853 = vmatpush.bf16.msra.mxu0 %v1611
      %1854 = vmatpush.bf16.msra.mxu0 %v1609
      %1855 = vmatpush.bf16.msra.mxu0 %v1607
      %1856 = vmatpush.bf16.msra.mxu0 %v1605
      %1857 = vmatpush.bf16.msra.mxu0 %v1603
      %1858 = vmatpush.bf16.msra.mxu0 %v1601
      %1859 = vmatpush.bf16.msra.mxu0 %v1599
      %1860 = vmatpush.bf16.msra.mxu0 %v1597
      %1861 = vmatmul.bf16.gmra.mxu0 %v421
      %v1862 = vpop.f32.mrf.mxu0
      %v1863 = vadd.f32 0.0, %v1862
      %v1864 = vpop.f32.mrf.mxu0
      %v1865 = vadd.f32 0.0, %v1864
      %1866 = vmatmul.bf16.gmra.mxu0 %v425
      %v1867 = vpop.f32.mrf.mxu0
      %v1868 = vadd.f32 0.0, %v1867
      %v1869 = vpop.f32.mrf.mxu0
      %v1870 = vadd.f32 0.0, %v1869
      %1871 = vmatmul.bf16.gmra.mxu0 %v429
      %v1872 = vpop.f32.mrf.mxu0
      %v1873 = vadd.f32 0.0, %v1872
      %v1874 = vpop.f32.mrf.mxu0
      %v1875 = vadd.f32 0.0, %v1874
      %1876 = vmatmul.bf16.gmra.mxu0 %v433
      %v1877 = vpop.f32.mrf.mxu0
      %v1878 = vadd.f32 0.0, %v1877
      %v1879 = vpop.f32.mrf.mxu0
      %v1880 = vadd.f32 0.0, %v1879
      %1881 = vdwg.mxu0
      %1882 = vmatpush.bf16.msra.mxu0 %v1627
      %1883 = vmatpush.bf16.msra.mxu0 %v1625
      %1884 = vmatpush.bf16.msra.mxu0 %v1623
      %1885 = vmatpush.bf16.msra.mxu0 %v1621
      %1886 = vmatpush.bf16.msra.mxu0 %v1619
      %1887 = vmatpush.bf16.msra.mxu0 %v1617
      %1888 = vmatpush.bf16.msra.mxu0 %v1615
      %1889 = vmatpush.bf16.msra.mxu0 %v1613
      %1890 = vmatmul.bf16.gmra.mxu0 %v422
      %v1891 = vpop.f32.mrf.mxu0
      %v1892 = vadd.f32 %v1863, %v1891
      %v1893 = vpop.f32.mrf.mxu0
      %v1894 = vadd.f32 %v1865, %v1893
      %1895 = vmatmul.bf16.gmra.mxu0 %v426
      %v1896 = vpop.f32.mrf.mxu0
      %v1897 = vadd.f32 %v1868, %v1896
      %v1898 = vpop.f32.mrf.mxu0
      %v1899 = vadd.f32 %v1870, %v1898
      %1900 = vmatmul.bf16.gmra.mxu0 %v430
      %v1901 = vpop.f32.mrf.mxu0
      %v1902 = vadd.f32 %v1873, %v1901
      %v1903 = vpop.f32.mrf.mxu0
      %v1904 = vadd.f32 %v1875, %v1903
      %1905 = vmatmul.bf16.gmra.mxu0 %v434
      %v1906 = vpop.f32.mrf.mxu0
      %v1907 = vadd.f32 %v1878, %v1906
      %v1908 = vpop.f32.mrf.mxu0
      %v1909 = vadd.f32 %v1880, %v1908
      %1910 = vdwg.mxu0
      %1911 = vmatpush.bf16.msra.mxu0 %v1643
      %1912 = vmatpush.bf16.msra.mxu0 %v1641
      %1913 = vmatpush.bf16.msra.mxu0 %v1639
      %1914 = vmatpush.bf16.msra.mxu0 %v1637
      %1915 = vmatpush.bf16.msra.mxu0 %v1635
      %1916 = vmatpush.bf16.msra.mxu0 %v1633
      %1917 = vmatpush.bf16.msra.mxu0 %v1631
      %1918 = vmatpush.bf16.msra.mxu0 %v1629
      %1919 = vmatmul.bf16.gmra.mxu0 %v423
      %v1920 = vpop.f32.mrf.mxu0
      %v1921 = vadd.f32 %v1892, %v1920
      %v1922 = vpop.f32.mrf.mxu0
      %v1923 = vadd.f32 %v1894, %v1922
      %1924 = vmatmul.bf16.gmra.mxu0 %v427
      %v1925 = vpop.f32.mrf.mxu0
      %v1926 = vadd.f32 %v1897, %v1925
      %v1927 = vpop.f32.mrf.mxu0
      %v1928 = vadd.f32 %v1899, %v1927
      %1929 = vmatmul.bf16.gmra.mxu0 %v431
      %v1930 = vpop.f32.mrf.mxu0
      %v1931 = vadd.f32 %v1902, %v1930
      %v1932 = vpop.f32.mrf.mxu0
      %v1933 = vadd.f32 %v1904, %v1932
      %1934 = vmatmul.bf16.gmra.mxu0 %v435
      %v1935 = vpop.f32.mrf.mxu0
      %v1936 = vadd.f32 %v1907, %v1935
      %v1937 = vpop.f32.mrf.mxu0
      %v1938 = vadd.f32 %v1909, %v1937
      %1939 = vdwg.mxu0
      %1940 = vmatpush.bf16.msra.mxu0 %v1659
      %1941 = vmatpush.bf16.msra.mxu0 %v1657
      %1942 = vmatpush.bf16.msra.mxu0 %v1655
      %1943 = vmatpush.bf16.msra.mxu0 %v1653
      %1944 = vmatpush.bf16.msra.mxu0 %v1651
      %1945 = vmatpush.bf16.msra.mxu0 %v1649
      %1946 = vmatpush.bf16.msra.mxu0 %v1647
      %1947 = vmatpush.bf16.msra.mxu0 %v1645
      %1948 = vmatmul.bf16.gmra.mxu0 %v424
      %v1949 = vpop.f32.mrf.mxu0
      %v1950 = vadd.f32 %v1921, %v1949
      %v1951 = vpop.f32.mrf.mxu0
      %v1952 = vadd.f32 %v1923, %v1951
      %1953 = vmatmul.bf16.gmra.mxu0 %v428
      %v1954 = vpop.f32.mrf.mxu0
      %v1955 = vadd.f32 %v1926, %v1954
      %v1956 = vpop.f32.mrf.mxu0
      %v1957 = vadd.f32 %v1928, %v1956
      %1958 = vmatmul.bf16.gmra.mxu0 %v432
      %v1959 = vpop.f32.mrf.mxu0
      %v1960 = vadd.f32 %v1931, %v1959
      %v1961 = vpop.f32.mrf.mxu0
      %v1962 = vadd.f32 %v1933, %v1961
      %1963 = vmatmul.bf16.gmra.mxu0 %v436
      %v1964 = vpop.f32.mrf.mxu0
      %v1965 = vadd.f32 %v1936, %v1964
      %v1966 = vpop.f32.mrf.mxu0
      %v1967 = vadd.f32 %v1938, %v1966
      %1968 = vdwg.mxu0
      %1969 = vmatpush.bf16.msra.mxu0 %v1675
      %1970 = vmatpush.bf16.msra.mxu0 %v1673
      %1971 = vmatpush.bf16.msra.mxu0 %v1671
      %1972 = vmatpush.bf16.msra.mxu0 %v1669
      %1973 = vmatpush.bf16.msra.mxu0 %v1667
      %1974 = vmatpush.bf16.msra.mxu0 %v1665
      %1975 = vmatpush.bf16.msra.mxu0 %v1663
      %1976 = vmatpush.bf16.msra.mxu0 %v1661
      %1977 = vmatmul.bf16.gmra.mxu0 %v1181
      %v1978 = vpop.f32.mrf.mxu0
      %v1979 = vadd.f32 %v1950, %v1978
      %v1980 = vpop.f32.mrf.mxu0
      %v1981 = vadd.f32 %v1952, %v1980
      %1982 = vmatmul.bf16.gmra.mxu0 %v1185
      %v1983 = vpop.f32.mrf.mxu0
      %v1984 = vadd.f32 %v1955, %v1983
      %v1985 = vpop.f32.mrf.mxu0
      %v1986 = vadd.f32 %v1957, %v1985
      %1987 = vmatmul.bf16.gmra.mxu0 %v1189
      %v1988 = vpop.f32.mrf.mxu0
      %v1989 = vadd.f32 %v1960, %v1988
      %v1990 = vpop.f32.mrf.mxu0
      %v1991 = vadd.f32 %v1962, %v1990
      %1992 = vmatmul.bf16.gmra.mxu0 %v1193
      %v1993 = vpop.f32.mrf.mxu0
      %v1994 = vadd.f32 %v1965, %v1993
      %v1995 = vpop.f32.mrf.mxu0
      %v1996 = vadd.f32 %v1967, %v1995
      %1997 = vdwg.mxu0
      %1998 = vmatpush.bf16.msra.mxu0 %v1691
      %1999 = vmatpush.bf16.msra.mxu0 %v1689
      %2000 = vmatpush.bf16.msra.mxu0 %v1687
      %2001 = vmatpush.bf16.msra.mxu0 %v1685
      %2002 = vmatpush.bf16.msra.mxu0 %v1683
      %2003 = vmatpush.bf16.msra.mxu0 %v1681
      %2004 = vmatpush.bf16.msra.mxu0 %v1679
      %2005 = vmatpush.bf16.msra.mxu0 %v1677
      %2006 = vmatmul.bf16.gmra.mxu0 %v1182
      %v2007 = vpop.f32.mrf.mxu0
      %v2008 = vadd.f32 %v1979, %v2007
      %v2009 = vpop.f32.mrf.mxu0
      %v2010 = vadd.f32 %v1981, %v2009
      %2011 = vmatmul.bf16.gmra.mxu0 %v1186
      %v2012 = vpop.f32.mrf.mxu0
      %v2013 = vadd.f32 %v1984, %v2012
      %v2014 = vpop.f32.mrf.mxu0
      %v2015 = vadd.f32 %v1986, %v2014
      %2016 = vmatmul.bf16.gmra.mxu0 %v1190
      %v2017 = vpop.f32.mrf.mxu0
      %v2018 = vadd.f32 %v1989, %v2017
      %v2019 = vpop.f32.mrf.mxu0
      %v2020 = vadd.f32 %v1991, %v2019
      %2021 = vmatmul.bf16.gmra.mxu0 %v1194
      %v2022 = vpop.f32.mrf.mxu0
      %v2023 = vadd.f32 %v1994, %v2022
      %v2024 = vpop.f32.mrf.mxu0
      %v2025 = vadd.f32 %v1996, %v2024
      %2026 = vdwg.mxu0
      %2027 = vmatpush.bf16.msra.mxu0 %v1707
      %2028 = vmatpush.bf16.msra.mxu0 %v1705
      %2029 = vmatpush.bf16.msra.mxu0 %v1703
      %2030 = vmatpush.bf16.msra.mxu0 %v1701
      %2031 = vmatpush.bf16.msra.mxu0 %v1699
      %2032 = vmatpush.bf16.msra.mxu0 %v1697
      %2033 = vmatpush.bf16.msra.mxu0 %v1695
      %2034 = vmatpush.bf16.msra.mxu0 %v1693
      %2035 = vmatmul.bf16.gmra.mxu0 %v1183
      %v2036 = vpop.f32.mrf.mxu0
      %v2037 = vadd.f32 %v2008, %v2036
      %v2038 = vpop.f32.mrf.mxu0
      %v2039 = vadd.f32 %v2010, %v2038
      %2040 = vmatmul.bf16.gmra.mxu0 %v1187
      %v2041 = vpop.f32.mrf.mxu0
      %v2042 = vadd.f32 %v2013, %v2041
      %v2043 = vpop.f32.mrf.mxu0
      %v2044 = vadd.f32 %v2015, %v2043
      %2045 = vmatmul.bf16.gmra.mxu0 %v1191
      %v2046 = vpop.f32.mrf.mxu0
      %v2047 = vadd.f32 %v2018, %v2046
      %v2048 = vpop.f32.mrf.mxu0
      %v2049 = vadd.f32 %v2020, %v2048
      %2050 = vmatmul.bf16.gmra.mxu0 %v1195
      %v2051 = vpop.f32.mrf.mxu0
      %v2052 = vadd.f32 %v2023, %v2051
      %v2053 = vpop.f32.mrf.mxu0
      %v2054 = vadd.f32 %v2025, %v2053
      %2055 = vdwg.mxu0
      %2056 = vmatpush.bf16.msra.mxu0 %v1723
      %2057 = vmatpush.bf16.msra.mxu0 %v1721
      %2058 = vmatpush.bf16.msra.mxu0 %v1719
      %2059 = vmatpush.bf16.msra.mxu0 %v1717
      %2060 = vmatpush.bf16.msra.mxu0 %v1715
      %2061 = vmatpush.bf16.msra.mxu0 %v1713
      %2062 = vmatpush.bf16.msra.mxu0 %v1711
      %2063 = vmatpush.bf16.msra.mxu0 %v1709
      %2064 = vmatmul.bf16.gmra.mxu0 %v1184
      %v2065 = vpop.f32.mrf.mxu0
      %v2066 = vadd.f32 %v2037, %v2065
      %v2067 = vpop.f32.mrf.mxu0
      %v2068 = vadd.f32 %v2039, %v2067
      %2069 = vmatmul.bf16.gmra.mxu0 %v1188
      %v2070 = vpop.f32.mrf.mxu0
      %v2071 = vadd.f32 %v2042, %v2070
      %v2072 = vpop.f32.mrf.mxu0
      %v2073 = vadd.f32 %v2044, %v2072
      %2074 = vmatmul.bf16.gmra.mxu0 %v1192
      %v2075 = vpop.f32.mrf.mxu0
      %v2076 = vadd.f32 %v2047, %v2075
      %v2077 = vpop.f32.mrf.mxu0
      %v2078 = vadd.f32 %v2049, %v2077
      %2079 = vmatmul.bf16.gmra.mxu0 %v1196
      %v2080 = vpop.f32.mrf.mxu0
      %v2081 = vadd.f32 %v2052, %v2080
      %v2082 = vpop.f32.mrf.mxu0
      %v2083 = vadd.f32 %v2054, %v2082
      %2084 = vdwg.mxu0
      %2085 = vmatpush.bf16.msra.mxu0 %v1612
      %2086 = vmatpush.bf16.msra.mxu0 %v1610
      %2087 = vmatpush.bf16.msra.mxu0 %v1608
      %2088 = vmatpush.bf16.msra.mxu0 %v1606
      %2089 = vmatpush.bf16.msra.mxu0 %v1604
      %2090 = vmatpush.bf16.msra.mxu0 %v1602
      %2091 = vmatpush.bf16.msra.mxu0 %v1600
      %2092 = vmatpush.bf16.msra.mxu0 %v1598
      %2093 = vmatmul.bf16.gmra.mxu0 %v421
      %v2094 = vpop.f32.mrf.mxu0
      %v2095 = vadd.f32 0.0, %v2094
      %v2096 = vpop.f32.mrf.mxu0
      %v2097 = vadd.f32 0.0, %v2096
      %2098 = vmatmul.bf16.gmra.mxu0 %v425
      %v2099 = vpop.f32.mrf.mxu0
      %v2100 = vadd.f32 0.0, %v2099
      %v2101 = vpop.f32.mrf.mxu0
      %v2102 = vadd.f32 0.0, %v2101
      %2103 = vmatmul.bf16.gmra.mxu0 %v429
      %v2104 = vpop.f32.mrf.mxu0
      %v2105 = vadd.f32 0.0, %v2104
      %v2106 = vpop.f32.mrf.mxu0
      %v2107 = vadd.f32 0.0, %v2106
      %2108 = vmatmul.bf16.gmra.mxu0 %v433
      %v2109 = vpop.f32.mrf.mxu0
      %v2110 = vadd.f32 0.0, %v2109
      %v2111 = vpop.f32.mrf.mxu0
      %v2112 = vadd.f32 0.0, %v2111
      %2113 = vdwg.mxu0
      %2114 = vmatpush.bf16.msra.mxu0 %v1628
      %2115 = vmatpush.bf16.msra.mxu0 %v1626
      %2116 = vmatpush.bf16.msra.mxu0 %v1624
      %2117 = vmatpush.bf16.msra.mxu0 %v1622
      %2118 = vmatpush.bf16.msra.mxu0 %v1620
      %2119 = vmatpush.bf16.msra.mxu0 %v1618
      %2120 = vmatpush.bf16.msra.mxu0 %v1616
      %2121 = vmatpush.bf16.msra.mxu0 %v1614
      %2122 = vmatmul.bf16.gmra.mxu0 %v422
      %v2123 = vpop.f32.mrf.mxu0
      %v2124 = vadd.f32 %v2095, %v2123
      %v2125 = vpop.f32.mrf.mxu0
      %v2126 = vadd.f32 %v2097, %v2125
      %2127 = vmatmul.bf16.gmra.mxu0 %v426
      %v2128 = vpop.f32.mrf.mxu0
      %v2129 = vadd.f32 %v2100, %v2128
      %v2130 = vpop.f32.mrf.mxu0
      %v2131 = vadd.f32 %v2102, %v2130
      %2132 = vmatmul.bf16.gmra.mxu0 %v430
      %v2133 = vpop.f32.mrf.mxu0
      %v2134 = vadd.f32 %v2105, %v2133
      %v2135 = vpop.f32.mrf.mxu0
      %v2136 = vadd.f32 %v2107, %v2135
      %2137 = vmatmul.bf16.gmra.mxu0 %v434
      %v2138 = vpop.f32.mrf.mxu0
      %v2139 = vadd.f32 %v2110, %v2138
      %v2140 = vpop.f32.mrf.mxu0
      %v2141 = vadd.f32 %v2112, %v2140
      %2142 = vdwg.mxu0
      %2143 = vmatpush.bf16.msra.mxu0 %v1644
      %2144 = vmatpush.bf16.msra.mxu0 %v1642
      %2145 = vmatpush.bf16.msra.mxu0 %v1640
      %2146 = vmatpush.bf16.msra.mxu0 %v1638
      %2147 = vmatpush.bf16.msra.mxu0 %v1636
      %2148 = vmatpush.bf16.msra.mxu0 %v1634
      %2149 = vmatpush.bf16.msra.mxu0 %v1632
      %2150 = vmatpush.bf16.msra.mxu0 %v1630
      %2151 = vmatmul.bf16.gmra.mxu0 %v423
      %v2152 = vpop.f32.mrf.mxu0
      %v2153 = vadd.f32 %v2124, %v2152
      %v2154 = vpop.f32.mrf.mxu0
      %v2155 = vadd.f32 %v2126, %v2154
      %2156 = vmatmul.bf16.gmra.mxu0 %v427
      %v2157 = vpop.f32.mrf.mxu0
      %v2158 = vadd.f32 %v2129, %v2157
      %v2159 = vpop.f32.mrf.mxu0
      %v2160 = vadd.f32 %v2131, %v2159
      %2161 = vmatmul.bf16.gmra.mxu0 %v431
      %v2162 = vpop.f32.mrf.mxu0
      %v2163 = vadd.f32 %v2134, %v2162
      %v2164 = vpop.f32.mrf.mxu0
      %v2165 = vadd.f32 %v2136, %v2164
      %2166 = vmatmul.bf16.gmra.mxu0 %v435
      %v2167 = vpop.f32.mrf.mxu0
      %v2168 = vadd.f32 %v2139, %v2167
      %v2169 = vpop.f32.mrf.mxu0
      %v2170 = vadd.f32 %v2141, %v2169
      %2171 = vdwg.mxu0
      %2172 = vmatpush.bf16.msra.mxu0 %v1660
      %2173 = vmatpush.bf16.msra.mxu0 %v1658
      %2174 = vmatpush.bf16.msra.mxu0 %v1656
      %2175 = vmatpush.bf16.msra.mxu0 %v1654
      %2176 = vmatpush.bf16.msra.mxu0 %v1652
      %2177 = vmatpush.bf16.msra.mxu0 %v1650
      %2178 = vmatpush.bf16.msra.mxu0 %v1648
      %2179 = vmatpush.bf16.msra.mxu0 %v1646
      %2180 = vmatmul.bf16.gmra.mxu0 %v424
      %v2181 = vpop.f32.mrf.mxu0
      %v2182 = vadd.f32 %v2153, %v2181
      %v2183 = vpop.f32.mrf.mxu0
      %v2184 = vadd.f32 %v2155, %v2183
      %2185 = vmatmul.bf16.gmra.mxu0 %v428
      %v2186 = vpop.f32.mrf.mxu0
      %v2187 = vadd.f32 %v2158, %v2186
      %v2188 = vpop.f32.mrf.mxu0
      %v2189 = vadd.f32 %v2160, %v2188
      %2190 = vmatmul.bf16.gmra.mxu0 %v432
      %v2191 = vpop.f32.mrf.mxu0
      %v2192 = vadd.f32 %v2163, %v2191
      %v2193 = vpop.f32.mrf.mxu0
      %v2194 = vadd.f32 %v2165, %v2193
      %2195 = vmatmul.bf16.gmra.mxu0 %v436
      %v2196 = vpop.f32.mrf.mxu0
      %v2197 = vadd.f32 %v2168, %v2196
      %v2198 = vpop.f32.mrf.mxu0
      %v2199 = vadd.f32 %v2170, %v2198
      %2200 = vdwg.mxu0
      %2201 = vmatpush.bf16.msra.mxu0 %v1676
      %2202 = vmatpush.bf16.msra.mxu0 %v1674
      %2203 = vmatpush.bf16.msra.mxu0 %v1672
      %2204 = vmatpush.bf16.msra.mxu0 %v1670
      %2205 = vmatpush.bf16.msra.mxu0 %v1668
      %2206 = vmatpush.bf16.msra.mxu0 %v1666
      %2207 = vmatpush.bf16.msra.mxu0 %v1664
      %2208 = vmatpush.bf16.msra.mxu0 %v1662
      %2209 = vmatmul.bf16.gmra.mxu0 %v1181
      %v2210 = vpop.f32.mrf.mxu0
      %v2211 = vadd.f32 %v2182, %v2210
      %v2212 = vpop.f32.mrf.mxu0
      %v2213 = vadd.f32 %v2184, %v2212
      %2214 = vmatmul.bf16.gmra.mxu0 %v1185
      %v2215 = vpop.f32.mrf.mxu0
      %v2216 = vadd.f32 %v2187, %v2215
      %v2217 = vpop.f32.mrf.mxu0
      %v2218 = vadd.f32 %v2189, %v2217
      %2219 = vmatmul.bf16.gmra.mxu0 %v1189
      %v2220 = vpop.f32.mrf.mxu0
      %v2221 = vadd.f32 %v2192, %v2220
      %v2222 = vpop.f32.mrf.mxu0
      %v2223 = vadd.f32 %v2194, %v2222
      %2224 = vmatmul.bf16.gmra.mxu0 %v1193
      %v2225 = vpop.f32.mrf.mxu0
      %v2226 = vadd.f32 %v2197, %v2225
      %v2227 = vpop.f32.mrf.mxu0
      %v2228 = vadd.f32 %v2199, %v2227
      %2229 = vdwg.mxu0
      %2230 = vmatpush.bf16.msra.mxu0 %v1692
      %2231 = vmatpush.bf16.msra.mxu0 %v1690
      %2232 = vmatpush.bf16.msra.mxu0 %v1688
      %2233 = vmatpush.bf16.msra.mxu0 %v1686
      %2234 = vmatpush.bf16.msra.mxu0 %v1684
      %2235 = vmatpush.bf16.msra.mxu0 %v1682
      %2236 = vmatpush.bf16.msra.mxu0 %v1680
      %2237 = vmatpush.bf16.msra.mxu0 %v1678
      %2238 = vmatmul.bf16.gmra.mxu0 %v1182
      %v2239 = vpop.f32.mrf.mxu0
      %v2240 = vadd.f32 %v2211, %v2239
      %v2241 = vpop.f32.mrf.mxu0
      %v2242 = vadd.f32 %v2213, %v2241
      %2243 = vmatmul.bf16.gmra.mxu0 %v1186
      %v2244 = vpop.f32.mrf.mxu0
      %v2245 = vadd.f32 %v2216, %v2244
      %v2246 = vpop.f32.mrf.mxu0
      %v2247 = vadd.f32 %v2218, %v2246
      %2248 = vmatmul.bf16.gmra.mxu0 %v1190
      %v2249 = vpop.f32.mrf.mxu0
      %v2250 = vadd.f32 %v2221, %v2249
      %v2251 = vpop.f32.mrf.mxu0
      %v2252 = vadd.f32 %v2223, %v2251
      %2253 = vmatmul.bf16.gmra.mxu0 %v1194
      %v2254 = vpop.f32.mrf.mxu0
      %v2255 = vadd.f32 %v2226, %v2254
      %v2256 = vpop.f32.mrf.mxu0
      %v2257 = vadd.f32 %v2228, %v2256
      %2258 = vdwg.mxu0
      %2259 = vmatpush.bf16.msra.mxu0 %v1708
      %2260 = vmatpush.bf16.msra.mxu0 %v1706
      %2261 = vmatpush.bf16.msra.mxu0 %v1704
      %2262 = vmatpush.bf16.msra.mxu0 %v1702
      %2263 = vmatpush.bf16.msra.mxu0 %v1700
      %2264 = vmatpush.bf16.msra.mxu0 %v1698
      %2265 = vmatpush.bf16.msra.mxu0 %v1696
      %2266 = vmatpush.bf16.msra.mxu0 %v1694
      %2267 = vmatmul.bf16.gmra.mxu0 %v1183
      %v2268 = vpop.f32.mrf.mxu0
      %v2269 = vadd.f32 %v2240, %v2268
      %v2270 = vpop.f32.mrf.mxu0
      %v2271 = vadd.f32 %v2242, %v2270
      %2272 = vmatmul.bf16.gmra.mxu0 %v1187
      %v2273 = vpop.f32.mrf.mxu0
      %v2274 = vadd.f32 %v2245, %v2273
      %v2275 = vpop.f32.mrf.mxu0
      %v2276 = vadd.f32 %v2247, %v2275
      %2277 = vmatmul.bf16.gmra.mxu0 %v1191
      %v2278 = vpop.f32.mrf.mxu0
      %v2279 = vadd.f32 %v2250, %v2278
      %v2280 = vpop.f32.mrf.mxu0
      %v2281 = vadd.f32 %v2252, %v2280
      %2282 = vmatmul.bf16.gmra.mxu0 %v1195
      %v2283 = vpop.f32.mrf.mxu0
      %v2284 = vadd.f32 %v2255, %v2283
      %v2285 = vpop.f32.mrf.mxu0
      %v2286 = vadd.f32 %v2257, %v2285
      %2287 = vdwg.mxu0
      %2288 = vmatpush.bf16.msra.mxu0 %v1724
      %2289 = vmatpush.bf16.msra.mxu0 %v1722
      %2290 = vmatpush.bf16.msra.mxu0 %v1720
      %2291 = vmatpush.bf16.msra.mxu0 %v1718
      %2292 = vmatpush.bf16.msra.mxu0 %v1716
      %2293 = vmatpush.bf16.msra.mxu0 %v1714
      %2294 = vmatpush.bf16.msra.mxu0 %v1712
      %2295 = vmatpush.bf16.msra.mxu0 %v1710
      %2296 = vmatmul.bf16.gmra.mxu0 %v1184
      %v2297 = vpop.f32.mrf.mxu0
      %v2298 = vadd.f32 %v2269, %v2297
      %v2299 = vpop.f32.mrf.mxu0
      %v2300 = vadd.f32 %v2271, %v2299
      %2301 = vmatmul.bf16.gmra.mxu0 %v1188
      %v2302 = vpop.f32.mrf.mxu0
      %v2303 = vadd.f32 %v2274, %v2302
      %v2304 = vpop.f32.mrf.mxu0
      %v2305 = vadd.f32 %v2276, %v2304
      %2306 = vmatmul.bf16.gmra.mxu0 %v1192
      %v2307 = vpop.f32.mrf.mxu0
      %v2308 = vadd.f32 %v2279, %v2307
      %v2309 = vpop.f32.mrf.mxu0
      %v2310 = vadd.f32 %v2281, %v2309
      %2311 = vmatmul.bf16.gmra.mxu0 %v1196
      %v2312 = vpop.f32.mrf.mxu0
      %v2313 = vadd.f32 %v2284, %v2312
      %v2314 = vpop.f32.mrf.mxu0
      %v2315 = vadd.f32 %v2286, %v2314
      %2316 = vdwg.mxu0
      %v2317 = vld [vmem:[%s3] sm:$0xf]
      %v2319 = vperm.slane %v2317, 0
      %v2320 = vperm.slane %v2317, 1
      %v2321 = vperm.slane %v2317, 2
      %v2322 = vperm.slane %v2317, 3
      %v2327 = vadd.f32 %v870, %v2319
      %v2328 = vadd.f32 %v986, %v2320
      %v2329 = vadd.f32 %v2066, %v2321
      %v2330 = vadd.f32 %v2298, %v2322
      %v2331 = vadd.f32 %v872, %v2319
      %v2332 = vadd.f32 %v988, %v2320
      %v2333 = vadd.f32 %v2068, %v2321
      %v2334 = vadd.f32 %v2300, %v2322
      %v2335 = vadd.f32 %v875, %v2319
      %v2336 = vadd.f32 %v991, %v2320
      %v2337 = vadd.f32 %v2071, %v2321
      %v2338 = vadd.f32 %v2303, %v2322
      %v2339 = vadd.f32 %v877, %v2319
      %v2340 = vadd.f32 %v993, %v2320
      %v2341 = vadd.f32 %v2073, %v2321
      %v2342 = vadd.f32 %v2305, %v2322
      %v2343 = vadd.f32 %v880, %v2319
      %v2344 = vadd.f32 %v996, %v2320
      %v2345 = vadd.f32 %v2076, %v2321
      %v2346 = vadd.f32 %v2308, %v2322
      %v2347 = vadd.f32 %v882, %v2319
      %v2348 = vadd.f32 %v998, %v2320
      %v2349 = vadd.f32 %v2078, %v2321
      %v2350 = vadd.f32 %v2310, %v2322
      %v2351 = vadd.f32 %v885, %v2319
      %v2352 = vadd.f32 %v1001, %v2320
      %v2353 = vadd.f32 %v2081, %v2321
      %v2354 = vadd.f32 %v2313, %v2322
      %v2355 = vadd.f32 %v887, %v2319
      %v2356 = vadd.f32 %v1003, %v2320
      %v2357 = vadd.f32 %v2083, %v2321
      %v2358 = vadd.f32 %v2315, %v2322
      %v2359 = vmax.f32 %v2327, 0.0
      %v2360 = vmax.f32 %v2328, 0.0
      %v2361 = vmax.f32 %v2329, 0.0
      %v2362 = vmax.f32 %v2330, 0.0
      %v2363 = vmax.f32 %v2331, 0.0
      %v2364 = vmax.f32 %v2332, 0.0
      %v2365 = vmax.f32 %v2333, 0.0
      %v2366 = vmax.f32 %v2334, 0.0
      %v2367 = vmax.f32 %v2335, 0.0
      %v2368 = vmax.f32 %v2336, 0.0
      %v2369 = vmax.f32 %v2337, 0.0
      %v2370 = vmax.f32 %v2338, 0.0
      %v2371 = vmax.f32 %v2339, 0.0
      %v2372 = vmax.f32 %v2340, 0.0
      %v2373 = vmax.f32 %v2341, 0.0
      %v2374 = vmax.f32 %v2342, 0.0
      %v2375 = vmax.f32 %v2343, 0.0
      %v2376 = vmax.f32 %v2344, 0.0
      %v2377 = vmax.f32 %v2345, 0.0
      %v2378 = vmax.f32 %v2346, 0.0
      %v2379 = vmax.f32 %v2347, 0.0
      %v2380 = vmax.f32 %v2348, 0.0
      %v2381 = vmax.f32 %v2349, 0.0
      %v2382 = vmax.f32 %v2350, 0.0
      %v2383 = vmax.f32 %v2351, 0.0
      %v2384 = vmax.f32 %v2352, 0.0
      %v2385 = vmax.f32 %v2353, 0.0
      %v2386 = vmax.f32 %v2354, 0.0
      %v2387 = vmax.f32 %v2355, 0.0
      %v2388 = vmax.f32 %v2356, 0.0
      %v2389 = vmax.f32 %v2357, 0.0
      %v2390 = vmax.f32 %v2358, 0.0
      %v2391 = vpack.c.bf16 %v2360, %v2359
      %v2392 = vpack.c.bf16 %v2362, %v2361
      %v2393 = vpack.c.bf16 %v2364, %v2363
      %v2394 = vpack.c.bf16 %v2366, %v2365
      %v2395 = vpack.c.bf16 %v2368, %v2367
      %v2396 = vpack.c.bf16 %v2370, %v2369
      %v2397 = vpack.c.bf16 %v2372, %v2371
      %v2398 = vpack.c.bf16 %v2374, %v2373
      %v2399 = vpack.c.bf16 %v2376, %v2375
      %v2400 = vpack.c.bf16 %v2378, %v2377
      %v2401 = vpack.c.bf16 %v2380, %v2379
      %v2402 = vpack.c.bf16 %v2382, %v2381
      %v2403 = vpack.c.bf16 %v2384, %v2383
      %v2404 = vpack.c.bf16 %v2386, %v2385
      %v2405 = vpack.c.bf16 %v2388, %v2387
      %v2406 = vpack.c.bf16 %v2390, %v2389
      %2407 = vst [vmem:[%s266] sm:$0xff] %v2391
      %2408 = vst [vmem:[%s266 + $0x8] sm:$0xff] %v2392
      %2409 = vst [vmem:[%s266 + $0x10] sm:$0xff] %v2393
      %2410 = vst [vmem:[%s266 + $0x18] sm:$0xff] %v2394
      %2411 = vst [vmem:[%s266 + $0x20] sm:$0xff] %v2395
      %2412 = vst [vmem:[%s266 + $0x28] sm:$0xff] %v2396
      %2413 = vst [vmem:[%s266 + $0x30] sm:$0xff] %v2397
      %2414 = vst [vmem:[%s266 + $0x38] sm:$0xff] %v2398
      %2415 = vst [vmem:[%s266 + $0x40] sm:$0xff] %v2399
      %2416 = vst [vmem:[%s266 + $0x48] sm:$0xff] %v2400
      %2417 = vst [vmem:[%s266 + $0x50] sm:$0xff] %v2401
      %2418 = vst [vmem:[%s266 + $0x58] sm:$0xff] %v2402
      %2419 = vst [vmem:[%s266 + $0x60] sm:$0xff] %v2403
      %2420 = vst [vmem:[%s266 + $0x68] sm:$0xff] %v2404
      %2421 = vst [vmem:[%s266 + $0x70] sm:$0xff] %v2405
      %2422 = vst [vmem:[%s266 + $0x78] sm:$0xff] %v2406
      %v2423 = vunpack.c.l.bf16 %v2391
      %v2424 = vunpack.c.h.bf16 %v2391
      %v2425 = vunpack.c.l.bf16 %v2392
      %v2426 = vunpack.c.h.bf16 %v2392
      %v2427 = vunpack.c.l.bf16 %v2393
      %v2428 = vunpack.c.h.bf16 %v2393
      %v2429 = vunpack.c.l.bf16 %v2394
      %v2430 = vunpack.c.h.bf16 %v2394
      %v2431 = vunpack.c.l.bf16 %v2395
      %v2432 = vunpack.c.h.bf16 %v2395
      %v2433 = vunpack.c.l.bf16 %v2396
      %v2434 = vunpack.c.h.bf16 %v2396
      %v2435 = vunpack.c.l.bf16 %v2397
      %v2436 = vunpack.c.h.bf16 %v2397
      %v2437 = vunpack.c.l.bf16 %v2398
      %v2438 = vunpack.c.h.bf16 %v2398
      %v2439 = vunpack.c.l.bf16 %v2399
      %v2440 = vunpack.c.h.bf16 %v2399
      %v2441 = vunpack.c.l.bf16 %v2400
      %v2442 = vunpack.c.h.bf16 %v2400
      %v2443 = vunpack.c.l.bf16 %v2401
      %v2444 = vunpack.c.h.bf16 %v2401
      %v2445 = vunpack.c.l.bf16 %v2402
      %v2446 = vunpack.c.h.bf16 %v2402
      %v2447 = vunpack.c.l.bf16 %v2403
      %v2448 = vunpack.c.h.bf16 %v2403
      %v2449 = vunpack.c.l.bf16 %v2404
      %v2450 = vunpack.c.h.bf16 %v2404
      %v2451 = vunpack.c.l.bf16 %v2405
      %v2452 = vunpack.c.h.bf16 %v2405
      %v2453 = vunpack.c.l.bf16 %v2406
      %v2454 = vunpack.c.h.bf16 %v2406
      %v2455 = vadd.f32 %v2423, %v2427
      %v2456 = vadd.f32 %v2455, %v2431
      %v2457 = vadd.f32 %v2456, %v2435
      %v2458 = vadd.f32 %v2457, %v2439
      %v2459 = vadd.f32 %v2458, %v2443
      %v2460 = vadd.f32 %v2459, %v2447
      %v2461 = vadd.f32 %v2460, %v2451
      %v2462 = vrot.slane %v2461, 4
      %v2463 = vadd.f32 %v2461, %v2462
      %v2464 = vrot.slane %v2463, 2
      %v2465 = vadd.f32 %v2463, %v2464
      %v2466 = vrot.slane %v2465, 1
      %v2467 = vadd.f32 %v2465, %v2466
      %v2468 = vadd.f32 %v2424, %v2428
      %v2469 = vadd.f32 %v2468, %v2432
      %v2470 = vadd.f32 %v2469, %v2436
      %v2471 = vadd.f32 %v2470, %v2440
      %v2472 = vadd.f32 %v2471, %v2444
      %v2473 = vadd.f32 %v2472, %v2448
      %v2474 = vadd.f32 %v2473, %v2452
      %v2475 = vrot.slane %v2474, 4
      %v2476 = vadd.f32 %v2474, %v2475
      %v2477 = vrot.slane %v2476, 2
      %v2478 = vadd.f32 %v2476, %v2477
      %v2479 = vrot.slane %v2478, 1
      %v2480 = vadd.f32 %v2478, %v2479
      %v2481 = vadd.f32 %v2425, %v2429
      %v2482 = vadd.f32 %v2481, %v2433
      %v2483 = vadd.f32 %v2482, %v2437
      %v2484 = vadd.f32 %v2483, %v2441
      %v2485 = vadd.f32 %v2484, %v2445
      %v2486 = vadd.f32 %v2485, %v2449
      %v2487 = vadd.f32 %v2486, %v2453
      %v2488 = vrot.slane %v2487, 4
      %v2489 = vadd.f32 %v2487, %v2488
      %v2490 = vrot.slane %v2489, 2
      %v2491 = vadd.f32 %v2489, %v2490
      %v2492 = vrot.slane %v2491, 1
      %v2493 = vadd.f32 %v2491, %v2492
      %v2494 = vadd.f32 %v2426, %v2430
      %v2495 = vadd.f32 %v2494, %v2434
      %v2496 = vadd.f32 %v2495, %v2438
      %v2497 = vadd.f32 %v2496, %v2442
      %v2498 = vadd.f32 %v2497, %v2446
      %v2499 = vadd.f32 %v2498, %v2450
      %v2500 = vadd.f32 %v2499, %v2454
      %v2501 = vrot.slane %v2500, 4
      %v2502 = vadd.f32 %v2500, %v2501
      %v2503 = vrot.slane %v2502, 2
      %v2504 = vadd.f32 %v2502, %v2503
      %v2505 = vrot.slane %v2504, 1
      %v2506 = vadd.f32 %v2504, %v2505
      %2507 = vst [vmem:[%s271] sm:$0xff] %v2467
      %2508 = vst [vmem:[%s271 + $0x8] sm:$0xff] %v2480
      %2509 = vst [vmem:[%s271 + $0x10] sm:$0xff] %v2493
      %2510 = vst [vmem:[%s271 + $0x18] sm:$0xff] %v2506
      %v2511 = vmul.f32 %v2423, %v2423
      %v2512 = vmul.f32 %v2424, %v2424
      %v2513 = vmul.f32 %v2425, %v2425
      %v2514 = vmul.f32 %v2426, %v2426
      %v2515 = vmul.f32 %v2427, %v2427
      %v2516 = vmul.f32 %v2428, %v2428
      %v2517 = vmul.f32 %v2429, %v2429
      %v2518 = vmul.f32 %v2430, %v2430
      %v2519 = vmul.f32 %v2431, %v2431
      %v2520 = vmul.f32 %v2432, %v2432
      %v2521 = vmul.f32 %v2433, %v2433
      %v2522 = vmul.f32 %v2434, %v2434
      %v2523 = vmul.f32 %v2435, %v2435
      %v2524 = vmul.f32 %v2436, %v2436
      %v2525 = vmul.f32 %v2437, %v2437
      %v2526 = vmul.f32 %v2438, %v2438
      %v2527 = vmul.f32 %v2439, %v2439
      %v2528 = vmul.f32 %v2440, %v2440
      %v2529 = vmul.f32 %v2441, %v2441
      %v2530 = vmul.f32 %v2442, %v2442
      %v2531 = vmul.f32 %v2443, %v2443
      %v2532 = vmul.f32 %v2444, %v2444
      %v2533 = vmul.f32 %v2445, %v2445
      %v2534 = vmul.f32 %v2446, %v2446
      %v2535 = vmul.f32 %v2447, %v2447
      %v2536 = vmul.f32 %v2448, %v2448
      %v2537 = vmul.f32 %v2449, %v2449
      %v2538 = vmul.f32 %v2450, %v2450
      %v2539 = vmul.f32 %v2451, %v2451
      %v2540 = vmul.f32 %v2452, %v2452
      %v2541 = vmul.f32 %v2453, %v2453
      %v2542 = vmul.f32 %v2454, %v2454
      %v2543 = vadd.f32 %v2511, %v2515
      %v2544 = vadd.f32 %v2543, %v2519
      %v2545 = vadd.f32 %v2544, %v2523
      %v2546 = vadd.f32 %v2545, %v2527
      %v2547 = vadd.f32 %v2546, %v2531
      %v2548 = vadd.f32 %v2547, %v2535
      %v2549 = vadd.f32 %v2548, %v2539
      %v2550 = vrot.slane %v2549, 4
      %v2551 = vadd.f32 %v2549, %v2550
      %v2552 = vrot.slane %v2551, 2
      %v2553 = vadd.f32 %v2551, %v2552
      %v2554 = vrot.slane %v2553, 1
      %v2555 = vadd.f32 %v2553, %v2554
      %v2556 = vadd.f32 %v2512, %v2516
      %v2557 = vadd.f32 %v2556, %v2520
      %v2558 = vadd.f32 %v2557, %v2524
      %v2559 = vadd.f32 %v2558, %v2528
      %v2560 = vadd.f32 %v2559, %v2532
      %v2561 = vadd.f32 %v2560, %v2536
      %v2562 = vadd.f32 %v2561, %v2540
      %v2563 = vrot.slane %v2562, 4
      %v2564 = vadd.f32 %v2562, %v2563
      %v2565 = vrot.slane %v2564, 2
      %v2566 = vadd.f32 %v2564, %v2565
      %v2567 = vrot.slane %v2566, 1
      %v2568 = vadd.f32 %v2566, %v2567
      %v2569 = vadd.f32 %v2513, %v2517
      %v2570 = vadd.f32 %v2569, %v2521
      %v2571 = vadd.f32 %v2570, %v2525
      %v2572 = vadd.f32 %v2571, %v2529
      %v2573 = vadd.f32 %v2572, %v2533
      %v2574 = vadd.f32 %v2573, %v2537
      %v2575 = vadd.f32 %v2574, %v2541
      %v2576 = vrot.slane %v2575, 4
      %v2577 = vadd.f32 %v2575, %v2576
      %v2578 = vrot.slane %v2577, 2
      %v2579 = vadd.f32 %v2577, %v2578
      %v2580 = vrot.slane %v2579, 1
      %v2581 = vadd.f32 %v2579, %v2580
      %v2582 = vadd.f32 %v2514, %v2518
      %v2583 = vadd.f32 %v2582, %v2522
      %v2584 = vadd.f32 %v2583, %v2526
      %v2585 = vadd.f32 %v2584, %v2530
      %v2586 = vadd.f32 %v2585, %v2534
      %v2587 = vadd.f32 %v2586, %v2538
      %v2588 = vadd.f32 %v2587, %v2542
      %v2589 = vrot.slane %v2588, 4
      %v2590 = vadd.f32 %v2588, %v2589
      %v2591 = vrot.slane %v2590, 2
      %v2592 = vadd.f32 %v2590, %v2591
      %v2593 = vrot.slane %v2592, 1
      %v2594 = vadd.f32 %v2592, %v2593
      %2595 = vst [vmem:[%s276] sm:$0xff] %v2555
      %2596 = vst [vmem:[%s276 + $0x8] sm:$0xff] %v2568
      %2597 = vst [vmem:[%s276 + $0x10] sm:$0xff] %v2581
      %2598 = vst [vmem:[%s276 + $0x18] sm:$0xff] %v2594
      %p2599 = scmp.lt.s32.totalorder %s18, 1
      %s2600 = scalar_select %p2599, %s18, 1
      %s2601 = smul.addr %s2600, 32
      %s2602 = smul.addr %s2601, 4
      %s2603 = scalar_lea.vmem %s4, %s2602
      %p2604 = scmp.lt.s32.totalorder %s18, 1
      %s2605 = scalar_select %p2604, %s18, 1
      %s2606 = smul.addr %s2605, 4
      %s2607 = smul.addr %s2606, 8
      %s2608 = scalar_lea.vmem %s5, %s2607
      %p2609 = scmp.lt.s32.totalorder %s18, 1
      %s2610 = scalar_select %p2609, %s18, 1
      %s2611 = smul.addr %s2610, 4
      %s2612 = smul.addr %s2611, 8
      %s2613 = scalar_lea.vmem %s6, %s2612
      // Predicated region
      $region37: #{decoder_forward.4} parent=35 // pred_check
        %p2614 = pneg %p125
      $region38: #{decoder_forward.4} parent=35 // pred_check_branch
        %2616 = sbr.rel (%p2614) target = $region40
      $region39: #{decoder_forward.4} parent=35 // pred_region
        _
      $region40: #{decoder_forward.4} parent=35 // pred_fallthru
        _
      // Predicated region
      $region41: #{decoder_forward.4} parent=35 // pred_check
        %p2617 = pneg %p151
      $region42: #{decoder_forward.4} parent=35 // pred_check_branch
        %2619 = sbr.rel (%p2617) target = $region44
      $region43: #{decoder_forward.4} parent=35 // pred_region
        _
      $region44: #{decoder_forward.4} parent=35 // pred_fallthru
        _
      // Predicated region
      $region45: #{decoder_forward.4} parent=35 // pred_check
        %p2620 = pneg %p177
      $region46: #{decoder_forward.4} parent=35 // pred_check_branch
        %2622 = sbr.rel (%p2620) target = $region48
      $region47: #{decoder_forward.4} parent=35 // pred_region
        _
      $region48: #{decoder_forward.4} parent=35 // pred_fallthru
        _
    $region36: #{decoder_forward.4} parent=5 // pred_fallthru
      _
    %p2623 = scmp.le.s32.totalorder 2, %s13
    // Predicated region
    $region49: #{decoder_forward.4} parent=5 // pred_check
      %p2624 = pneg %p2623
    $region50: #{decoder_forward.4} parent=5 // pred_check_branch
      %2626 = sbr.rel (%p2624) target = $region52
    $region51: #{decoder_forward.4} parent=5 // pred_region
      %s2627 = ssub.s32 %s13, 2
      // Predicated region
      $region53: #{decoder_forward.4} parent=51 // pred_check
        %p2628 = pneg %p131
      $region54: #{decoder_forward.4} parent=51 // pred_check_branch
        %2630 = sbr.rel (%p2628) target = $region56
      $region55: #{decoder_forward.4} parent=51 // pred_region
        %p2631 = scmp.lt.s32.totalorder %s19, 1
        %s2632 = scalar_select %p2631, %s19, 1
        %s2633 = smul.addr %s2632, 32
        %s2634 = smul.addr %s2633, 4
        %s2635 = scalar_lea.vmem %s4, %s2634
      $region56: #{decoder_forward.4} parent=51 // pred_fallthru
        _
      // Predicated region
      $region57: #{decoder_forward.4} parent=51 // pred_check
        %p2636 = pneg %p157
      $region58: #{decoder_forward.4} parent=51 // pred_check_branch
        %2638 = sbr.rel (%p2636) target = $region60
      $region59: #{decoder_forward.4} parent=51 // pred_region
        %p2639 = scmp.lt.s32.totalorder %s19, 1
        %s2640 = scalar_select %p2639, %s19, 1
        %s2641 = smul.addr %s2640, 4
        %s2642 = smul.addr %s2641, 8
        %s2643 = scalar_lea.vmem %s5, %s2642
      $region60: #{decoder_forward.4} parent=51 // pred_fallthru
        _
      // Predicated region
      $region61: #{decoder_forward.4} parent=51 // pred_check
        %p2644 = pneg %p183
      $region62: #{decoder_forward.4} parent=51 // pred_check_branch
        %2646 = sbr.rel (%p2644) target = $region64
      $region63: #{decoder_forward.4} parent=51 // pred_region
        %p2647 = scmp.lt.s32.totalorder %s19, 1
        %s2648 = scalar_select %p2647, %s19, 1
        %s2649 = smul.addr %s2648, 4
        %s2650 = smul.addr %s2649, 8
        %s2651 = scalar_lea.vmem %s6, %s2650
      $region64: #{decoder_forward.4} parent=51 // pred_fallthru
        _
    $region52: #{decoder_forward.4} parent=5 // pred_fallthru
      _
  $region6: #{decoder_forward.4} parent=0 // loop_footer
    %s17 = sadd.s32 1, %s13
  $region7: #{decoder_forward.4} parent=0 // loop_footer_branch
    %12 = sbr.rel target = $region3
  $region8: #{decoder_forward.4} parent=0 // loop_exit
    _

// kernel: decoder_forward.5
$region0: #{decoder_forward.5}
  #allocation0 [shape = 'u32[]', space=smem, size = 0x4, offset = 0x4, fixed_abs, tag = 'smem constant byte address 0x4 - core index']
  #allocation1 [shape = 'u32[72,128]{1,0:T(1,128)}', space=vmem, size = 0x9000, scoped, tag = 'internal scratch']
  #allocation2 [shape = 'f32[304,576]{1,0:T(8,128)}', space=vmem, size = 0xbe000, scoped, tag = 'scratch operand']
  %s0 = inlined_call_operand.vmem [shape: bf16[2,304,128], index: 0, kind: input, shape index: {}]
  %s1 = inlined_call_operand.vmem [shape: bf16[128,576], index: 1, kind: input, shape index: {}]
  %s2 = inlined_call_operand.vmem [shape: f32[224,64], index: 2, kind: input, shape index: {}]
  %s3 = inlined_call_operand.vmem [shape: bf16[2,304,64], index: 3, kind: output, shape index: {0}]
  %s4 = inlined_call_operand.vmem [shape: f32[2,8,64], index: 4, kind: output, shape index: {1}]
  %s5 = inlined_call_operand.vmem [shape: f32[2,8,64], index: 5, kind: output, shape index: {2}]
  %6 = xla_tuple %s3, %s4, %s5
  %s7 = sld [smem:[#allocation0]]
  $region61: #{decoder_forward.5} parent=0
    _
  %s9 = ssub.s32 1, %s7
  %s10 = scalar_select 0, %s9, %s7
  loop: start=0, step=1, limit=4
  $region2: #{decoder_forward.5} parent=0 // loop_pre_header
    _
  $region3: #{decoder_forward.5} parent=0 // loop_header
    %s12 = sphi 0, %s16
    %p13 = scmp.ge.s32.totalorder %s12, 4
    %s22 = sphi 0, %s24
    %s25 = sphi 0, %s22
    %s26 = sphi 0, %s25
    %s42 = sphi 0, %s26
    %s46 = sphi 0, %s46
    %s48 = sphi 0, %s46
    %s49 = sphi 0, %s48
    %s63 = sphi 0, %s49
    %s67 = sphi 0, %s67
    %s69 = sphi 0, %s67
    %s70 = sphi 0, %s69
    %s84 = sphi 0, %s70
    %s90 = sphi 0, %s92
    %s93 = sphi 0, %s90
    %s94 = sphi 0, %s93
    %s110 = sphi 0, %s94
    %s116 = sphi 0, %s118
    %s119 = sphi 0, %s116
    %s120 = sphi 0, %s119
    %s136 = sphi 0, %s120
    %s142 = sphi 0, %s144
    %s145 = sphi 0, %s142
    %s146 = sphi 0, %s145
    %s162 = sphi 0, %s146
  $region4: #{decoder_forward.5} parent=0 // loop_header_branch
    %15 = sbr.rel (%p13) target = $region8
  $region5: #{decoder_forward.5} parent=0 // loop_body
    %s17 = ssub.s32 %s12, 1
    %s18 = ssub.s32 %s12, 2
    %s19 = sadd.s32 %s12, 1
    %s20 = ssub.s32 %s12, %s19
    %p21 = scmp.eq.s32.totalorder %s20, 0
    %s23 = sadd.s32 %s22, 1
    %s24 = scalar_select %p21, %s22, %s23
    %p27 = pneg %p21
    %p28 = scmp.eq.s32.totalorder %s12, 1
    %p29 = por %p27, %p28
    %p30 = scmp.ne.s32.totalorder %s22, %s25
    %p31 = scmp.eq.s32.totalorder %s12, 0
    %p32 = por %p30, %p31
    %p33 = scmp.ne.s32.totalorder %s22, %s25
    %p34 = scmp.eq.s32.totalorder %s17, 1
    %p35 = por %p33, %p34
    %p36 = scmp.ne.s32.totalorder %s25, %s26
    %p37 = scmp.eq.s32.totalorder %s17, 0
    %p38 = por %p36, %p37
    %p39 = scmp.ne.s32.totalorder %s25, %s26
    %p40 = scmp.eq.s32.totalorder %s18, 1
    %p41 = por %p39, %p40
    %p43 = scmp.ne.s32.totalorder %s26, %s42
    %p44 = scmp.eq.s32.totalorder %s18, 0
    %p45 = por %p43, %p44
    %s47 = sadd.s32 %s46, 1
    %p50 = scmp.eq.s32.totalorder %s12, 1
    %p51 = scmp.ne.s32.totalorder %s46, %s48
    %p52 = scmp.eq.s32.totalorder %s12, 0
    %p53 = por %p51, %p52
    %p54 = scmp.ne.s32.totalorder %s46, %s48
    %p55 = scmp.eq.s32.totalorder %s17, 1
    %p56 = por %p54, %p55
    %p57 = scmp.ne.s32.totalorder %s48, %s49
    %p58 = scmp.eq.s32.totalorder %s17, 0
    %p59 = por %p57, %p58
    %p60 = scmp.ne.s32.totalorder %s48, %s49
    %p61 = scmp.eq.s32.totalorder %s18, 1
    %p62 = por %p60, %p61
    %p64 = scmp.ne.s32.totalorder %s49, %s63
    %p65 = scmp.eq.s32.totalorder %s18, 0
    %p66 = por %p64, %p65
    %s68 = sadd.s32 %s67, 1
    %p71 = scmp.eq.s32.totalorder %s12, 1
    %p72 = scmp.ne.s32.totalorder %s67, %s69
    %p73 = scmp.eq.s32.totalorder %s12, 0
    %p74 = por %p72, %p73
    %p75 = scmp.ne.s32.totalorder %s67, %s69
    %p76 = scmp.eq.s32.totalorder %s17, 1
    %p77 = por %p75, %p76
    %p78 = scmp.ne.s32.totalorder %s69, %s70
    %p79 = scmp.eq.s32.totalorder %s17, 0
    %p80 = por %p78, %p79
    %p81 = scmp.ne.s32.totalorder %s69, %s70
    %p82 = scmp.eq.s32.totalorder %s18, 1
    %p83 = por %p81, %p82
    %p85 = scmp.ne.s32.totalorder %s70, %s84
    %p86 = scmp.eq.s32.totalorder %s18, 0
    %p87 = por %p85, %p86
    %s88 = ssub.s32 %s12, %s19
    %p89 = scmp.eq.s32.totalorder %s88, 0
    %s91 = sadd.s32 %s90, 1
    %s92 = scalar_select %p89, %s90, %s91
    %p95 = pneg %p89
    %p96 = scmp.eq.s32.totalorder %s12, 1
    %p97 = por %p95, %p96
    %p98 = scmp.ne.s32.totalorder %s90, %s93
    %p99 = scmp.eq.s32.totalorder %s12, 0
    %p100 = por %p98, %p99
    %p101 = scmp.ne.s32.totalorder %s90, %s93
    %p102 = scmp.eq.s32.totalorder %s17, 1
    %p103 = por %p101, %p102
    %p104 = scmp.ne.s32.totalorder %s93, %s94
    %p105 = scmp.eq.s32.totalorder %s17, 0
    %p106 = por %p104, %p105
    %p107 = scmp.ne.s32.totalorder %s93, %s94
    %p108 = scmp.eq.s32.totalorder %s18, 1
    %p109 = por %p107, %p108
    %p111 = scmp.ne.s32.totalorder %s94, %s110
    %p112 = scmp.eq.s32.totalorder %s18, 0
    %p113 = por %p111, %p112
    %s114 = ssub.s32 %s12, %s19
    %p115 = scmp.eq.s32.totalorder %s114, 0
    %s117 = sadd.s32 %s116, 1
    %s118 = scalar_select %p115, %s116, %s117
    %p121 = pneg %p115
    %p122 = scmp.eq.s32.totalorder %s12, 1
    %p123 = por %p121, %p122
    %p124 = scmp.ne.s32.totalorder %s116, %s119
    %p125 = scmp.eq.s32.totalorder %s12, 0
    %p126 = por %p124, %p125
    %p127 = scmp.ne.s32.totalorder %s116, %s119
    %p128 = scmp.eq.s32.totalorder %s17, 1
    %p129 = por %p127, %p128
    %p130 = scmp.ne.s32.totalorder %s119, %s120
    %p131 = scmp.eq.s32.totalorder %s17, 0
    %p132 = por %p130, %p131
    %p133 = scmp.ne.s32.totalorder %s119, %s120
    %p134 = scmp.eq.s32.totalorder %s18, 1
    %p135 = por %p133, %p134
    %p137 = scmp.ne.s32.totalorder %s120, %s136
    %p138 = scmp.eq.s32.totalorder %s18, 0
    %p139 = por %p137, %p138
    %s140 = ssub.s32 %s12, %s19
    %p141 = scmp.eq.s32.totalorder %s140, 0
    %s143 = sadd.s32 %s142, 1
    %s144 = scalar_select %p141, %s142, %s143
    %p147 = pneg %p141
    %p148 = scmp.eq.s32.totalorder %s12, 1
    %p149 = por %p147, %p148
    %p150 = scmp.ne.s32.totalorder %s142, %s145
    %p151 = scmp.eq.s32.totalorder %s12, 0
    %p152 = por %p150, %p151
    %p153 = scmp.ne.s32.totalorder %s142, %s145
    %p154 = scmp.eq.s32.totalorder %s17, 1
    %p155 = por %p153, %p154
    %p156 = scmp.ne.s32.totalorder %s145, %s146
    %p157 = scmp.eq.s32.totalorder %s17, 0
    %p158 = por %p156, %p157
    %p159 = scmp.ne.s32.totalorder %s145, %s146
    %p160 = scmp.eq.s32.totalorder %s18, 1
    %p161 = por %p159, %p160
    %p163 = scmp.ne.s32.totalorder %s146, %s162
    %p164 = scmp.eq.s32.totalorder %s18, 0
    %p165 = por %p163, %p164
    %p166 = scmp.le.s32.totalorder 1, %s12
    %p167 = scmp.lt.s32.totalorder %s12, 3
    %p168 = pnand %p166, %p167
    %p169 = pneg %p168
    // Predicated region
    $region9: #{decoder_forward.5} parent=5 // pred_check
      _
    $region10: #{decoder_forward.5} parent=5 // pred_check_branch
      %171 = sbr.rel (%p168) target = $region12
    $region11: #{decoder_forward.5} parent=5 // pred_region
      %s172 = ssub.s32 %s12, 1
      // Predicated region
      $region13: #{decoder_forward.5} parent=11 // pred_check
        %p173 = pneg %p59
      $region14: #{decoder_forward.5} parent=11 // pred_check_branch
        %175 = sbr.rel (%p173) target = $region16
      $region15: #{decoder_forward.5} parent=11 // pred_region
        _
      $region16: #{decoder_forward.5} parent=11 // pred_fallthru
        _
      // Predicated region
      $region17: #{decoder_forward.5} parent=11 // pred_check
        %p176 = pneg %p80
      $region18: #{decoder_forward.5} parent=11 // pred_check_branch
        %178 = sbr.rel (%p176) target = $region20
      $region19: #{decoder_forward.5} parent=11 // pred_region
        _
      $region20: #{decoder_forward.5} parent=11 // pred_fallthru
        _
    $region12: #{decoder_forward.5} parent=5 // pred_fallthru
      _
    %p179 = scmp.lt.s32.totalorder %s12, 2
    // Predicated region
    $region21: #{decoder_forward.5} parent=5 // pred_check
      %p180 = pneg %p179
    $region22: #{decoder_forward.5} parent=5 // pred_check_branch
      %182 = sbr.rel (%p180) target = $region24
    $region23: #{decoder_forward.5} parent=5 // pred_region
      // Predicated region
      $region25: #{decoder_forward.5} parent=23 // pred_check
        %p183 = pneg %p32
      $region26: #{decoder_forward.5} parent=23 // pred_check_branch
        %185 = sbr.rel (%p183) target = $region28
      $region27: #{decoder_forward.5} parent=23 // pred_region
        %p186 = scmp.lt.s32.totalorder %s12, 1
        %s187 = scalar_select %p186, %s12, 1
        %s188 = smul.addr %s187, 38
        %s189 = smul.addr %s188, 4
        %s190 = scalar_lea.vmem %s0, %s189
      $region28: #{decoder_forward.5} parent=23 // pred_fallthru
        _
    $region24: #{decoder_forward.5} parent=5 // pred_fallthru
      _
    %p191 = scmp.le.s32.totalorder 1, %s12
    %p192 = scmp.lt.s32.totalorder %s12, 3
    %p193 = pnand %p191, %p192
    %p194 = pneg %p193
    // Predicated region
    $region29: #{decoder_forward.5} parent=5 // pred_check
      _
    $region30: #{decoder_forward.5} parent=5 // pred_check_branch
      %196 = sbr.rel (%p193) target = $region32
    $region31: #{decoder_forward.5} parent=5 // pred_region
      %s197 = ssub.s32 %s12, 1
      %p198 = scmp.lt.s32.totalorder %s17, 1
      %s199 = scalar_select %p198, %s17, 1
      %s200 = smul.addr %s199, 38
      %s201 = smul.addr %s200, 4
      %s202 = scalar_lea.vmem %s0, %s201
      %p203 = pneg %p38
      %p204 = pneg %p35
      %p205 = pneg %p59
      %p206 = pneg %p56
      %p207 = pneg %p80
      %p208 = pneg %p77
      %p209 = pneg %p106
      %p210 = pneg %p103
      %p211 = scmp.lt.s32.totalorder %s17, 1
      %s212 = scalar_select %p211, %s17, 1
      %s213 = smul.addr %s212, 38
      %s214 = smul.addr %s213, 4
      %s215 = scalar_lea.vmem %s3, %s214
      %p216 = pneg %p132
      %p217 = pneg %p129
      %p218 = scmp.lt.s32.totalorder %s17, 1
      %s219 = scalar_select %p218, %s17, 1
      %s220 = smul.addr %s219, 8
      %s221 = scalar_lea.vmem %s4, %s220
      %p222 = pneg %p158
      %p223 = pneg %p155
      %p224 = scmp.lt.s32.totalorder %s17, 1
      %s225 = scalar_select %p224, %s17, 1
      %s226 = smul.addr %s225, 8
      %s227 = scalar_lea.vmem %s5, %s226
      %p228 = scmp.lt.s32.totalorder %s17, 1
      %s229 = scalar_select %p228, %s17, 1
      %s230 = smul.addr %s229, 38
      %s231 = smul.addr %s230, 4
      %s232 = scalar_lea.vmem %s0, %s231
      %p233 = scmp.lt.s32.totalorder %s17, 1
      %s234 = scalar_select %p233, %s17, 1
      %s235 = smul.addr %s234, 38
      %s236 = smul.addr %s235, 4
      %s237 = scalar_lea.vmem %s3, %s236
      %p238 = scmp.lt.s32.totalorder %s17, 1
      %s239 = scalar_select %p238, %s17, 1
      %s240 = smul.addr %s239, 8
      %s241 = scalar_lea.vmem %s4, %s240
      %p242 = scmp.lt.s32.totalorder %s17, 1
      %s243 = scalar_select %p242, %s17, 1
      %s244 = smul.addr %s243, 8
      %s245 = scalar_lea.vmem %s5, %s244
      %v247 = vld [vmem:[%s232] sm:$0xf]
      %v248 = vld [vmem:[%s232 + $0x4] sm:$0xf]
      %v249 = vld [vmem:[%s232 + $0x8] sm:$0xf]
      %v250 = vld [vmem:[%s232 + $0xc] sm:$0xf]
      %v251 = vld [vmem:[%s232 + $0x10] sm:$0xf]
      %v252 = vld [vmem:[%s232 + $0x14] sm:$0xf]
      %v253 = vld [vmem:[%s232 + $0x18] sm:$0xf]
      %v254 = vld [vmem:[%s232 + $0x1c] sm:$0xf]
      %v255 = vld [vmem:[%s232 + $0x20] sm:$0xf]
      %v256 = vld [vmem:[%s232 + $0x24] sm:$0xf]
      %v257 = vld [vmem:[%s232 + $0x28] sm:$0xf]
      %v258 = vld [vmem:[%s232 + $0x2c] sm:$0xf]
      %v259 = vld [vmem:[%s232 + $0x30] sm:$0xf]
      %v260 = vld [vmem:[%s232 + $0x34] sm:$0xf]
      %v261 = vld [vmem:[%s232 + $0x38] sm:$0xf]
      %v262 = vld [vmem:[%s232 + $0x3c] sm:$0xf]
      %v263 = vld [vmem:[%s232 + $0x40] sm:$0xf]
      %v264 = vld [vmem:[%s232 + $0x44] sm:$0xf]
      %v265 = vld [vmem:[%s232 + $0x48] sm:$0xf]
      %v266 = vld [vmem:[%s232 + $0x4c] sm:$0xf]
      %v267 = vld [vmem:[%s232 + $0x50] sm:$0xf]
      %v268 = vld [vmem:[%s232 + $0x54] sm:$0xf]
      %v269 = vld [vmem:[%s232 + $0x58] sm:$0xf]
      %v270 = vld [vmem:[%s232 + $0x5c] sm:$0xf]
      %v271 = vld [vmem:[%s232 + $0x60] sm:$0xf]
      %v272 = vld [vmem:[%s232 + $0x64] sm:$0xf]
      %v273 = vld [vmem:[%s232 + $0x68] sm:$0xf]
      %v274 = vld [vmem:[%s232 + $0x6c] sm:$0xf]
      %v275 = vld [vmem:[%s232 + $0x70] sm:$0xf]
      %v276 = vld [vmem:[%s232 + $0x74] sm:$0xf]
      %v277 = vld [vmem:[%s232 + $0x78] sm:$0xf]
      %v278 = vld [vmem:[%s232 + $0x7c] sm:$0xf]
      %v279 = vld [vmem:[%s232 + $0x80] sm:$0xf]
      %v280 = vld [vmem:[%s232 + $0x84] sm:$0xf]
      %v281 = vld [vmem:[%s232 + $0x88] sm:$0xf]
      %v282 = vld [vmem:[%s232 + $0x8c] sm:$0xf]
      %v283 = vld [vmem:[%s232 + $0x90] sm:$0xf]
      %v284 = vld [vmem:[%s232 + $0x94] sm:$0xf]
      %v285 = vld [vmem:[%s1] sm:$0xff]
      %v286 = vld [vmem:[%s1 + $0x8] sm:$0xff]
      %v287 = vld [vmem:[%s1 + $0x10] sm:$0xf]
      %v288 = vld [vmem:[%s1 + $0x14] sm:$0xff]
      %v289 = vld [vmem:[%s1 + $0x1c] sm:$0xff]
      %v290 = vld [vmem:[%s1 + $0x24] sm:$0xf]
      %v291 = vld [vmem:[%s1 + $0x28] sm:$0xff]
      %v292 = vld [vmem:[%s1 + $0x30] sm:$0xff]
      %v293 = vld [vmem:[%s1 + $0x38] sm:$0xf]
      %v294 = vld [vmem:[%s1 + $0x3c] sm:$0xff]
      %v295 = vld [vmem:[%s1 + $0x44] sm:$0xff]
      %v296 = vld [vmem:[%s1 + $0x4c] sm:$0xf]
      %v297 = vld [vmem:[%s1 + $0x50] sm:$0xff]
      %v298 = vld [vmem:[%s1 + $0x58] sm:$0xff]
      %v299 = vld [vmem:[%s1 + $0x60] sm:$0xf]
      %v300 = vld [vmem:[%s1 + $0x64] sm:$0xff]
      %v301 = vld [vmem:[%s1 + $0x6c] sm:$0xff]
      %v302 = vld [vmem:[%s1 + $0x74] sm:$0xf]
      %v303 = vld [vmem:[%s1 + $0x78] sm:$0xff]
      %v304 = vld [vmem:[%s1 + $0x80] sm:$0xff]
      %v305 = vld [vmem:[%s1 + $0x88] sm:$0xf]
      %v306 = vld [vmem:[%s1 + $0x8c] sm:$0xff]
      %v307 = vld [vmem:[%s1 + $0x94] sm:$0xff]
      %v308 = vld [vmem:[%s1 + $0x9c] sm:$0xf]
      %v309 = vld [vmem:[%s1 + $0xa0] sm:$0xff]
      %v310 = vld [vmem:[%s1 + $0xa8] sm:$0xff]
      %v311 = vld [vmem:[%s1 + $0xb0] sm:$0xf]
      %v312 = vld [vmem:[%s1 + $0xb4] sm:$0xff]
      %v313 = vld [vmem:[%s1 + $0xbc] sm:$0xff]
      %v314 = vld [vmem:[%s1 + $0xc4] sm:$0xf]
      %v315 = vld [vmem:[%s1 + $0xc8] sm:$0xff]
      %v316 = vld [vmem:[%s1 + $0xd0] sm:$0xff]
      %v317 = vld [vmem:[%s1 + $0xd8] sm:$0xf]
      %v318 = vld [vmem:[%s1 + $0xdc] sm:$0xff]
      %v319 = vld [vmem:[%s1 + $0xe4] sm:$0xff]
      %v320 = vld [vmem:[%s1 + $0xec] sm:$0xf]
      %v321 = vld [vmem:[%s1 + $0xf0] sm:$0xff]
      %v322 = vld [vmem:[%s1 + $0xf8] sm:$0xff]
      %v323 = vld [vmem:[%s1 + $0x100] sm:$0xf]
      %v324 = vld [vmem:[%s1 + $0x104] sm:$0xff]
      %v325 = vld [vmem:[%s1 + $0x10c] sm:$0xff]
      %v326 = vld [vmem:[%s1 + $0x114] sm:$0xf]
      %v327 = vld [vmem:[%s1 + $0x118] sm:$0xff]
      %v328 = vld [vmem:[%s1 + $0x120] sm:$0xff]
      %v329 = vld [vmem:[%s1 + $0x128] sm:$0xf]
      %v330 = vld [vmem:[%s1 + $0x12c] sm:$0xff]
      %v331 = vld [vmem:[%s1 + $0x134] sm:$0xff]
      %v332 = vld [vmem:[%s1 + $0x13c] sm:$0xf]
      %v371 = vunpack.c.l.b16 %v247
      %v372 = vunpack.c.l.b16 %v248
      %v373 = vunpack.c.l.b16 %v249
      %v374 = vunpack.c.l.b16 %v250
      %v375 = vunpack.c.l.b16 %v251
      %v376 = vunpack.c.l.b16 %v252
      %v377 = vunpack.c.l.b16 %v253
      %v378 = vunpack.c.l.b16 %v254
      %v379 = vunpack.c.l.b16 %v255
      %v380 = vunpack.c.l.b16 %v256
      %v381 = vunpack.c.l.b16 %v257
      %v382 = vunpack.c.l.b16 %v258
      %v383 = vunpack.c.l.b16 %v259
      %v384 = vunpack.c.l.b16 %v260
      %v385 = vunpack.c.l.b16 %v261
      %v386 = vunpack.c.l.b16 %v262
      %v387 = vunpack.c.l.b16 %v263
      %v388 = vunpack.c.l.b16 %v264
      %v389 = vunpack.c.l.b16 %v265
      %v390 = vunpack.c.l.b16 %v266
      %v391 = vunpack.c.l.b16 %v267
      %v392 = vunpack.c.l.b16 %v268
      %v393 = vunpack.c.l.b16 %v269
      %v394 = vunpack.c.l.b16 %v270
      %v395 = vunpack.c.l.b16 %v271
      %v396 = vunpack.c.l.b16 %v272
      %v397 = vunpack.c.l.b16 %v273
      %v398 = vunpack.c.l.b16 %v274
      %v399 = vunpack.c.l.b16 %v275
      %v400 = vunpack.c.l.b16 %v276
      %v401 = vunpack.c.l.b16 %v277
      %v402 = vunpack.c.l.b16 %v278
      %v403 = vunpack.c.l.b16 %v279
      %v404 = vunpack.c.l.b16 %v280
      %v405 = vunpack.c.l.b16 %v281
      %v406 = vunpack.c.l.b16 %v282
      %v407 = vunpack.c.l.b16 %v283
      %v408 = vunpack.c.l.b16 %v284
      %v409 = vpack.c.b16 %v372, %v371
      %v410 = vpack.c.b16 %v374, %v373
      %v411 = vpack.c.b16 %v376, %v375
      %v412 = vpack.c.b16 %v378, %v377
      %v413 = vpack.c.b16 %v380, %v379
      %v414 = vpack.c.b16 %v382, %v381
      %v415 = vpack.c.b16 %v384, %v383
      %v416 = vpack.c.b16 %v386, %v385
      %v417 = vpack.c.b16 %v388, %v387
      %v418 = vpack.c.b16 %v390, %v389
      %v419 = vpack.c.b16 %v392, %v391
      %v420 = vpack.c.b16 %v394, %v393
      %v421 = vpack.c.b16 %v396, %v395
      %v422 = vpack.c.b16 %v398, %v397
      %v423 = vpack.c.b16 %v400, %v399
      %v424 = vpack.c.b16 %v402, %v401
      %v425 = vpack.c.b16 %v404, %v403
      %v426 = vpack.c.b16 %v406, %v405
      %v427 = vpack.c.b16 %v408, %v407
      %v495 = vunpack.c.l.b16 %v285
      %v496 = vunpack.c.h.b16 %v285
      %v497 = vunpack.c.l.b16 %v286
      %v498 = vunpack.c.h.b16 %v286
      %v499 = vunpack.c.l.b16 %v287
      %v500 = vunpack.c.l.b16 %v288
      %v501 = vunpack.c.h.b16 %v288
      %v502 = vunpack.c.l.b16 %v289
      %v503 = vunpack.c.h.b16 %v289
      %v504 = vunpack.c.l.b16 %v290
      %v505 = vunpack.c.l.b16 %v291
      %v506 = vunpack.c.h.b16 %v291
      %v507 = vunpack.c.l.b16 %v292
      %v508 = vunpack.c.h.b16 %v292
      %v509 = vunpack.c.l.b16 %v293
      %v510 = vunpack.c.l.b16 %v294
      %v511 = vunpack.c.h.b16 %v294
      %v512 = vunpack.c.l.b16 %v295
      %v513 = vunpack.c.h.b16 %v295
      %v514 = vunpack.c.l.b16 %v296
      %v515 = vunpack.c.l.b16 %v297
      %v516 = vunpack.c.h.b16 %v297
      %v517 = vunpack.c.l.b16 %v298
      %v518 = vunpack.c.h.b16 %v298
      %v519 = vunpack.c.l.b16 %v299
      %v520 = vunpack.c.l.b16 %v300
      %v521 = vunpack.c.h.b16 %v300
      %v522 = vunpack.c.l.b16 %v301
      %v523 = vunpack.c.h.b16 %v301
      %v524 = vunpack.c.l.b16 %v302
      %v525 = vunpack.c.l.b16 %v303
      %v526 = vunpack.c.h.b16 %v303
      %v527 = vunpack.c.l.b16 %v304
      %v528 = vunpack.c.h.b16 %v304
      %v529 = vunpack.c.l.b16 %v305
      %v530 = vunpack.c.l.b16 %v306
      %v531 = vunpack.c.h.b16 %v306
      %v532 = vunpack.c.l.b16 %v307
      %v533 = vunpack.c.h.b16 %v307
      %v534 = vunpack.c.l.b16 %v308
      %v535 = vunpack.c.l.b16 %v309
      %v536 = vunpack.c.h.b16 %v309
      %v537 = vunpack.c.l.b16 %v310
      %v538 = vunpack.c.h.b16 %v310
      %v539 = vunpack.c.l.b16 %v311
      %v540 = vunpack.c.l.b16 %v312
      %v541 = vunpack.c.h.b16 %v312
      %v542 = vunpack.c.l.b16 %v313
      %v543 = vunpack.c.h.b16 %v313
      %v544 = vunpack.c.l.b16 %v314
      %v545 = vunpack.c.l.b16 %v315
      %v546 = vunpack.c.h.b16 %v315
      %v547 = vunpack.c.l.b16 %v316
      %v548 = vunpack.c.h.b16 %v316
      %v549 = vunpack.c.l.b16 %v317
      %v550 = vunpack.c.l.b16 %v318
      %v551 = vunpack.c.h.b16 %v318
      %v552 = vunpack.c.l.b16 %v319
      %v553 = vunpack.c.h.b16 %v319
      %v554 = vunpack.c.l.b16 %v320
      %v555 = vunpack.c.l.b16 %v321
      %v556 = vunpack.c.h.b16 %v321
      %v557 = vunpack.c.l.b16 %v322
      %v558 = vunpack.c.h.b16 %v322
      %v559 = vunpack.c.l.b16 %v323
      %v560 = vunpack.c.l.b16 %v324
      %v561 = vunpack.c.h.b16 %v324
      %v562 = vunpack.c.l.b16 %v325
      %v563 = vunpack.c.h.b16 %v325
      %v564 = vunpack.c.l.b16 %v326
      %v565 = vunpack.c.l.b16 %v327
      %v566 = vunpack.c.h.b16 %v327
      %v567 = vunpack.c.l.b16 %v328
      %v568 = vunpack.c.h.b16 %v328
      %v569 = vunpack.c.l.b16 %v329
      %v570 = vunpack.c.l.b16 %v330
      %v571 = vunpack.c.h.b16 %v330
      %v572 = vunpack.c.l.b16 %v331
      %v573 = vunpack.c.h.b16 %v331
      %v574 = vunpack.c.l.b16 %v332
      %v575 = vpack.c.b16 %v500, %v495
      %v576 = vpack.c.b16 %v501, %v496
      %v577 = vpack.c.b16 %v502, %v497
      %v578 = vpack.c.b16 %v503, %v498
      %v579 = vpack.c.b16 %v504, %v499
      %v580 = vpack.c.b16 %v510, %v505
      %v581 = vpack.c.b16 %v511, %v506
      %v582 = vpack.c.b16 %v512, %v507
      %v583 = vpack.c.b16 %v513, %v508
      %v584 = vpack.c.b16 %v514, %v509
      %v585 = vpack.c.b16 %v520, %v515
      %v586 = vpack.c.b16 %v521, %v516
      %v587 = vpack.c.b16 %v522, %v517
      %v588 = vpack.c.b16 %v523, %v518
      %v589 = vpack.c.b16 %v524, %v519
      %v590 = vpack.c.b16 %v530, %v525
      %v591 = vpack.c.b16 %v531, %v526
      %v592 = vpack.c.b16 %v532, %v527
      %v593 = vpack.c.b16 %v533, %v528
      %v594 = vpack.c.b16 %v534, %v529
      %v595 = vpack.c.b16 %v540, %v535
      %v596 = vpack.c.b16 %v541, %v536
      %v597 = vpack.c.b16 %v542, %v537
      %v598 = vpack.c.b16 %v543, %v538
      %v599 = vpack.c.b16 %v544, %v539
      %v600 = vpack.c.b16 %v550, %v545
      %v601 = vpack.c.b16 %v551, %v546
      %v602 = vpack.c.b16 %v552, %v547
      %v603 = vpack.c.b16 %v553, %v548
      %v604 = vpack.c.b16 %v554, %v549
      %v605 = vpack.c.b16 %v560, %v555
      %v606 = vpack.c.b16 %v561, %v556
      %v607 = vpack.c.b16 %v562, %v557
      %v608 = vpack.c.b16 %v563, %v558
      %v609 = vpack.c.b16 %v564, %v559
      %v610 = vpack.c.b16 %v570, %v565
      %v611 = vpack.c.b16 %v571, %v566
      %v612 = vpack.c.b16 %v572, %v567
      %v613 = vpack.c.b16 %v573, %v568
      %v614 = vpack.c.b16 %v574, %v569
      %655 = vmatpush.bf16.msra.mxu0 %v610
      %656 = vmatpush.bf16.msra.mxu0 %v605
      %657 = vmatpush.bf16.msra.mxu0 %v600
      %658 = vmatpush.bf16.msra.mxu0 %v595
      %659 = vmatpush.bf16.msra.mxu0 %v590
      %660 = vmatpush.bf16.msra.mxu0 %v585
      %661 = vmatpush.bf16.msra.mxu0 %v580
      %662 = vmatpush.bf16.msra.mxu0 %v575
      %663 = vmatmul.bf16.gmra.mxu0 %v409
      %v664 = vpop.f32.mrf.mxu0
      %v665 = vadd.f32 0.0, %v664
      %v666 = vpop.f32.mrf.mxu0
      %v667 = vadd.f32 0.0, %v666
      %668 = vmatmul.bf16.gmra.mxu0 %v410
      %v669 = vpop.f32.mrf.mxu0
      %v670 = vadd.f32 0.0, %v669
      %v671 = vpop.f32.mrf.mxu0
      %v672 = vadd.f32 0.0, %v671
      %673 = vmatmul.bf16.gmra.mxu0 %v411
      %v674 = vpop.f32.mrf.mxu0
      %v675 = vadd.f32 0.0, %v674
      %v676 = vpop.f32.mrf.mxu0
      %v677 = vadd.f32 0.0, %v676
      %678 = vmatmul.bf16.gmra.mxu0 %v412
      %v679 = vpop.f32.mrf.mxu0
      %v680 = vadd.f32 0.0, %v679
      %v681 = vpop.f32.mrf.mxu0
      %v682 = vadd.f32 0.0, %v681
      %683 = vmatmul.bf16.gmra.mxu0 %v413
      %v684 = vpop.f32.mrf.mxu0
      %v685 = vadd.f32 0.0, %v684
      %v686 = vpop.f32.mrf.mxu0
      %v687 = vadd.f32 0.0, %v686
      %688 = vmatmul.bf16.gmra.mxu0 %v414
      %v689 = vpop.f32.mrf.mxu0
      %v690 = vadd.f32 0.0, %v689
      %v691 = vpop.f32.mrf.mxu0
      %v692 = vadd.f32 0.0, %v691
      %693 = vmatmul.bf16.gmra.mxu0 %v415
      %v694 = vpop.f32.mrf.mxu0
      %v695 = vadd.f32 0.0, %v694
      %v696 = vpop.f32.mrf.mxu0
      %v697 = vadd.f32 0.0, %v696
      %698 = vmatmul.bf16.gmra.mxu0 %v416
      %v699 = vpop.f32.mrf.mxu0
      %v700 = vadd.f32 0.0, %v699
      %v701 = vpop.f32.mrf.mxu0
      %v702 = vadd.f32 0.0, %v701
      %703 = vmatmul.bf16.gmra.mxu0 %v417
      %v704 = vpop.f32.mrf.mxu0
      %v705 = vadd.f32 0.0, %v704
      %v706 = vpop.f32.mrf.mxu0
      %v707 = vadd.f32 0.0, %v706
      %708 = vmatmul.bf16.gmra.mxu0 %v418
      %v709 = vpop.f32.mrf.mxu0
      %v710 = vadd.f32 0.0, %v709
      %v711 = vpop.f32.mrf.mxu0
      %v712 = vadd.f32 0.0, %v711
      %713 = vmatmul.bf16.gmra.mxu0 %v419
      %v714 = vpop.f32.mrf.mxu0
      %v715 = vadd.f32 0.0, %v714
      %v716 = vpop.f32.mrf.mxu0
      %v717 = vadd.f32 0.0, %v716
      %718 = vmatmul.bf16.gmra.mxu0 %v420
      %v719 = vpop.f32.mrf.mxu0
      %v720 = vadd.f32 0.0, %v719
      %v721 = vpop.f32.mrf.mxu0
      %v722 = vadd.f32 0.0, %v721
      %723 = vmatmul.bf16.gmra.mxu0 %v421
      %v724 = vpop.f32.mrf.mxu0
      %v725 = vadd.f32 0.0, %v724
      %v726 = vpop.f32.mrf.mxu0
      %v727 = vadd.f32 0.0, %v726
      %728 = vmatmul.bf16.gmra.mxu0 %v422
      %v729 = vpop.f32.mrf.mxu0
      %v730 = vadd.f32 0.0, %v729
      %v731 = vpop.f32.mrf.mxu0
      %v732 = vadd.f32 0.0, %v731
      %733 = vmatmul.bf16.gmra.mxu0 %v423
      %v734 = vpop.f32.mrf.mxu0
      %v735 = vadd.f32 0.0, %v734
      %v736 = vpop.f32.mrf.mxu0
      %v737 = vadd.f32 0.0, %v736
      %738 = vmatmul.bf16.gmra.mxu0 %v424
      %v739 = vpop.f32.mrf.mxu0
      %v740 = vadd.f32 0.0, %v739
      %v741 = vpop.f32.mrf.mxu0
      %v742 = vadd.f32 0.0, %v741
      %743 = vmatmul.bf16.gmra.mxu0 %v425
      %v744 = vpop.f32.mrf.mxu0
      %v745 = vadd.f32 0.0, %v744
      %v746 = vpop.f32.mrf.mxu0
      %v747 = vadd.f32 0.0, %v746
      %748 = vmatmul.bf16.gmra.mxu0 %v426
      %v749 = vpop.f32.mrf.mxu0
      %v750 = vadd.f32 0.0, %v749
      %v751 = vpop.f32.mrf.mxu0
      %v752 = vadd.f32 0.0, %v751
      %753 = vmatmul.bf16.gmra.mxu0 %v427
      %v754 = vpop.f32.mrf.mxu0
      %v755 = vadd.f32 0.0, %v754
      %v756 = vpop.f32.mrf.mxu0
      %v757 = vadd.f32 0.0, %v756
      %758 = vdwg.mxu0
      %759 = vmatpush.bf16.msra.mxu0 %v611
      %760 = vmatpush.bf16.msra.mxu0 %v606
      %761 = vmatpush.bf16.msra.mxu0 %v601
      %762 = vmatpush.bf16.msra.mxu0 %v596
      %763 = vmatpush.bf16.msra.mxu0 %v591
      %764 = vmatpush.bf16.msra.mxu0 %v586
      %765 = vmatpush.bf16.msra.mxu0 %v581
      %766 = vmatpush.bf16.msra.mxu0 %v576
      %767 = vmatmul.bf16.gmra.mxu0 %v409
      %v768 = vpop.f32.mrf.mxu0
      %v769 = vadd.f32 0.0, %v768
      %v770 = vpop.f32.mrf.mxu0
      %v771 = vadd.f32 0.0, %v770
      %772 = vmatmul.bf16.gmra.mxu0 %v410
      %v773 = vpop.f32.mrf.mxu0
      %v774 = vadd.f32 0.0, %v773
      %v775 = vpop.f32.mrf.mxu0
      %v776 = vadd.f32 0.0, %v775
      %777 = vmatmul.bf16.gmra.mxu0 %v411
      %v778 = vpop.f32.mrf.mxu0
      %v779 = vadd.f32 0.0, %v778
      %v780 = vpop.f32.mrf.mxu0
      %v781 = vadd.f32 0.0, %v780
      %782 = vmatmul.bf16.gmra.mxu0 %v412
      %v783 = vpop.f32.mrf.mxu0
      %v784 = vadd.f32 0.0, %v783
      %v785 = vpop.f32.mrf.mxu0
      %v786 = vadd.f32 0.0, %v785
      %787 = vmatmul.bf16.gmra.mxu0 %v413
      %v788 = vpop.f32.mrf.mxu0
      %v789 = vadd.f32 0.0, %v788
      %v790 = vpop.f32.mrf.mxu0
      %v791 = vadd.f32 0.0, %v790
      %792 = vmatmul.bf16.gmra.mxu0 %v414
      %v793 = vpop.f32.mrf.mxu0
      %v794 = vadd.f32 0.0, %v793
      %v795 = vpop.f32.mrf.mxu0
      %v796 = vadd.f32 0.0, %v795
      %797 = vmatmul.bf16.gmra.mxu0 %v415
      %v798 = vpop.f32.mrf.mxu0
      %v799 = vadd.f32 0.0, %v798
      %v800 = vpop.f32.mrf.mxu0
      %v801 = vadd.f32 0.0, %v800
      %802 = vmatmul.bf16.gmra.mxu0 %v416
      %v803 = vpop.f32.mrf.mxu0
      %v804 = vadd.f32 0.0, %v803
      %v805 = vpop.f32.mrf.mxu0
      %v806 = vadd.f32 0.0, %v805
      %807 = vmatmul.bf16.gmra.mxu0 %v417
      %v808 = vpop.f32.mrf.mxu0
      %v809 = vadd.f32 0.0, %v808
      %v810 = vpop.f32.mrf.mxu0
      %v811 = vadd.f32 0.0, %v810
      %812 = vmatmul.bf16.gmra.mxu0 %v418
      %v813 = vpop.f32.mrf.mxu0
      %v814 = vadd.f32 0.0, %v813
      %v815 = vpop.f32.mrf.mxu0
      %v816 = vadd.f32 0.0, %v815
      %817 = vmatmul.bf16.gmra.mxu0 %v419
      %v818 = vpop.f32.mrf.mxu0
      %v819 = vadd.f32 0.0, %v818
      %v820 = vpop.f32.mrf.mxu0
      %v821 = vadd.f32 0.0, %v820
      %822 = vmatmul.bf16.gmra.mxu0 %v420
      %v823 = vpop.f32.mrf.mxu0
      %v824 = vadd.f32 0.0, %v823
      %v825 = vpop.f32.mrf.mxu0
      %v826 = vadd.f32 0.0, %v825
      %827 = vmatmul.bf16.gmra.mxu0 %v421
      %v828 = vpop.f32.mrf.mxu0
      %v829 = vadd.f32 0.0, %v828
      %v830 = vpop.f32.mrf.mxu0
      %v831 = vadd.f32 0.0, %v830
      %832 = vmatmul.bf16.gmra.mxu0 %v422
      %v833 = vpop.f32.mrf.mxu0
      %v834 = vadd.f32 0.0, %v833
      %v835 = vpop.f32.mrf.mxu0
      %v836 = vadd.f32 0.0, %v835
      %837 = vmatmul.bf16.gmra.mxu0 %v423
      %v838 = vpop.f32.mrf.mxu0
      %v839 = vadd.f32 0.0, %v838
      %v840 = vpop.f32.mrf.mxu0
      %v841 = vadd.f32 0.0, %v840
      %842 = vmatmul.bf16.gmra.mxu0 %v424
      %v843 = vpop.f32.mrf.mxu0
      %v844 = vadd.f32 0.0, %v843
      %v845 = vpop.f32.mrf.mxu0
      %v846 = vadd.f32 0.0, %v845
      %847 = vmatmul.bf16.gmra.mxu0 %v425
      %v848 = vpop.f32.mrf.mxu0
      %v849 = vadd.f32 0.0, %v848
      %v850 = vpop.f32.mrf.mxu0
      %v851 = vadd.f32 0.0, %v850
      %852 = vmatmul.bf16.gmra.mxu0 %v426
      %v853 = vpop.f32.mrf.mxu0
      %v854 = vadd.f32 0.0, %v853
      %v855 = vpop.f32.mrf.mxu0
      %v856 = vadd.f32 0.0, %v855
      %857 = vmatmul.bf16.gmra.mxu0 %v427
      %v858 = vpop.f32.mrf.mxu0
      %v859 = vadd.f32 0.0, %v858
      %v860 = vpop.f32.mrf.mxu0
      %v861 = vadd.f32 0.0, %v860
      %862 = vdwg.mxu0
      %863 = vmatpush.bf16.msra.mxu0 %v612
      %864 = vmatpush.bf16.msra.mxu0 %v607
      %865 = vmatpush.bf16.msra.mxu0 %v602
      %866 = vmatpush.bf16.msra.mxu0 %v597
      %867 = vmatpush.bf16.msra.mxu0 %v592
      %868 = vmatpush.bf16.msra.mxu0 %v587
      %869 = vmatpush.bf16.msra.mxu0 %v582
      %870 = vmatpush.bf16.msra.mxu0 %v577
      %871 = vmatmul.bf16.gmra.mxu0 %v409
      %v872 = vpop.f32.mrf.mxu0
      %v873 = vadd.f32 0.0, %v872
      %v874 = vpop.f32.mrf.mxu0
      %v875 = vadd.f32 0.0, %v874
      %876 = vmatmul.bf16.gmra.mxu0 %v410
      %v877 = vpop.f32.mrf.mxu0
      %v878 = vadd.f32 0.0, %v877
      %v879 = vpop.f32.mrf.mxu0
      %v880 = vadd.f32 0.0, %v879
      %881 = vmatmul.bf16.gmra.mxu0 %v411
      %v882 = vpop.f32.mrf.mxu0
      %v883 = vadd.f32 0.0, %v882
      %v884 = vpop.f32.mrf.mxu0
      %v885 = vadd.f32 0.0, %v884
      %886 = vmatmul.bf16.gmra.mxu0 %v412
      %v887 = vpop.f32.mrf.mxu0
      %v888 = vadd.f32 0.0, %v887
      %v889 = vpop.f32.mrf.mxu0
      %v890 = vadd.f32 0.0, %v889
      %891 = vmatmul.bf16.gmra.mxu0 %v413
      %v892 = vpop.f32.mrf.mxu0
      %v893 = vadd.f32 0.0, %v892
      %v894 = vpop.f32.mrf.mxu0
      %v895 = vadd.f32 0.0, %v894
      %896 = vmatmul.bf16.gmra.mxu0 %v414
      %v897 = vpop.f32.mrf.mxu0
      %v898 = vadd.f32 0.0, %v897
      %v899 = vpop.f32.mrf.mxu0
      %v900 = vadd.f32 0.0, %v899
      %901 = vmatmul.bf16.gmra.mxu0 %v415
      %v902 = vpop.f32.mrf.mxu0
      %v903 = vadd.f32 0.0, %v902
      %v904 = vpop.f32.mrf.mxu0
      %v905 = vadd.f32 0.0, %v904
      %906 = vmatmul.bf16.gmra.mxu0 %v416
      %v907 = vpop.f32.mrf.mxu0
      %v908 = vadd.f32 0.0, %v907
      %v909 = vpop.f32.mrf.mxu0
      %v910 = vadd.f32 0.0, %v909
      %911 = vmatmul.bf16.gmra.mxu0 %v417
      %v912 = vpop.f32.mrf.mxu0
      %v913 = vadd.f32 0.0, %v912
      %v914 = vpop.f32.mrf.mxu0
      %v915 = vadd.f32 0.0, %v914
      %916 = vmatmul.bf16.gmra.mxu0 %v418
      %v917 = vpop.f32.mrf.mxu0
      %v918 = vadd.f32 0.0, %v917
      %v919 = vpop.f32.mrf.mxu0
      %v920 = vadd.f32 0.0, %v919
      %921 = vmatmul.bf16.gmra.mxu0 %v419
      %v922 = vpop.f32.mrf.mxu0
      %v923 = vadd.f32 0.0, %v922
      %v924 = vpop.f32.mrf.mxu0
      %v925 = vadd.f32 0.0, %v924
      %926 = vmatmul.bf16.gmra.mxu0 %v420
      %v927 = vpop.f32.mrf.mxu0
      %v928 = vadd.f32 0.0, %v927
      %v929 = vpop.f32.mrf.mxu0
      %v930 = vadd.f32 0.0, %v929
      %931 = vmatmul.bf16.gmra.mxu0 %v421
      %v932 = vpop.f32.mrf.mxu0
      %v933 = vadd.f32 0.0, %v932
      %v934 = vpop.f32.mrf.mxu0
      %v935 = vadd.f32 0.0, %v934
      %936 = vmatmul.bf16.gmra.mxu0 %v422
      %v937 = vpop.f32.mrf.mxu0
      %v938 = vadd.f32 0.0, %v937
      %v939 = vpop.f32.mrf.mxu0
      %v940 = vadd.f32 0.0, %v939
      %941 = vmatmul.bf16.gmra.mxu0 %v423
      %v942 = vpop.f32.mrf.mxu0
      %v943 = vadd.f32 0.0, %v942
      %v944 = vpop.f32.mrf.mxu0
      %v945 = vadd.f32 0.0, %v944
      %946 = vmatmul.bf16.gmra.mxu0 %v424
      %v947 = vpop.f32.mrf.mxu0
      %v948 = vadd.f32 0.0, %v947
      %v949 = vpop.f32.mrf.mxu0
      %v950 = vadd.f32 0.0, %v949
      %951 = vmatmul.bf16.gmra.mxu0 %v425
      %v952 = vpop.f32.mrf.mxu0
      %v953 = vadd.f32 0.0, %v952
      %v954 = vpop.f32.mrf.mxu0
      %v955 = vadd.f32 0.0, %v954
      %956 = vmatmul.bf16.gmra.mxu0 %v426
      %v957 = vpop.f32.mrf.mxu0
      %v958 = vadd.f32 0.0, %v957
      %v959 = vpop.f32.mrf.mxu0
      %v960 = vadd.f32 0.0, %v959
      %961 = vmatmul.bf16.gmra.mxu0 %v427
      %v962 = vpop.f32.mrf.mxu0
      %v963 = vadd.f32 0.0, %v962
      %v964 = vpop.f32.mrf.mxu0
      %v965 = vadd.f32 0.0, %v964
      %966 = vdwg.mxu0
      %967 = vmatpush.bf16.msra.mxu0 %v613
      %968 = vmatpush.bf16.msra.mxu0 %v608
      %969 = vmatpush.bf16.msra.mxu0 %v603
      %970 = vmatpush.bf16.msra.mxu0 %v598
      %971 = vmatpush.bf16.msra.mxu0 %v593
      %972 = vmatpush.bf16.msra.mxu0 %v588
      %973 = vmatpush.bf16.msra.mxu0 %v583
      %974 = vmatpush.bf16.msra.mxu0 %v578
      %975 = vmatmul.bf16.gmra.mxu0 %v409
      %v976 = vpop.f32.mrf.mxu0
      %v977 = vadd.f32 0.0, %v976
      %v978 = vpop.f32.mrf.mxu0
      %v979 = vadd.f32 0.0, %v978
      %980 = vmatmul.bf16.gmra.mxu0 %v410
      %v981 = vpop.f32.mrf.mxu0
      %v982 = vadd.f32 0.0, %v981
      %v983 = vpop.f32.mrf.mxu0
      %v984 = vadd.f32 0.0, %v983
      %985 = vmatmul.bf16.gmra.mxu0 %v411
      %v986 = vpop.f32.mrf.mxu0
      %v987 = vadd.f32 0.0, %v986
      %v988 = vpop.f32.mrf.mxu0
      %v989 = vadd.f32 0.0, %v988
      %990 = vmatmul.bf16.gmra.mxu0 %v412
      %v991 = vpop.f32.mrf.mxu0
      %v992 = vadd.f32 0.0, %v991
      %v993 = vpop.f32.mrf.mxu0
      %v994 = vadd.f32 0.0, %v993
      %995 = vmatmul.bf16.gmra.mxu0 %v413
      %v996 = vpop.f32.mrf.mxu0
      %v997 = vadd.f32 0.0, %v996
      %v998 = vpop.f32.mrf.mxu0
      %v999 = vadd.f32 0.0, %v998
      %1000 = vmatmul.bf16.gmra.mxu0 %v414
      %v1001 = vpop.f32.mrf.mxu0
      %v1002 = vadd.f32 0.0, %v1001
      %v1003 = vpop.f32.mrf.mxu0
      %v1004 = vadd.f32 0.0, %v1003
      %1005 = vmatmul.bf16.gmra.mxu0 %v415
      %v1006 = vpop.f32.mrf.mxu0
      %v1007 = vadd.f32 0.0, %v1006
      %v1008 = vpop.f32.mrf.mxu0
      %v1009 = vadd.f32 0.0, %v1008
      %1010 = vmatmul.bf16.gmra.mxu0 %v416
      %v1011 = vpop.f32.mrf.mxu0
      %v1012 = vadd.f32 0.0, %v1011
      %v1013 = vpop.f32.mrf.mxu0
      %v1014 = vadd.f32 0.0, %v1013
      %1015 = vmatmul.bf16.gmra.mxu0 %v417
      %v1016 = vpop.f32.mrf.mxu0
      %v1017 = vadd.f32 0.0, %v1016
      %v1018 = vpop.f32.mrf.mxu0
      %v1019 = vadd.f32 0.0, %v1018
      %1020 = vmatmul.bf16.gmra.mxu0 %v418
      %v1021 = vpop.f32.mrf.mxu0
      %v1022 = vadd.f32 0.0, %v1021
      %v1023 = vpop.f32.mrf.mxu0
      %v1024 = vadd.f32 0.0, %v1023
      %1025 = vmatmul.bf16.gmra.mxu0 %v419
      %v1026 = vpop.f32.mrf.mxu0
      %v1027 = vadd.f32 0.0, %v1026
      %v1028 = vpop.f32.mrf.mxu0
      %v1029 = vadd.f32 0.0, %v1028
      %1030 = vmatmul.bf16.gmra.mxu0 %v420
      %v1031 = vpop.f32.mrf.mxu0
      %v1032 = vadd.f32 0.0, %v1031
      %v1033 = vpop.f32.mrf.mxu0
      %v1034 = vadd.f32 0.0, %v1033
      %1035 = vmatmul.bf16.gmra.mxu0 %v421
      %v1036 = vpop.f32.mrf.mxu0
      %v1037 = vadd.f32 0.0, %v1036
      %v1038 = vpop.f32.mrf.mxu0
      %v1039 = vadd.f32 0.0, %v1038
      %1040 = vmatmul.bf16.gmra.mxu0 %v422
      %v1041 = vpop.f32.mrf.mxu0
      %v1042 = vadd.f32 0.0, %v1041
      %v1043 = vpop.f32.mrf.mxu0
      %v1044 = vadd.f32 0.0, %v1043
      %1045 = vmatmul.bf16.gmra.mxu0 %v423
      %v1046 = vpop.f32.mrf.mxu0
      %v1047 = vadd.f32 0.0, %v1046
      %v1048 = vpop.f32.mrf.mxu0
      %v1049 = vadd.f32 0.0, %v1048
      %1050 = vmatmul.bf16.gmra.mxu0 %v424
      %v1051 = vpop.f32.mrf.mxu0
      %v1052 = vadd.f32 0.0, %v1051
      %v1053 = vpop.f32.mrf.mxu0
      %v1054 = vadd.f32 0.0, %v1053
      %1055 = vmatmul.bf16.gmra.mxu0 %v425
      %v1056 = vpop.f32.mrf.mxu0
      %v1057 = vadd.f32 0.0, %v1056
      %v1058 = vpop.f32.mrf.mxu0
      %v1059 = vadd.f32 0.0, %v1058
      %1060 = vmatmul.bf16.gmra.mxu0 %v426
      %v1061 = vpop.f32.mrf.mxu0
      %v1062 = vadd.f32 0.0, %v1061
      %v1063 = vpop.f32.mrf.mxu0
      %v1064 = vadd.f32 0.0, %v1063
      %1065 = vmatmul.bf16.gmra.mxu0 %v427
      %v1066 = vpop.f32.mrf.mxu0
      %v1067 = vadd.f32 0.0, %v1066
      %v1068 = vpop.f32.mrf.mxu0
      %v1069 = vadd.f32 0.0, %v1068
      %1070 = vdwg.mxu0
      %1071 = vmatpush.bf16.msra.mxu0 %v614
      %1072 = vmatpush.bf16.msra.mxu0 %v609
      %1073 = vmatpush.bf16.msra.mxu0 %v604
      %1074 = vmatpush.bf16.msra.mxu0 %v599
      %1075 = vmatpush.bf16.msra.mxu0 %v594
      %1076 = vmatpush.bf16.msra.mxu0 %v589
      %1077 = vmatpush.bf16.msra.mxu0 %v584
      %1078 = vmatpush.bf16.msra.mxu0 %v579
      %1079 = vmatmul.bf16.gmra.mxu0 %v409
      %v1080 = vpop.f32.mrf.mxu0
      %v1081 = vadd.f32 0.0, %v1080
      %v1082 = vpop.f32.mrf.mxu0
      %v1083 = vadd.f32 0.0, %v1082
      %1084 = vmatmul.bf16.gmra.mxu0 %v410
      %v1085 = vpop.f32.mrf.mxu0
      %v1086 = vadd.f32 0.0, %v1085
      %v1087 = vpop.f32.mrf.mxu0
      %v1088 = vadd.f32 0.0, %v1087
      %1089 = vmatmul.bf16.gmra.mxu0 %v411
      %v1090 = vpop.f32.mrf.mxu0
      %v1091 = vadd.f32 0.0, %v1090
      %v1092 = vpop.f32.mrf.mxu0
      %v1093 = vadd.f32 0.0, %v1092
      %1094 = vmatmul.bf16.gmra.mxu0 %v412
      %v1095 = vpop.f32.mrf.mxu0
      %v1096 = vadd.f32 0.0, %v1095
      %v1097 = vpop.f32.mrf.mxu0
      %v1098 = vadd.f32 0.0, %v1097
      %1099 = vmatmul.bf16.gmra.mxu0 %v413
      %v1100 = vpop.f32.mrf.mxu0
      %v1101 = vadd.f32 0.0, %v1100
      %v1102 = vpop.f32.mrf.mxu0
      %v1103 = vadd.f32 0.0, %v1102
      %1104 = vmatmul.bf16.gmra.mxu0 %v414
      %v1105 = vpop.f32.mrf.mxu0
      %v1106 = vadd.f32 0.0, %v1105
      %v1107 = vpop.f32.mrf.mxu0
      %v1108 = vadd.f32 0.0, %v1107
      %1109 = vmatmul.bf16.gmra.mxu0 %v415
      %v1110 = vpop.f32.mrf.mxu0
      %v1111 = vadd.f32 0.0, %v1110
      %v1112 = vpop.f32.mrf.mxu0
      %v1113 = vadd.f32 0.0, %v1112
      %1114 = vmatmul.bf16.gmra.mxu0 %v416
      %v1115 = vpop.f32.mrf.mxu0
      %v1116 = vadd.f32 0.0, %v1115
      %v1117 = vpop.f32.mrf.mxu0
      %v1118 = vadd.f32 0.0, %v1117
      %1119 = vmatmul.bf16.gmra.mxu0 %v417
      %v1120 = vpop.f32.mrf.mxu0
      %v1121 = vadd.f32 0.0, %v1120
      %v1122 = vpop.f32.mrf.mxu0
      %v1123 = vadd.f32 0.0, %v1122
      %1124 = vmatmul.bf16.gmra.mxu0 %v418
      %v1125 = vpop.f32.mrf.mxu0
      %v1126 = vadd.f32 0.0, %v1125
      %v1127 = vpop.f32.mrf.mxu0
      %v1128 = vadd.f32 0.0, %v1127
      %1129 = vmatmul.bf16.gmra.mxu0 %v419
      %v1130 = vpop.f32.mrf.mxu0
      %v1131 = vadd.f32 0.0, %v1130
      %v1132 = vpop.f32.mrf.mxu0
      %v1133 = vadd.f32 0.0, %v1132
      %1134 = vmatmul.bf16.gmra.mxu0 %v420
      %v1135 = vpop.f32.mrf.mxu0
      %v1136 = vadd.f32 0.0, %v1135
      %v1137 = vpop.f32.mrf.mxu0
      %v1138 = vadd.f32 0.0, %v1137
      %1139 = vmatmul.bf16.gmra.mxu0 %v421
      %v1140 = vpop.f32.mrf.mxu0
      %v1141 = vadd.f32 0.0, %v1140
      %v1142 = vpop.f32.mrf.mxu0
      %v1143 = vadd.f32 0.0, %v1142
      %1144 = vmatmul.bf16.gmra.mxu0 %v422
      %v1145 = vpop.f32.mrf.mxu0
      %v1146 = vadd.f32 0.0, %v1145
      %v1147 = vpop.f32.mrf.mxu0
      %v1148 = vadd.f32 0.0, %v1147
      %1149 = vmatmul.bf16.gmra.mxu0 %v423
      %v1150 = vpop.f32.mrf.mxu0
      %v1151 = vadd.f32 0.0, %v1150
      %v1152 = vpop.f32.mrf.mxu0
      %v1153 = vadd.f32 0.0, %v1152
      %1154 = vmatmul.bf16.gmra.mxu0 %v424
      %v1155 = vpop.f32.mrf.mxu0
      %v1156 = vadd.f32 0.0, %v1155
      %v1157 = vpop.f32.mrf.mxu0
      %v1158 = vadd.f32 0.0, %v1157
      %1159 = vmatmul.bf16.gmra.mxu0 %v425
      %v1160 = vpop.f32.mrf.mxu0
      %v1161 = vadd.f32 0.0, %v1160
      %v1162 = vpop.f32.mrf.mxu0
      %v1163 = vadd.f32 0.0, %v1162
      %1164 = vmatmul.bf16.gmra.mxu0 %v426
      %v1165 = vpop.f32.mrf.mxu0
      %v1166 = vadd.f32 0.0, %v1165
      %v1167 = vpop.f32.mrf.mxu0
      %v1168 = vadd.f32 0.0, %v1167
      %1169 = vmatmul.bf16.gmra.mxu0 %v427
      %v1170 = vpop.f32.mrf.mxu0
      %v1171 = vadd.f32 0.0, %v1170
      %v1172 = vpop.f32.mrf.mxu0
      %v1173 = vadd.f32 0.0, %v1172
      %1174 = vdwg.mxu0
      %1175 = vst [vmem:[#allocation2] sm:$0xff] %v665
      %1176 = vst [vmem:[#allocation2 + $0x8] sm:$0xff] %v769
      %1177 = vst [vmem:[#allocation2 + $0x10] sm:$0xff] %v873
      %1178 = vst [vmem:[#allocation2 + $0x18] sm:$0xff] %v977
      %vm1179 = vcmask 523264
      %1180 = vst.msk [vmem:[#allocation2 + $0x20] sm:$0xff] %vm1179, %v1081
      %1181 = vst [vmem:[#allocation2 + $0x28] sm:$0xff] %v667
      %1182 = vst [vmem:[#allocation2 + $0x30] sm:$0xff] %v771
      %1183 = vst [vmem:[#allocation2 + $0x38] sm:$0xff] %v875
      %1184 = vst [vmem:[#allocation2 + $0x40] sm:$0xff] %v979
      %1185 = vst.msk [vmem:[#allocation2 + $0x48] sm:$0xff] %vm1179, %v1083
      %1186 = vst [vmem:[#allocation2 + $0x50] sm:$0xff] %v670
      %1187 = vst [vmem:[#allocation2 + $0x58] sm:$0xff] %v774
      %1188 = vst [vmem:[#allocation2 + $0x60] sm:$0xff] %v878
      %1189 = vst [vmem:[#allocation2 + $0x68] sm:$0xff] %v982
      %1190 = vst.msk [vmem:[#allocation2 + $0x70] sm:$0xff] %vm1179, %v1086
      %1191 = vst [vmem:[#allocation2 + $0x78] sm:$0xff] %v672
      %1192 = vst [vmem:[#allocation2 + $0x80] sm:$0xff] %v776
      %1193 = vst [vmem:[#allocation2 + $0x88] sm:$0xff] %v880
      %1194 = vst [vmem:[#allocation2 + $0x90] sm:$0xff] %v984
      %1195 = vst.msk [vmem:[#allocation2 + $0x98] sm:$0xff] %vm1179, %v1088
      %1196 = vst [vmem:[#allocation2 + $0xa0] sm:$0xff] %v675
      %1197 = vst [vmem:[#allocation2 + $0xa8] sm:$0xff] %v779
      %1198 = vst [vmem:[#allocation2 + $0xb0] sm:$0xff] %v883
      %1199 = vst [vmem:[#allocation2 + $0xb8] sm:$0xff] %v987
      %1200 = vst.msk [vmem:[#allocation2 + $0xc0] sm:$0xff] %vm1179, %v1091
      %1201 = vst [vmem:[#allocation2 + $0xc8] sm:$0xff] %v677
      %1202 = vst [vmem:[#allocation2 + $0xd0] sm:$0xff] %v781
      %1203 = vst [vmem:[#allocation2 + $0xd8] sm:$0xff] %v885
      %1204 = vst [vmem:[#allocation2 + $0xe0] sm:$0xff] %v989
      %1205 = vst.msk [vmem:[#allocation2 + $0xe8] sm:$0xff] %vm1179, %v1093
      %1206 = vst [vmem:[#allocation2 + $0xf0] sm:$0xff] %v680
      %1207 = vst [vmem:[#allocation2 + $0xf8] sm:$0xff] %v784
      %1208 = vst [vmem:[#allocation2 + $0x100] sm:$0xff] %v888
      %1209 = vst [vmem:[#allocation2 + $0x108] sm:$0xff] %v992
      %1210 = vst.msk [vmem:[#allocation2 + $0x110] sm:$0xff] %vm1179, %v1096
      %1211 = vst [vmem:[#allocation2 + $0x118] sm:$0xff] %v682
      %1212 = vst [vmem:[#allocation2 + $0x120] sm:$0xff] %v786
      %1213 = vst [vmem:[#allocation2 + $0x128] sm:$0xff] %v890
      %1214 = vst [vmem:[#allocation2 + $0x130] sm:$0xff] %v994
      %1215 = vst.msk [vmem:[#allocation2 + $0x138] sm:$0xff] %vm1179, %v1098
      %1216 = vst [vmem:[#allocation2 + $0x140] sm:$0xff] %v685
      %1217 = vst [vmem:[#allocation2 + $0x148] sm:$0xff] %v789
      %1218 = vst [vmem:[#allocation2 + $0x150] sm:$0xff] %v893
      %1219 = vst [vmem:[#allocation2 + $0x158] sm:$0xff] %v997
      %1220 = vst.msk [vmem:[#allocation2 + $0x160] sm:$0xff] %vm1179, %v1101
      %1221 = vst [vmem:[#allocation2 + $0x168] sm:$0xff] %v687
      %1222 = vst [vmem:[#allocation2 + $0x170] sm:$0xff] %v791
      %1223 = vst [vmem:[#allocation2 + $0x178] sm:$0xff] %v895
      %1224 = vst [vmem:[#allocation2 + $0x180] sm:$0xff] %v999
      %1225 = vst.msk [vmem:[#allocation2 + $0x188] sm:$0xff] %vm1179, %v1103
      %1226 = vst [vmem:[#allocation2 + $0x190] sm:$0xff] %v690
      %1227 = vst [vmem:[#allocation2 + $0x198] sm:$0xff] %v794
      %1228 = vst [vmem:[#allocation2 + $0x1a0] sm:$0xff] %v898
      %1229 = vst [vmem:[#allocation2 + $0x1a8] sm:$0xff] %v1002
      %1230 = vst.msk [vmem:[#allocation2 + $0x1b0] sm:$0xff] %vm1179, %v1106
      %1231 = vst [vmem:[#allocation2 + $0x1b8] sm:$0xff] %v692
      %1232 = vst [vmem:[#allocation2 + $0x1c0] sm:$0xff] %v796
      %1233 = vst [vmem:[#allocation2 + $0x1c8] sm:$0xff] %v900
      %1234 = vst [vmem:[#allocation2 + $0x1d0] sm:$0xff] %v1004
      %1235 = vst.msk [vmem:[#allocation2 + $0x1d8] sm:$0xff] %vm1179, %v1108
      %1236 = vst [vmem:[#allocation2 + $0x1e0] sm:$0xff] %v695
      %1237 = vst [vmem:[#allocation2 + $0x1e8] sm:$0xff] %v799
      %1238 = vst [vmem:[#allocation2 + $0x1f0] sm:$0xff] %v903
      %1239 = vst [vmem:[#allocation2 + $0x1f8] sm:$0xff] %v1007
      %1240 = vst.msk [vmem:[#allocation2 + $0x200] sm:$0xff] %vm1179, %v1111
      %1241 = vst [vmem:[#allocation2 + $0x208] sm:$0xff] %v697
      %1242 = vst [vmem:[#allocation2 + $0x210] sm:$0xff] %v801
      %1243 = vst [vmem:[#allocation2 + $0x218] sm:$0xff] %v905
      %1244 = vst [vmem:[#allocation2 + $0x220] sm:$0xff] %v1009
      %1245 = vst.msk [vmem:[#allocation2 + $0x228] sm:$0xff] %vm1179, %v1113
      %1246 = vst [vmem:[#allocation2 + $0x230] sm:$0xff] %v700
      %1247 = vst [vmem:[#allocation2 + $0x238] sm:$0xff] %v804
      %1248 = vst [vmem:[#allocation2 + $0x240] sm:$0xff] %v908
      %1249 = vst [vmem:[#allocation2 + $0x248] sm:$0xff] %v1012
      %1250 = vst.msk [vmem:[#allocation2 + $0x250] sm:$0xff] %vm1179, %v1116
      %1251 = vst [vmem:[#allocation2 + $0x258] sm:$0xff] %v702
      %1252 = vst [vmem:[#allocation2 + $0x260] sm:$0xff] %v806
      %1253 = vst [vmem:[#allocation2 + $0x268] sm:$0xff] %v910
      %1254 = vst [vmem:[#allocation2 + $0x270] sm:$0xff] %v1014
      %1255 = vst.msk [vmem:[#allocation2 + $0x278] sm:$0xff] %vm1179, %v1118
      %1256 = vst [vmem:[#allocation2 + $0x280] sm:$0xff] %v705
      %1257 = vst [vmem:[#allocation2 + $0x288] sm:$0xff] %v809
      %1258 = vst [vmem:[#allocation2 + $0x290] sm:$0xff] %v913
      %1259 = vst [vmem:[#allocation2 + $0x298] sm:$0xff] %v1017
      %1260 = vst.msk [vmem:[#allocation2 + $0x2a0] sm:$0xff] %vm1179, %v1121
      %1261 = vst [vmem:[#allocation2 + $0x2a8] sm:$0xff] %v707
      %1262 = vst [vmem:[#allocation2 + $0x2b0] sm:$0xff] %v811
      %1263 = vst [vmem:[#allocation2 + $0x2b8] sm:$0xff] %v915
      %1264 = vst [vmem:[#allocation2 + $0x2c0] sm:$0xff] %v1019
      %1265 = vst.msk [vmem:[#allocation2 + $0x2c8] sm:$0xff] %vm1179, %v1123
      %1266 = vst [vmem:[#allocation2 + $0x2d0] sm:$0xff] %v710
      %1267 = vst [vmem:[#allocation2 + $0x2d8] sm:$0xff] %v814
      %1268 = vst [vmem:[#allocation2 + $0x2e0] sm:$0xff] %v918
      %1269 = vst [vmem:[#allocation2 + $0x2e8] sm:$0xff] %v1022
      %1270 = vst.msk [vmem:[#allocation2 + $0x2f0] sm:$0xff] %vm1179, %v1126
      %1271 = vst [vmem:[#allocation2 + $0x2f8] sm:$0xff] %v712
      %1272 = vst [vmem:[#allocation2 + $0x300] sm:$0xff] %v816
      %1273 = vst [vmem:[#allocation2 + $0x308] sm:$0xff] %v920
      %1274 = vst [vmem:[#allocation2 + $0x310] sm:$0xff] %v1024
      %1275 = vst.msk [vmem:[#allocation2 + $0x318] sm:$0xff] %vm1179, %v1128
      %1276 = vst [vmem:[#allocation2 + $0x320] sm:$0xff] %v715
      %1277 = vst [vmem:[#allocation2 + $0x328] sm:$0xff] %v819
      %1278 = vst [vmem:[#allocation2 + $0x330] sm:$0xff] %v923
      %1279 = vst [vmem:[#allocation2 + $0x338] sm:$0xff] %v1027
      %1280 = vst.msk [vmem:[#allocation2 + $0x340] sm:$0xff] %vm1179, %v1131
      %1281 = vst [vmem:[#allocation2 + $0x348] sm:$0xff] %v717
      %1282 = vst [vmem:[#allocation2 + $0x350] sm:$0xff] %v821
      %1283 = vst [vmem:[#allocation2 + $0x358] sm:$0xff] %v925
      %1284 = vst [vmem:[#allocation2 + $0x360] sm:$0xff] %v1029
      %1285 = vst.msk [vmem:[#allocation2 + $0x368] sm:$0xff] %vm1179, %v1133
      %1286 = vst [vmem:[#allocation2 + $0x370] sm:$0xff] %v720
      %1287 = vst [vmem:[#allocation2 + $0x378] sm:$0xff] %v824
      %1288 = vst [vmem:[#allocation2 + $0x380] sm:$0xff] %v928
      %1289 = vst [vmem:[#allocation2 + $0x388] sm:$0xff] %v1032
      %1290 = vst.msk [vmem:[#allocation2 + $0x390] sm:$0xff] %vm1179, %v1136
      %1291 = vst [vmem:[#allocation2 + $0x398] sm:$0xff] %v722
      %1292 = vst [vmem:[#allocation2 + $0x3a0] sm:$0xff] %v826
      %1293 = vst [vmem:[#allocation2 + $0x3a8] sm:$0xff] %v930
      %1294 = vst [vmem:[#allocation2 + $0x3b0] sm:$0xff] %v1034
      %1295 = vst.msk [vmem:[#allocation2 + $0x3b8] sm:$0xff] %vm1179, %v1138
      %1296 = vst [vmem:[#allocation2 + $0x3c0] sm:$0xff] %v725
      %1297 = vst [vmem:[#allocation2 + $0x3c8] sm:$0xff] %v829
      %1298 = vst [vmem:[#allocation2 + $0x3d0] sm:$0xff] %v933
      %1299 = vst [vmem:[#allocation2 + $0x3d8] sm:$0xff] %v1037
      %1300 = vst.msk [vmem:[#allocation2 + $0x3e0] sm:$0xff] %vm1179, %v1141
      %1301 = vst [vmem:[#allocation2 + $0x3e8] sm:$0xff] %v727
      %1302 = vst [vmem:[#allocation2 + $0x3f0] sm:$0xff] %v831
      %1303 = vst [vmem:[#allocation2 + $0x3f8] sm:$0xff] %v935
      %1304 = vst [vmem:[#allocation2 + $0x400] sm:$0xff] %v1039
      %1305 = vst.msk [vmem:[#allocation2 + $0x408] sm:$0xff] %vm1179, %v1143
      %1306 = vst [vmem:[#allocation2 + $0x410] sm:$0xff] %v730
      %1307 = vst [vmem:[#allocation2 + $0x418] sm:$0xff] %v834
      %1308 = vst [vmem:[#allocation2 + $0x420] sm:$0xff] %v938
      %1309 = vst [vmem:[#allocation2 + $0x428] sm:$0xff] %v1042
      %1310 = vst.msk [vmem:[#allocation2 + $0x430] sm:$0xff] %vm1179, %v1146
      %1311 = vst [vmem:[#allocation2 + $0x438] sm:$0xff] %v732
      %1312 = vst [vmem:[#allocation2 + $0x440] sm:$0xff] %v836
      %1313 = vst [vmem:[#allocation2 + $0x448] sm:$0xff] %v940
      %1314 = vst [vmem:[#allocation2 + $0x450] sm:$0xff] %v1044
      %1315 = vst.msk [vmem:[#allocation2 + $0x458] sm:$0xff] %vm1179, %v1148
      %1316 = vst [vmem:[#allocation2 + $0x460] sm:$0xff] %v735
      %1317 = vst [vmem:[#allocation2 + $0x468] sm:$0xff] %v839
      %1318 = vst [vmem:[#allocation2 + $0x470] sm:$0xff] %v943
      %1319 = vst [vmem:[#allocation2 + $0x478] sm:$0xff] %v1047
      %1320 = vst.msk [vmem:[#allocation2 + $0x480] sm:$0xff] %vm1179, %v1151
      %1321 = vst [vmem:[#allocation2 + $0x488] sm:$0xff] %v737
      %1322 = vst [vmem:[#allocation2 + $0x490] sm:$0xff] %v841
      %1323 = vst [vmem:[#allocation2 + $0x498] sm:$0xff] %v945
      %1324 = vst [vmem:[#allocation2 + $0x4a0] sm:$0xff] %v1049
      %1325 = vst.msk [vmem:[#allocation2 + $0x4a8] sm:$0xff] %vm1179, %v1153
      %1326 = vst [vmem:[#allocation2 + $0x4b0] sm:$0xff] %v740
      %1327 = vst [vmem:[#allocation2 + $0x4b8] sm:$0xff] %v844
      %1328 = vst [vmem:[#allocation2 + $0x4c0] sm:$0xff] %v948
      %1329 = vst [vmem:[#allocation2 + $0x4c8] sm:$0xff] %v1052
      %1330 = vst.msk [vmem:[#allocation2 + $0x4d0] sm:$0xff] %vm1179, %v1156
      %1331 = vst [vmem:[#allocation2 + $0x4d8] sm:$0xff] %v742
      %1332 = vst [vmem:[#allocation2 + $0x4e0] sm:$0xff] %v846
      %1333 = vst [vmem:[#allocation2 + $0x4e8] sm:$0xff] %v950
      %1334 = vst [vmem:[#allocation2 + $0x4f0] sm:$0xff] %v1054
      %1335 = vst.msk [vmem:[#allocation2 + $0x4f8] sm:$0xff] %vm1179, %v1158
      %1336 = vst [vmem:[#allocation2 + $0x500] sm:$0xff] %v745
      %1337 = vst [vmem:[#allocation2 + $0x508] sm:$0xff] %v849
      %1338 = vst [vmem:[#allocation2 + $0x510] sm:$0xff] %v953
      %1339 = vst [vmem:[#allocation2 + $0x518] sm:$0xff] %v1057
      %1340 = vst.msk [vmem:[#allocation2 + $0x520] sm:$0xff] %vm1179, %v1161
      %1341 = vst [vmem:[#allocation2 + $0x528] sm:$0xff] %v747
      %1342 = vst [vmem:[#allocation2 + $0x530] sm:$0xff] %v851
      %1343 = vst [vmem:[#allocation2 + $0x538] sm:$0xff] %v955
      %1344 = vst [vmem:[#allocation2 + $0x540] sm:$0xff] %v1059
      %1345 = vst.msk [vmem:[#allocation2 + $0x548] sm:$0xff] %vm1179, %v1163
      %1346 = vst [vmem:[#allocation2 + $0x550] sm:$0xff] %v750
      %1347 = vst [vmem:[#allocation2 + $0x558] sm:$0xff] %v854
      %1348 = vst [vmem:[#allocation2 + $0x560] sm:$0xff] %v958
      %1349 = vst [vmem:[#allocation2 + $0x568] sm:$0xff] %v1062
      %1350 = vst.msk [vmem:[#allocation2 + $0x570] sm:$0xff] %vm1179, %v1166
      %1351 = vst [vmem:[#allocation2 + $0x578] sm:$0xff] %v752
      %1352 = vst [vmem:[#allocation2 + $0x580] sm:$0xff] %v856
      %1353 = vst [vmem:[#allocation2 + $0x588] sm:$0xff] %v960
      %1354 = vst [vmem:[#allocation2 + $0x590] sm:$0xff] %v1064
      %1355 = vst.msk [vmem:[#allocation2 + $0x598] sm:$0xff] %vm1179, %v1168
      %1356 = vst [vmem:[#allocation2 + $0x5a0] sm:$0xff] %v755
      %1357 = vst [vmem:[#allocation2 + $0x5a8] sm:$0xff] %v859
      %1358 = vst [vmem:[#allocation2 + $0x5b0] sm:$0xff] %v963
      %1359 = vst [vmem:[#allocation2 + $0x5b8] sm:$0xff] %v1067
      %1360 = vst.msk [vmem:[#allocation2 + $0x5c0] sm:$0xff] %vm1179, %v1171
      %1361 = vst [vmem:[#allocation2 + $0x5c8] sm:$0xff] %v757
      %1362 = vst [vmem:[#allocation2 + $0x5d0] sm:$0xff] %v861
      %1363 = vst [vmem:[#allocation2 + $0x5d8] sm:$0xff] %v965
      %1364 = vst [vmem:[#allocation2 + $0x5e0] sm:$0xff] %v1069
      %1365 = vst.msk [vmem:[#allocation2 + $0x5e8] sm:$0xff] %vm1179, %v1173
      %v1366 = vld [vmem:[%s2] sm:$0xff]
      %v1367 = vld [vmem:[%s2 + $0x8] sm:$0xff]
      %v1368 = vld [vmem:[%s2 + $0x10] sm:$0xff]
      %v1369 = vld [vmem:[%s2 + $0x18] sm:$0xff]
      %v1370 = vld [vmem:[%s2 + $0x20] sm:$0xff]
      %v1371 = vld [vmem:[%s2 + $0x28] sm:$0xff]
      %v1372 = vld [vmem:[%s2 + $0x30] sm:$0xff]
      %v1373 = vld [vmem:[%s2 + $0x38] sm:$0xff]
      %v1374 = vld [vmem:[%s2 + $0x40] sm:$0xff]
      %v1375 = vld [vmem:[%s2 + $0x48] sm:$0xff]
      %v1376 = vld [vmem:[%s2 + $0x50] sm:$0xff]
      %v1377 = vld [vmem:[%s2 + $0x58] sm:$0xff]
      %v1378 = vld [vmem:[%s2 + $0x60] sm:$0xff]
      %v1379 = vld [vmem:[%s2 + $0x68] sm:$0xff]
      %v1380 = vld [vmem:[%s2 + $0x70] sm:$0xff]
      %v1381 = vld [vmem:[%s2 + $0x78] sm:$0xff]
      %v1382 = vld [vmem:[%s2 + $0x80] sm:$0xff]
      %v1383 = vld [vmem:[%s2 + $0x88] sm:$0xff]
      %v1384 = vld [vmem:[%s2 + $0x90] sm:$0xff]
      %v1385 = vld [vmem:[%s2 + $0x98] sm:$0xff]
      %v1386 = vld [vmem:[%s2 + $0xa0] sm:$0xff]
      %v1387 = vld [vmem:[%s2 + $0xa8] sm:$0xff]
      %v1388 = vld [vmem:[%s2 + $0xb0] sm:$0xff]
      %v1389 = vld [vmem:[%s2 + $0xb8] sm:$0xff]
      %v1390 = vld [vmem:[%s2 + $0xc0] sm:$0xff]
      %v1391 = vld [vmem:[%s2 + $0xc8] sm:$0xff]
      %v1392 = vld [vmem:[%s2 + $0xd0] sm:$0xff]
      %v1393 = vld [vmem:[%s2 + $0xd8] sm:$0xff]
      %v1394 = vlaneseq
      %v1395 = vshrl.u32 %v1394, 7
      %v1396 = vadd.s32 %v1395, 8
      %v1397 = vadd.s32 %v1395, 16
      %v1398 = vadd.s32 %v1395, 24
      %v1399 = vadd.s32 %v1395, 32
      %v1400 = vadd.s32 %v1395, 40
      %v1401 = vadd.s32 %v1395, 48
      %v1402 = vadd.s32 %v1395, 56
      %v1403 = vadd.s32 %v1395, 64
      %v1404 = vadd.s32 %v1395, 72
      %v1405 = vadd.s32 %v1395, 80
      %v1406 = vadd.s32 %v1395, 88
      %v1407 = vadd.s32 %v1395, 96
      %v1408 = vadd.s32 %v1395, 104
      %v1409 = vadd.s32 %v1395, 112
      %v1410 = vadd.s32 %v1395, 120
      %v1411 = vadd.s32 %v1395, 128
      %v1412 = vadd.s32 %v1395, 136
      %v1413 = vadd.s32 %v1395, 144
      %v1414 = vadd.s32 %v1395, 152
      %v1415 = vadd.s32 %v1395, 160
      %v1416 = vadd.s32 %v1395, 168
      %v1417 = vadd.s32 %v1395, 176
      %v1418 = vadd.s32 %v1395, 184
      %v1419 = vadd.s32 %v1395, 192
      %v1420 = vadd.s32 %v1395, 200
      %v1421 = vadd.s32 %v1395, 208
      %v1422 = vadd.s32 %v1395, 216
      %vm1423 = vcmp.lt.s32.totalorder %v1395, 0
      %v1424 = vsub.s32 0, %v1395
      %v1425 = vsel %vm1423, %v1424, %v1395
      %v1426 = vshrl.u32 %v1425, 4
      %v1427 = vand.u32 %v1425, 15
      %v1428 = vsub.s32 0, %v1427
      %v1429 = vsel %vm1423, %v1428, %v1427
      %vm1430 = vcmp.lt.s32.totalorder %v1396, 0
      %v1431 = vsub.s32 0, %v1396
      %v1432 = vsel %vm1430, %v1431, %v1396
      %v1433 = vshrl.u32 %v1432, 4
      %v1434 = vand.u32 %v1432, 15
      %v1435 = vsub.s32 0, %v1434
      %v1436 = vsel %vm1430, %v1435, %v1434
      %vm1437 = vcmp.lt.s32.totalorder %v1397, 0
      %v1438 = vsub.s32 0, %v1397
      %v1439 = vsel %vm1437, %v1438, %v1397
      %v1440 = vshrl.u32 %v1439, 4
      %v1441 = vand.u32 %v1439, 15
      %v1442 = vsub.s32 0, %v1441
      %v1443 = vsel %vm1437, %v1442, %v1441
      %vm1444 = vcmp.lt.s32.totalorder %v1398, 0
      %v1445 = vsub.s32 0, %v1398
      %v1446 = vsel %vm1444, %v1445, %v1398
      %v1447 = vshrl.u32 %v1446, 4
      %v1448 = vand.u32 %v1446, 15
      %v1449 = vsub.s32 0, %v1448
      %v1450 = vsel %vm1444, %v1449, %v1448
      %vm1451 = vcmp.lt.s32.totalorder %v1399, 0
      %v1452 = vsub.s32 0, %v1399
      %v1453 = vsel %vm1451, %v1452, %v1399
      %v1454 = vshrl.u32 %v1453, 4
      %v1455 = vand.u32 %v1453, 15
      %v1456 = vsub.s32 0, %v1455
      %v1457 = vsel %vm1451, %v1456, %v1455
      %vm1458 = vcmp.lt.s32.totalorder %v1400, 0
      %v1459 = vsub.s32 0, %v1400
      %v1460 = vsel %vm1458, %v1459, %v1400
      %v1461 = vshrl.u32 %v1460, 4
      %v1462 = vand.u32 %v1460, 15
      %v1463 = vsub.s32 0, %v1462
      %v1464 = vsel %vm1458, %v1463, %v1462
      %vm1465 = vcmp.lt.s32.totalorder %v1401, 0
      %v1466 = vsub.s32 0, %v1401
      %v1467 = vsel %vm1465, %v1466, %v1401
      %v1468 = vshrl.u32 %v1467, 4
      %v1469 = vand.u32 %v1467, 15
      %v1470 = vsub.s32 0, %v1469
      %v1471 = vsel %vm1465, %v1470, %v1469
      %vm1472 = vcmp.lt.s32.totalorder %v1402, 0
      %v1473 = vsub.s32 0, %v1402
      %v1474 = vsel %vm1472, %v1473, %v1402
      %v1475 = vshrl.u32 %v1474, 4
      %v1476 = vand.u32 %v1474, 15
      %v1477 = vsub.s32 0, %v1476
      %v1478 = vsel %vm1472, %v1477, %v1476
      %vm1479 = vcmp.lt.s32.totalorder %v1403, 0
      %v1480 = vsub.s32 0, %v1403
      %v1481 = vsel %vm1479, %v1480, %v1403
      %v1482 = vshrl.u32 %v1481, 4
      %v1483 = vand.u32 %v1481, 15
      %v1484 = vsub.s32 0, %v1483
      %v1485 = vsel %vm1479, %v1484, %v1483
      %vm1486 = vcmp.lt.s32.totalorder %v1404, 0
      %v1487 = vsub.s32 0, %v1404
      %v1488 = vsel %vm1486, %v1487, %v1404
      %v1489 = vshrl.u32 %v1488, 4
      %v1490 = vand.u32 %v1488, 15
      %v1491 = vsub.s32 0, %v1490
      %v1492 = vsel %vm1486, %v1491, %v1490
      %vm1493 = vcmp.lt.s32.totalorder %v1405, 0
      %v1494 = vsub.s32 0, %v1405
      %v1495 = vsel %vm1493, %v1494, %v1405
      %v1496 = vshrl.u32 %v1495, 4
      %v1497 = vand.u32 %v1495, 15
      %v1498 = vsub.s32 0, %v1497
      %v1499 = vsel %vm1493, %v1498, %v1497
      %vm1500 = vcmp.lt.s32.totalorder %v1406, 0
      %v1501 = vsub.s32 0, %v1406
      %v1502 = vsel %vm1500, %v1501, %v1406
      %v1503 = vshrl.u32 %v1502, 4
      %v1504 = vand.u32 %v1502, 15
      %v1505 = vsub.s32 0, %v1504
      %v1506 = vsel %vm1500, %v1505, %v1504
      %vm1507 = vcmp.lt.s32.totalorder %v1407, 0
      %v1508 = vsub.s32 0, %v1407
      %v1509 = vsel %vm1507, %v1508, %v1407
      %v1510 = vshrl.u32 %v1509, 4
      %v1511 = vand.u32 %v1509, 15
      %v1512 = vsub.s32 0, %v1511
      %v1513 = vsel %vm1507, %v1512, %v1511
      %vm1514 = vcmp.lt.s32.totalorder %v1408, 0
      %v1515 = vsub.s32 0, %v1408
      %v1516 = vsel %vm1514, %v1515, %v1408
      %v1517 = vshrl.u32 %v1516, 4
      %v1518 = vand.u32 %v1516, 15
      %v1519 = vsub.s32 0, %v1518
      %v1520 = vsel %vm1514, %v1519, %v1518
      %vm1521 = vcmp.lt.s32.totalorder %v1409, 0
      %v1522 = vsub.s32 0, %v1409
      %v1523 = vsel %vm1521, %v1522, %v1409
      %v1524 = vshrl.u32 %v1523, 4
      %v1525 = vand.u32 %v1523, 15
      %v1526 = vsub.s32 0, %v1525
      %v1527 = vsel %vm1521, %v1526, %v1525
      %vm1528 = vcmp.lt.s32.totalorder %v1410, 0
      %v1529 = vsub.s32 0, %v1410
      %v1530 = vsel %vm1528, %v1529, %v1410
      %v1531 = vshrl.u32 %v1530, 4
      %v1532 = vand.u32 %v1530, 15
      %v1533 = vsub.s32 0, %v1532
      %v1534 = vsel %vm1528, %v1533, %v1532
      %vm1535 = vcmp.lt.s32.totalorder %v1411, 0
      %v1536 = vsub.s32 0, %v1411
      %v1537 = vsel %vm1535, %v1536, %v1411
      %v1538 = vshrl.u32 %v1537, 4
      %v1539 = vand.u32 %v1537, 15
      %v1540 = vsub.s32 0, %v1539
      %v1541 = vsel %vm1535, %v1540, %v1539
      %vm1542 = vcmp.lt.s32.totalorder %v1412, 0
      %v1543 = vsub.s32 0, %v1412
      %v1544 = vsel %vm1542, %v1543, %v1412
      %v1545 = vshrl.u32 %v1544, 4
      %v1546 = vand.u32 %v1544, 15
      %v1547 = vsub.s32 0, %v1546
      %v1548 = vsel %vm1542, %v1547, %v1546
      %vm1549 = vcmp.lt.s32.totalorder %v1413, 0
      %v1550 = vsub.s32 0, %v1413
      %v1551 = vsel %vm1549, %v1550, %v1413
      %v1552 = vshrl.u32 %v1551, 4
      %v1553 = vand.u32 %v1551, 15
      %v1554 = vsub.s32 0, %v1553
      %v1555 = vsel %vm1549, %v1554, %v1553
      %vm1556 = vcmp.lt.s32.totalorder %v1414, 0
      %v1557 = vsub.s32 0, %v1414
      %v1558 = vsel %vm1556, %v1557, %v1414
      %v1559 = vshrl.u32 %v1558, 4
      %v1560 = vand.u32 %v1558, 15
      %v1561 = vsub.s32 0, %v1560
      %v1562 = vsel %vm1556, %v1561, %v1560
      %vm1563 = vcmp.lt.s32.totalorder %v1415, 0
      %v1564 = vsub.s32 0, %v1415
      %v1565 = vsel %vm1563, %v1564, %v1415
      %v1566 = vshrl.u32 %v1565, 4
      %v1567 = vand.u32 %v1565, 15
      %v1568 = vsub.s32 0, %v1567
      %v1569 = vsel %vm1563, %v1568, %v1567
      %vm1570 = vcmp.lt.s32.totalorder %v1416, 0
      %v1571 = vsub.s32 0, %v1416
      %v1572 = vsel %vm1570, %v1571, %v1416
      %v1573 = vshrl.u32 %v1572, 4
      %v1574 = vand.u32 %v1572, 15
      %v1575 = vsub.s32 0, %v1574
      %v1576 = vsel %vm1570, %v1575, %v1574
      %vm1577 = vcmp.lt.s32.totalorder %v1417, 0
      %v1578 = vsub.s32 0, %v1417
      %v1579 = vsel %vm1577, %v1578, %v1417
      %v1580 = vshrl.u32 %v1579, 4
      %v1581 = vand.u32 %v1579, 15
      %v1582 = vsub.s32 0, %v1581
      %v1583 = vsel %vm1577, %v1582, %v1581
      %vm1584 = vcmp.lt.s32.totalorder %v1418, 0
      %v1585 = vsub.s32 0, %v1418
      %v1586 = vsel %vm1584, %v1585, %v1418
      %v1587 = vshrl.u32 %v1586, 4
      %v1588 = vand.u32 %v1586, 15
      %v1589 = vsub.s32 0, %v1588
      %v1590 = vsel %vm1584, %v1589, %v1588
      %vm1591 = vcmp.lt.s32.totalorder %v1419, 0
      %v1592 = vsub.s32 0, %v1419
      %v1593 = vsel %vm1591, %v1592, %v1419
      %v1594 = vshrl.u32 %v1593, 4
      %v1595 = vand.u32 %v1593, 15
      %v1596 = vsub.s32 0, %v1595
      %v1597 = vsel %vm1591, %v1596, %v1595
      %vm1598 = vcmp.lt.s32.totalorder %v1420, 0
      %v1599 = vsub.s32 0, %v1420
      %v1600 = vsel %vm1598, %v1599, %v1420
      %v1601 = vshrl.u32 %v1600, 4
      %v1602 = vand.u32 %v1600, 15
      %v1603 = vsub.s32 0, %v1602
      %v1604 = vsel %vm1598, %v1603, %v1602
      %vm1605 = vcmp.lt.s32.totalorder %v1421, 0
      %v1606 = vsub.s32 0, %v1421
      %v1607 = vsel %vm1605, %v1606, %v1421
      %v1608 = vshrl.u32 %v1607, 4
      %v1609 = vand.u32 %v1607, 15
      %v1610 = vsub.s32 0, %v1609
      %v1611 = vsel %vm1605, %v1610, %v1609
      %vm1612 = vcmp.lt.s32.totalorder %v1422, 0
      %v1613 = vsub.s32 0, %v1422
      %v1614 = vsel %vm1612, %v1613, %v1422
      %v1615 = vshrl.u32 %v1614, 4
      %v1616 = vand.u32 %v1614, 15
      %v1617 = vsub.s32 0, %v1616
      %v1618 = vsel %vm1612, %v1617, %v1616
      %vm1619 = vcmp.ne.s32.totalorder %v1429, 0
      %vm1620 = vcmp.ne.s32.totalorder %v1436, 0
      %vm1621 = vcmp.ne.s32.totalorder %v1443, 0
      %vm1622 = vcmp.ne.s32.totalorder %v1450, 0
      %vm1623 = vcmp.ne.s32.totalorder %v1457, 0
      %vm1624 = vcmp.ne.s32.totalorder %v1464, 0
      %vm1625 = vcmp.ne.s32.totalorder %v1471, 0
      %vm1626 = vcmp.ne.s32.totalorder %v1478, 0
      %vm1627 = vcmp.ne.s32.totalorder %v1485, 0
      %vm1628 = vcmp.ne.s32.totalorder %v1492, 0
      %vm1629 = vcmp.ne.s32.totalorder %v1499, 0
      %vm1630 = vcmp.ne.s32.totalorder %v1506, 0
      %vm1631 = vcmp.ne.s32.totalorder %v1513, 0
      %vm1632 = vcmp.ne.s32.totalorder %v1520, 0
      %vm1633 = vcmp.ne.s32.totalorder %v1527, 0
      %vm1634 = vcmp.ne.s32.totalorder %v1534, 0
      %vm1635 = vcmp.ne.s32.totalorder %v1541, 0
      %vm1636 = vcmp.ne.s32.totalorder %v1548, 0
      %vm1637 = vcmp.ne.s32.totalorder %v1555, 0
      %vm1638 = vcmp.ne.s32.totalorder %v1562, 0
      %vm1639 = vcmp.ne.s32.totalorder %v1569, 0
      %vm1640 = vcmp.ne.s32.totalorder %v1576, 0
      %vm1641 = vcmp.ne.s32.totalorder %v1583, 0
      %vm1642 = vcmp.ne.s32.totalorder %v1590, 0
      %vm1643 = vcmp.ne.s32.totalorder %v1597, 0
      %vm1644 = vcmp.ne.s32.totalorder %v1604, 0
      %vm1645 = vcmp.ne.s32.totalorder %v1611, 0
      %vm1646 = vcmp.ne.s32.totalorder %v1618, 0
      %vm1647 = vcmp.lt.s32.totalorder %v1429, 0
      %vm1648 = vcmp.lt.s32.totalorder %v1436, 0
      %vm1649 = vcmp.lt.s32.totalorder %v1443, 0
      %vm1650 = vcmp.lt.s32.totalorder %v1450, 0
      %vm1651 = vcmp.lt.s32.totalorder %v1457, 0
      %vm1652 = vcmp.lt.s32.totalorder %v1464, 0
      %vm1653 = vcmp.lt.s32.totalorder %v1471, 0
      %vm1654 = vcmp.lt.s32.totalorder %v1478, 0
      %vm1655 = vcmp.lt.s32.totalorder %v1485, 0
      %vm1656 = vcmp.lt.s32.totalorder %v1492, 0
      %vm1657 = vcmp.lt.s32.totalorder %v1499, 0
      %vm1658 = vcmp.lt.s32.totalorder %v1506, 0
      %vm1659 = vcmp.lt.s32.totalorder %v1513, 0
      %vm1660 = vcmp.lt.s32.totalorder %v1520, 0
      %vm1661 = vcmp.lt.s32.totalorder %v1527, 0
      %vm1662 = vcmp.lt.s32.totalorder %v1534, 0
      %vm1663 = vcmp.lt.s32.totalorder %v1541, 0
      %vm1664 = vcmp.lt.s32.totalorder %v1548, 0
      %vm1665 = vcmp.lt.s32.totalorder %v1555, 0
      %vm1666 = vcmp.lt.s32.totalorder %v1562, 0
      %vm1667 = vcmp.lt.s32.totalorder %v1569, 0
      %vm1668 = vcmp.lt.s32.totalorder %v1576, 0
      %vm1669 = vcmp.lt.s32.totalorder %v1583, 0
      %vm1670 = vcmp.lt.s32.totalorder %v1590, 0
      %vm1671 = vcmp.lt.s32.totalorder %v1597, 0
      %vm1672 = vcmp.lt.s32.totalorder %v1604, 0
      %vm1673 = vcmp.lt.s32.totalorder %v1611, 0
      %vm1674 = vcmp.lt.s32.totalorder %v1618, 0
      %vm1675 = vmand %vm1647, %vm1619
      %vm1676 = vmand %vm1648, %vm1620
      %vm1677 = vmand %vm1649, %vm1621
      %vm1678 = vmand %vm1650, %vm1622
      %vm1679 = vmand %vm1651, %vm1623
      %vm1680 = vmand %vm1652, %vm1624
      %vm1681 = vmand %vm1653, %vm1625
      %vm1682 = vmand %vm1654, %vm1626
      %vm1683 = vmand %vm1655, %vm1627
      %vm1684 = vmand %vm1656, %vm1628
      %vm1685 = vmand %vm1657, %vm1629
      %vm1686 = vmand %vm1658, %vm1630
      %vm1687 = vmand %vm1659, %vm1631
      %vm1688 = vmand %vm1660, %vm1632
      %vm1689 = vmand %vm1661, %vm1633
      %vm1690 = vmand %vm1662, %vm1634
      %vm1691 = vmand %vm1663, %vm1635
      %vm1692 = vmand %vm1664, %vm1636
      %vm1693 = vmand %vm1665, %vm1637
      %vm1694 = vmand %vm1666, %vm1638
      %vm1695 = vmand %vm1667, %vm1639
      %vm1696 = vmand %vm1668, %vm1640
      %vm1697 = vmand %vm1669, %vm1641
      %vm1698 = vmand %vm1670, %vm1642
      %vm1699 = vmand %vm1671, %vm1643
      %vm1700 = vmand %vm1672, %vm1644
      %vm1701 = vmand %vm1673, %vm1645
      %vm1702 = vmand %vm1674, %vm1646
      %v1703 = vadd.s32 %v1429, 16
      %v1704 = vadd.s32 %v1436, 16
      %v1705 = vadd.s32 %v1443, 16
      %v1706 = vadd.s32 %v1450, 16
      %v1707 = vadd.s32 %v1457, 16
      %v1708 = vadd.s32 %v1464, 16
      %v1709 = vadd.s32 %v1471, 16
      %v1710 = vadd.s32 %v1478, 16
      %v1711 = vadd.s32 %v1485, 16
      %v1712 = vadd.s32 %v1492, 16
      %v1713 = vadd.s32 %v1499, 16
      %v1714 = vadd.s32 %v1506, 16
      %v1715 = vadd.s32 %v1513, 16
      %v1716 = vadd.s32 %v1520, 16
      %v1717 = vadd.s32 %v1527, 16
      %v1718 = vadd.s32 %v1534, 16
      %v1719 = vadd.s32 %v1541, 16
      %v1720 = vadd.s32 %v1548, 16
      %v1721 = vadd.s32 %v1555, 16
      %v1722 = vadd.s32 %v1562, 16
      %v1723 = vadd.s32 %v1569, 16
      %v1724 = vadd.s32 %v1576, 16
      %v1725 = vadd.s32 %v1583, 16
      %v1726 = vadd.s32 %v1590, 16
      %v1727 = vadd.s32 %v1597, 16
      %v1728 = vadd.s32 %v1604, 16
      %v1729 = vadd.s32 %v1611, 16
      %v1730 = vadd.s32 %v1618, 16
      %v1731 = vsel %vm1675, %v1703, %v1429
      %v1732 = vsel %vm1676, %v1704, %v1436
      %v1733 = vsel %vm1677, %v1705, %v1443
      %v1734 = vsel %vm1678, %v1706, %v1450
      %v1735 = vsel %vm1679, %v1707, %v1457
      %v1736 = vsel %vm1680, %v1708, %v1464
      %v1737 = vsel %vm1681, %v1709, %v1471
      %v1738 = vsel %vm1682, %v1710, %v1478
      %v1739 = vsel %vm1683, %v1711, %v1485
      %v1740 = vsel %vm1684, %v1712, %v1492
      %v1741 = vsel %vm1685, %v1713, %v1499
      %v1742 = vsel %vm1686, %v1714, %v1506
      %v1743 = vsel %vm1687, %v1715, %v1513
      %v1744 = vsel %vm1688, %v1716, %v1520
      %v1745 = vsel %vm1689, %v1717, %v1527
      %v1746 = vsel %vm1690, %v1718, %v1534
      %v1747 = vsel %vm1691, %v1719, %v1541
      %v1748 = vsel %vm1692, %v1720, %v1548
      %v1749 = vsel %vm1693, %v1721, %v1555
      %v1750 = vsel %vm1694, %v1722, %v1562
      %v1751 = vsel %vm1695, %v1723, %v1569
      %v1752 = vsel %vm1696, %v1724, %v1576
      %v1753 = vsel %vm1697, %v1725, %v1583
      %v1754 = vsel %vm1698, %v1726, %v1590
      %v1755 = vsel %vm1699, %v1727, %v1597
      %v1756 = vsel %vm1700, %v1728, %v1604
      %v1757 = vsel %vm1701, %v1729, %v1611
      %v1758 = vsel %vm1702, %v1730, %v1618
      %vm1759 = vcmp.ge.s32.totalorder %v1731, 2
      %vm1760 = vcmp.ge.s32.totalorder %v1732, 2
      %vm1761 = vcmp.ge.s32.totalorder %v1733, 2
      %vm1762 = vcmp.ge.s32.totalorder %v1734, 2
      %vm1763 = vcmp.ge.s32.totalorder %v1735, 2
      %vm1764 = vcmp.ge.s32.totalorder %v1736, 2
      %vm1765 = vcmp.ge.s32.totalorder %v1737, 2
      %vm1766 = vcmp.ge.s32.totalorder %v1738, 2
      %vm1767 = vcmp.ge.s32.totalorder %v1739, 2
      %vm1768 = vcmp.ge.s32.totalorder %v1740, 2
      %vm1769 = vcmp.ge.s32.totalorder %v1741, 2
      %vm1770 = vcmp.ge.s32.totalorder %v1742, 2
      %vm1771 = vcmp.ge.s32.totalorder %v1743, 2
      %vm1772 = vcmp.ge.s32.totalorder %v1744, 2
      %vm1773 = vcmp.ge.s32.totalorder %v1745, 2
      %vm1774 = vcmp.ge.s32.totalorder %v1746, 2
      %vm1775 = vcmp.ge.s32.totalorder %v1747, 2
      %vm1776 = vcmp.ge.s32.totalorder %v1748, 2
      %vm1777 = vcmp.ge.s32.totalorder %v1749, 2
      %vm1778 = vcmp.ge.s32.totalorder %v1750, 2
      %vm1779 = vcmp.ge.s32.totalorder %v1751, 2
      %vm1780 = vcmp.ge.s32.totalorder %v1752, 2
      %vm1781 = vcmp.ge.s32.totalorder %v1753, 2
      %vm1782 = vcmp.ge.s32.totalorder %v1754, 2
      %vm1783 = vcmp.ge.s32.totalorder %v1755, 2
      %vm1784 = vcmp.ge.s32.totalorder %v1756, 2
      %vm1785 = vcmp.ge.s32.totalorder %v1757, 2
      %vm1786 = vcmp.ge.s32.totalorder %v1758, 2
      %vm1787 = vcmp.lt.s32.totalorder %v1731, 16
      %vm1788 = vcmp.lt.s32.totalorder %v1732, 16
      %vm1789 = vcmp.lt.s32.totalorder %v1733, 16
      %vm1790 = vcmp.lt.s32.totalorder %v1734, 16
      %vm1791 = vcmp.lt.s32.totalorder %v1735, 16
      %vm1792 = vcmp.lt.s32.totalorder %v1736, 16
      %vm1793 = vcmp.lt.s32.totalorder %v1737, 16
      %vm1794 = vcmp.lt.s32.totalorder %v1738, 16
      %vm1795 = vcmp.lt.s32.totalorder %v1739, 16
      %vm1796 = vcmp.lt.s32.totalorder %v1740, 16
      %vm1797 = vcmp.lt.s32.totalorder %v1741, 16
      %vm1798 = vcmp.lt.s32.totalorder %v1742, 16
      %vm1799 = vcmp.lt.s32.totalorder %v1743, 16
      %vm1800 = vcmp.lt.s32.totalorder %v1744, 16
      %vm1801 = vcmp.lt.s32.totalorder %v1745, 16
      %vm1802 = vcmp.lt.s32.totalorder %v1746, 16
      %vm1803 = vcmp.lt.s32.totalorder %v1747, 16
      %vm1804 = vcmp.lt.s32.totalorder %v1748, 16
      %vm1805 = vcmp.lt.s32.totalorder %v1749, 16
      %vm1806 = vcmp.lt.s32.totalorder %v1750, 16
      %vm1807 = vcmp.lt.s32.totalorder %v1751, 16
      %vm1808 = vcmp.lt.s32.totalorder %v1752, 16
      %vm1809 = vcmp.lt.s32.totalorder %v1753, 16
      %vm1810 = vcmp.lt.s32.totalorder %v1754, 16
      %vm1811 = vcmp.lt.s32.totalorder %v1755, 16
      %vm1812 = vcmp.lt.s32.totalorder %v1756, 16
      %vm1813 = vcmp.lt.s32.totalorder %v1757, 16
      %vm1814 = vcmp.lt.s32.totalorder %v1758, 16
      %vm1815 = vmand %vm1759, %vm1787
      %vm1816 = vmand %vm1760, %vm1788
      %vm1817 = vmand %vm1761, %vm1789
      %vm1818 = vmand %vm1762, %vm1790
      %vm1819 = vmand %vm1763, %vm1791
      %vm1820 = vmand %vm1764, %vm1792
      %vm1821 = vmand %vm1765, %vm1793
      %vm1822 = vmand %vm1766, %vm1794
      %vm1823 = vmand %vm1767, %vm1795
      %vm1824 = vmand %vm1768, %vm1796
      %vm1825 = vmand %vm1769, %vm1797
      %vm1826 = vmand %vm1770, %vm1798
      %vm1827 = vmand %vm1771, %vm1799
      %vm1828 = vmand %vm1772, %vm1800
      %vm1829 = vmand %vm1773, %vm1801
      %vm1830 = vmand %vm1774, %vm1802
      %vm1831 = vmand %vm1775, %vm1803
      %vm1832 = vmand %vm1776, %vm1804
      %vm1833 = vmand %vm1777, %vm1805
      %vm1834 = vmand %vm1778, %vm1806
      %vm1835 = vmand %vm1779, %vm1807
      %vm1836 = vmand %vm1780, %vm1808
      %vm1837 = vmand %vm1781, %vm1809
      %vm1838 = vmand %vm1782, %vm1810
      %vm1839 = vmand %vm1783, %vm1811
      %vm1840 = vmand %vm1784, %vm1812
      %vm1841 = vmand %vm1785, %vm1813
      %vm1842 = vmand %vm1786, %vm1814
      %v1843 = vsel %vm1815, 1, 0
      %v1844 = vsel %vm1816, 1, 0
      %v1845 = vsel %vm1817, 1, 0
      %v1846 = vsel %vm1818, 1, 0
      %v1847 = vsel %vm1819, 1, 0
      %v1848 = vsel %vm1820, 1, 0
      %v1849 = vsel %vm1821, 1, 0
      %v1850 = vsel %vm1822, 1, 0
      %v1851 = vsel %vm1823, 1, 0
      %v1852 = vsel %vm1824, 1, 0
      %v1853 = vsel %vm1825, 1, 0
      %v1854 = vsel %vm1826, 1, 0
      %v1855 = vsel %vm1827, 1, 0
      %v1856 = vsel %vm1828, 1, 0
      %v1857 = vsel %vm1829, 1, 0
      %v1858 = vsel %vm1830, 1, 0
      %v1859 = vsel %vm1831, 1, 0
      %v1860 = vsel %vm1832, 1, 0
      %v1861 = vsel %vm1833, 1, 0
      %v1862 = vsel %vm1834, 1, 0
      %v1863 = vsel %vm1835, 1, 0
      %v1864 = vsel %vm1836, 1, 0
      %v1865 = vsel %vm1837, 1, 0
      %v1866 = vsel %vm1838, 1, 0
      %v1867 = vsel %vm1839, 1, 0
      %v1868 = vsel %vm1840, 1, 0
      %v1869 = vsel %vm1841, 1, 0
      %v1870 = vsel %vm1842, 1, 0
      %v1871 = vcvt.s32.f32 %v1843
      %v1872 = vcvt.s32.f32 %v1844
      %v1873 = vcvt.s32.f32 %v1845
      %v1874 = vcvt.s32.f32 %v1846
      %v1875 = vcvt.s32.f32 %v1847
      %v1876 = vcvt.s32.f32 %v1848
      %v1877 = vcvt.s32.f32 %v1849
      %v1878 = vcvt.s32.f32 %v1850
      %v1879 = vcvt.s32.f32 %v1851
      %v1880 = vcvt.s32.f32 %v1852
      %v1881 = vcvt.s32.f32 %v1853
      %v1882 = vcvt.s32.f32 %v1854
      %v1883 = vcvt.s32.f32 %v1855
      %v1884 = vcvt.s32.f32 %v1856
      %v1885 = vcvt.s32.f32 %v1857
      %v1886 = vcvt.s32.f32 %v1858
      %v1887 = vcvt.s32.f32 %v1859
      %v1888 = vcvt.s32.f32 %v1860
      %v1889 = vcvt.s32.f32 %v1861
      %v1890 = vcvt.s32.f32 %v1862
      %v1891 = vcvt.s32.f32 %v1863
      %v1892 = vcvt.s32.f32 %v1864
      %v1893 = vcvt.s32.f32 %v1865
      %v1894 = vcvt.s32.f32 %v1866
      %v1895 = vcvt.s32.f32 %v1867
      %v1896 = vcvt.s32.f32 %v1868
      %v1897 = vcvt.s32.f32 %v1869
      %v1898 = vcvt.s32.f32 %v1870
      %v1899 = vld [vmem:[#allocation2 + $0x28] sm:$0x80]
      %v1900 = vld [vmem:[#allocation2 + $0x50] sm:$0xff]
      %v1901 = vld [vmem:[#allocation2 + $0x78] sm:$0xff]
      %v1902 = vld [vmem:[#allocation2 + $0xa0] sm:$0xff]
      %v1903 = vld [vmem:[#allocation2 + $0xc8] sm:$0xff]
      %v1904 = vld [vmem:[#allocation2 + $0xf0] sm:$0xff]
      %v1905 = vld [vmem:[#allocation2 + $0x118] sm:$0xff]
      %v1906 = vld [vmem:[#allocation2 + $0x140] sm:$0xff]
      %v1907 = vld [vmem:[#allocation2 + $0x168] sm:$0xff]
      %v1908 = vld [vmem:[#allocation2 + $0x190] sm:$0xff]
      %v1909 = vld [vmem:[#allocation2 + $0x1b8] sm:$0xff]
      %v1910 = vld [vmem:[#allocation2 + $0x1e0] sm:$0xff]
      %v1911 = vld [vmem:[#allocation2 + $0x208] sm:$0xff]
      %v1912 = vld [vmem:[#allocation2 + $0x230] sm:$0xff]
      %v1913 = vld [vmem:[#allocation2 + $0x258] sm:$0xff]
      %v1914 = vld [vmem:[#allocation2 + $0x280] sm:$0xff]
      %v1915 = vld [vmem:[#allocation2 + $0x2a8] sm:$0xff]
      %v1916 = vld [vmem:[#allocation2 + $0x2d0] sm:$0xff]
      %v1917 = vld [vmem:[#allocation2 + $0x2f8] sm:$0xff]
      %v1918 = vld [vmem:[#allocation2 + $0x320] sm:$0xff]
      %v1919 = vld [vmem:[#allocation2 + $0x348] sm:$0xff]
      %v1920 = vld [vmem:[#allocation2 + $0x370] sm:$0xff]
      %v1921 = vld [vmem:[#allocation2 + $0x398] sm:$0xff]
      %v1922 = vld [vmem:[#allocation2 + $0x3c0] sm:$0xff]
      %v1923 = vld [vmem:[#allocation2 + $0x3e8] sm:$0xff]
      %v1924 = vld [vmem:[#allocation2 + $0x410] sm:$0xff]
      %v1925 = vld [vmem:[#allocation2 + $0x438] sm:$0xff]
      %v1926 = vld [vmem:[#allocation2 + $0x460] sm:$0xff]
      %v1927 = vld [vmem:[#allocation2 + $0x488] sm:$0x7f]
      %vm1957 = vcmask 1040384
      %v1958 = vrot.slane %v1899, 7
      %v1959 = vrot.slane %v1900, 7
      %v1960 = vsel %vm1957, %v1958, %v1959
      %v1961 = vrot.slane %v1901, 7
      %v1962 = vsel %vm1957, %v1959, %v1961
      %v1963 = vrot.slane %v1902, 7
      %v1964 = vsel %vm1957, %v1961, %v1963
      %v1965 = vrot.slane %v1903, 7
      %v1966 = vsel %vm1957, %v1963, %v1965
      %v1967 = vrot.slane %v1904, 7
      %v1968 = vsel %vm1957, %v1965, %v1967
      %v1969 = vrot.slane %v1905, 7
      %v1970 = vsel %vm1957, %v1967, %v1969
      %v1971 = vrot.slane %v1906, 7
      %v1972 = vsel %vm1957, %v1969, %v1971
      %v1973 = vrot.slane %v1907, 7
      %v1974 = vsel %vm1957, %v1971, %v1973
      %v1975 = vrot.slane %v1908, 7
      %v1976 = vsel %vm1957, %v1973, %v1975
      %v1977 = vrot.slane %v1909, 7
      %v1978 = vsel %vm1957, %v1975, %v1977
      %v1979 = vrot.slane %v1910, 7
      %v1980 = vsel %vm1957, %v1977, %v1979
      %v1981 = vrot.slane %v1911, 7
      %v1982 = vsel %vm1957, %v1979, %v1981
      %v1983 = vrot.slane %v1912, 7
      %v1984 = vsel %vm1957, %v1981, %v1983
      %v1985 = vrot.slane %v1913, 7
      %v1986 = vsel %vm1957, %v1983, %v1985
      %v1987 = vrot.slane %v1914, 7
      %v1988 = vsel %vm1957, %v1985, %v1987
      %v1989 = vrot.slane %v1915, 7
      %v1990 = vsel %vm1957, %v1987, %v1989
      %v1991 = vrot.slane %v1916, 7
      %v1992 = vsel %vm1957, %v1989, %v1991
      %v1993 = vrot.slane %v1917, 7
      %v1994 = vsel %vm1957, %v1991, %v1993
      %v1995 = vrot.slane %v1918, 7
      %v1996 = vsel %vm1957, %v1993, %v1995
      %v1997 = vrot.slane %v1919, 7
      %v1998 = vsel %vm1957, %v1995, %v1997
      %v1999 = vrot.slane %v1920, 7
      %v2000 = vsel %vm1957, %v1997, %v1999
      %v2001 = vrot.slane %v1921, 7
      %v2002 = vsel %vm1957, %v1999, %v2001
      %v2003 = vrot.slane %v1922, 7
      %v2004 = vsel %vm1957, %v2001, %v2003
      %v2005 = vrot.slane %v1923, 7
      %v2006 = vsel %vm1957, %v2003, %v2005
      %v2007 = vrot.slane %v1924, 7
      %v2008 = vsel %vm1957, %v2005, %v2007
      %v2009 = vrot.slane %v1925, 7
      %v2010 = vsel %vm1957, %v2007, %v2009
      %v2011 = vrot.slane %v1926, 7
      %v2012 = vsel %vm1957, %v2009, %v2011
      %v2013 = vrot.slane %v1927, 7
      %v2014 = vsel %vm1957, %v2011, %v2013
      %v2043 = vadd.f32 %v1366, %v1960
      %v2044 = vadd.f32 %v1367, %v1962
      %v2045 = vadd.f32 %v1368, %v1964
      %v2046 = vadd.f32 %v1369, %v1966
      %v2047 = vadd.f32 %v1370, %v1968
      %v2048 = vadd.f32 %v1371, %v1970
      %v2049 = vadd.f32 %v1372, %v1972
      %v2050 = vadd.f32 %v1373, %v1974
      %v2051 = vadd.f32 %v1374, %v1976
      %v2052 = vadd.f32 %v1375, %v1978
      %v2053 = vadd.f32 %v1376, %v1980
      %v2054 = vadd.f32 %v1377, %v1982
      %v2055 = vadd.f32 %v1378, %v1984
      %v2056 = vadd.f32 %v1379, %v1986
      %v2057 = vadd.f32 %v1380, %v1988
      %v2058 = vadd.f32 %v1381, %v1990
      %v2059 = vadd.f32 %v1382, %v1992
      %v2060 = vadd.f32 %v1383, %v1994
      %v2061 = vadd.f32 %v1384, %v1996
      %v2062 = vadd.f32 %v1385, %v1998
      %v2063 = vadd.f32 %v1386, %v2000
      %v2064 = vadd.f32 %v1387, %v2002
      %v2065 = vadd.f32 %v1388, %v2004
      %v2066 = vadd.f32 %v1389, %v2006
      %v2067 = vadd.f32 %v1390, %v2008
      %v2068 = vadd.f32 %v1391, %v2010
      %v2069 = vadd.f32 %v1392, %v2012
      %v2070 = vadd.f32 %v1393, %v2014
      %v2071 = vld [vmem:[#allocation2 + $0x488] sm:$0xff]
      %2073 = vrot.lane.b32.xlu0 %v1900, 64
      %v2074 = vpop.permute.xlu0 %2073
      %2075 = vrot.lane.b32.xlu0 %v1901, 64
      %v2076 = vpop.permute.xlu0 %2075
      %2077 = vrot.lane.b32.xlu0 %v1902, 64
      %v2078 = vpop.permute.xlu0 %2077
      %2079 = vrot.lane.b32.xlu0 %v1903, 64
      %v2080 = vpop.permute.xlu0 %2079
      %2081 = vrot.lane.b32.xlu0 %v1904, 64
      %v2082 = vpop.permute.xlu0 %2081
      %2083 = vrot.lane.b32.xlu0 %v1905, 64
      %v2084 = vpop.permute.xlu0 %2083
      %2085 = vrot.lane.b32.xlu0 %v1906, 64
      %v2086 = vpop.permute.xlu0 %2085
      %2087 = vrot.lane.b32.xlu0 %v1907, 64
      %v2088 = vpop.permute.xlu0 %2087
      %2089 = vrot.lane.b32.xlu0 %v1908, 64
      %v2090 = vpop.permute.xlu0 %2089
      %2091 = vrot.lane.b32.xlu0 %v1909, 64
      %v2092 = vpop.permute.xlu0 %2091
      %2093 = vrot.lane.b32.xlu0 %v1910, 64
      %v2094 = vpop.permute.xlu0 %2093
      %2095 = vrot.lane.b32.xlu0 %v1911, 64
      %v2096 = vpop.permute.xlu0 %2095
      %2097 = vrot.lane.b32.xlu0 %v1912, 64
      %v2098 = vpop.permute.xlu0 %2097
      %2099 = vrot.lane.b32.xlu0 %v1913, 64
      %v2100 = vpop.permute.xlu0 %2099
      %2101 = vrot.lane.b32.xlu0 %v1914, 64
      %v2102 = vpop.permute.xlu0 %2101
      %2103 = vrot.lane.b32.xlu0 %v1915, 64
      %v2104 = vpop.permute.xlu0 %2103
      %2105 = vrot.lane.b32.xlu0 %v1916, 64
      %v2106 = vpop.permute.xlu0 %2105
      %2107 = vrot.lane.b32.xlu0 %v1917, 64
      %v2108 = vpop.permute.xlu0 %2107
      %2109 = vrot.lane.b32.xlu0 %v1918, 64
      %v2110 = vpop.permute.xlu0 %2109
      %2111 = vrot.lane.b32.xlu0 %v1919, 64
      %v2112 = vpop.permute.xlu0 %2111
      %2113 = vrot.lane.b32.xlu0 %v1920, 64
      %v2114 = vpop.permute.xlu0 %2113
      %2115 = vrot.lane.b32.xlu0 %v1921, 64
      %v2116 = vpop.permute.xlu0 %2115
      %2117 = vrot.lane.b32.xlu0 %v1922, 64
      %v2118 = vpop.permute.xlu0 %2117
      %2119 = vrot.lane.b32.xlu0 %v1923, 64
      %v2120 = vpop.permute.xlu0 %2119
      %2121 = vrot.lane.b32.xlu0 %v1924, 64
      %v2122 = vpop.permute.xlu0 %2121
      %2123 = vrot.lane.b32.xlu0 %v1925, 64
      %v2124 = vpop.permute.xlu0 %2123
      %2125 = vrot.lane.b32.xlu0 %v1926, 64
      %v2126 = vpop.permute.xlu0 %2125
      %2127 = vrot.lane.b32.xlu0 %v2071, 64
      %v2128 = vpop.permute.xlu0 %2127
      %v2157 = vadd.f32 %v2043, %v2074
      %v2158 = vadd.f32 %v2044, %v2076
      %v2159 = vadd.f32 %v2045, %v2078
      %v2160 = vadd.f32 %v2046, %v2080
      %v2161 = vadd.f32 %v2047, %v2082
      %v2162 = vadd.f32 %v2048, %v2084
      %v2163 = vadd.f32 %v2049, %v2086
      %v2164 = vadd.f32 %v2050, %v2088
      %v2165 = vadd.f32 %v2051, %v2090
      %v2166 = vadd.f32 %v2052, %v2092
      %v2167 = vadd.f32 %v2053, %v2094
      %v2168 = vadd.f32 %v2054, %v2096
      %v2169 = vadd.f32 %v2055, %v2098
      %v2170 = vadd.f32 %v2056, %v2100
      %v2171 = vadd.f32 %v2057, %v2102
      %v2172 = vadd.f32 %v2058, %v2104
      %v2173 = vadd.f32 %v2059, %v2106
      %v2174 = vadd.f32 %v2060, %v2108
      %v2175 = vadd.f32 %v2061, %v2110
      %v2176 = vadd.f32 %v2062, %v2112
      %v2177 = vadd.f32 %v2063, %v2114
      %v2178 = vadd.f32 %v2064, %v2116
      %v2179 = vadd.f32 %v2065, %v2118
      %v2180 = vadd.f32 %v2066, %v2120
      %v2181 = vadd.f32 %v2067, %v2122
      %v2182 = vadd.f32 %v2068, %v2124
      %v2183 = vadd.f32 %v2069, %v2126
      %v2184 = vadd.f32 %v2070, %v2128
      %v2185 = vld [vmem:[#allocation2 + $0x58] sm:$0xfe]
      %v2186 = vld [vmem:[#allocation2 + $0x80] sm:$0xff]
      %v2187 = vld [vmem:[#allocation2 + $0xa8] sm:$0xff]
      %v2188 = vld [vmem:[#allocation2 + $0xd0] sm:$0xff]
      %v2189 = vld [vmem:[#allocation2 + $0xf8] sm:$0xff]
      %v2190 = vld [vmem:[#allocation2 + $0x120] sm:$0xff]
      %v2191 = vld [vmem:[#allocation2 + $0x148] sm:$0xff]
      %v2192 = vld [vmem:[#allocation2 + $0x170] sm:$0xff]
      %v2193 = vld [vmem:[#allocation2 + $0x198] sm:$0xff]
      %v2194 = vld [vmem:[#allocation2 + $0x1c0] sm:$0xff]
      %v2195 = vld [vmem:[#allocation2 + $0x1e8] sm:$0xff]
      %v2196 = vld [vmem:[#allocation2 + $0x210] sm:$0xff]
      %v2197 = vld [vmem:[#allocation2 + $0x238] sm:$0xff]
      %v2198 = vld [vmem:[#allocation2 + $0x260] sm:$0xff]
      %v2199 = vld [vmem:[#allocation2 + $0x288] sm:$0xff]
      %v2200 = vld [vmem:[#allocation2 + $0x2b0] sm:$0xff]
      %v2201 = vld [vmem:[#allocation2 + $0x2d8] sm:$0xff]
      %v2202 = vld [vmem:[#allocation2 + $0x300] sm:$0xff]
      %v2203 = vld [vmem:[#allocation2 + $0x328] sm:$0xff]
      %v2204 = vld [vmem:[#allocation2 + $0x350] sm:$0xff]
      %v2205 = vld [vmem:[#allocation2 + $0x378] sm:$0xff]
      %v2206 = vld [vmem:[#allocation2 + $0x3a0] sm:$0xff]
      %v2207 = vld [vmem:[#allocation2 + $0x3c8] sm:$0xff]
      %v2208 = vld [vmem:[#allocation2 + $0x3f0] sm:$0xff]
      %v2209 = vld [vmem:[#allocation2 + $0x418] sm:$0xff]
      %v2210 = vld [vmem:[#allocation2 + $0x440] sm:$0xff]
      %v2211 = vld [vmem:[#allocation2 + $0x468] sm:$0xff]
      %v2212 = vld [vmem:[#allocation2 + $0x490] sm:$0xff]
      %v2213 = vld [vmem:[#allocation2 + $0x4b8] sm:$0x1]
      %vm2243 = vcmask 1046528
      %v2244 = vrot.slane %v2185, 1
      %v2245 = vrot.slane %v2186, 1
      %v2246 = vsel %vm2243, %v2244, %v2245
      %v2247 = vrot.slane %v2187, 1
      %v2248 = vsel %vm2243, %v2245, %v2247
      %v2249 = vrot.slane %v2188, 1
      %v2250 = vsel %vm2243, %v2247, %v2249
      %v2251 = vrot.slane %v2189, 1
      %v2252 = vsel %vm2243, %v2249, %v2251
      %v2253 = vrot.slane %v2190, 1
      %v2254 = vsel %vm2243, %v2251, %v2253
      %v2255 = vrot.slane %v2191, 1
      %v2256 = vsel %vm2243, %v2253, %v2255
      %v2257 = vrot.slane %v2192, 1
      %v2258 = vsel %vm2243, %v2255, %v2257
      %v2259 = vrot.slane %v2193, 1
      %v2260 = vsel %vm2243, %v2257, %v2259
      %v2261 = vrot.slane %v2194, 1
      %v2262 = vsel %vm2243, %v2259, %v2261
      %v2263 = vrot.slane %v2195, 1
      %v2264 = vsel %vm2243, %v2261, %v2263
      %v2265 = vrot.slane %v2196, 1
      %v2266 = vsel %vm2243, %v2263, %v2265
      %v2267 = vrot.slane %v2197, 1
      %v2268 = vsel %vm2243, %v2265, %v2267
      %v2269 = vrot.slane %v2198, 1
      %v2270 = vsel %vm2243, %v2267, %v2269
      %v2271 = vrot.slane %v2199, 1
      %v2272 = vsel %vm2243, %v2269, %v2271
      %v2273 = vrot.slane %v2200, 1
      %v2274 = vsel %vm2243, %v2271, %v2273
      %v2275 = vrot.slane %v2201, 1
      %v2276 = vsel %vm2243, %v2273, %v2275
      %v2277 = vrot.slane %v2202, 1
      %v2278 = vsel %vm2243, %v2275, %v2277
      %v2279 = vrot.slane %v2203, 1
      %v2280 = vsel %vm2243, %v2277, %v2279
      %v2281 = vrot.slane %v2204, 1
      %v2282 = vsel %vm2243, %v2279, %v2281
      %v2283 = vrot.slane %v2205, 1
      %v2284 = vsel %vm2243, %v2281, %v2283
      %v2285 = vrot.slane %v2206, 1
      %v2286 = vsel %vm2243, %v2283, %v2285
      %v2287 = vrot.slane %v2207, 1
      %v2288 = vsel %vm2243, %v2285, %v2287
      %v2289 = vrot.slane %v2208, 1
      %v2290 = vsel %vm2243, %v2287, %v2289
      %v2291 = vrot.slane %v2209, 1
      %v2292 = vsel %vm2243, %v2289, %v2291
      %v2293 = vrot.slane %v2210, 1
      %v2294 = vsel %vm2243, %v2291, %v2293
      %v2295 = vrot.slane %v2211, 1
      %v2296 = vsel %vm2243, %v2293, %v2295
      %v2297 = vrot.slane %v2212, 1
      %v2298 = vsel %vm2243, %v2295, %v2297
      %v2299 = vrot.slane %v2213, 1
      %v2300 = vsel %vm2243, %v2297, %v2299
      %v2329 = vadd.f32 %v2157, %v2246
      %v2330 = vadd.f32 %v2158, %v2248
      %v2331 = vadd.f32 %v2159, %v2250
      %v2332 = vadd.f32 %v2160, %v2252
      %v2333 = vadd.f32 %v2161, %v2254
      %v2334 = vadd.f32 %v2162, %v2256
      %v2335 = vadd.f32 %v2163, %v2258
      %v2336 = vadd.f32 %v2164, %v2260
      %v2337 = vadd.f32 %v2165, %v2262
      %v2338 = vadd.f32 %v2166, %v2264
      %v2339 = vadd.f32 %v2167, %v2266
      %v2340 = vadd.f32 %v2168, %v2268
      %v2341 = vadd.f32 %v2169, %v2270
      %v2342 = vadd.f32 %v2170, %v2272
      %v2343 = vadd.f32 %v2171, %v2274
      %v2344 = vadd.f32 %v2172, %v2276
      %v2345 = vadd.f32 %v2173, %v2278
      %v2346 = vadd.f32 %v2174, %v2280
      %v2347 = vadd.f32 %v2175, %v2282
      %v2348 = vadd.f32 %v2176, %v2284
      %v2349 = vadd.f32 %v2177, %v2286
      %v2350 = vadd.f32 %v2178, %v2288
      %v2351 = vadd.f32 %v2179, %v2290
      %v2352 = vadd.f32 %v2180, %v2292
      %v2353 = vadd.f32 %v2181, %v2294
      %v2354 = vadd.f32 %v2182, %v2296
      %v2355 = vadd.f32 %v2183, %v2298
      %v2356 = vadd.f32 %v2184, %v2300
      %v2357 = vld [vmem:[#allocation2 + $0x80] sm:$0x80]
      %v2358 = vld [vmem:[#allocation2 + $0x4b8] sm:$0xff]
      %v2359 = vld [vmem:[#allocation2 + $0x4e0] sm:$0x7f]
      %v2363 = vrot.slane %v2357, 7
      %v2364 = vrot.slane %v2187, 7
      %v2365 = vsel %vm1957, %v2363, %v2364
      %v2366 = vrot.slane %v2188, 7
      %v2367 = vsel %vm1957, %v2364, %v2366
      %v2368 = vrot.slane %v2189, 7
      %v2369 = vsel %vm1957, %v2366, %v2368
      %v2370 = vrot.slane %v2190, 7
      %v2371 = vsel %vm1957, %v2368, %v2370
      %v2372 = vrot.slane %v2191, 7
      %v2373 = vsel %vm1957, %v2370, %v2372
      %v2374 = vrot.slane %v2192, 7
      %v2375 = vsel %vm1957, %v2372, %v2374
      %v2376 = vrot.slane %v2193, 7
      %v2377 = vsel %vm1957, %v2374, %v2376
      %v2378 = vrot.slane %v2194, 7
      %v2379 = vsel %vm1957, %v2376, %v2378
      %v2380 = vrot.slane %v2195, 7
      %v2381 = vsel %vm1957, %v2378, %v2380
      %v2382 = vrot.slane %v2196, 7
      %v2383 = vsel %vm1957, %v2380, %v2382
      %v2384 = vrot.slane %v2197, 7
      %v2385 = vsel %vm1957, %v2382, %v2384
      %v2386 = vrot.slane %v2198, 7
      %v2387 = vsel %vm1957, %v2384, %v2386
      %v2388 = vrot.slane %v2199, 7
      %v2389 = vsel %vm1957, %v2386, %v2388
      %v2390 = vrot.slane %v2200, 7
      %v2391 = vsel %vm1957, %v2388, %v2390
      %v2392 = vrot.slane %v2201, 7
      %v2393 = vsel %vm1957, %v2390, %v2392
      %v2394 = vrot.slane %v2202, 7
      %v2395 = vsel %vm1957, %v2392, %v2394
      %v2396 = vrot.slane %v2203, 7
      %v2397 = vsel %vm1957, %v2394, %v2396
      %v2398 = vrot.slane %v2204, 7
      %v2399 = vsel %vm1957, %v2396, %v2398
      %v2400 = vrot.slane %v2205, 7
      %v2401 = vsel %vm1957, %v2398, %v2400
      %v2402 = vrot.slane %v2206, 7
      %v2403 = vsel %vm1957, %v2400, %v2402
      %v2404 = vrot.slane %v2207, 7
      %v2405 = vsel %vm1957, %v2402, %v2404
      %v2406 = vrot.slane %v2208, 7
      %v2407 = vsel %vm1957, %v2404, %v2406
      %v2408 = vrot.slane %v2209, 7
      %v2409 = vsel %vm1957, %v2406, %v2408
      %v2410 = vrot.slane %v2210, 7
      %v2411 = vsel %vm1957, %v2408, %v2410
      %v2412 = vrot.slane %v2211, 7
      %v2413 = vsel %vm1957, %v2410, %v2412
      %v2414 = vrot.slane %v2212, 7
      %v2415 = vsel %vm1957, %v2412, %v2414
      %v2416 = vrot.slane %v2358, 7
      %v2417 = vsel %vm1957, %v2414, %v2416
      %v2418 = vrot.slane %v2359, 7
      %v2419 = vsel %vm1957, %v2416, %v2418
      %2420 = vrot.lane.b32.xlu0 %v2365, 64
      %v2421 = vpop.permute.xlu0 %2420
      %2422 = vrot.lane.b32.xlu0 %v2367, 64
      %v2423 = vpop.permute.xlu0 %2422
      %2424 = vrot.lane.b32.xlu0 %v2369, 64
      %v2425 = vpop.permute.xlu0 %2424
      %2426 = vrot.lane.b32.xlu0 %v2371, 64
      %v2427 = vpop.permute.xlu0 %2426
      %2428 = vrot.lane.b32.xlu0 %v2373, 64
      %v2429 = vpop.permute.xlu0 %2428
      %2430 = vrot.lane.b32.xlu0 %v2375, 64
      %v2431 = vpop.permute.xlu0 %2430
      %2432 = vrot.lane.b32.xlu0 %v2377, 64
      %v2433 = vpop.permute.xlu0 %2432
      %2434 = vrot.lane.b32.xlu0 %v2379, 64
      %v2435 = vpop.permute.xlu0 %2434
      %2436 = vrot.lane.b32.xlu0 %v2381, 64
      %v2437 = vpop.permute.xlu0 %2436
      %2438 = vrot.lane.b32.xlu0 %v2383, 64
      %v2439 = vpop.permute.xlu0 %2438
      %2440 = vrot.lane.b32.xlu0 %v2385, 64
      %v2441 = vpop.permute.xlu0 %2440
      %2442 = vrot.lane.b32.xlu0 %v2387, 64
      %v2443 = vpop.permute.xlu0 %2442
      %2444 = vrot.lane.b32.xlu0 %v2389, 64
      %v2445 = vpop.permute.xlu0 %2444
      %2446 = vrot.lane.b32.xlu0 %v2391, 64
      %v2447 = vpop.permute.xlu0 %2446
      %2448 = vrot.lane.b32.xlu0 %v2393, 64
      %v2449 = vpop.permute.xlu0 %2448
      %2450 = vrot.lane.b32.xlu0 %v2395, 64
      %v2451 = vpop.permute.xlu0 %2450
      %2452 = vrot.lane.b32.xlu0 %v2397, 64
      %v2453 = vpop.permute.xlu0 %2452
      %2454 = vrot.lane.b32.xlu0 %v2399, 64
      %v2455 = vpop.permute.xlu0 %2454
      %2456 = vrot.lane.b32.xlu0 %v2401, 64
      %v2457 = vpop.permute.xlu0 %2456
      %2458 = vrot.lane.b32.xlu0 %v2403, 64
      %v2459 = vpop.permute.xlu0 %2458
      %2460 = vrot.lane.b32.xlu0 %v2405, 64
      %v2461 = vpop.permute.xlu0 %2460
      %2462 = vrot.lane.b32.xlu0 %v2407, 64
      %v2463 = vpop.permute.xlu0 %2462
      %2464 = vrot.lane.b32.xlu0 %v2409, 64
      %v2465 = vpop.permute.xlu0 %2464
      %2466 = vrot.lane.b32.xlu0 %v2411, 64
      %v2467 = vpop.permute.xlu0 %2466
      %2468 = vrot.lane.b32.xlu0 %v2413, 64
      %v2469 = vpop.permute.xlu0 %2468
      %2470 = vrot.lane.b32.xlu0 %v2415, 64
      %v2471 = vpop.permute.xlu0 %2470
      %2472 = vrot.lane.b32.xlu0 %v2417, 64
      %v2473 = vpop.permute.xlu0 %2472
      %2474 = vrot.lane.b32.xlu0 %v2419, 64
      %v2475 = vpop.permute.xlu0 %2474
      %v2504 = vadd.f32 %v2329, %v2421
      %v2505 = vadd.f32 %v2330, %v2423
      %v2506 = vadd.f32 %v2331, %v2425
      %v2507 = vadd.f32 %v2332, %v2427
      %v2508 = vadd.f32 %v2333, %v2429
      %v2509 = vadd.f32 %v2334, %v2431
      %v2510 = vadd.f32 %v2335, %v2433
      %v2511 = vadd.f32 %v2336, %v2435
      %v2512 = vadd.f32 %v2337, %v2437
      %v2513 = vadd.f32 %v2338, %v2439
      %v2514 = vadd.f32 %v2339, %v2441
      %v2515 = vadd.f32 %v2340, %v2443
      %v2516 = vadd.f32 %v2341, %v2445
      %v2517 = vadd.f32 %v2342, %v2447
      %v2518 = vadd.f32 %v2343, %v2449
      %v2519 = vadd.f32 %v2344, %v2451
      %v2520 = vadd.f32 %v2345, %v2453
      %v2521 = vadd.f32 %v2346, %v2455
      %v2522 = vadd.f32 %v2347, %v2457
      %v2523 = vadd.f32 %v2348, %v2459
      %v2524 = vadd.f32 %v2349, %v2461
      %v2525 = vadd.f32 %v2350, %v2463
      %v2526 = vadd.f32 %v2351, %v2465
      %v2527 = vadd.f32 %v2352, %v2467
      %v2528 = vadd.f32 %v2353, %v2469
      %v2529 = vadd.f32 %v2354, %v2471
      %v2530 = vadd.f32 %v2355, %v2473
      %v2531 = vadd.f32 %v2356, %v2475
      %v2532 = vld [vmem:[#allocation2 + $0xb0] sm:$0xff]
      %v2533 = vld [vmem:[#allocation2 + $0xd8] sm:$0xff]
      %v2534 = vld [vmem:[#allocation2 + $0x100] sm:$0xff]
      %v2535 = vld [vmem:[#allocation2 + $0x128] sm:$0xff]
      %v2536 = vld [vmem:[#allocation2 + $0x150] sm:$0xff]
      %v2537 = vld [vmem:[#allocation2 + $0x178] sm:$0xff]
      %v2538 = vld [vmem:[#allocation2 + $0x1a0] sm:$0xff]
      %v2539 = vld [vmem:[#allocation2 + $0x1c8] sm:$0xff]
      %v2540 = vld [vmem:[#allocation2 + $0x1f0] sm:$0xff]
      %v2541 = vld [vmem:[#allocation2 + $0x218] sm:$0xff]
      %v2542 = vld [vmem:[#allocation2 + $0x240] sm:$0xff]
      %v2543 = vld [vmem:[#allocation2 + $0x268] sm:$0xff]
      %v2544 = vld [vmem:[#allocation2 + $0x290] sm:$0xff]
      %v2545 = vld [vmem:[#allocation2 + $0x2b8] sm:$0xff]
      %v2546 = vld [vmem:[#allocation2 + $0x2e0] sm:$0xff]
      %v2547 = vld [vmem:[#allocation2 + $0x308] sm:$0xff]
      %v2548 = vld [vmem:[#allocation2 + $0x330] sm:$0xff]
      %v2549 = vld [vmem:[#allocation2 + $0x358] sm:$0xff]
      %v2550 = vld [vmem:[#allocation2 + $0x380] sm:$0xff]
      %v2551 = vld [vmem:[#allocation2 + $0x3a8] sm:$0xff]
      %v2552 = vld [vmem:[#allocation2 + $0x3d0] sm:$0xff]
      %v2553 = vld [vmem:[#allocation2 + $0x3f8] sm:$0xff]
      %v2554 = vld [vmem:[#allocation2 + $0x420] sm:$0xff]
      %v2555 = vld [vmem:[#allocation2 + $0x448] sm:$0xff]
      %v2556 = vld [vmem:[#allocation2 + $0x470] sm:$0xff]
      %v2557 = vld [vmem:[#allocation2 + $0x498] sm:$0xff]
      %v2558 = vld [vmem:[#allocation2 + $0x4c0] sm:$0xff]
      %v2559 = vld [vmem:[#allocation2 + $0x4e8] sm:$0xff]
      %v2560 = vadd.f32 %v2504, %v2532
      %v2561 = vadd.f32 %v2505, %v2533
      %v2562 = vadd.f32 %v2506, %v2534
      %v2563 = vadd.f32 %v2507, %v2535
      %v2564 = vadd.f32 %v2508, %v2536
      %v2565 = vadd.f32 %v2509, %v2537
      %v2566 = vadd.f32 %v2510, %v2538
      %v2567 = vadd.f32 %v2511, %v2539
      %v2568 = vadd.f32 %v2512, %v2540
      %v2569 = vadd.f32 %v2513, %v2541
      %v2570 = vadd.f32 %v2514, %v2542
      %v2571 = vadd.f32 %v2515, %v2543
      %v2572 = vadd.f32 %v2516, %v2544
      %v2573 = vadd.f32 %v2517, %v2545
      %v2574 = vadd.f32 %v2518, %v2546
      %v2575 = vadd.f32 %v2519, %v2547
      %v2576 = vadd.f32 %v2520, %v2548
      %v2577 = vadd.f32 %v2521, %v2549
      %v2578 = vadd.f32 %v2522, %v2550
      %v2579 = vadd.f32 %v2523, %v2551
      %v2580 = vadd.f32 %v2524, %v2552
      %v2581 = vadd.f32 %v2525, %v2553
      %v2582 = vadd.f32 %v2526, %v2554
      %v2583 = vadd.f32 %v2527, %v2555
      %v2584 = vadd.f32 %v2528, %v2556
      %v2585 = vadd.f32 %v2529, %v2557
      %v2586 = vadd.f32 %v2530, %v2558
      %v2587 = vadd.f32 %v2531, %v2559
      %v2588 = vld [vmem:[#allocation2 + $0xb0] sm:$0xfe]
      %v2589 = vld [vmem:[#allocation2 + $0x510] sm:$0x1]
      %v2619 = vrot.slane %v2588, 1
      %v2620 = vrot.slane %v2533, 1
      %v2621 = vsel %vm2243, %v2619, %v2620
      %v2622 = vrot.slane %v2534, 1
      %v2623 = vsel %vm2243, %v2620, %v2622
      %v2624 = vrot.slane %v2535, 1
      %v2625 = vsel %vm2243, %v2622, %v2624
      %v2626 = vrot.slane %v2536, 1
      %v2627 = vsel %vm2243, %v2624, %v2626
      %v2628 = vrot.slane %v2537, 1
      %v2629 = vsel %vm2243, %v2626, %v2628
      %v2630 = vrot.slane %v2538, 1
      %v2631 = vsel %vm2243, %v2628, %v2630
      %v2632 = vrot.slane %v2539, 1
      %v2633 = vsel %vm2243, %v2630, %v2632
      %v2634 = vrot.slane %v2540, 1
      %v2635 = vsel %vm2243, %v2632, %v2634
      %v2636 = vrot.slane %v2541, 1
      %v2637 = vsel %vm2243, %v2634, %v2636
      %v2638 = vrot.slane %v2542, 1
      %v2639 = vsel %vm2243, %v2636, %v2638
      %v2640 = vrot.slane %v2543, 1
      %v2641 = vsel %vm2243, %v2638, %v2640
      %v2642 = vrot.slane %v2544, 1
      %v2643 = vsel %vm2243, %v2640, %v2642
      %v2644 = vrot.slane %v2545, 1
      %v2645 = vsel %vm2243, %v2642, %v2644
      %v2646 = vrot.slane %v2546, 1
      %v2647 = vsel %vm2243, %v2644, %v2646
      %v2648 = vrot.slane %v2547, 1
      %v2649 = vsel %vm2243, %v2646, %v2648
      %v2650 = vrot.slane %v2548, 1
      %v2651 = vsel %vm2243, %v2648, %v2650
      %v2652 = vrot.slane %v2549, 1
      %v2653 = vsel %vm2243, %v2650, %v2652
      %v2654 = vrot.slane %v2550, 1
      %v2655 = vsel %vm2243, %v2652, %v2654
      %v2656 = vrot.slane %v2551, 1
      %v2657 = vsel %vm2243, %v2654, %v2656
      %v2658 = vrot.slane %v2552, 1
      %v2659 = vsel %vm2243, %v2656, %v2658
      %v2660 = vrot.slane %v2553, 1
      %v2661 = vsel %vm2243, %v2658, %v2660
      %v2662 = vrot.slane %v2554, 1
      %v2663 = vsel %vm2243, %v2660, %v2662
      %v2664 = vrot.slane %v2555, 1
      %v2665 = vsel %vm2243, %v2662, %v2664
      %v2666 = vrot.slane %v2556, 1
      %v2667 = vsel %vm2243, %v2664, %v2666
      %v2668 = vrot.slane %v2557, 1
      %v2669 = vsel %vm2243, %v2666, %v2668
      %v2670 = vrot.slane %v2558, 1
      %v2671 = vsel %vm2243, %v2668, %v2670
      %v2672 = vrot.slane %v2559, 1
      %v2673 = vsel %vm2243, %v2670, %v2672
      %v2674 = vrot.slane %v2589, 1
      %v2675 = vsel %vm2243, %v2672, %v2674
      %2676 = vrot.lane.b32.xlu0 %v2621, 64
      %v2677 = vpop.permute.xlu0 %2676
      %2678 = vrot.lane.b32.xlu0 %v2623, 64
      %v2679 = vpop.permute.xlu0 %2678
      %2680 = vrot.lane.b32.xlu0 %v2625, 64
      %v2681 = vpop.permute.xlu0 %2680
      %2682 = vrot.lane.b32.xlu0 %v2627, 64
      %v2683 = vpop.permute.xlu0 %2682
      %2684 = vrot.lane.b32.xlu0 %v2629, 64
      %v2685 = vpop.permute.xlu0 %2684
      %2686 = vrot.lane.b32.xlu0 %v2631, 64
      %v2687 = vpop.permute.xlu0 %2686
      %2688 = vrot.lane.b32.xlu0 %v2633, 64
      %v2689 = vpop.permute.xlu0 %2688
      %2690 = vrot.lane.b32.xlu0 %v2635, 64
      %v2691 = vpop.permute.xlu0 %2690
      %2692 = vrot.lane.b32.xlu0 %v2637, 64
      %v2693 = vpop.permute.xlu0 %2692
      %2694 = vrot.lane.b32.xlu0 %v2639, 64
      %v2695 = vpop.permute.xlu0 %2694
      %2696 = vrot.lane.b32.xlu0 %v2641, 64
      %v2697 = vpop.permute.xlu0 %2696
      %2698 = vrot.lane.b32.xlu0 %v2643, 64
      %v2699 = vpop.permute.xlu0 %2698
      %2700 = vrot.lane.b32.xlu0 %v2645, 64
      %v2701 = vpop.permute.xlu0 %2700
      %2702 = vrot.lane.b32.xlu0 %v2647, 64
      %v2703 = vpop.permute.xlu0 %2702
      %2704 = vrot.lane.b32.xlu0 %v2649, 64
      %v2705 = vpop.permute.xlu0 %2704
      %2706 = vrot.lane.b32.xlu0 %v2651, 64
      %v2707 = vpop.permute.xlu0 %2706
      %2708 = vrot.lane.b32.xlu0 %v2653, 64
      %v2709 = vpop.permute.xlu0 %2708
      %2710 = vrot.lane.b32.xlu0 %v2655, 64
      %v2711 = vpop.permute.xlu0 %2710
      %2712 = vrot.lane.b32.xlu0 %v2657, 64
      %v2713 = vpop.permute.xlu0 %2712
      %2714 = vrot.lane.b32.xlu0 %v2659, 64
      %v2715 = vpop.permute.xlu0 %2714
      %2716 = vrot.lane.b32.xlu0 %v2661, 64
      %v2717 = vpop.permute.xlu0 %2716
      %2718 = vrot.lane.b32.xlu0 %v2663, 64
      %v2719 = vpop.permute.xlu0 %2718
      %2720 = vrot.lane.b32.xlu0 %v2665, 64
      %v2721 = vpop.permute.xlu0 %2720
      %2722 = vrot.lane.b32.xlu0 %v2667, 64
      %v2723 = vpop.permute.xlu0 %2722
      %2724 = vrot.lane.b32.xlu0 %v2669, 64
      %v2725 = vpop.permute.xlu0 %2724
      %2726 = vrot.lane.b32.xlu0 %v2671, 64
      %v2727 = vpop.permute.xlu0 %2726
      %2728 = vrot.lane.b32.xlu0 %v2673, 64
      %v2729 = vpop.permute.xlu0 %2728
      %2730 = vrot.lane.b32.xlu0 %v2675, 64
      %v2731 = vpop.permute.xlu0 %2730
      %v2760 = vadd.f32 %v2560, %v2677
      %v2761 = vadd.f32 %v2561, %v2679
      %v2762 = vadd.f32 %v2562, %v2681
      %v2763 = vadd.f32 %v2563, %v2683
      %v2764 = vadd.f32 %v2564, %v2685
      %v2765 = vadd.f32 %v2565, %v2687
      %v2766 = vadd.f32 %v2566, %v2689
      %v2767 = vadd.f32 %v2567, %v2691
      %v2768 = vadd.f32 %v2568, %v2693
      %v2769 = vadd.f32 %v2569, %v2695
      %v2770 = vadd.f32 %v2570, %v2697
      %v2771 = vadd.f32 %v2571, %v2699
      %v2772 = vadd.f32 %v2572, %v2701
      %v2773 = vadd.f32 %v2573, %v2703
      %v2774 = vadd.f32 %v2574, %v2705
      %v2775 = vadd.f32 %v2575, %v2707
      %v2776 = vadd.f32 %v2576, %v2709
      %v2777 = vadd.f32 %v2577, %v2711
      %v2778 = vadd.f32 %v2578, %v2713
      %v2779 = vadd.f32 %v2579, %v2715
      %v2780 = vadd.f32 %v2580, %v2717
      %v2781 = vadd.f32 %v2581, %v2719
      %v2782 = vadd.f32 %v2582, %v2721
      %v2783 = vadd.f32 %v2583, %v2723
      %v2784 = vadd.f32 %v2584, %v2725
      %v2785 = vadd.f32 %v2585, %v2727
      %v2786 = vadd.f32 %v2586, %v2729
      %v2787 = vadd.f32 %v2587, %v2731
      %v2788 = vld [vmem:[#allocation2 + $0xe0] sm:$0x80]
      %v2789 = vld [vmem:[#allocation2 + $0x108] sm:$0xff]
      %v2790 = vld [vmem:[#allocation2 + $0x130] sm:$0xff]
      %v2791 = vld [vmem:[#allocation2 + $0x158] sm:$0xff]
      %v2792 = vld [vmem:[#allocation2 + $0x180] sm:$0xff]
      %v2793 = vld [vmem:[#allocation2 + $0x1a8] sm:$0xff]
      %v2794 = vld [vmem:[#allocation2 + $0x1d0] sm:$0xff]
      %v2795 = vld [vmem:[#allocation2 + $0x1f8] sm:$0xff]
      %v2796 = vld [vmem:[#allocation2 + $0x220] sm:$0xff]
      %v2797 = vld [vmem:[#allocation2 + $0x248] sm:$0xff]
      %v2798 = vld [vmem:[#allocation2 + $0x270] sm:$0xff]
      %v2799 = vld [vmem:[#allocation2 + $0x298] sm:$0xff]
      %v2800 = vld [vmem:[#allocation2 + $0x2c0] sm:$0xff]
      %v2801 = vld [vmem:[#allocation2 + $0x2e8] sm:$0xff]
      %v2802 = vld [vmem:[#allocation2 + $0x310] sm:$0xff]
      %v2803 = vld [vmem:[#allocation2 + $0x338] sm:$0xff]
      %v2804 = vld [vmem:[#allocation2 + $0x360] sm:$0xff]
      %v2805 = vld [vmem:[#allocation2 + $0x388] sm:$0xff]
      %v2806 = vld [vmem:[#allocation2 + $0x3b0] sm:$0xff]
      %v2807 = vld [vmem:[#allocation2 + $0x3d8] sm:$0xff]
      %v2808 = vld [vmem:[#allocation2 + $0x400] sm:$0xff]
      %v2809 = vld [vmem:[#allocation2 + $0x428] sm:$0xff]
      %v2810 = vld [vmem:[#allocation2 + $0x450] sm:$0xff]
      %v2811 = vld [vmem:[#allocation2 + $0x478] sm:$0xff]
      %v2812 = vld [vmem:[#allocation2 + $0x4a0] sm:$0xff]
      %v2813 = vld [vmem:[#allocation2 + $0x4c8] sm:$0xff]
      %v2814 = vld [vmem:[#allocation2 + $0x4f0] sm:$0xff]
      %v2815 = vld [vmem:[#allocation2 + $0x518] sm:$0xff]
      %v2816 = vld [vmem:[#allocation2 + $0x540] sm:$0x7f]
      %v2846 = vrot.slane %v2788, 7
      %v2847 = vrot.slane %v2789, 7
      %v2848 = vsel %vm1957, %v2846, %v2847
      %v2849 = vrot.slane %v2790, 7
      %v2850 = vsel %vm1957, %v2847, %v2849
      %v2851 = vrot.slane %v2791, 7
      %v2852 = vsel %vm1957, %v2849, %v2851
      %v2853 = vrot.slane %v2792, 7
      %v2854 = vsel %vm1957, %v2851, %v2853
      %v2855 = vrot.slane %v2793, 7
      %v2856 = vsel %vm1957, %v2853, %v2855
      %v2857 = vrot.slane %v2794, 7
      %v2858 = vsel %vm1957, %v2855, %v2857
      %v2859 = vrot.slane %v2795, 7
      %v2860 = vsel %vm1957, %v2857, %v2859
      %v2861 = vrot.slane %v2796, 7
      %v2862 = vsel %vm1957, %v2859, %v2861
      %v2863 = vrot.slane %v2797, 7
      %v2864 = vsel %vm1957, %v2861, %v2863
      %v2865 = vrot.slane %v2798, 7
      %v2866 = vsel %vm1957, %v2863, %v2865
      %v2867 = vrot.slane %v2799, 7
      %v2868 = vsel %vm1957, %v2865, %v2867
      %v2869 = vrot.slane %v2800, 7
      %v2870 = vsel %vm1957, %v2867, %v2869
      %v2871 = vrot.slane %v2801, 7
      %v2872 = vsel %vm1957, %v2869, %v2871
      %v2873 = vrot.slane %v2802, 7
      %v2874 = vsel %vm1957, %v2871, %v2873
      %v2875 = vrot.slane %v2803, 7
      %v2876 = vsel %vm1957, %v2873, %v2875
      %v2877 = vrot.slane %v2804, 7
      %v2878 = vsel %vm1957, %v2875, %v2877
      %v2879 = vrot.slane %v2805, 7
      %v2880 = vsel %vm1957, %v2877, %v2879
      %v2881 = vrot.slane %v2806, 7
      %v2882 = vsel %vm1957, %v2879, %v2881
      %v2883 = vrot.slane %v2807, 7
      %v2884 = vsel %vm1957, %v2881, %v2883
      %v2885 = vrot.slane %v2808, 7
      %v2886 = vsel %vm1957, %v2883, %v2885
      %v2887 = vrot.slane %v2809, 7
      %v2888 = vsel %vm1957, %v2885, %v2887
      %v2889 = vrot.slane %v2810, 7
      %v2890 = vsel %vm1957, %v2887, %v2889
      %v2891 = vrot.slane %v2811, 7
      %v2892 = vsel %vm1957, %v2889, %v2891
      %v2893 = vrot.slane %v2812, 7
      %v2894 = vsel %vm1957, %v2891, %v2893
      %v2895 = vrot.slane %v2813, 7
      %v2896 = vsel %vm1957, %v2893, %v2895
      %v2897 = vrot.slane %v2814, 7
      %v2898 = vsel %vm1957, %v2895, %v2897
      %v2899 = vrot.slane %v2815, 7
      %v2900 = vsel %vm1957, %v2897, %v2899
      %v2901 = vrot.slane %v2816, 7
      %v2902 = vsel %vm1957, %v2899, %v2901
      %v2931 = vadd.f32 %v2760, %v2848
      %v2932 = vadd.f32 %v2761, %v2850
      %v2933 = vadd.f32 %v2762, %v2852
      %v2934 = vadd.f32 %v2763, %v2854
      %v2935 = vadd.f32 %v2764, %v2856
      %v2936 = vadd.f32 %v2765, %v2858
      %v2937 = vadd.f32 %v2766, %v2860
      %v2938 = vadd.f32 %v2767, %v2862
      %v2939 = vadd.f32 %v2768, %v2864
      %v2940 = vadd.f32 %v2769, %v2866
      %v2941 = vadd.f32 %v2770, %v2868
      %v2942 = vadd.f32 %v2771, %v2870
      %v2943 = vadd.f32 %v2772, %v2872
      %v2944 = vadd.f32 %v2773, %v2874
      %v2945 = vadd.f32 %v2774, %v2876
      %v2946 = vadd.f32 %v2775, %v2878
      %v2947 = vadd.f32 %v2776, %v2880
      %v2948 = vadd.f32 %v2777, %v2882
      %v2949 = vadd.f32 %v2778, %v2884
      %v2950 = vadd.f32 %v2779, %v2886
      %v2951 = vadd.f32 %v2780, %v2888
      %v2952 = vadd.f32 %v2781, %v2890
      %v2953 = vadd.f32 %v2782, %v2892
      %v2954 = vadd.f32 %v2783, %v2894
      %v2955 = vadd.f32 %v2784, %v2896
      %v2956 = vadd.f32 %v2785, %v2898
      %v2957 = vadd.f32 %v2786, %v2900
      %v2958 = vadd.f32 %v2787, %v2902
      %v2959 = vld [vmem:[#allocation2 + $0x540] sm:$0xff]
      %2961 = vrot.lane.b32.xlu0 %v2789, 64
      %v2962 = vpop.permute.xlu0 %2961
      %2963 = vrot.lane.b32.xlu0 %v2790, 64
      %v2964 = vpop.permute.xlu0 %2963
      %2965 = vrot.lane.b32.xlu0 %v2791, 64
      %v2966 = vpop.permute.xlu0 %2965
      %2967 = vrot.lane.b32.xlu0 %v2792, 64
      %v2968 = vpop.permute.xlu0 %2967
      %2969 = vrot.lane.b32.xlu0 %v2793, 64
      %v2970 = vpop.permute.xlu0 %2969
      %2971 = vrot.lane.b32.xlu0 %v2794, 64
      %v2972 = vpop.permute.xlu0 %2971
      %2973 = vrot.lane.b32.xlu0 %v2795, 64
      %v2974 = vpop.permute.xlu0 %2973
      %2975 = vrot.lane.b32.xlu0 %v2796, 64
      %v2976 = vpop.permute.xlu0 %2975
      %2977 = vrot.lane.b32.xlu0 %v2797, 64
      %v2978 = vpop.permute.xlu0 %2977
      %2979 = vrot.lane.b32.xlu0 %v2798, 64
      %v2980 = vpop.permute.xlu0 %2979
      %2981 = vrot.lane.b32.xlu0 %v2799, 64
      %v2982 = vpop.permute.xlu0 %2981
      %2983 = vrot.lane.b32.xlu0 %v2800, 64
      %v2984 = vpop.permute.xlu0 %2983
      %2985 = vrot.lane.b32.xlu0 %v2801, 64
      %v2986 = vpop.permute.xlu0 %2985
      %2987 = vrot.lane.b32.xlu0 %v2802, 64
      %v2988 = vpop.permute.xlu0 %2987
      %2989 = vrot.lane.b32.xlu0 %v2803, 64
      %v2990 = vpop.permute.xlu0 %2989
      %2991 = vrot.lane.b32.xlu0 %v2804, 64
      %v2992 = vpop.permute.xlu0 %2991
      %2993 = vrot.lane.b32.xlu0 %v2805, 64
      %v2994 = vpop.permute.xlu0 %2993
      %2995 = vrot.lane.b32.xlu0 %v2806, 64
      %v2996 = vpop.permute.xlu0 %2995
      %2997 = vrot.lane.b32.xlu0 %v2807, 64
      %v2998 = vpop.permute.xlu0 %2997
      %2999 = vrot.lane.b32.xlu0 %v2808, 64
      %v3000 = vpop.permute.xlu0 %2999
      %3001 = vrot.lane.b32.xlu0 %v2809, 64
      %v3002 = vpop.permute.xlu0 %3001
      %3003 = vrot.lane.b32.xlu0 %v2810, 64
      %v3004 = vpop.permute.xlu0 %3003
      %3005 = vrot.lane.b32.xlu0 %v2811, 64
      %v3006 = vpop.permute.xlu0 %3005
      %3007 = vrot.lane.b32.xlu0 %v2812, 64
      %v3008 = vpop.permute.xlu0 %3007
      %3009 = vrot.lane.b32.xlu0 %v2813, 64
      %v3010 = vpop.permute.xlu0 %3009
      %3011 = vrot.lane.b32.xlu0 %v2814, 64
      %v3012 = vpop.permute.xlu0 %3011
      %3013 = vrot.lane.b32.xlu0 %v2815, 64
      %v3014 = vpop.permute.xlu0 %3013
      %3015 = vrot.lane.b32.xlu0 %v2959, 64
      %v3016 = vpop.permute.xlu0 %3015
      %v3045 = vadd.f32 %v2931, %v2962
      %v3046 = vadd.f32 %v2932, %v2964
      %v3047 = vadd.f32 %v2933, %v2966
      %v3048 = vadd.f32 %v2934, %v2968
      %v3049 = vadd.f32 %v2935, %v2970
      %v3050 = vadd.f32 %v2936, %v2972
      %v3051 = vadd.f32 %v2937, %v2974
      %v3052 = vadd.f32 %v2938, %v2976
      %v3053 = vadd.f32 %v2939, %v2978
      %v3054 = vadd.f32 %v2940, %v2980
      %v3055 = vadd.f32 %v2941, %v2982
      %v3056 = vadd.f32 %v2942, %v2984
      %v3057 = vadd.f32 %v2943, %v2986
      %v3058 = vadd.f32 %v2944, %v2988
      %v3059 = vadd.f32 %v2945, %v2990
      %v3060 = vadd.f32 %v2946, %v2992
      %v3061 = vadd.f32 %v2947, %v2994
      %v3062 = vadd.f32 %v2948, %v2996
      %v3063 = vadd.f32 %v2949, %v2998
      %v3064 = vadd.f32 %v2950, %v3000
      %v3065 = vadd.f32 %v2951, %v3002
      %v3066 = vadd.f32 %v2952, %v3004
      %v3067 = vadd.f32 %v2953, %v3006
      %v3068 = vadd.f32 %v2954, %v3008
      %v3069 = vadd.f32 %v2955, %v3010
      %v3070 = vadd.f32 %v2956, %v3012
      %v3071 = vadd.f32 %v2957, %v3014
      %v3072 = vadd.f32 %v2958, %v3016
      %v3073 = vld [vmem:[#allocation2 + $0x110] sm:$0xfe]
      %v3074 = vld [vmem:[#allocation2 + $0x138] sm:$0xff]
      %v3075 = vld [vmem:[#allocation2 + $0x160] sm:$0xff]
      %v3076 = vld [vmem:[#allocation2 + $0x188] sm:$0xff]
      %v3077 = vld [vmem:[#allocation2 + $0x1b0] sm:$0xff]
      %v3078 = vld [vmem:[#allocation2 + $0x1d8] sm:$0xff]
      %v3079 = vld [vmem:[#allocation2 + $0x200] sm:$0xff]
      %v3080 = vld [vmem:[#allocation2 + $0x228] sm:$0xff]
      %v3081 = vld [vmem:[#allocation2 + $0x250] sm:$0xff]
      %v3082 = vld [vmem:[#allocation2 + $0x278] sm:$0xff]
      %v3083 = vld [vmem:[#allocation2 + $0x2a0] sm:$0xff]
      %v3084 = vld [vmem:[#allocation2 + $0x2c8] sm:$0xff]
      %v3085 = vld [vmem:[#allocation2 + $0x2f0] sm:$0xff]
      %v3086 = vld [vmem:[#allocation2 + $0x318] sm:$0xff]
      %v3087 = vld [vmem:[#allocation2 + $0x340] sm:$0xff]
      %v3088 = vld [vmem:[#allocation2 + $0x368] sm:$0xff]
      %v3089 = vld [vmem:[#allocation2 + $0x390] sm:$0xff]
      %v3090 = vld [vmem:[#allocation2 + $0x3b8] sm:$0xff]
      %v3091 = vld [vmem:[#allocation2 + $0x3e0] sm:$0xff]
      %v3092 = vld [vmem:[#allocation2 + $0x408] sm:$0xff]
      %v3093 = vld [vmem:[#allocation2 + $0x430] sm:$0xff]
      %v3094 = vld [vmem:[#allocation2 + $0x458] sm:$0xff]
      %v3095 = vld [vmem:[#allocation2 + $0x480] sm:$0xff]
      %v3096 = vld [vmem:[#allocation2 + $0x4a8] sm:$0xff]
      %v3097 = vld [vmem:[#allocation2 + $0x4d0] sm:$0xff]
      %v3098 = vld [vmem:[#allocation2 + $0x4f8] sm:$0xff]
      %v3099 = vld [vmem:[#allocation2 + $0x520] sm:$0xff]
      %v3100 = vld [vmem:[#allocation2 + $0x548] sm:$0xff]
      %v3101 = vld [vmem:[#allocation2 + $0x570] sm:$0x1]
      %v3131 = vrot.slane %v3073, 1
      %v3132 = vrot.slane %v3074, 1
      %v3133 = vsel %vm2243, %v3131, %v3132
      %v3134 = vrot.slane %v3075, 1
      %v3135 = vsel %vm2243, %v3132, %v3134
      %v3136 = vrot.slane %v3076, 1
      %v3137 = vsel %vm2243, %v3134, %v3136
      %v3138 = vrot.slane %v3077, 1
      %v3139 = vsel %vm2243, %v3136, %v3138
      %v3140 = vrot.slane %v3078, 1
      %v3141 = vsel %vm2243, %v3138, %v3140
      %v3142 = vrot.slane %v3079, 1
      %v3143 = vsel %vm2243, %v3140, %v3142
      %v3144 = vrot.slane %v3080, 1
      %v3145 = vsel %vm2243, %v3142, %v3144
      %v3146 = vrot.slane %v3081, 1
      %v3147 = vsel %vm2243, %v3144, %v3146
      %v3148 = vrot.slane %v3082, 1
      %v3149 = vsel %vm2243, %v3146, %v3148
      %v3150 = vrot.slane %v3083, 1
      %v3151 = vsel %vm2243, %v3148, %v3150
      %v3152 = vrot.slane %v3084, 1
      %v3153 = vsel %vm2243, %v3150, %v3152
      %v3154 = vrot.slane %v3085, 1
      %v3155 = vsel %vm2243, %v3152, %v3154
      %v3156 = vrot.slane %v3086, 1
      %v3157 = vsel %vm2243, %v3154, %v3156
      %v3158 = vrot.slane %v3087, 1
      %v3159 = vsel %vm2243, %v3156, %v3158
      %v3160 = vrot.slane %v3088, 1
      %v3161 = vsel %vm2243, %v3158, %v3160
      %v3162 = vrot.slane %v3089, 1
      %v3163 = vsel %vm2243, %v3160, %v3162
      %v3164 = vrot.slane %v3090, 1
      %v3165 = vsel %vm2243, %v3162, %v3164
      %v3166 = vrot.slane %v3091, 1
      %v3167 = vsel %vm2243, %v3164, %v3166
      %v3168 = vrot.slane %v3092, 1
      %v3169 = vsel %vm2243, %v3166, %v3168
      %v3170 = vrot.slane %v3093, 1
      %v3171 = vsel %vm2243, %v3168, %v3170
      %v3172 = vrot.slane %v3094, 1
      %v3173 = vsel %vm2243, %v3170, %v3172
      %v3174 = vrot.slane %v3095, 1
      %v3175 = vsel %vm2243, %v3172, %v3174
      %v3176 = vrot.slane %v3096, 1
      %v3177 = vsel %vm2243, %v3174, %v3176
      %v3178 = vrot.slane %v3097, 1
      %v3179 = vsel %vm2243, %v3176, %v3178
      %v3180 = vrot.slane %v3098, 1
      %v3181 = vsel %vm2243, %v3178, %v3180
      %v3182 = vrot.slane %v3099, 1
      %v3183 = vsel %vm2243, %v3180, %v3182
      %v3184 = vrot.slane %v3100, 1
      %v3185 = vsel %vm2243, %v3182, %v3184
      %v3186 = vrot.slane %v3101, 1
      %v3187 = vsel %vm2243, %v3184, %v3186
      %v3216 = vadd.f32 %v3045, %v3133
      %v3217 = vadd.f32 %v3046, %v3135
      %v3218 = vadd.f32 %v3047, %v3137
      %v3219 = vadd.f32 %v3048, %v3139
      %v3220 = vadd.f32 %v3049, %v3141
      %v3221 = vadd.f32 %v3050, %v3143
      %v3222 = vadd.f32 %v3051, %v3145
      %v3223 = vadd.f32 %v3052, %v3147
      %v3224 = vadd.f32 %v3053, %v3149
      %v3225 = vadd.f32 %v3054, %v3151
      %v3226 = vadd.f32 %v3055, %v3153
      %v3227 = vadd.f32 %v3056, %v3155
      %v3228 = vadd.f32 %v3057, %v3157
      %v3229 = vadd.f32 %v3058, %v3159
      %v3230 = vadd.f32 %v3059, %v3161
      %v3231 = vadd.f32 %v3060, %v3163
      %v3232 = vadd.f32 %v3061, %v3165
      %v3233 = vadd.f32 %v3062, %v3167
      %v3234 = vadd.f32 %v3063, %v3169
      %v3235 = vadd.f32 %v3064, %v3171
      %v3236 = vadd.f32 %v3065, %v3173
      %v3237 = vadd.f32 %v3066, %v3175
      %v3238 = vadd.f32 %v3067, %v3177
      %v3239 = vadd.f32 %v3068, %v3179
      %v3240 = vadd.f32 %v3069, %v3181
      %v3241 = vadd.f32 %v3070, %v3183
      %v3242 = vadd.f32 %v3071, %v3185
      %v3243 = vadd.f32 %v3072, %v3187
      %v3244 = vmax.f32 %v3216, 0.0
      %v3245 = vmax.f32 %v3217, 0.0
      %v3246 = vmax.f32 %v3218, 0.0
      %v3247 = vmax.f32 %v3219, 0.0
      %v3248 = vmax.f32 %v3220, 0.0
      %v3249 = vmax.f32 %v3221, 0.0
      %v3250 = vmax.f32 %v3222, 0.0
      %v3251 = vmax.f32 %v3223, 0.0
      %v3252 = vmax.f32 %v3224, 0.0
      %v3253 = vmax.f32 %v3225, 0.0
      %v3254 = vmax.f32 %v3226, 0.0
      %v3255 = vmax.f32 %v3227, 0.0
      %v3256 = vmax.f32 %v3228, 0.0
      %v3257 = vmax.f32 %v3229, 0.0
      %v3258 = vmax.f32 %v3230, 0.0
      %v3259 = vmax.f32 %v3231, 0.0
      %v3260 = vmax.f32 %v3232, 0.0
      %v3261 = vmax.f32 %v3233, 0.0
      %v3262 = vmax.f32 %v3234, 0.0
      %v3263 = vmax.f32 %v3235, 0.0
      %v3264 = vmax.f32 %v3236, 0.0
      %v3265 = vmax.f32 %v3237, 0.0
      %v3266 = vmax.f32 %v3238, 0.0
      %v3267 = vmax.f32 %v3239, 0.0
      %v3268 = vmax.f32 %v3240, 0.0
      %v3269 = vmax.f32 %v3241, 0.0
      %v3270 = vmax.f32 %v3242, 0.0
      %v3271 = vmax.f32 %v3243, 0.0
      %v3272 = vmul.f32 %v3244, %v1871
      %v3273 = vmul.f32 %v3245, %v1872
      %v3274 = vmul.f32 %v3246, %v1873
      %v3275 = vmul.f32 %v3247, %v1874
      %v3276 = vmul.f32 %v3248, %v1875
      %v3277 = vmul.f32 %v3249, %v1876
      %v3278 = vmul.f32 %v3250, %v1877
      %v3279 = vmul.f32 %v3251, %v1878
      %v3280 = vmul.f32 %v3252, %v1879
      %v3281 = vmul.f32 %v3253, %v1880
      %v3282 = vmul.f32 %v3254, %v1881
      %v3283 = vmul.f32 %v3255, %v1882
      %v3284 = vmul.f32 %v3256, %v1883
      %v3285 = vmul.f32 %v3257, %v1884
      %v3286 = vmul.f32 %v3258, %v1885
      %v3287 = vmul.f32 %v3259, %v1886
      %v3288 = vmul.f32 %v3260, %v1887
      %v3289 = vmul.f32 %v3261, %v1888
      %v3290 = vmul.f32 %v3262, %v1889
      %v3291 = vmul.f32 %v3263, %v1890
      %v3292 = vmul.f32 %v3264, %v1891
      %v3293 = vmul.f32 %v3265, %v1892
      %v3294 = vmul.f32 %v3266, %v1893
      %v3295 = vmul.f32 %v3267, %v1894
      %v3296 = vmul.f32 %v3268, %v1895
      %v3297 = vmul.f32 %v3269, %v1896
      %v3298 = vmul.f32 %v3270, %v1897
      %v3299 = vmul.f32 %v3271, %v1898
      %v3300 = vpack.c.bf16 %v3272, %v3272
      %v3301 = vpack.c.bf16 %v3273, %v3273
      %v3302 = vpack.c.bf16 %v3274, %v3274
      %v3303 = vpack.c.bf16 %v3275, %v3275
      %v3304 = vpack.c.bf16 %v3276, %v3276
      %v3305 = vpack.c.bf16 %v3277, %v3277
      %v3306 = vpack.c.bf16 %v3278, %v3278
      %v3307 = vpack.c.bf16 %v3279, %v3279
      %v3308 = vpack.c.bf16 %v3280, %v3280
      %v3309 = vpack.c.bf16 %v3281, %v3281
      %v3310 = vpack.c.bf16 %v3282, %v3282
      %v3311 = vpack.c.bf16 %v3283, %v3283
      %v3312 = vpack.c.bf16 %v3284, %v3284
      %v3313 = vpack.c.bf16 %v3285, %v3285
      %v3314 = vpack.c.bf16 %v3286, %v3286
      %v3315 = vpack.c.bf16 %v3287, %v3287
      %v3316 = vpack.c.bf16 %v3288, %v3288
      %v3317 = vpack.c.bf16 %v3289, %v3289
      %v3318 = vpack.c.bf16 %v3290, %v3290
      %v3319 = vpack.c.bf16 %v3291, %v3291
      %v3320 = vpack.c.bf16 %v3292, %v3292
      %v3321 = vpack.c.bf16 %v3293, %v3293
      %v3322 = vpack.c.bf16 %v3294, %v3294
      %v3323 = vpack.c.bf16 %v3295, %v3295
      %v3324 = vpack.c.bf16 %v3296, %v3296
      %v3325 = vpack.c.bf16 %v3297, %v3297
      %v3326 = vpack.c.bf16 %v3298, %v3298
      %v3327 = vpack.c.bf16 %v3299, %v3299
      %vm3328 = vcmask 519168
      %3329 = vst.msk [vmem:[%s237] sm:$0xf] %vm3328, 0
      %3330 = vst.msk [vmem:[%s237 + $0x4] sm:$0xf] %vm3328, 0
      %3331 = vst.msk [vmem:[%s237 + $0x8] sm:$0xf] %vm3328, 0
      %3332 = vst.msk [vmem:[%s237 + $0xc] sm:$0xf] %vm3328, 0
      %3333 = vst.msk [vmem:[%s237 + $0x10] sm:$0xf] %vm3328, %v3300
      %3334 = vst.msk [vmem:[%s237 + $0x14] sm:$0xf] %vm3328, %v3301
      %3335 = vst.msk [vmem:[%s237 + $0x18] sm:$0xf] %vm3328, %v3302
      %3336 = vst.msk [vmem:[%s237 + $0x1c] sm:$0xf] %vm3328, %v3303
      %3337 = vst.msk [vmem:[%s237 + $0x20] sm:$0xf] %vm3328, %v3304
      %3338 = vst.msk [vmem:[%s237 + $0x24] sm:$0xf] %vm3328, %v3305
      %3339 = vst.msk [vmem:[%s237 + $0x28] sm:$0xf] %vm3328, %v3306
      %3340 = vst.msk [vmem:[%s237 + $0x2c] sm:$0xf] %vm3328, %v3307
      %3341 = vst.msk [vmem:[%s237 + $0x30] sm:$0xf] %vm3328, %v3308
      %3342 = vst.msk [vmem:[%s237 + $0x34] sm:$0xf] %vm3328, %v3309
      %3343 = vst.msk [vmem:[%s237 + $0x38] sm:$0xf] %vm3328, %v3310
      %3344 = vst.msk [vmem:[%s237 + $0x3c] sm:$0xf] %vm3328, %v3311
      %3345 = vst.msk [vmem:[%s237 + $0x40] sm:$0xf] %vm3328, %v3312
      %3346 = vst.msk [vmem:[%s237 + $0x44] sm:$0xf] %vm3328, %v3313
      %3347 = vst.msk [vmem:[%s237 + $0x48] sm:$0xf] %vm3328, %v3314
      %3348 = vst.msk [vmem:[%s237 + $0x4c] sm:$0xf] %vm3328, %v3315
      %3349 = vst.msk [vmem:[%s237 + $0x50] sm:$0xf] %vm3328, %v3316
      %3350 = vst.msk [vmem:[%s237 + $0x54] sm:$0xf] %vm3328, %v3317
      %3351 = vst.msk [vmem:[%s237 + $0x58] sm:$0xf] %vm3328, %v3318
      %3352 = vst.msk [vmem:[%s237 + $0x5c] sm:$0xf] %vm3328, %v3319
      %3353 = vst.msk [vmem:[%s237 + $0x60] sm:$0xf] %vm3328, %v3320
      %3354 = vst.msk [vmem:[%s237 + $0x64] sm:$0xf] %vm3328, %v3321
      %3355 = vst.msk [vmem:[%s237 + $0x68] sm:$0xf] %vm3328, %v3322
      %3356 = vst.msk [vmem:[%s237 + $0x6c] sm:$0xf] %vm3328, %v3323
      %3357 = vst.msk [vmem:[%s237 + $0x70] sm:$0xf] %vm3328, %v3324
      %3358 = vst.msk [vmem:[%s237 + $0x74] sm:$0xf] %vm3328, %v3325
      %3359 = vst.msk [vmem:[%s237 + $0x78] sm:$0xf] %vm3328, %v3326
      %3360 = vst.msk [vmem:[%s237 + $0x7c] sm:$0xf] %vm3328, %v3327
      %3361 = vst.msk [vmem:[%s237 + $0x80] sm:$0xf] %vm3328, 0
      %3362 = vst.msk [vmem:[%s237 + $0x84] sm:$0xf] %vm3328, 0
      %3363 = vst.msk [vmem:[%s237 + $0x88] sm:$0xf] %vm3328, 0
      %3364 = vst.msk [vmem:[%s237 + $0x8c] sm:$0xf] %vm3328, 0
      %3365 = vst.msk [vmem:[%s237 + $0x90] sm:$0xf] %vm3328, 0
      %3366 = vst.msk [vmem:[%s237 + $0x94] sm:$0xf] %vm3328, 0
      %v3367 = vunpack.c.l.bf16 %v3300
      %v3368 = vunpack.c.l.bf16 %v3301
      %v3369 = vunpack.c.l.bf16 %v3302
      %v3370 = vunpack.c.l.bf16 %v3303
      %v3371 = vunpack.c.l.bf16 %v3304
      %v3372 = vunpack.c.l.bf16 %v3305
      %v3373 = vunpack.c.l.bf16 %v3306
      %v3374 = vunpack.c.l.bf16 %v3307
      %v3375 = vunpack.c.l.bf16 %v3308
      %v3376 = vunpack.c.l.bf16 %v3309
      %v3377 = vunpack.c.l.bf16 %v3310
      %v3378 = vunpack.c.l.bf16 %v3311
      %v3379 = vunpack.c.l.bf16 %v3312
      %v3380 = vunpack.c.l.bf16 %v3313
      %v3381 = vunpack.c.l.bf16 %v3314
      %v3382 = vunpack.c.l.bf16 %v3315
      %v3383 = vunpack.c.l.bf16 %v3316
      %v3384 = vunpack.c.l.bf16 %v3317
      %v3385 = vunpack.c.l.bf16 %v3318
      %v3386 = vunpack.c.l.bf16 %v3319
      %v3387 = vunpack.c.l.bf16 %v3320
      %v3388 = vunpack.c.l.bf16 %v3321
      %v3389 = vunpack.c.l.bf16 %v3322
      %v3390 = vunpack.c.l.bf16 %v3323
      %v3391 = vunpack.c.l.bf16 %v3324
      %v3392 = vunpack.c.l.bf16 %v3325
      %v3393 = vunpack.c.l.bf16 %v3326
      %v3394 = vunpack.c.l.bf16 %v3327
      %v3395 = vsel %vm1179, %v3367, 0.0
      %v3396 = vsel %vm1179, %v3368, 0.0
      %v3397 = vadd.f32 %v3395, %v3396
      %v3398 = vsel %vm1179, %v3369, 0.0
      %v3399 = vadd.f32 %v3397, %v3398
      %v3400 = vsel %vm1179, %v3370, 0.0
      %v3401 = vadd.f32 %v3399, %v3400
      %v3402 = vsel %vm1179, %v3371, 0.0
      %v3403 = vadd.f32 %v3401, %v3402
      %v3404 = vsel %vm1179, %v3372, 0.0
      %v3405 = vadd.f32 %v3403, %v3404
      %v3406 = vsel %vm1179, %v3373, 0.0
      %v3407 = vadd.f32 %v3405, %v3406
      %v3408 = vsel %vm1179, %v3374, 0.0
      %v3409 = vadd.f32 %v3407, %v3408
      %v3410 = vsel %vm1179, %v3375, 0.0
      %v3411 = vadd.f32 %v3409, %v3410
      %v3412 = vsel %vm1179, %v3376, 0.0
      %v3413 = vadd.f32 %v3411, %v3412
      %v3414 = vsel %vm1179, %v3377, 0.0
      %v3415 = vadd.f32 %v3413, %v3414
      %v3416 = vsel %vm1179, %v3378, 0.0
      %v3417 = vadd.f32 %v3415, %v3416
      %v3418 = vsel %vm1179, %v3379, 0.0
      %v3419 = vadd.f32 %v3417, %v3418
      %v3420 = vsel %vm1179, %v3380, 0.0
      %v3421 = vadd.f32 %v3419, %v3420
      %v3422 = vsel %vm1179, %v3381, 0.0
      %v3423 = vadd.f32 %v3421, %v3422
      %v3424 = vsel %vm1179, %v3382, 0.0
      %v3425 = vadd.f32 %v3423, %v3424
      %v3426 = vsel %vm1179, %v3383, 0.0
      %v3427 = vadd.f32 %v3425, %v3426
      %v3428 = vsel %vm1179, %v3384, 0.0
      %v3429 = vadd.f32 %v3427, %v3428
      %v3430 = vsel %vm1179, %v3385, 0.0
      %v3431 = vadd.f32 %v3429, %v3430
      %v3432 = vsel %vm1179, %v3386, 0.0
      %v3433 = vadd.f32 %v3431, %v3432
      %v3434 = vsel %vm1179, %v3387, 0.0
      %v3435 = vadd.f32 %v3433, %v3434
      %v3436 = vsel %vm1179, %v3388, 0.0
      %v3437 = vadd.f32 %v3435, %v3436
      %v3438 = vsel %vm1179, %v3389, 0.0
      %v3439 = vadd.f32 %v3437, %v3438
      %v3440 = vsel %vm1179, %v3390, 0.0
      %v3441 = vadd.f32 %v3439, %v3440
      %v3442 = vsel %vm1179, %v3391, 0.0
      %v3443 = vadd.f32 %v3441, %v3442
      %v3444 = vsel %vm1179, %v3392, 0.0
      %v3445 = vadd.f32 %v3443, %v3444
      %v3446 = vsel %vm1179, %v3393, 0.0
      %v3447 = vadd.f32 %v3445, %v3446
      %v3448 = vsel %vm1179, %v3394, 0.0
      %v3449 = vadd.f32 %v3447, %v3448
      %v3450 = vrot.slane %v3449, 4
      %v3451 = vadd.f32 %v3449, %v3450
      %v3452 = vrot.slane %v3451, 2
      %v3453 = vadd.f32 %v3451, %v3452
      %v3454 = vrot.slane %v3453, 1
      %v3455 = vadd.f32 %v3453, %v3454
      %v3456 = vadd.f32 %v3455, 0.0
      %v3457 = vmul.f32 %v3367, %v3367
      %v3458 = vmul.f32 %v3368, %v3368
      %v3459 = vmul.f32 %v3369, %v3369
      %v3460 = vmul.f32 %v3370, %v3370
      %v3461 = vmul.f32 %v3371, %v3371
      %v3462 = vmul.f32 %v3372, %v3372
      %v3463 = vmul.f32 %v3373, %v3373
      %v3464 = vmul.f32 %v3374, %v3374
      %v3465 = vmul.f32 %v3375, %v3375
      %v3466 = vmul.f32 %v3376, %v3376
      %v3467 = vmul.f32 %v3377, %v3377
      %v3468 = vmul.f32 %v3378, %v3378
      %v3469 = vmul.f32 %v3379, %v3379
      %v3470 = vmul.f32 %v3380, %v3380
      %v3471 = vmul.f32 %v3381, %v3381
      %v3472 = vmul.f32 %v3382, %v3382
      %v3473 = vmul.f32 %v3383, %v3383
      %v3474 = vmul.f32 %v3384, %v3384
      %v3475 = vmul.f32 %v3385, %v3385
      %v3476 = vmul.f32 %v3386, %v3386
      %v3477 = vmul.f32 %v3387, %v3387
      %v3478 = vmul.f32 %v3388, %v3388
      %v3479 = vmul.f32 %v3389, %v3389
      %v3480 = vmul.f32 %v3390, %v3390
      %v3481 = vmul.f32 %v3391, %v3391
      %v3482 = vmul.f32 %v3392, %v3392
      %v3483 = vmul.f32 %v3393, %v3393
      %v3484 = vmul.f32 %v3394, %v3394
      %v3485 = vsel %vm1179, %v3457, 0.0
      %v3486 = vsel %vm1179, %v3458, 0.0
      %v3487 = vadd.f32 %v3485, %v3486
      %v3488 = vsel %vm1179, %v3459, 0.0
      %v3489 = vadd.f32 %v3487, %v3488
      %v3490 = vsel %vm1179, %v3460, 0.0
      %v3491 = vadd.f32 %v3489, %v3490
      %v3492 = vsel %vm1179, %v3461, 0.0
      %v3493 = vadd.f32 %v3491, %v3492
      %v3494 = vsel %vm1179, %v3462, 0.0
      %v3495 = vadd.f32 %v3493, %v3494
      %v3496 = vsel %vm1179, %v3463, 0.0
      %v3497 = vadd.f32 %v3495, %v3496
      %v3498 = vsel %vm1179, %v3464, 0.0
      %v3499 = vadd.f32 %v3497, %v3498
      %v3500 = vsel %vm1179, %v3465, 0.0
      %v3501 = vadd.f32 %v3499, %v3500
      %v3502 = vsel %vm1179, %v3466, 0.0
      %v3503 = vadd.f32 %v3501, %v3502
      %v3504 = vsel %vm1179, %v3467, 0.0
      %v3505 = vadd.f32 %v3503, %v3504
      %v3506 = vsel %vm1179, %v3468, 0.0
      %v3507 = vadd.f32 %v3505, %v3506
      %v3508 = vsel %vm1179, %v3469, 0.0
      %v3509 = vadd.f32 %v3507, %v3508
      %v3510 = vsel %vm1179, %v3470, 0.0
      %v3511 = vadd.f32 %v3509, %v3510
      %v3512 = vsel %vm1179, %v3471, 0.0
      %v3513 = vadd.f32 %v3511, %v3512
      %v3514 = vsel %vm1179, %v3472, 0.0
      %v3515 = vadd.f32 %v3513, %v3514
      %v3516 = vsel %vm1179, %v3473, 0.0
      %v3517 = vadd.f32 %v3515, %v3516
      %v3518 = vsel %vm1179, %v3474, 0.0
      %v3519 = vadd.f32 %v3517, %v3518
      %v3520 = vsel %vm1179, %v3475, 0.0
      %v3521 = vadd.f32 %v3519, %v3520
      %v3522 = vsel %vm1179, %v3476, 0.0
      %v3523 = vadd.f32 %v3521, %v3522
      %v3524 = vsel %vm1179, %v3477, 0.0
      %v3525 = vadd.f32 %v3523, %v3524
      %v3526 = vsel %vm1179, %v3478, 0.0
      %v3527 = vadd.f32 %v3525, %v3526
      %v3528 = vsel %vm1179, %v3479, 0.0
      %v3529 = vadd.f32 %v3527, %v3528
      %v3530 = vsel %vm1179, %v3480, 0.0
      %v3531 = vadd.f32 %v3529, %v3530
      %v3532 = vsel %vm1179, %v3481, 0.0
      %v3533 = vadd.f32 %v3531, %v3532
      %v3534 = vsel %vm1179, %v3482, 0.0
      %v3535 = vadd.f32 %v3533, %v3534
      %v3536 = vsel %vm1179, %v3483, 0.0
      %v3537 = vadd.f32 %v3535, %v3536
      %v3538 = vsel %vm1179, %v3484, 0.0
      %v3539 = vadd.f32 %v3537, %v3538
      %v3540 = vrot.slane %v3539, 4
      %v3541 = vadd.f32 %v3539, %v3540
      %v3542 = vrot.slane %v3541, 2
      %v3543 = vadd.f32 %v3541, %v3542
      %v3544 = vrot.slane %v3543, 1
      %v3545 = vadd.f32 %v3543, %v3544
      %v3546 = vadd.f32 %v3545, 0.0
      %3547 = vst.msk [vmem:[%s241] sm:$0xff] %vm1179, %v3456
      %3548 = vst.msk [vmem:[%s245] sm:$0xff] %vm1179, %v3546
      %p3549 = scmp.lt.s32.totalorder %s17, 1
      %s3550 = scalar_select %p3549, %s17, 1
      %s3551 = smul.addr %s3550, 38
      %s3552 = smul.addr %s3551, 4
      %s3553 = scalar_lea.vmem %s3, %s3552
      %p3554 = scmp.lt.s32.totalorder %s17, 1
      %s3555 = scalar_select %p3554, %s17, 1
      %s3556 = smul.addr %s3555, 8
      %s3557 = scalar_lea.vmem %s4, %s3556
      %p3558 = scmp.lt.s32.totalorder %s17, 1
      %s3559 = scalar_select %p3558, %s17, 1
      %s3560 = smul.addr %s3559, 8
      %s3561 = scalar_lea.vmem %s5, %s3560
      // Predicated region
      $region33: #{decoder_forward.5} parent=31 // pred_check
        %p3562 = pneg %p103
      $region34: #{decoder_forward.5} parent=31 // pred_check_branch
        %3564 = sbr.rel (%p3562) target = $region36
      $region35: #{decoder_forward.5} parent=31 // pred_region
        _
      $region36: #{decoder_forward.5} parent=31 // pred_fallthru
        _
      // Predicated region
      $region37: #{decoder_forward.5} parent=31 // pred_check
        %p3565 = pneg %p129
      $region38: #{decoder_forward.5} parent=31 // pred_check_branch
        %3567 = sbr.rel (%p3565) target = $region40
      $region39: #{decoder_forward.5} parent=31 // pred_region
        _
      $region40: #{decoder_forward.5} parent=31 // pred_fallthru
        _
      // Predicated region
      $region41: #{decoder_forward.5} parent=31 // pred_check
        %p3568 = pneg %p155
      $region42: #{decoder_forward.5} parent=31 // pred_check_branch
        %3570 = sbr.rel (%p3568) target = $region44
      $region43: #{decoder_forward.5} parent=31 // pred_region
        _
      $region44: #{decoder_forward.5} parent=31 // pred_fallthru
        _
    $region32: #{decoder_forward.5} parent=5 // pred_fallthru
      _
    %p3571 = scmp.le.s32.totalorder 2, %s12
    // Predicated region
    $region45: #{decoder_forward.5} parent=5 // pred_check
      %p3572 = pneg %p3571
    $region46: #{decoder_forward.5} parent=5 // pred_check_branch
      %3574 = sbr.rel (%p3572) target = $region48
    $region47: #{decoder_forward.5} parent=5 // pred_region
      %s3575 = ssub.s32 %s12, 2
      // Predicated region
      $region49: #{decoder_forward.5} parent=47 // pred_check
        %p3576 = pneg %p109
      $region50: #{decoder_forward.5} parent=47 // pred_check_branch
        %3578 = sbr.rel (%p3576) target = $region52
      $region51: #{decoder_forward.5} parent=47 // pred_region
        %p3579 = scmp.lt.s32.totalorder %s18, 1
        %s3580 = scalar_select %p3579, %s18, 1
        %s3581 = smul.addr %s3580, 38
        %s3582 = smul.addr %s3581, 4
        %s3583 = scalar_lea.vmem %s3, %s3582
      $region52: #{decoder_forward.5} parent=47 // pred_fallthru
        _
      // Predicated region
      $region53: #{decoder_forward.5} parent=47 // pred_check
        %p3584 = pneg %p135
      $region54: #{decoder_forward.5} parent=47 // pred_check_branch
        %3586 = sbr.rel (%p3584) target = $region56
      $region55: #{decoder_forward.5} parent=47 // pred_region
        %p3587 = scmp.lt.s32.totalorder %s18, 1
        %s3588 = scalar_select %p3587, %s18, 1
        %s3589 = smul.addr %s3588, 8
        %s3590 = scalar_lea.vmem %s4, %s3589
      $region56: #{decoder_forward.5} parent=47 // pred_fallthru
        _
      // Predicated region
      $region57: #{decoder_forward.5} parent=47 // pred_check
        %p3591 = pneg %p161
      $region58: #{decoder_forward.5} parent=47 // pred_check_branch
        %3593 = sbr.rel (%p3591) target = $region60
      $region59: #{decoder_forward.5} parent=47 // pred_region
        %p3594 = scmp.lt.s32.totalorder %s18, 1
        %s3595 = scalar_select %p3594, %s18, 1
        %s3596 = smul.addr %s3595, 8
        %s3597 = scalar_lea.vmem %s5, %s3596
      $region60: #{decoder_forward.5} parent=47 // pred_fallthru
        _
    $region48: #{decoder_forward.5} parent=5 // pred_fallthru
      _
  $region6: #{decoder_forward.5} parent=0 // loop_footer
    %s16 = sadd.s32 1, %s12
  $region7: #{decoder_forward.5} parent=0 // loop_footer_branch
    %11 = sbr.rel target = $region3
  $region8: #{decoder_forward.5} parent=0 // loop_exit
    _

// kernel: decoder_forward.6
$region0: #{decoder_forward.6}
  #allocation0 [shape = 'u32[]', space=smem, size = 0x4, offset = 0x4, fixed_abs, tag = 'smem constant byte address 0x4 - core index']
  #allocation1 [shape = 'u32[72,128]{1,0:T(1,128)}', space=vmem, size = 0x9000, scoped, tag = 'internal scratch']
  #allocation2 [shape = 'f32[304,144]{1,0:T(8,128)}', space=vmem, size = 0x4c000, scoped, tag = 'scratch operand']
  %s0 = inlined_call_operand.vmem [shape: bf16[2,304,64], index: 0, kind: input, shape index: {}]
  %s1 = inlined_call_operand.vmem [shape: bf16[64,144], index: 1, kind: input, shape index: {}]
  %s2 = inlined_call_operand.vmem [shape: f32[224,16], index: 2, kind: input, shape index: {}]
  %s3 = inlined_call_operand.vmem [shape: bf16[2,256,16], index: 3, kind: output, shape index: {0}]
  %s4 = inlined_call_operand.vmem [shape: f32[2,8,16], index: 4, kind: output, shape index: {1}]
  %s5 = inlined_call_operand.vmem [shape: f32[2,8,16], index: 5, kind: output, shape index: {2}]
  %6 = xla_tuple %s3, %s4, %s5
  %s7 = sld [smem:[#allocation0]]
  $region61: #{decoder_forward.6} parent=0
    _
  %s9 = ssub.s32 1, %s7
  %s10 = scalar_select 0, %s9, %s7
  loop: start=0, step=1, limit=4
  $region2: #{decoder_forward.6} parent=0 // loop_pre_header
    _
  $region3: #{decoder_forward.6} parent=0 // loop_header
    %s12 = sphi 0, %s16
    %p13 = scmp.ge.s32.totalorder %s12, 4
    %s22 = sphi 0, %s24
    %s25 = sphi 0, %s22
    %s26 = sphi 0, %s25
    %s42 = sphi 0, %s26
    %s46 = sphi 0, %s46
    %s48 = sphi 0, %s46
    %s49 = sphi 0, %s48
    %s63 = sphi 0, %s49
    %s67 = sphi 0, %s67
    %s69 = sphi 0, %s67
    %s70 = sphi 0, %s69
    %s84 = sphi 0, %s70
    %s90 = sphi 0, %s92
    %s93 = sphi 0, %s90
    %s94 = sphi 0, %s93
    %s110 = sphi 0, %s94
    %s116 = sphi 0, %s118
    %s119 = sphi 0, %s116
    %s120 = sphi 0, %s119
    %s136 = sphi 0, %s120
    %s142 = sphi 0, %s144
    %s145 = sphi 0, %s142
    %s146 = sphi 0, %s145
    %s162 = sphi 0, %s146
  $region4: #{decoder_forward.6} parent=0 // loop_header_branch
    %15 = sbr.rel (%p13) target = $region8
  $region5: #{decoder_forward.6} parent=0 // loop_body
    %s17 = ssub.s32 %s12, 1
    %s18 = ssub.s32 %s12, 2
    %s19 = sadd.s32 %s12, 1
    %s20 = ssub.s32 %s12, %s19
    %p21 = scmp.eq.s32.totalorder %s20, 0
    %s23 = sadd.s32 %s22, 1
    %s24 = scalar_select %p21, %s22, %s23
    %p27 = pneg %p21
    %p28 = scmp.eq.s32.totalorder %s12, 1
    %p29 = por %p27, %p28
    %p30 = scmp.ne.s32.totalorder %s22, %s25
    %p31 = scmp.eq.s32.totalorder %s12, 0
    %p32 = por %p30, %p31
    %p33 = scmp.ne.s32.totalorder %s22, %s25
    %p34 = scmp.eq.s32.totalorder %s17, 1
    %p35 = por %p33, %p34
    %p36 = scmp.ne.s32.totalorder %s25, %s26
    %p37 = scmp.eq.s32.totalorder %s17, 0
    %p38 = por %p36, %p37
    %p39 = scmp.ne.s32.totalorder %s25, %s26
    %p40 = scmp.eq.s32.totalorder %s18, 1
    %p41 = por %p39, %p40
    %p43 = scmp.ne.s32.totalorder %s26, %s42
    %p44 = scmp.eq.s32.totalorder %s18, 0
    %p45 = por %p43, %p44
    %s47 = sadd.s32 %s46, 1
    %p50 = scmp.eq.s32.totalorder %s12, 1
    %p51 = scmp.ne.s32.totalorder %s46, %s48
    %p52 = scmp.eq.s32.totalorder %s12, 0
    %p53 = por %p51, %p52
    %p54 = scmp.ne.s32.totalorder %s46, %s48
    %p55 = scmp.eq.s32.totalorder %s17, 1
    %p56 = por %p54, %p55
    %p57 = scmp.ne.s32.totalorder %s48, %s49
    %p58 = scmp.eq.s32.totalorder %s17, 0
    %p59 = por %p57, %p58
    %p60 = scmp.ne.s32.totalorder %s48, %s49
    %p61 = scmp.eq.s32.totalorder %s18, 1
    %p62 = por %p60, %p61
    %p64 = scmp.ne.s32.totalorder %s49, %s63
    %p65 = scmp.eq.s32.totalorder %s18, 0
    %p66 = por %p64, %p65
    %s68 = sadd.s32 %s67, 1
    %p71 = scmp.eq.s32.totalorder %s12, 1
    %p72 = scmp.ne.s32.totalorder %s67, %s69
    %p73 = scmp.eq.s32.totalorder %s12, 0
    %p74 = por %p72, %p73
    %p75 = scmp.ne.s32.totalorder %s67, %s69
    %p76 = scmp.eq.s32.totalorder %s17, 1
    %p77 = por %p75, %p76
    %p78 = scmp.ne.s32.totalorder %s69, %s70
    %p79 = scmp.eq.s32.totalorder %s17, 0
    %p80 = por %p78, %p79
    %p81 = scmp.ne.s32.totalorder %s69, %s70
    %p82 = scmp.eq.s32.totalorder %s18, 1
    %p83 = por %p81, %p82
    %p85 = scmp.ne.s32.totalorder %s70, %s84
    %p86 = scmp.eq.s32.totalorder %s18, 0
    %p87 = por %p85, %p86
    %s88 = ssub.s32 %s12, %s19
    %p89 = scmp.eq.s32.totalorder %s88, 0
    %s91 = sadd.s32 %s90, 1
    %s92 = scalar_select %p89, %s90, %s91
    %p95 = pneg %p89
    %p96 = scmp.eq.s32.totalorder %s12, 1
    %p97 = por %p95, %p96
    %p98 = scmp.ne.s32.totalorder %s90, %s93
    %p99 = scmp.eq.s32.totalorder %s12, 0
    %p100 = por %p98, %p99
    %p101 = scmp.ne.s32.totalorder %s90, %s93
    %p102 = scmp.eq.s32.totalorder %s17, 1
    %p103 = por %p101, %p102
    %p104 = scmp.ne.s32.totalorder %s93, %s94
    %p105 = scmp.eq.s32.totalorder %s17, 0
    %p106 = por %p104, %p105
    %p107 = scmp.ne.s32.totalorder %s93, %s94
    %p108 = scmp.eq.s32.totalorder %s18, 1
    %p109 = por %p107, %p108
    %p111 = scmp.ne.s32.totalorder %s94, %s110
    %p112 = scmp.eq.s32.totalorder %s18, 0
    %p113 = por %p111, %p112
    %s114 = ssub.s32 %s12, %s19
    %p115 = scmp.eq.s32.totalorder %s114, 0
    %s117 = sadd.s32 %s116, 1
    %s118 = scalar_select %p115, %s116, %s117
    %p121 = pneg %p115
    %p122 = scmp.eq.s32.totalorder %s12, 1
    %p123 = por %p121, %p122
    %p124 = scmp.ne.s32.totalorder %s116, %s119
    %p125 = scmp.eq.s32.totalorder %s12, 0
    %p126 = por %p124, %p125
    %p127 = scmp.ne.s32.totalorder %s116, %s119
    %p128 = scmp.eq.s32.totalorder %s17, 1
    %p129 = por %p127, %p128
    %p130 = scmp.ne.s32.totalorder %s119, %s120
    %p131 = scmp.eq.s32.totalorder %s17, 0
    %p132 = por %p130, %p131
    %p133 = scmp.ne.s32.totalorder %s119, %s120
    %p134 = scmp.eq.s32.totalorder %s18, 1
    %p135 = por %p133, %p134
    %p137 = scmp.ne.s32.totalorder %s120, %s136
    %p138 = scmp.eq.s32.totalorder %s18, 0
    %p139 = por %p137, %p138
    %s140 = ssub.s32 %s12, %s19
    %p141 = scmp.eq.s32.totalorder %s140, 0
    %s143 = sadd.s32 %s142, 1
    %s144 = scalar_select %p141, %s142, %s143
    %p147 = pneg %p141
    %p148 = scmp.eq.s32.totalorder %s12, 1
    %p149 = por %p147, %p148
    %p150 = scmp.ne.s32.totalorder %s142, %s145
    %p151 = scmp.eq.s32.totalorder %s12, 0
    %p152 = por %p150, %p151
    %p153 = scmp.ne.s32.totalorder %s142, %s145
    %p154 = scmp.eq.s32.totalorder %s17, 1
    %p155 = por %p153, %p154
    %p156 = scmp.ne.s32.totalorder %s145, %s146
    %p157 = scmp.eq.s32.totalorder %s17, 0
    %p158 = por %p156, %p157
    %p159 = scmp.ne.s32.totalorder %s145, %s146
    %p160 = scmp.eq.s32.totalorder %s18, 1
    %p161 = por %p159, %p160
    %p163 = scmp.ne.s32.totalorder %s146, %s162
    %p164 = scmp.eq.s32.totalorder %s18, 0
    %p165 = por %p163, %p164
    %p166 = scmp.le.s32.totalorder 1, %s12
    %p167 = scmp.lt.s32.totalorder %s12, 3
    %p168 = pnand %p166, %p167
    %p169 = pneg %p168
    // Predicated region
    $region9: #{decoder_forward.6} parent=5 // pred_check
      _
    $region10: #{decoder_forward.6} parent=5 // pred_check_branch
      %171 = sbr.rel (%p168) target = $region12
    $region11: #{decoder_forward.6} parent=5 // pred_region
      %s172 = ssub.s32 %s12, 1
      // Predicated region
      $region13: #{decoder_forward.6} parent=11 // pred_check
        %p173 = pneg %p59
      $region14: #{decoder_forward.6} parent=11 // pred_check_branch
        %175 = sbr.rel (%p173) target = $region16
      $region15: #{decoder_forward.6} parent=11 // pred_region
        _
      $region16: #{decoder_forward.6} parent=11 // pred_fallthru
        _
      // Predicated region
      $region17: #{decoder_forward.6} parent=11 // pred_check
        %p176 = pneg %p80
      $region18: #{decoder_forward.6} parent=11 // pred_check_branch
        %178 = sbr.rel (%p176) target = $region20
      $region19: #{decoder_forward.6} parent=11 // pred_region
        _
      $region20: #{decoder_forward.6} parent=11 // pred_fallthru
        _
    $region12: #{decoder_forward.6} parent=5 // pred_fallthru
      _
    %p179 = scmp.lt.s32.totalorder %s12, 2
    // Predicated region
    $region21: #{decoder_forward.6} parent=5 // pred_check
      %p180 = pneg %p179
    $region22: #{decoder_forward.6} parent=5 // pred_check_branch
      %182 = sbr.rel (%p180) target = $region24
    $region23: #{decoder_forward.6} parent=5 // pred_region
      // Predicated region
      $region25: #{decoder_forward.6} parent=23 // pred_check
        %p183 = pneg %p32
      $region26: #{decoder_forward.6} parent=23 // pred_check_branch
        %185 = sbr.rel (%p183) target = $region28
      $region27: #{decoder_forward.6} parent=23 // pred_region
        %p186 = scmp.lt.s32.totalorder %s12, 1
        %s187 = scalar_select %p186, %s12, 1
        %s188 = smul.addr %s187, 38
        %s189 = smul.addr %s188, 4
        %s190 = scalar_lea.vmem %s0, %s189
      $region28: #{decoder_forward.6} parent=23 // pred_fallthru
        _
    $region24: #{decoder_forward.6} parent=5 // pred_fallthru
      _
    %p191 = scmp.le.s32.totalorder 1, %s12
    %p192 = scmp.lt.s32.totalorder %s12, 3
    %p193 = pnand %p191, %p192
    %p194 = pneg %p193
    // Predicated region
    $region29: #{decoder_forward.6} parent=5 // pred_check
      _
    $region30: #{decoder_forward.6} parent=5 // pred_check_branch
      %196 = sbr.rel (%p193) target = $region32
    $region31: #{decoder_forward.6} parent=5 // pred_region
      %s197 = ssub.s32 %s12, 1
      %p198 = scmp.lt.s32.totalorder %s17, 1
      %s199 = scalar_select %p198, %s17, 1
      %s200 = smul.addr %s199, 38
      %s201 = smul.addr %s200, 4
      %s202 = scalar_lea.vmem %s0, %s201
      %p203 = pneg %p38
      %p204 = pneg %p35
      %p205 = pneg %p59
      %p206 = pneg %p56
      %p207 = pneg %p80
      %p208 = pneg %p77
      %p209 = pneg %p106
      %p210 = pneg %p103
      %p211 = scmp.lt.s32.totalorder %s17, 1
      %s212 = scalar_select %p211, %s17, 1
      %s213 = smul.addr %s212, 32
      %s214 = smul.addr %s213, 4
      %s215 = scalar_lea.vmem %s3, %s214
      %p216 = pneg %p132
      %p217 = pneg %p129
      %p218 = scmp.lt.s32.totalorder %s17, 1
      %s219 = scalar_select %p218, %s17, 1
      %s220 = smul.addr %s219, 8
      %s221 = scalar_lea.vmem %s4, %s220
      %p222 = pneg %p158
      %p223 = pneg %p155
      %p224 = scmp.lt.s32.totalorder %s17, 1
      %s225 = scalar_select %p224, %s17, 1
      %s226 = smul.addr %s225, 8
      %s227 = scalar_lea.vmem %s5, %s226
      %p228 = scmp.lt.s32.totalorder %s17, 1
      %s229 = scalar_select %p228, %s17, 1
      %s230 = smul.addr %s229, 38
      %s231 = smul.addr %s230, 4
      %s232 = scalar_lea.vmem %s0, %s231
      %p233 = scmp.lt.s32.totalorder %s17, 1
      %s234 = scalar_select %p233, %s17, 1
      %s235 = smul.addr %s234, 32
      %s236 = smul.addr %s235, 4
      %s237 = scalar_lea.vmem %s3, %s236
      %p238 = scmp.lt.s32.totalorder %s17, 1
      %s239 = scalar_select %p238, %s17, 1
      %s240 = smul.addr %s239, 8
      %s241 = scalar_lea.vmem %s4, %s240
      %p242 = scmp.lt.s32.totalorder %s17, 1
      %s243 = scalar_select %p242, %s17, 1
      %s244 = smul.addr %s243, 8
      %s245 = scalar_lea.vmem %s5, %s244
      %v247 = vld [vmem:[%s232] sm:$0xf]
      %v248 = vld [vmem:[%s232 + $0x4] sm:$0xf]
      %v249 = vld [vmem:[%s232 + $0x8] sm:$0xf]
      %v250 = vld [vmem:[%s232 + $0xc] sm:$0xf]
      %v251 = vld [vmem:[%s232 + $0x10] sm:$0xf]
      %v252 = vld [vmem:[%s232 + $0x14] sm:$0xf]
      %v253 = vld [vmem:[%s232 + $0x18] sm:$0xf]
      %v254 = vld [vmem:[%s232 + $0x1c] sm:$0xf]
      %v255 = vld [vmem:[%s232 + $0x20] sm:$0xf]
      %v256 = vld [vmem:[%s232 + $0x24] sm:$0xf]
      %v257 = vld [vmem:[%s232 + $0x28] sm:$0xf]
      %v258 = vld [vmem:[%s232 + $0x2c] sm:$0xf]
      %v259 = vld [vmem:[%s232 + $0x30] sm:$0xf]
      %v260 = vld [vmem:[%s232 + $0x34] sm:$0xf]
      %v261 = vld [vmem:[%s232 + $0x38] sm:$0xf]
      %v262 = vld [vmem:[%s232 + $0x3c] sm:$0xf]
      %v263 = vld [vmem:[%s232 + $0x40] sm:$0xf]
      %v264 = vld [vmem:[%s232 + $0x44] sm:$0xf]
      %v265 = vld [vmem:[%s232 + $0x48] sm:$0xf]
      %v266 = vld [vmem:[%s232 + $0x4c] sm:$0xf]
      %v267 = vld [vmem:[%s232 + $0x50] sm:$0xf]
      %v268 = vld [vmem:[%s232 + $0x54] sm:$0xf]
      %v269 = vld [vmem:[%s232 + $0x58] sm:$0xf]
      %v270 = vld [vmem:[%s232 + $0x5c] sm:$0xf]
      %v271 = vld [vmem:[%s232 + $0x60] sm:$0xf]
      %v272 = vld [vmem:[%s232 + $0x64] sm:$0xf]
      %v273 = vld [vmem:[%s232 + $0x68] sm:$0xf]
      %v274 = vld [vmem:[%s232 + $0x6c] sm:$0xf]
      %v275 = vld [vmem:[%s232 + $0x70] sm:$0xf]
      %v276 = vld [vmem:[%s232 + $0x74] sm:$0xf]
      %v277 = vld [vmem:[%s232 + $0x78] sm:$0xf]
      %v278 = vld [vmem:[%s232 + $0x7c] sm:$0xf]
      %v279 = vld [vmem:[%s232 + $0x80] sm:$0xf]
      %v280 = vld [vmem:[%s232 + $0x84] sm:$0xf]
      %v281 = vld [vmem:[%s232 + $0x88] sm:$0xf]
      %v282 = vld [vmem:[%s232 + $0x8c] sm:$0xf]
      %v283 = vld [vmem:[%s232 + $0x90] sm:$0xf]
      %v284 = vld [vmem:[%s232 + $0x94] sm:$0xf]
      %v285 = vld [vmem:[%s1] sm:$0xff]
      %v286 = vld [vmem:[%s1 + $0x8] sm:$0xff]
      %v287 = vld [vmem:[%s1 + $0x10] sm:$0xff]
      %v288 = vld [vmem:[%s1 + $0x18] sm:$0xff]
      %v289 = vld [vmem:[%s1 + $0x20] sm:$0xff]
      %v290 = vld [vmem:[%s1 + $0x28] sm:$0xff]
      %v291 = vld [vmem:[%s1 + $0x30] sm:$0xff]
      %v292 = vld [vmem:[%s1 + $0x38] sm:$0xff]
      %v331 = vunpack.c.l.b16 %v247
      %v332 = vunpack.c.l.b16 %v248
      %v333 = vunpack.c.l.b16 %v249
      %v334 = vunpack.c.l.b16 %v250
      %v335 = vunpack.c.l.b16 %v251
      %v336 = vunpack.c.l.b16 %v252
      %v337 = vunpack.c.l.b16 %v253
      %v338 = vunpack.c.l.b16 %v254
      %v339 = vunpack.c.l.b16 %v255
      %v340 = vunpack.c.l.b16 %v256
      %v341 = vunpack.c.l.b16 %v257
      %v342 = vunpack.c.l.b16 %v258
      %v343 = vunpack.c.l.b16 %v259
      %v344 = vunpack.c.l.b16 %v260
      %v345 = vunpack.c.l.b16 %v261
      %v346 = vunpack.c.l.b16 %v262
      %v347 = vunpack.c.l.b16 %v263
      %v348 = vunpack.c.l.b16 %v264
      %v349 = vunpack.c.l.b16 %v265
      %v350 = vunpack.c.l.b16 %v266
      %v351 = vunpack.c.l.b16 %v267
      %v352 = vunpack.c.l.b16 %v268
      %v353 = vunpack.c.l.b16 %v269
      %v354 = vunpack.c.l.b16 %v270
      %v355 = vunpack.c.l.b16 %v271
      %v356 = vunpack.c.l.b16 %v272
      %v357 = vunpack.c.l.b16 %v273
      %v358 = vunpack.c.l.b16 %v274
      %v359 = vunpack.c.l.b16 %v275
      %v360 = vunpack.c.l.b16 %v276
      %v361 = vunpack.c.l.b16 %v277
      %v362 = vunpack.c.l.b16 %v278
      %v363 = vunpack.c.l.b16 %v279
      %v364 = vunpack.c.l.b16 %v280
      %v365 = vunpack.c.l.b16 %v281
      %v366 = vunpack.c.l.b16 %v282
      %v367 = vunpack.c.l.b16 %v283
      %v368 = vunpack.c.l.b16 %v284
      %v369 = vpack.c.b16 %v332, %v331
      %v370 = vpack.c.b16 %v334, %v333
      %v371 = vpack.c.b16 %v336, %v335
      %v372 = vpack.c.b16 %v338, %v337
      %v373 = vpack.c.b16 %v340, %v339
      %v374 = vpack.c.b16 %v342, %v341
      %v375 = vpack.c.b16 %v344, %v343
      %v376 = vpack.c.b16 %v346, %v345
      %v377 = vpack.c.b16 %v348, %v347
      %v378 = vpack.c.b16 %v350, %v349
      %v379 = vpack.c.b16 %v352, %v351
      %v380 = vpack.c.b16 %v354, %v353
      %v381 = vpack.c.b16 %v356, %v355
      %v382 = vpack.c.b16 %v358, %v357
      %v383 = vpack.c.b16 %v360, %v359
      %v384 = vpack.c.b16 %v362, %v361
      %v385 = vpack.c.b16 %v364, %v363
      %v386 = vpack.c.b16 %v366, %v365
      %v387 = vpack.c.b16 %v368, %v367
      %v396 = vunpack.c.l.b16 %v285
      %v397 = vunpack.c.h.b16 %v285
      %v398 = vunpack.c.l.b16 %v286
      %v399 = vunpack.c.h.b16 %v286
      %v400 = vunpack.c.l.b16 %v287
      %v401 = vunpack.c.h.b16 %v287
      %v402 = vunpack.c.l.b16 %v288
      %v403 = vunpack.c.h.b16 %v288
      %v404 = vunpack.c.l.b16 %v289
      %v405 = vunpack.c.h.b16 %v289
      %v406 = vunpack.c.l.b16 %v290
      %v407 = vunpack.c.h.b16 %v290
      %v408 = vunpack.c.l.b16 %v291
      %v409 = vunpack.c.h.b16 %v291
      %v410 = vunpack.c.l.b16 %v292
      %v411 = vunpack.c.h.b16 %v292
      %v412 = vpack.c.b16 %v398, %v396
      %v413 = vpack.c.b16 %v399, %v397
      %v414 = vpack.c.b16 %v402, %v400
      %v415 = vpack.c.b16 %v403, %v401
      %v416 = vpack.c.b16 %v406, %v404
      %v417 = vpack.c.b16 %v407, %v405
      %v418 = vpack.c.b16 %v410, %v408
      %v419 = vpack.c.b16 %v411, %v409
      %vm428 = vcmask 523264
      %v430 = vsel %vm428, %v369, 0
      %v433 = vsel %vm428, %v370, 0
      %v436 = vsel %vm428, %v371, 0
      %v439 = vsel %vm428, %v372, 0
      %v442 = vsel %vm428, %v373, 0
      %v445 = vsel %vm428, %v374, 0
      %v448 = vsel %vm428, %v375, 0
      %v451 = vsel %vm428, %v376, 0
      %v454 = vsel %vm428, %v377, 0
      %v457 = vsel %vm428, %v378, 0
      %v460 = vsel %vm428, %v379, 0
      %v463 = vsel %vm428, %v380, 0
      %v466 = vsel %vm428, %v381, 0
      %v469 = vsel %vm428, %v382, 0
      %v472 = vsel %vm428, %v383, 0
      %v475 = vsel %vm428, %v384, 0
      %v478 = vsel %vm428, %v385, 0
      %v481 = vsel %vm428, %v386, 0
      %v484 = vsel %vm428, %v387, 0
      %486 = vmatpush.bf16.msra.mxu0 0
      %487 = vmatpush.bf16.msra.mxu0 0
      %488 = vmatpush.bf16.msra.mxu0 0
      %489 = vmatpush.bf16.msra.mxu0 0
      %490 = vmatpush.bf16.msra.mxu0 %v418
      %491 = vmatpush.bf16.msra.mxu0 %v416
      %492 = vmatpush.bf16.msra.mxu0 %v414
      %493 = vmatpush.bf16.msra.mxu0 %v412
      %494 = vmatmul.bf16.gmra.mxu0 %v430
      %v495 = vpop.f32.mrf.mxu0
      %v496 = vadd.f32 0.0, %v495
      %v497 = vpop.f32.mrf.mxu0
      %v498 = vadd.f32 0.0, %v497
      %499 = vmatmul.bf16.gmra.mxu0 %v433
      %v500 = vpop.f32.mrf.mxu0
      %v501 = vadd.f32 0.0, %v500
      %v502 = vpop.f32.mrf.mxu0
      %v503 = vadd.f32 0.0, %v502
      %504 = vmatmul.bf16.gmra.mxu0 %v436
      %v505 = vpop.f32.mrf.mxu0
      %v506 = vadd.f32 0.0, %v505
      %v507 = vpop.f32.mrf.mxu0
      %v508 = vadd.f32 0.0, %v507
      %509 = vmatmul.bf16.gmra.mxu0 %v439
      %v510 = vpop.f32.mrf.mxu0
      %v511 = vadd.f32 0.0, %v510
      %v512 = vpop.f32.mrf.mxu0
      %v513 = vadd.f32 0.0, %v512
      %514 = vmatmul.bf16.gmra.mxu0 %v442
      %v515 = vpop.f32.mrf.mxu0
      %v516 = vadd.f32 0.0, %v515
      %v517 = vpop.f32.mrf.mxu0
      %v518 = vadd.f32 0.0, %v517
      %519 = vmatmul.bf16.gmra.mxu0 %v445
      %v520 = vpop.f32.mrf.mxu0
      %v521 = vadd.f32 0.0, %v520
      %v522 = vpop.f32.mrf.mxu0
      %v523 = vadd.f32 0.0, %v522
      %524 = vmatmul.bf16.gmra.mxu0 %v448
      %v525 = vpop.f32.mrf.mxu0
      %v526 = vadd.f32 0.0, %v525
      %v527 = vpop.f32.mrf.mxu0
      %v528 = vadd.f32 0.0, %v527
      %529 = vmatmul.bf16.gmra.mxu0 %v451
      %v530 = vpop.f32.mrf.mxu0
      %v531 = vadd.f32 0.0, %v530
      %v532 = vpop.f32.mrf.mxu0
      %v533 = vadd.f32 0.0, %v532
      %534 = vmatmul.bf16.gmra.mxu0 %v454
      %v535 = vpop.f32.mrf.mxu0
      %v536 = vadd.f32 0.0, %v535
      %v537 = vpop.f32.mrf.mxu0
      %v538 = vadd.f32 0.0, %v537
      %539 = vmatmul.bf16.gmra.mxu0 %v457
      %v540 = vpop.f32.mrf.mxu0
      %v541 = vadd.f32 0.0, %v540
      %v542 = vpop.f32.mrf.mxu0
      %v543 = vadd.f32 0.0, %v542
      %544 = vmatmul.bf16.gmra.mxu0 %v460
      %v545 = vpop.f32.mrf.mxu0
      %v546 = vadd.f32 0.0, %v545
      %v547 = vpop.f32.mrf.mxu0
      %v548 = vadd.f32 0.0, %v547
      %549 = vmatmul.bf16.gmra.mxu0 %v463
      %v550 = vpop.f32.mrf.mxu0
      %v551 = vadd.f32 0.0, %v550
      %v552 = vpop.f32.mrf.mxu0
      %v553 = vadd.f32 0.0, %v552
      %554 = vmatmul.bf16.gmra.mxu0 %v466
      %v555 = vpop.f32.mrf.mxu0
      %v556 = vadd.f32 0.0, %v555
      %v557 = vpop.f32.mrf.mxu0
      %v558 = vadd.f32 0.0, %v557
      %559 = vmatmul.bf16.gmra.mxu0 %v469
      %v560 = vpop.f32.mrf.mxu0
      %v561 = vadd.f32 0.0, %v560
      %v562 = vpop.f32.mrf.mxu0
      %v563 = vadd.f32 0.0, %v562
      %564 = vmatmul.bf16.gmra.mxu0 %v472
      %v565 = vpop.f32.mrf.mxu0
      %v566 = vadd.f32 0.0, %v565
      %v567 = vpop.f32.mrf.mxu0
      %v568 = vadd.f32 0.0, %v567
      %569 = vmatmul.bf16.gmra.mxu0 %v475
      %v570 = vpop.f32.mrf.mxu0
      %v571 = vadd.f32 0.0, %v570
      %v572 = vpop.f32.mrf.mxu0
      %v573 = vadd.f32 0.0, %v572
      %574 = vmatmul.bf16.gmra.mxu0 %v478
      %v575 = vpop.f32.mrf.mxu0
      %v576 = vadd.f32 0.0, %v575
      %v577 = vpop.f32.mrf.mxu0
      %v578 = vadd.f32 0.0, %v577
      %579 = vmatmul.bf16.gmra.mxu0 %v481
      %v580 = vpop.f32.mrf.mxu0
      %v581 = vadd.f32 0.0, %v580
      %v582 = vpop.f32.mrf.mxu0
      %v583 = vadd.f32 0.0, %v582
      %584 = vmatmul.bf16.gmra.mxu0 %v484
      %v585 = vpop.f32.mrf.mxu0
      %v586 = vadd.f32 0.0, %v585
      %v587 = vpop.f32.mrf.mxu0
      %v588 = vadd.f32 0.0, %v587
      %589 = vdwg.mxu0
      %590 = vmatpush.bf16.msra.mxu0 0
      %591 = vmatpush.bf16.msra.mxu0 0
      %592 = vmatpush.bf16.msra.mxu0 0
      %593 = vmatpush.bf16.msra.mxu0 0
      %594 = vmatpush.bf16.msra.mxu0 %v419
      %595 = vmatpush.bf16.msra.mxu0 %v417
      %596 = vmatpush.bf16.msra.mxu0 %v415
      %597 = vmatpush.bf16.msra.mxu0 %v413
      %598 = vmatmul.bf16.gmra.mxu0 %v430
      %v599 = vpop.f32.mrf.mxu0
      %v600 = vadd.f32 0.0, %v599
      %v601 = vpop.f32.mrf.mxu0
      %v602 = vadd.f32 0.0, %v601
      %603 = vmatmul.bf16.gmra.mxu0 %v433
      %v604 = vpop.f32.mrf.mxu0
      %v605 = vadd.f32 0.0, %v604
      %v606 = vpop.f32.mrf.mxu0
      %v607 = vadd.f32 0.0, %v606
      %608 = vmatmul.bf16.gmra.mxu0 %v436
      %v609 = vpop.f32.mrf.mxu0
      %v610 = vadd.f32 0.0, %v609
      %v611 = vpop.f32.mrf.mxu0
      %v612 = vadd.f32 0.0, %v611
      %613 = vmatmul.bf16.gmra.mxu0 %v439
      %v614 = vpop.f32.mrf.mxu0
      %v615 = vadd.f32 0.0, %v614
      %v616 = vpop.f32.mrf.mxu0
      %v617 = vadd.f32 0.0, %v616
      %618 = vmatmul.bf16.gmra.mxu0 %v442
      %v619 = vpop.f32.mrf.mxu0
      %v620 = vadd.f32 0.0, %v619
      %v621 = vpop.f32.mrf.mxu0
      %v622 = vadd.f32 0.0, %v621
      %623 = vmatmul.bf16.gmra.mxu0 %v445
      %v624 = vpop.f32.mrf.mxu0
      %v625 = vadd.f32 0.0, %v624
      %v626 = vpop.f32.mrf.mxu0
      %v627 = vadd.f32 0.0, %v626
      %628 = vmatmul.bf16.gmra.mxu0 %v448
      %v629 = vpop.f32.mrf.mxu0
      %v630 = vadd.f32 0.0, %v629
      %v631 = vpop.f32.mrf.mxu0
      %v632 = vadd.f32 0.0, %v631
      %633 = vmatmul.bf16.gmra.mxu0 %v451
      %v634 = vpop.f32.mrf.mxu0
      %v635 = vadd.f32 0.0, %v634
      %v636 = vpop.f32.mrf.mxu0
      %v637 = vadd.f32 0.0, %v636
      %638 = vmatmul.bf16.gmra.mxu0 %v454
      %v639 = vpop.f32.mrf.mxu0
      %v640 = vadd.f32 0.0, %v639
      %v641 = vpop.f32.mrf.mxu0
      %v642 = vadd.f32 0.0, %v641
      %643 = vmatmul.bf16.gmra.mxu0 %v457
      %v644 = vpop.f32.mrf.mxu0
      %v645 = vadd.f32 0.0, %v644
      %v646 = vpop.f32.mrf.mxu0
      %v647 = vadd.f32 0.0, %v646
      %648 = vmatmul.bf16.gmra.mxu0 %v460
      %v649 = vpop.f32.mrf.mxu0
      %v650 = vadd.f32 0.0, %v649
      %v651 = vpop.f32.mrf.mxu0
      %v652 = vadd.f32 0.0, %v651
      %653 = vmatmul.bf16.gmra.mxu0 %v463
      %v654 = vpop.f32.mrf.mxu0
      %v655 = vadd.f32 0.0, %v654
      %v656 = vpop.f32.mrf.mxu0
      %v657 = vadd.f32 0.0, %v656
      %658 = vmatmul.bf16.gmra.mxu0 %v466
      %v659 = vpop.f32.mrf.mxu0
      %v660 = vadd.f32 0.0, %v659
      %v661 = vpop.f32.mrf.mxu0
      %v662 = vadd.f32 0.0, %v661
      %663 = vmatmul.bf16.gmra.mxu0 %v469
      %v664 = vpop.f32.mrf.mxu0
      %v665 = vadd.f32 0.0, %v664
      %v666 = vpop.f32.mrf.mxu0
      %v667 = vadd.f32 0.0, %v666
      %668 = vmatmul.bf16.gmra.mxu0 %v472
      %v669 = vpop.f32.mrf.mxu0
      %v670 = vadd.f32 0.0, %v669
      %v671 = vpop.f32.mrf.mxu0
      %v672 = vadd.f32 0.0, %v671
      %673 = vmatmul.bf16.gmra.mxu0 %v475
      %v674 = vpop.f32.mrf.mxu0
      %v675 = vadd.f32 0.0, %v674
      %v676 = vpop.f32.mrf.mxu0
      %v677 = vadd.f32 0.0, %v676
      %678 = vmatmul.bf16.gmra.mxu0 %v478
      %v679 = vpop.f32.mrf.mxu0
      %v680 = vadd.f32 0.0, %v679
      %v681 = vpop.f32.mrf.mxu0
      %v682 = vadd.f32 0.0, %v681
      %683 = vmatmul.bf16.gmra.mxu0 %v481
      %v684 = vpop.f32.mrf.mxu0
      %v685 = vadd.f32 0.0, %v684
      %v686 = vpop.f32.mrf.mxu0
      %v687 = vadd.f32 0.0, %v686
      %688 = vmatmul.bf16.gmra.mxu0 %v484
      %v689 = vpop.f32.mrf.mxu0
      %v690 = vadd.f32 0.0, %v689
      %v691 = vpop.f32.mrf.mxu0
      %v692 = vadd.f32 0.0, %v691
      %693 = vdwg.mxu0
      %694 = vst [vmem:[#allocation2] sm:$0xff] %v496
      %vm695 = vcmask 130048
      %696 = vst.msk [vmem:[#allocation2 + $0x8] sm:$0xff] %vm695, %v600
      %697 = vst [vmem:[#allocation2 + $0x10] sm:$0xff] %v498
      %698 = vst.msk [vmem:[#allocation2 + $0x18] sm:$0xff] %vm695, %v602
      %699 = vst [vmem:[#allocation2 + $0x20] sm:$0xff] %v501
      %700 = vst.msk [vmem:[#allocation2 + $0x28] sm:$0xff] %vm695, %v605
      %701 = vst [vmem:[#allocation2 + $0x30] sm:$0xff] %v503
      %702 = vst.msk [vmem:[#allocation2 + $0x38] sm:$0xff] %vm695, %v607
      %703 = vst [vmem:[#allocation2 + $0x40] sm:$0xff] %v506
      %704 = vst.msk [vmem:[#allocation2 + $0x48] sm:$0xff] %vm695, %v610
      %705 = vst [vmem:[#allocation2 + $0x50] sm:$0xff] %v508
      %706 = vst.msk [vmem:[#allocation2 + $0x58] sm:$0xff] %vm695, %v612
      %707 = vst [vmem:[#allocation2 + $0x60] sm:$0xff] %v511
      %708 = vst.msk [vmem:[#allocation2 + $0x68] sm:$0xff] %vm695, %v615
      %709 = vst [vmem:[#allocation2 + $0x70] sm:$0xff] %v513
      %710 = vst.msk [vmem:[#allocation2 + $0x78] sm:$0xff] %vm695, %v617
      %711 = vst [vmem:[#allocation2 + $0x80] sm:$0xff] %v516
      %712 = vst.msk [vmem:[#allocation2 + $0x88] sm:$0xff] %vm695, %v620
      %713 = vst [vmem:[#allocation2 + $0x90] sm:$0xff] %v518
      %714 = vst.msk [vmem:[#allocation2 + $0x98] sm:$0xff] %vm695, %v622
      %715 = vst [vmem:[#allocation2 + $0xa0] sm:$0xff] %v521
      %716 = vst.msk [vmem:[#allocation2 + $0xa8] sm:$0xff] %vm695, %v625
      %717 = vst [vmem:[#allocation2 + $0xb0] sm:$0xff] %v523
      %718 = vst.msk [vmem:[#allocation2 + $0xb8] sm:$0xff] %vm695, %v627
      %719 = vst [vmem:[#allocation2 + $0xc0] sm:$0xff] %v526
      %720 = vst.msk [vmem:[#allocation2 + $0xc8] sm:$0xff] %vm695, %v630
      %721 = vst [vmem:[#allocation2 + $0xd0] sm:$0xff] %v528
      %722 = vst.msk [vmem:[#allocation2 + $0xd8] sm:$0xff] %vm695, %v632
      %723 = vst [vmem:[#allocation2 + $0xe0] sm:$0xff] %v531
      %724 = vst.msk [vmem:[#allocation2 + $0xe8] sm:$0xff] %vm695, %v635
      %725 = vst [vmem:[#allocation2 + $0xf0] sm:$0xff] %v533
      %726 = vst.msk [vmem:[#allocation2 + $0xf8] sm:$0xff] %vm695, %v637
      %727 = vst [vmem:[#allocation2 + $0x100] sm:$0xff] %v536
      %728 = vst.msk [vmem:[#allocation2 + $0x108] sm:$0xff] %vm695, %v640
      %729 = vst [vmem:[#allocation2 + $0x110] sm:$0xff] %v538
      %730 = vst.msk [vmem:[#allocation2 + $0x118] sm:$0xff] %vm695, %v642
      %731 = vst [vmem:[#allocation2 + $0x120] sm:$0xff] %v541
      %732 = vst.msk [vmem:[#allocation2 + $0x128] sm:$0xff] %vm695, %v645
      %733 = vst [vmem:[#allocation2 + $0x130] sm:$0xff] %v543
      %734 = vst.msk [vmem:[#allocation2 + $0x138] sm:$0xff] %vm695, %v647
      %735 = vst [vmem:[#allocation2 + $0x140] sm:$0xff] %v546
      %736 = vst.msk [vmem:[#allocation2 + $0x148] sm:$0xff] %vm695, %v650
      %737 = vst [vmem:[#allocation2 + $0x150] sm:$0xff] %v548
      %738 = vst.msk [vmem:[#allocation2 + $0x158] sm:$0xff] %vm695, %v652
      %739 = vst [vmem:[#allocation2 + $0x160] sm:$0xff] %v551
      %740 = vst.msk [vmem:[#allocation2 + $0x168] sm:$0xff] %vm695, %v655
      %741 = vst [vmem:[#allocation2 + $0x170] sm:$0xff] %v553
      %742 = vst.msk [vmem:[#allocation2 + $0x178] sm:$0xff] %vm695, %v657
      %743 = vst [vmem:[#allocation2 + $0x180] sm:$0xff] %v556
      %744 = vst.msk [vmem:[#allocation2 + $0x188] sm:$0xff] %vm695, %v660
      %745 = vst [vmem:[#allocation2 + $0x190] sm:$0xff] %v558
      %746 = vst.msk [vmem:[#allocation2 + $0x198] sm:$0xff] %vm695, %v662
      %747 = vst [vmem:[#allocation2 + $0x1a0] sm:$0xff] %v561
      %748 = vst.msk [vmem:[#allocation2 + $0x1a8] sm:$0xff] %vm695, %v665
      %749 = vst [vmem:[#allocation2 + $0x1b0] sm:$0xff] %v563
      %750 = vst.msk [vmem:[#allocation2 + $0x1b8] sm:$0xff] %vm695, %v667
      %751 = vst [vmem:[#allocation2 + $0x1c0] sm:$0xff] %v566
      %752 = vst.msk [vmem:[#allocation2 + $0x1c8] sm:$0xff] %vm695, %v670
      %753 = vst [vmem:[#allocation2 + $0x1d0] sm:$0xff] %v568
      %754 = vst.msk [vmem:[#allocation2 + $0x1d8] sm:$0xff] %vm695, %v672
      %755 = vst [vmem:[#allocation2 + $0x1e0] sm:$0xff] %v571
      %756 = vst.msk [vmem:[#allocation2 + $0x1e8] sm:$0xff] %vm695, %v675
      %757 = vst [vmem:[#allocation2 + $0x1f0] sm:$0xff] %v573
      %758 = vst.msk [vmem:[#allocation2 + $0x1f8] sm:$0xff] %vm695, %v677
      %759 = vst [vmem:[#allocation2 + $0x200] sm:$0xff] %v576
      %760 = vst.msk [vmem:[#allocation2 + $0x208] sm:$0xff] %vm695, %v680
      %761 = vst [vmem:[#allocation2 + $0x210] sm:$0xff] %v578
      %762 = vst.msk [vmem:[#allocation2 + $0x218] sm:$0xff] %vm695, %v682
      %763 = vst [vmem:[#allocation2 + $0x220] sm:$0xff] %v581
      %764 = vst.msk [vmem:[#allocation2 + $0x228] sm:$0xff] %vm695, %v685
      %765 = vst [vmem:[#allocation2 + $0x230] sm:$0xff] %v583
      %766 = vst.msk [vmem:[#allocation2 + $0x238] sm:$0xff] %vm695, %v687
      %767 = vst [vmem:[#allocation2 + $0x240] sm:$0xff] %v586
      %768 = vst.msk [vmem:[#allocation2 + $0x248] sm:$0xff] %vm695, %v690
      %769 = vst [vmem:[#allocation2 + $0x250] sm:$0xff] %v588
      %770 = vst.msk [vmem:[#allocation2 + $0x258] sm:$0xff] %vm695, %v692
      %v771 = vld [vmem:[%s2] sm:$0xff]
      %v772 = vld [vmem:[%s2 + $0x8] sm:$0xff]
      %v773 = vld [vmem:[%s2 + $0x10] sm:$0xff]
      %v774 = vld [vmem:[%s2 + $0x18] sm:$0xff]
      %v775 = vld [vmem:[%s2 + $0x20] sm:$0xff]
      %v776 = vld [vmem:[%s2 + $0x28] sm:$0xff]
      %v777 = vld [vmem:[%s2 + $0x30] sm:$0xff]
      %v778 = vld [vmem:[%s2 + $0x38] sm:$0xff]
      %v779 = vld [vmem:[%s2 + $0x40] sm:$0xff]
      %v780 = vld [vmem:[%s2 + $0x48] sm:$0xff]
      %v781 = vld [vmem:[%s2 + $0x50] sm:$0xff]
      %v782 = vld [vmem:[%s2 + $0x58] sm:$0xff]
      %v783 = vld [vmem:[%s2 + $0x60] sm:$0xff]
      %v784 = vld [vmem:[%s2 + $0x68] sm:$0xff]
      %v785 = vld [vmem:[%s2 + $0x70] sm:$0xff]
      %v786 = vld [vmem:[%s2 + $0x78] sm:$0xff]
      %v787 = vld [vmem:[%s2 + $0x80] sm:$0xff]
      %v788 = vld [vmem:[%s2 + $0x88] sm:$0xff]
      %v789 = vld [vmem:[%s2 + $0x90] sm:$0xff]
      %v790 = vld [vmem:[%s2 + $0x98] sm:$0xff]
      %v791 = vld [vmem:[%s2 + $0xa0] sm:$0xff]
      %v792 = vld [vmem:[%s2 + $0xa8] sm:$0xff]
      %v793 = vld [vmem:[%s2 + $0xb0] sm:$0xff]
      %v794 = vld [vmem:[%s2 + $0xb8] sm:$0xff]
      %v795 = vld [vmem:[%s2 + $0xc0] sm:$0xff]
      %v796 = vld [vmem:[%s2 + $0xc8] sm:$0xff]
      %v797 = vld [vmem:[%s2 + $0xd0] sm:$0xff]
      %v798 = vld [vmem:[%s2 + $0xd8] sm:$0xff]
      %v799 = vlaneseq
      %v800 = vshrl.u32 %v799, 7
      %v801 = vadd.s32 %v800, 8
      %v802 = vadd.s32 %v800, 16
      %v803 = vadd.s32 %v800, 24
      %v804 = vadd.s32 %v800, 32
      %v805 = vadd.s32 %v800, 40
      %v806 = vadd.s32 %v800, 48
      %v807 = vadd.s32 %v800, 56
      %v808 = vadd.s32 %v800, 64
      %v809 = vadd.s32 %v800, 72
      %v810 = vadd.s32 %v800, 80
      %v811 = vadd.s32 %v800, 88
      %v812 = vadd.s32 %v800, 96
      %v813 = vadd.s32 %v800, 104
      %v814 = vadd.s32 %v800, 112
      %v815 = vadd.s32 %v800, 120
      %v816 = vadd.s32 %v800, 128
      %v817 = vadd.s32 %v800, 136
      %v818 = vadd.s32 %v800, 144
      %v819 = vadd.s32 %v800, 152
      %v820 = vadd.s32 %v800, 160
      %v821 = vadd.s32 %v800, 168
      %v822 = vadd.s32 %v800, 176
      %v823 = vadd.s32 %v800, 184
      %v824 = vadd.s32 %v800, 192
      %v825 = vadd.s32 %v800, 200
      %v826 = vadd.s32 %v800, 208
      %v827 = vadd.s32 %v800, 216
      %vm828 = vcmp.lt.s32.totalorder %v800, 0
      %v829 = vsub.s32 0, %v800
      %v830 = vsel %vm828, %v829, %v800
      %v831 = vshrl.u32 %v830, 4
      %v832 = vand.u32 %v830, 15
      %v833 = vsub.s32 0, %v832
      %v834 = vsel %vm828, %v833, %v832
      %vm835 = vcmp.lt.s32.totalorder %v801, 0
      %v836 = vsub.s32 0, %v801
      %v837 = vsel %vm835, %v836, %v801
      %v838 = vshrl.u32 %v837, 4
      %v839 = vand.u32 %v837, 15
      %v840 = vsub.s32 0, %v839
      %v841 = vsel %vm835, %v840, %v839
      %vm842 = vcmp.lt.s32.totalorder %v802, 0
      %v843 = vsub.s32 0, %v802
      %v844 = vsel %vm842, %v843, %v802
      %v845 = vshrl.u32 %v844, 4
      %v846 = vand.u32 %v844, 15
      %v847 = vsub.s32 0, %v846
      %v848 = vsel %vm842, %v847, %v846
      %vm849 = vcmp.lt.s32.totalorder %v803, 0
      %v850 = vsub.s32 0, %v803
      %v851 = vsel %vm849, %v850, %v803
      %v852 = vshrl.u32 %v851, 4
      %v853 = vand.u32 %v851, 15
      %v854 = vsub.s32 0, %v853
      %v855 = vsel %vm849, %v854, %v853
      %vm856 = vcmp.lt.s32.totalorder %v804, 0
      %v857 = vsub.s32 0, %v804
      %v858 = vsel %vm856, %v857, %v804
      %v859 = vshrl.u32 %v858, 4
      %v860 = vand.u32 %v858, 15
      %v861 = vsub.s32 0, %v860
      %v862 = vsel %vm856, %v861, %v860
      %vm863 = vcmp.lt.s32.totalorder %v805, 0
      %v864 = vsub.s32 0, %v805
      %v865 = vsel %vm863, %v864, %v805
      %v866 = vshrl.u32 %v865, 4
      %v867 = vand.u32 %v865, 15
      %v868 = vsub.s32 0, %v867
      %v869 = vsel %vm863, %v868, %v867
      %vm870 = vcmp.lt.s32.totalorder %v806, 0
      %v871 = vsub.s32 0, %v806
      %v872 = vsel %vm870, %v871, %v806
      %v873 = vshrl.u32 %v872, 4
      %v874 = vand.u32 %v872, 15
      %v875 = vsub.s32 0, %v874
      %v876 = vsel %vm870, %v875, %v874
      %vm877 = vcmp.lt.s32.totalorder %v807, 0
      %v878 = vsub.s32 0, %v807
      %v879 = vsel %vm877, %v878, %v807
      %v880 = vshrl.u32 %v879, 4
      %v881 = vand.u32 %v879, 15
      %v882 = vsub.s32 0, %v881
      %v883 = vsel %vm877, %v882, %v881
      %vm884 = vcmp.lt.s32.totalorder %v808, 0
      %v885 = vsub.s32 0, %v808
      %v886 = vsel %vm884, %v885, %v808
      %v887 = vshrl.u32 %v886, 4
      %v888 = vand.u32 %v886, 15
      %v889 = vsub.s32 0, %v888
      %v890 = vsel %vm884, %v889, %v888
      %vm891 = vcmp.lt.s32.totalorder %v809, 0
      %v892 = vsub.s32 0, %v809
      %v893 = vsel %vm891, %v892, %v809
      %v894 = vshrl.u32 %v893, 4
      %v895 = vand.u32 %v893, 15
      %v896 = vsub.s32 0, %v895
      %v897 = vsel %vm891, %v896, %v895
      %vm898 = vcmp.lt.s32.totalorder %v810, 0
      %v899 = vsub.s32 0, %v810
      %v900 = vsel %vm898, %v899, %v810
      %v901 = vshrl.u32 %v900, 4
      %v902 = vand.u32 %v900, 15
      %v903 = vsub.s32 0, %v902
      %v904 = vsel %vm898, %v903, %v902
      %vm905 = vcmp.lt.s32.totalorder %v811, 0
      %v906 = vsub.s32 0, %v811
      %v907 = vsel %vm905, %v906, %v811
      %v908 = vshrl.u32 %v907, 4
      %v909 = vand.u32 %v907, 15
      %v910 = vsub.s32 0, %v909
      %v911 = vsel %vm905, %v910, %v909
      %vm912 = vcmp.lt.s32.totalorder %v812, 0
      %v913 = vsub.s32 0, %v812
      %v914 = vsel %vm912, %v913, %v812
      %v915 = vshrl.u32 %v914, 4
      %v916 = vand.u32 %v914, 15
      %v917 = vsub.s32 0, %v916
      %v918 = vsel %vm912, %v917, %v916
      %vm919 = vcmp.lt.s32.totalorder %v813, 0
      %v920 = vsub.s32 0, %v813
      %v921 = vsel %vm919, %v920, %v813
      %v922 = vshrl.u32 %v921, 4
      %v923 = vand.u32 %v921, 15
      %v924 = vsub.s32 0, %v923
      %v925 = vsel %vm919, %v924, %v923
      %vm926 = vcmp.lt.s32.totalorder %v814, 0
      %v927 = vsub.s32 0, %v814
      %v928 = vsel %vm926, %v927, %v814
      %v929 = vshrl.u32 %v928, 4
      %v930 = vand.u32 %v928, 15
      %v931 = vsub.s32 0, %v930
      %v932 = vsel %vm926, %v931, %v930
      %vm933 = vcmp.lt.s32.totalorder %v815, 0
      %v934 = vsub.s32 0, %v815
      %v935 = vsel %vm933, %v934, %v815
      %v936 = vshrl.u32 %v935, 4
      %v937 = vand.u32 %v935, 15
      %v938 = vsub.s32 0, %v937
      %v939 = vsel %vm933, %v938, %v937
      %vm940 = vcmp.lt.s32.totalorder %v816, 0
      %v941 = vsub.s32 0, %v816
      %v942 = vsel %vm940, %v941, %v816
      %v943 = vshrl.u32 %v942, 4
      %v944 = vand.u32 %v942, 15
      %v945 = vsub.s32 0, %v944
      %v946 = vsel %vm940, %v945, %v944
      %vm947 = vcmp.lt.s32.totalorder %v817, 0
      %v948 = vsub.s32 0, %v817
      %v949 = vsel %vm947, %v948, %v817
      %v950 = vshrl.u32 %v949, 4
      %v951 = vand.u32 %v949, 15
      %v952 = vsub.s32 0, %v951
      %v953 = vsel %vm947, %v952, %v951
      %vm954 = vcmp.lt.s32.totalorder %v818, 0
      %v955 = vsub.s32 0, %v818
      %v956 = vsel %vm954, %v955, %v818
      %v957 = vshrl.u32 %v956, 4
      %v958 = vand.u32 %v956, 15
      %v959 = vsub.s32 0, %v958
      %v960 = vsel %vm954, %v959, %v958
      %vm961 = vcmp.lt.s32.totalorder %v819, 0
      %v962 = vsub.s32 0, %v819
      %v963 = vsel %vm961, %v962, %v819
      %v964 = vshrl.u32 %v963, 4
      %v965 = vand.u32 %v963, 15
      %v966 = vsub.s32 0, %v965
      %v967 = vsel %vm961, %v966, %v965
      %vm968 = vcmp.lt.s32.totalorder %v820, 0
      %v969 = vsub.s32 0, %v820
      %v970 = vsel %vm968, %v969, %v820
      %v971 = vshrl.u32 %v970, 4
      %v972 = vand.u32 %v970, 15
      %v973 = vsub.s32 0, %v972
      %v974 = vsel %vm968, %v973, %v972
      %vm975 = vcmp.lt.s32.totalorder %v821, 0
      %v976 = vsub.s32 0, %v821
      %v977 = vsel %vm975, %v976, %v821
      %v978 = vshrl.u32 %v977, 4
      %v979 = vand.u32 %v977, 15
      %v980 = vsub.s32 0, %v979
      %v981 = vsel %vm975, %v980, %v979
      %vm982 = vcmp.lt.s32.totalorder %v822, 0
      %v983 = vsub.s32 0, %v822
      %v984 = vsel %vm982, %v983, %v822
      %v985 = vshrl.u32 %v984, 4
      %v986 = vand.u32 %v984, 15
      %v987 = vsub.s32 0, %v986
      %v988 = vsel %vm982, %v987, %v986
      %vm989 = vcmp.lt.s32.totalorder %v823, 0
      %v990 = vsub.s32 0, %v823
      %v991 = vsel %vm989, %v990, %v823
      %v992 = vshrl.u32 %v991, 4
      %v993 = vand.u32 %v991, 15
      %v994 = vsub.s32 0, %v993
      %v995 = vsel %vm989, %v994, %v993
      %vm996 = vcmp.lt.s32.totalorder %v824, 0
      %v997 = vsub.s32 0, %v824
      %v998 = vsel %vm996, %v997, %v824
      %v999 = vshrl.u32 %v998, 4
      %v1000 = vand.u32 %v998, 15
      %v1001 = vsub.s32 0, %v1000
      %v1002 = vsel %vm996, %v1001, %v1000
      %vm1003 = vcmp.lt.s32.totalorder %v825, 0
      %v1004 = vsub.s32 0, %v825
      %v1005 = vsel %vm1003, %v1004, %v825
      %v1006 = vshrl.u32 %v1005, 4
      %v1007 = vand.u32 %v1005, 15
      %v1008 = vsub.s32 0, %v1007
      %v1009 = vsel %vm1003, %v1008, %v1007
      %vm1010 = vcmp.lt.s32.totalorder %v826, 0
      %v1011 = vsub.s32 0, %v826
      %v1012 = vsel %vm1010, %v1011, %v826
      %v1013 = vshrl.u32 %v1012, 4
      %v1014 = vand.u32 %v1012, 15
      %v1015 = vsub.s32 0, %v1014
      %v1016 = vsel %vm1010, %v1015, %v1014
      %vm1017 = vcmp.lt.s32.totalorder %v827, 0
      %v1018 = vsub.s32 0, %v827
      %v1019 = vsel %vm1017, %v1018, %v827
      %v1020 = vshrl.u32 %v1019, 4
      %v1021 = vand.u32 %v1019, 15
      %v1022 = vsub.s32 0, %v1021
      %v1023 = vsel %vm1017, %v1022, %v1021
      %vm1024 = vcmp.ne.s32.totalorder %v834, 0
      %vm1025 = vcmp.ne.s32.totalorder %v841, 0
      %vm1026 = vcmp.ne.s32.totalorder %v848, 0
      %vm1027 = vcmp.ne.s32.totalorder %v855, 0
      %vm1028 = vcmp.ne.s32.totalorder %v862, 0
      %vm1029 = vcmp.ne.s32.totalorder %v869, 0
      %vm1030 = vcmp.ne.s32.totalorder %v876, 0
      %vm1031 = vcmp.ne.s32.totalorder %v883, 0
      %vm1032 = vcmp.ne.s32.totalorder %v890, 0
      %vm1033 = vcmp.ne.s32.totalorder %v897, 0
      %vm1034 = vcmp.ne.s32.totalorder %v904, 0
      %vm1035 = vcmp.ne.s32.totalorder %v911, 0
      %vm1036 = vcmp.ne.s32.totalorder %v918, 0
      %vm1037 = vcmp.ne.s32.totalorder %v925, 0
      %vm1038 = vcmp.ne.s32.totalorder %v932, 0
      %vm1039 = vcmp.ne.s32.totalorder %v939, 0
      %vm1040 = vcmp.ne.s32.totalorder %v946, 0
      %vm1041 = vcmp.ne.s32.totalorder %v953, 0
      %vm1042 = vcmp.ne.s32.totalorder %v960, 0
      %vm1043 = vcmp.ne.s32.totalorder %v967, 0
      %vm1044 = vcmp.ne.s32.totalorder %v974, 0
      %vm1045 = vcmp.ne.s32.totalorder %v981, 0
      %vm1046 = vcmp.ne.s32.totalorder %v988, 0
      %vm1047 = vcmp.ne.s32.totalorder %v995, 0
      %vm1048 = vcmp.ne.s32.totalorder %v1002, 0
      %vm1049 = vcmp.ne.s32.totalorder %v1009, 0
      %vm1050 = vcmp.ne.s32.totalorder %v1016, 0
      %vm1051 = vcmp.ne.s32.totalorder %v1023, 0
      %vm1052 = vcmp.lt.s32.totalorder %v834, 0
      %vm1053 = vcmp.lt.s32.totalorder %v841, 0
      %vm1054 = vcmp.lt.s32.totalorder %v848, 0
      %vm1055 = vcmp.lt.s32.totalorder %v855, 0
      %vm1056 = vcmp.lt.s32.totalorder %v862, 0
      %vm1057 = vcmp.lt.s32.totalorder %v869, 0
      %vm1058 = vcmp.lt.s32.totalorder %v876, 0
      %vm1059 = vcmp.lt.s32.totalorder %v883, 0
      %vm1060 = vcmp.lt.s32.totalorder %v890, 0
      %vm1061 = vcmp.lt.s32.totalorder %v897, 0
      %vm1062 = vcmp.lt.s32.totalorder %v904, 0
      %vm1063 = vcmp.lt.s32.totalorder %v911, 0
      %vm1064 = vcmp.lt.s32.totalorder %v918, 0
      %vm1065 = vcmp.lt.s32.totalorder %v925, 0
      %vm1066 = vcmp.lt.s32.totalorder %v932, 0
      %vm1067 = vcmp.lt.s32.totalorder %v939, 0
      %vm1068 = vcmp.lt.s32.totalorder %v946, 0
      %vm1069 = vcmp.lt.s32.totalorder %v953, 0
      %vm1070 = vcmp.lt.s32.totalorder %v960, 0
      %vm1071 = vcmp.lt.s32.totalorder %v967, 0
      %vm1072 = vcmp.lt.s32.totalorder %v974, 0
      %vm1073 = vcmp.lt.s32.totalorder %v981, 0
      %vm1074 = vcmp.lt.s32.totalorder %v988, 0
      %vm1075 = vcmp.lt.s32.totalorder %v995, 0
      %vm1076 = vcmp.lt.s32.totalorder %v1002, 0
      %vm1077 = vcmp.lt.s32.totalorder %v1009, 0
      %vm1078 = vcmp.lt.s32.totalorder %v1016, 0
      %vm1079 = vcmp.lt.s32.totalorder %v1023, 0
      %vm1080 = vmand %vm1052, %vm1024
      %vm1081 = vmand %vm1053, %vm1025
      %vm1082 = vmand %vm1054, %vm1026
      %vm1083 = vmand %vm1055, %vm1027
      %vm1084 = vmand %vm1056, %vm1028
      %vm1085 = vmand %vm1057, %vm1029
      %vm1086 = vmand %vm1058, %vm1030
      %vm1087 = vmand %vm1059, %vm1031
      %vm1088 = vmand %vm1060, %vm1032
      %vm1089 = vmand %vm1061, %vm1033
      %vm1090 = vmand %vm1062, %vm1034
      %vm1091 = vmand %vm1063, %vm1035
      %vm1092 = vmand %vm1064, %vm1036
      %vm1093 = vmand %vm1065, %vm1037
      %vm1094 = vmand %vm1066, %vm1038
      %vm1095 = vmand %vm1067, %vm1039
      %vm1096 = vmand %vm1068, %vm1040
      %vm1097 = vmand %vm1069, %vm1041
      %vm1098 = vmand %vm1070, %vm1042
      %vm1099 = vmand %vm1071, %vm1043
      %vm1100 = vmand %vm1072, %vm1044
      %vm1101 = vmand %vm1073, %vm1045
      %vm1102 = vmand %vm1074, %vm1046
      %vm1103 = vmand %vm1075, %vm1047
      %vm1104 = vmand %vm1076, %vm1048
      %vm1105 = vmand %vm1077, %vm1049
      %vm1106 = vmand %vm1078, %vm1050
      %vm1107 = vmand %vm1079, %vm1051
      %v1108 = vadd.s32 %v834, 16
      %v1109 = vadd.s32 %v841, 16
      %v1110 = vadd.s32 %v848, 16
      %v1111 = vadd.s32 %v855, 16
      %v1112 = vadd.s32 %v862, 16
      %v1113 = vadd.s32 %v869, 16
      %v1114 = vadd.s32 %v876, 16
      %v1115 = vadd.s32 %v883, 16
      %v1116 = vadd.s32 %v890, 16
      %v1117 = vadd.s32 %v897, 16
      %v1118 = vadd.s32 %v904, 16
      %v1119 = vadd.s32 %v911, 16
      %v1120 = vadd.s32 %v918, 16
      %v1121 = vadd.s32 %v925, 16
      %v1122 = vadd.s32 %v932, 16
      %v1123 = vadd.s32 %v939, 16
      %v1124 = vadd.s32 %v946, 16
      %v1125 = vadd.s32 %v953, 16
      %v1126 = vadd.s32 %v960, 16
      %v1127 = vadd.s32 %v967, 16
      %v1128 = vadd.s32 %v974, 16
      %v1129 = vadd.s32 %v981, 16
      %v1130 = vadd.s32 %v988, 16
      %v1131 = vadd.s32 %v995, 16
      %v1132 = vadd.s32 %v1002, 16
      %v1133 = vadd.s32 %v1009, 16
      %v1134 = vadd.s32 %v1016, 16
      %v1135 = vadd.s32 %v1023, 16
      %v1136 = vsel %vm1080, %v1108, %v834
      %v1137 = vsel %vm1081, %v1109, %v841
      %v1138 = vsel %vm1082, %v1110, %v848
      %v1139 = vsel %vm1083, %v1111, %v855
      %v1140 = vsel %vm1084, %v1112, %v862
      %v1141 = vsel %vm1085, %v1113, %v869
      %v1142 = vsel %vm1086, %v1114, %v876
      %v1143 = vsel %vm1087, %v1115, %v883
      %v1144 = vsel %vm1088, %v1116, %v890
      %v1145 = vsel %vm1089, %v1117, %v897
      %v1146 = vsel %vm1090, %v1118, %v904
      %v1147 = vsel %vm1091, %v1119, %v911
      %v1148 = vsel %vm1092, %v1120, %v918
      %v1149 = vsel %vm1093, %v1121, %v925
      %v1150 = vsel %vm1094, %v1122, %v932
      %v1151 = vsel %vm1095, %v1123, %v939
      %v1152 = vsel %vm1096, %v1124, %v946
      %v1153 = vsel %vm1097, %v1125, %v953
      %v1154 = vsel %vm1098, %v1126, %v960
      %v1155 = vsel %vm1099, %v1127, %v967
      %v1156 = vsel %vm1100, %v1128, %v974
      %v1157 = vsel %vm1101, %v1129, %v981
      %v1158 = vsel %vm1102, %v1130, %v988
      %v1159 = vsel %vm1103, %v1131, %v995
      %v1160 = vsel %vm1104, %v1132, %v1002
      %v1161 = vsel %vm1105, %v1133, %v1009
      %v1162 = vsel %vm1106, %v1134, %v1016
      %v1163 = vsel %vm1107, %v1135, %v1023
      %vm1164 = vcmp.ge.s32.totalorder %v1136, 0
      %vm1165 = vcmp.ge.s32.totalorder %v1137, 0
      %vm1166 = vcmp.ge.s32.totalorder %v1138, 0
      %vm1167 = vcmp.ge.s32.totalorder %v1139, 0
      %vm1168 = vcmp.ge.s32.totalorder %v1140, 0
      %vm1169 = vcmp.ge.s32.totalorder %v1141, 0
      %vm1170 = vcmp.ge.s32.totalorder %v1142, 0
      %vm1171 = vcmp.ge.s32.totalorder %v1143, 0
      %vm1172 = vcmp.ge.s32.totalorder %v1144, 0
      %vm1173 = vcmp.ge.s32.totalorder %v1145, 0
      %vm1174 = vcmp.ge.s32.totalorder %v1146, 0
      %vm1175 = vcmp.ge.s32.totalorder %v1147, 0
      %vm1176 = vcmp.ge.s32.totalorder %v1148, 0
      %vm1177 = vcmp.ge.s32.totalorder %v1149, 0
      %vm1178 = vcmp.ge.s32.totalorder %v1150, 0
      %vm1179 = vcmp.ge.s32.totalorder %v1151, 0
      %vm1180 = vcmp.ge.s32.totalorder %v1152, 0
      %vm1181 = vcmp.ge.s32.totalorder %v1153, 0
      %vm1182 = vcmp.ge.s32.totalorder %v1154, 0
      %vm1183 = vcmp.ge.s32.totalorder %v1155, 0
      %vm1184 = vcmp.ge.s32.totalorder %v1156, 0
      %vm1185 = vcmp.ge.s32.totalorder %v1157, 0
      %vm1186 = vcmp.ge.s32.totalorder %v1158, 0
      %vm1187 = vcmp.ge.s32.totalorder %v1159, 0
      %vm1188 = vcmp.ge.s32.totalorder %v1160, 0
      %vm1189 = vcmp.ge.s32.totalorder %v1161, 0
      %vm1190 = vcmp.ge.s32.totalorder %v1162, 0
      %vm1191 = vcmp.ge.s32.totalorder %v1163, 0
      %vm1192 = vcmp.lt.s32.totalorder %v1136, 14
      %vm1193 = vcmp.lt.s32.totalorder %v1137, 14
      %vm1194 = vcmp.lt.s32.totalorder %v1138, 14
      %vm1195 = vcmp.lt.s32.totalorder %v1139, 14
      %vm1196 = vcmp.lt.s32.totalorder %v1140, 14
      %vm1197 = vcmp.lt.s32.totalorder %v1141, 14
      %vm1198 = vcmp.lt.s32.totalorder %v1142, 14
      %vm1199 = vcmp.lt.s32.totalorder %v1143, 14
      %vm1200 = vcmp.lt.s32.totalorder %v1144, 14
      %vm1201 = vcmp.lt.s32.totalorder %v1145, 14
      %vm1202 = vcmp.lt.s32.totalorder %v1146, 14
      %vm1203 = vcmp.lt.s32.totalorder %v1147, 14
      %vm1204 = vcmp.lt.s32.totalorder %v1148, 14
      %vm1205 = vcmp.lt.s32.totalorder %v1149, 14
      %vm1206 = vcmp.lt.s32.totalorder %v1150, 14
      %vm1207 = vcmp.lt.s32.totalorder %v1151, 14
      %vm1208 = vcmp.lt.s32.totalorder %v1152, 14
      %vm1209 = vcmp.lt.s32.totalorder %v1153, 14
      %vm1210 = vcmp.lt.s32.totalorder %v1154, 14
      %vm1211 = vcmp.lt.s32.totalorder %v1155, 14
      %vm1212 = vcmp.lt.s32.totalorder %v1156, 14
      %vm1213 = vcmp.lt.s32.totalorder %v1157, 14
      %vm1214 = vcmp.lt.s32.totalorder %v1158, 14
      %vm1215 = vcmp.lt.s32.totalorder %v1159, 14
      %vm1216 = vcmp.lt.s32.totalorder %v1160, 14
      %vm1217 = vcmp.lt.s32.totalorder %v1161, 14
      %vm1218 = vcmp.lt.s32.totalorder %v1162, 14
      %vm1219 = vcmp.lt.s32.totalorder %v1163, 14
      %vm1220 = vmand %vm1164, %vm1192
      %vm1221 = vmand %vm1165, %vm1193
      %vm1222 = vmand %vm1166, %vm1194
      %vm1223 = vmand %vm1167, %vm1195
      %vm1224 = vmand %vm1168, %vm1196
      %vm1225 = vmand %vm1169, %vm1197
      %vm1226 = vmand %vm1170, %vm1198
      %vm1227 = vmand %vm1171, %vm1199
      %vm1228 = vmand %vm1172, %vm1200
      %vm1229 = vmand %vm1173, %vm1201
      %vm1230 = vmand %vm1174, %vm1202
      %vm1231 = vmand %vm1175, %vm1203
      %vm1232 = vmand %vm1176, %vm1204
      %vm1233 = vmand %vm1177, %vm1205
      %vm1234 = vmand %vm1178, %vm1206
      %vm1235 = vmand %vm1179, %vm1207
      %vm1236 = vmand %vm1180, %vm1208
      %vm1237 = vmand %vm1181, %vm1209
      %vm1238 = vmand %vm1182, %vm1210
      %vm1239 = vmand %vm1183, %vm1211
      %vm1240 = vmand %vm1184, %vm1212
      %vm1241 = vmand %vm1185, %vm1213
      %vm1242 = vmand %vm1186, %vm1214
      %vm1243 = vmand %vm1187, %vm1215
      %vm1244 = vmand %vm1188, %vm1216
      %vm1245 = vmand %vm1189, %vm1217
      %vm1246 = vmand %vm1190, %vm1218
      %vm1247 = vmand %vm1191, %vm1219
      %v1248 = vsel %vm1220, 1, 0
      %v1249 = vsel %vm1221, 1, 0
      %v1250 = vsel %vm1222, 1, 0
      %v1251 = vsel %vm1223, 1, 0
      %v1252 = vsel %vm1224, 1, 0
      %v1253 = vsel %vm1225, 1, 0
      %v1254 = vsel %vm1226, 1, 0
      %v1255 = vsel %vm1227, 1, 0
      %v1256 = vsel %vm1228, 1, 0
      %v1257 = vsel %vm1229, 1, 0
      %v1258 = vsel %vm1230, 1, 0
      %v1259 = vsel %vm1231, 1, 0
      %v1260 = vsel %vm1232, 1, 0
      %v1261 = vsel %vm1233, 1, 0
      %v1262 = vsel %vm1234, 1, 0
      %v1263 = vsel %vm1235, 1, 0
      %v1264 = vsel %vm1236, 1, 0
      %v1265 = vsel %vm1237, 1, 0
      %v1266 = vsel %vm1238, 1, 0
      %v1267 = vsel %vm1239, 1, 0
      %v1268 = vsel %vm1240, 1, 0
      %v1269 = vsel %vm1241, 1, 0
      %v1270 = vsel %vm1242, 1, 0
      %v1271 = vsel %vm1243, 1, 0
      %v1272 = vsel %vm1244, 1, 0
      %v1273 = vsel %vm1245, 1, 0
      %v1274 = vsel %vm1246, 1, 0
      %v1275 = vsel %vm1247, 1, 0
      %v1276 = vcvt.s32.f32 %v1248
      %v1277 = vcvt.s32.f32 %v1249
      %v1278 = vcvt.s32.f32 %v1250
      %v1279 = vcvt.s32.f32 %v1251
      %v1280 = vcvt.s32.f32 %v1252
      %v1281 = vcvt.s32.f32 %v1253
      %v1282 = vcvt.s32.f32 %v1254
      %v1283 = vcvt.s32.f32 %v1255
      %v1284 = vcvt.s32.f32 %v1256
      %v1285 = vcvt.s32.f32 %v1257
      %v1286 = vcvt.s32.f32 %v1258
      %v1287 = vcvt.s32.f32 %v1259
      %v1288 = vcvt.s32.f32 %v1260
      %v1289 = vcvt.s32.f32 %v1261
      %v1290 = vcvt.s32.f32 %v1262
      %v1291 = vcvt.s32.f32 %v1263
      %v1292 = vcvt.s32.f32 %v1264
      %v1293 = vcvt.s32.f32 %v1265
      %v1294 = vcvt.s32.f32 %v1266
      %v1295 = vcvt.s32.f32 %v1267
      %v1296 = vcvt.s32.f32 %v1268
      %v1297 = vcvt.s32.f32 %v1269
      %v1298 = vcvt.s32.f32 %v1270
      %v1299 = vcvt.s32.f32 %v1271
      %v1300 = vcvt.s32.f32 %v1272
      %v1301 = vcvt.s32.f32 %v1273
      %v1302 = vcvt.s32.f32 %v1274
      %v1303 = vcvt.s32.f32 %v1275
      %v1304 = vld [vmem:[#allocation2 + $0x20] sm:$0xfe]
      %v1305 = vld [vmem:[#allocation2 + $0x30] sm:$0xff]
      %v1306 = vld [vmem:[#allocation2 + $0x40] sm:$0xff]
      %v1307 = vld [vmem:[#allocation2 + $0x50] sm:$0xff]
      %v1308 = vld [vmem:[#allocation2 + $0x60] sm:$0xff]
      %v1309 = vld [vmem:[#allocation2 + $0x70] sm:$0xff]
      %v1310 = vld [vmem:[#allocation2 + $0x80] sm:$0xff]
      %v1311 = vld [vmem:[#allocation2 + $0x90] sm:$0xff]
      %v1312 = vld [vmem:[#allocation2 + $0xa0] sm:$0xff]
      %v1313 = vld [vmem:[#allocation2 + $0xb0] sm:$0xff]
      %v1314 = vld [vmem:[#allocation2 + $0xc0] sm:$0xff]
      %v1315 = vld [vmem:[#allocation2 + $0xd0] sm:$0xff]
      %v1316 = vld [vmem:[#allocation2 + $0xe0] sm:$0xff]
      %v1317 = vld [vmem:[#allocation2 + $0xf0] sm:$0xff]
      %v1318 = vld [vmem:[#allocation2 + $0x100] sm:$0xff]
      %v1319 = vld [vmem:[#allocation2 + $0x110] sm:$0xff]
      %v1320 = vld [vmem:[#allocation2 + $0x120] sm:$0xff]
      %v1321 = vld [vmem:[#allocation2 + $0x130] sm:$0xff]
      %v1322 = vld [vmem:[#allocation2 + $0x140] sm:$0xff]
      %v1323 = vld [vmem:[#allocation2 + $0x150] sm:$0xff]
      %v1324 = vld [vmem:[#allocation2 + $0x160] sm:$0xff]
      %v1325 = vld [vmem:[#allocation2 + $0x170] sm:$0xff]
      %v1326 = vld [vmem:[#allocation2 + $0x180] sm:$0xff]
      %v1327 = vld [vmem:[#allocation2 + $0x190] sm:$0xff]
      %v1328 = vld [vmem:[#allocation2 + $0x1a0] sm:$0xff]
      %v1329 = vld [vmem:[#allocation2 + $0x1b0] sm:$0xff]
      %v1330 = vld [vmem:[#allocation2 + $0x1c0] sm:$0xff]
      %v1331 = vld [vmem:[#allocation2 + $0x1d0] sm:$0xff]
      %v1332 = vld [vmem:[#allocation2 + $0x1e0] sm:$0x1]
      %vm1362 = vcmask 1046528
      %v1363 = vrot.slane %v1304, 1
      %v1364 = vrot.slane %v1305, 1
      %v1365 = vsel %vm1362, %v1363, %v1364
      %v1366 = vrot.slane %v1306, 1
      %v1367 = vsel %vm1362, %v1364, %v1366
      %v1368 = vrot.slane %v1307, 1
      %v1369 = vsel %vm1362, %v1366, %v1368
      %v1370 = vrot.slane %v1308, 1
      %v1371 = vsel %vm1362, %v1368, %v1370
      %v1372 = vrot.slane %v1309, 1
      %v1373 = vsel %vm1362, %v1370, %v1372
      %v1374 = vrot.slane %v1310, 1
      %v1375 = vsel %vm1362, %v1372, %v1374
      %v1376 = vrot.slane %v1311, 1
      %v1377 = vsel %vm1362, %v1374, %v1376
      %v1378 = vrot.slane %v1312, 1
      %v1379 = vsel %vm1362, %v1376, %v1378
      %v1380 = vrot.slane %v1313, 1
      %v1381 = vsel %vm1362, %v1378, %v1380
      %v1382 = vrot.slane %v1314, 1
      %v1383 = vsel %vm1362, %v1380, %v1382
      %v1384 = vrot.slane %v1315, 1
      %v1385 = vsel %vm1362, %v1382, %v1384
      %v1386 = vrot.slane %v1316, 1
      %v1387 = vsel %vm1362, %v1384, %v1386
      %v1388 = vrot.slane %v1317, 1
      %v1389 = vsel %vm1362, %v1386, %v1388
      %v1390 = vrot.slane %v1318, 1
      %v1391 = vsel %vm1362, %v1388, %v1390
      %v1392 = vrot.slane %v1319, 1
      %v1393 = vsel %vm1362, %v1390, %v1392
      %v1394 = vrot.slane %v1320, 1
      %v1395 = vsel %vm1362, %v1392, %v1394
      %v1396 = vrot.slane %v1321, 1
      %v1397 = vsel %vm1362, %v1394, %v1396
      %v1398 = vrot.slane %v1322, 1
      %v1399 = vsel %vm1362, %v1396, %v1398
      %v1400 = vrot.slane %v1323, 1
      %v1401 = vsel %vm1362, %v1398, %v1400
      %v1402 = vrot.slane %v1324, 1
      %v1403 = vsel %vm1362, %v1400, %v1402
      %v1404 = vrot.slane %v1325, 1
      %v1405 = vsel %vm1362, %v1402, %v1404
      %v1406 = vrot.slane %v1326, 1
      %v1407 = vsel %vm1362, %v1404, %v1406
      %v1408 = vrot.slane %v1327, 1
      %v1409 = vsel %vm1362, %v1406, %v1408
      %v1410 = vrot.slane %v1328, 1
      %v1411 = vsel %vm1362, %v1408, %v1410
      %v1412 = vrot.slane %v1329, 1
      %v1413 = vsel %vm1362, %v1410, %v1412
      %v1414 = vrot.slane %v1330, 1
      %v1415 = vsel %vm1362, %v1412, %v1414
      %v1416 = vrot.slane %v1331, 1
      %v1417 = vsel %vm1362, %v1414, %v1416
      %v1418 = vrot.slane %v1332, 1
      %v1419 = vsel %vm1362, %v1416, %v1418
      %v1448 = vadd.f32 %v771, %v1365
      %v1449 = vadd.f32 %v772, %v1367
      %v1450 = vadd.f32 %v773, %v1369
      %v1451 = vadd.f32 %v774, %v1371
      %v1452 = vadd.f32 %v775, %v1373
      %v1453 = vadd.f32 %v776, %v1375
      %v1454 = vadd.f32 %v777, %v1377
      %v1455 = vadd.f32 %v778, %v1379
      %v1456 = vadd.f32 %v779, %v1381
      %v1457 = vadd.f32 %v780, %v1383
      %v1458 = vadd.f32 %v781, %v1385
      %v1459 = vadd.f32 %v782, %v1387
      %v1460 = vadd.f32 %v783, %v1389
      %v1461 = vadd.f32 %v784, %v1391
      %v1462 = vadd.f32 %v785, %v1393
      %v1463 = vadd.f32 %v786, %v1395
      %v1464 = vadd.f32 %v787, %v1397
      %v1465 = vadd.f32 %v788, %v1399
      %v1466 = vadd.f32 %v789, %v1401
      %v1467 = vadd.f32 %v790, %v1403
      %v1468 = vadd.f32 %v791, %v1405
      %v1469 = vadd.f32 %v792, %v1407
      %v1470 = vadd.f32 %v793, %v1409
      %v1471 = vadd.f32 %v794, %v1411
      %v1472 = vadd.f32 %v795, %v1413
      %v1473 = vadd.f32 %v796, %v1415
      %v1474 = vadd.f32 %v797, %v1417
      %v1475 = vadd.f32 %v798, %v1419
      %v1476 = vld [vmem:[#allocation2 + $0x20] sm:$0xfc]
      %v1477 = vld [vmem:[#allocation2 + $0x1e0] sm:$0x3]
      %vm1480 = vcmask 1045504
      %v1481 = vrot.slane %v1476, 2
      %v1482 = vrot.slane %v1305, 2
      %v1483 = vsel %vm1480, %v1481, %v1482
      %v1484 = vrot.slane %v1306, 2
      %v1485 = vsel %vm1480, %v1482, %v1484
      %v1486 = vrot.slane %v1307, 2
      %v1487 = vsel %vm1480, %v1484, %v1486
      %v1488 = vrot.slane %v1308, 2
      %v1489 = vsel %vm1480, %v1486, %v1488
      %v1490 = vrot.slane %v1309, 2
      %v1491 = vsel %vm1480, %v1488, %v1490
      %v1492 = vrot.slane %v1310, 2
      %v1493 = vsel %vm1480, %v1490, %v1492
      %v1494 = vrot.slane %v1311, 2
      %v1495 = vsel %vm1480, %v1492, %v1494
      %v1496 = vrot.slane %v1312, 2
      %v1497 = vsel %vm1480, %v1494, %v1496
      %v1498 = vrot.slane %v1313, 2
      %v1499 = vsel %vm1480, %v1496, %v1498
      %v1500 = vrot.slane %v1314, 2
      %v1501 = vsel %vm1480, %v1498, %v1500
      %v1502 = vrot.slane %v1315, 2
      %v1503 = vsel %vm1480, %v1500, %v1502
      %v1504 = vrot.slane %v1316, 2
      %v1505 = vsel %vm1480, %v1502, %v1504
      %v1506 = vrot.slane %v1317, 2
      %v1507 = vsel %vm1480, %v1504, %v1506
      %v1508 = vrot.slane %v1318, 2
      %v1509 = vsel %vm1480, %v1506, %v1508
      %v1510 = vrot.slane %v1319, 2
      %v1511 = vsel %vm1480, %v1508, %v1510
      %v1512 = vrot.slane %v1320, 2
      %v1513 = vsel %vm1480, %v1510, %v1512
      %v1514 = vrot.slane %v1321, 2
      %v1515 = vsel %vm1480, %v1512, %v1514
      %v1516 = vrot.slane %v1322, 2
      %v1517 = vsel %vm1480, %v1514, %v1516
      %v1518 = vrot.slane %v1323, 2
      %v1519 = vsel %vm1480, %v1516, %v1518
      %v1520 = vrot.slane %v1324, 2
      %v1521 = vsel %vm1480, %v1518, %v1520
      %v1522 = vrot.slane %v1325, 2
      %v1523 = vsel %vm1480, %v1520, %v1522
      %v1524 = vrot.slane %v1326, 2
      %v1525 = vsel %vm1480, %v1522, %v1524
      %v1526 = vrot.slane %v1327, 2
      %v1527 = vsel %vm1480, %v1524, %v1526
      %v1528 = vrot.slane %v1328, 2
      %v1529 = vsel %vm1480, %v1526, %v1528
      %v1530 = vrot.slane %v1329, 2
      %v1531 = vsel %vm1480, %v1528, %v1530
      %v1532 = vrot.slane %v1330, 2
      %v1533 = vsel %vm1480, %v1530, %v1532
      %v1534 = vrot.slane %v1331, 2
      %v1535 = vsel %vm1480, %v1532, %v1534
      %v1536 = vrot.slane %v1477, 2
      %v1537 = vsel %vm1480, %v1534, %v1536
      %1538 = vrot.lane.b32.xlu0 %v1483, 112
      %v1539 = vpop.permute.xlu0 %1538
      %1540 = vrot.lane.b32.xlu0 %v1485, 112
      %v1541 = vpop.permute.xlu0 %1540
      %1542 = vrot.lane.b32.xlu0 %v1487, 112
      %v1543 = vpop.permute.xlu0 %1542
      %1544 = vrot.lane.b32.xlu0 %v1489, 112
      %v1545 = vpop.permute.xlu0 %1544
      %1546 = vrot.lane.b32.xlu0 %v1491, 112
      %v1547 = vpop.permute.xlu0 %1546
      %1548 = vrot.lane.b32.xlu0 %v1493, 112
      %v1549 = vpop.permute.xlu0 %1548
      %1550 = vrot.lane.b32.xlu0 %v1495, 112
      %v1551 = vpop.permute.xlu0 %1550
      %1552 = vrot.lane.b32.xlu0 %v1497, 112
      %v1553 = vpop.permute.xlu0 %1552
      %1554 = vrot.lane.b32.xlu0 %v1499, 112
      %v1555 = vpop.permute.xlu0 %1554
      %1556 = vrot.lane.b32.xlu0 %v1501, 112
      %v1557 = vpop.permute.xlu0 %1556
      %1558 = vrot.lane.b32.xlu0 %v1503, 112
      %v1559 = vpop.permute.xlu0 %1558
      %1560 = vrot.lane.b32.xlu0 %v1505, 112
      %v1561 = vpop.permute.xlu0 %1560
      %1562 = vrot.lane.b32.xlu0 %v1507, 112
      %v1563 = vpop.permute.xlu0 %1562
      %1564 = vrot.lane.b32.xlu0 %v1509, 112
      %v1565 = vpop.permute.xlu0 %1564
      %1566 = vrot.lane.b32.xlu0 %v1511, 112
      %v1567 = vpop.permute.xlu0 %1566
      %1568 = vrot.lane.b32.xlu0 %v1513, 112
      %v1569 = vpop.permute.xlu0 %1568
      %1570 = vrot.lane.b32.xlu0 %v1515, 112
      %v1571 = vpop.permute.xlu0 %1570
      %1572 = vrot.lane.b32.xlu0 %v1517, 112
      %v1573 = vpop.permute.xlu0 %1572
      %1574 = vrot.lane.b32.xlu0 %v1519, 112
      %v1575 = vpop.permute.xlu0 %1574
      %1576 = vrot.lane.b32.xlu0 %v1521, 112
      %v1577 = vpop.permute.xlu0 %1576
      %1578 = vrot.lane.b32.xlu0 %v1523, 112
      %v1579 = vpop.permute.xlu0 %1578
      %1580 = vrot.lane.b32.xlu0 %v1525, 112
      %v1581 = vpop.permute.xlu0 %1580
      %1582 = vrot.lane.b32.xlu0 %v1527, 112
      %v1583 = vpop.permute.xlu0 %1582
      %1584 = vrot.lane.b32.xlu0 %v1529, 112
      %v1585 = vpop.permute.xlu0 %1584
      %1586 = vrot.lane.b32.xlu0 %v1531, 112
      %v1587 = vpop.permute.xlu0 %1586
      %1588 = vrot.lane.b32.xlu0 %v1533, 112
      %v1589 = vpop.permute.xlu0 %1588
      %1590 = vrot.lane.b32.xlu0 %v1535, 112
      %v1591 = vpop.permute.xlu0 %1590
      %1592 = vrot.lane.b32.xlu0 %v1537, 112
      %v1593 = vpop.permute.xlu0 %1592
      %v1622 = vadd.f32 %v1448, %v1539
      %v1623 = vadd.f32 %v1449, %v1541
      %v1624 = vadd.f32 %v1450, %v1543
      %v1625 = vadd.f32 %v1451, %v1545
      %v1626 = vadd.f32 %v1452, %v1547
      %v1627 = vadd.f32 %v1453, %v1549
      %v1628 = vadd.f32 %v1454, %v1551
      %v1629 = vadd.f32 %v1455, %v1553
      %v1630 = vadd.f32 %v1456, %v1555
      %v1631 = vadd.f32 %v1457, %v1557
      %v1632 = vadd.f32 %v1458, %v1559
      %v1633 = vadd.f32 %v1459, %v1561
      %v1634 = vadd.f32 %v1460, %v1563
      %v1635 = vadd.f32 %v1461, %v1565
      %v1636 = vadd.f32 %v1462, %v1567
      %v1637 = vadd.f32 %v1463, %v1569
      %v1638 = vadd.f32 %v1464, %v1571
      %v1639 = vadd.f32 %v1465, %v1573
      %v1640 = vadd.f32 %v1466, %v1575
      %v1641 = vadd.f32 %v1467, %v1577
      %v1642 = vadd.f32 %v1468, %v1579
      %v1643 = vadd.f32 %v1469, %v1581
      %v1644 = vadd.f32 %v1470, %v1583
      %v1645 = vadd.f32 %v1471, %v1585
      %v1646 = vadd.f32 %v1472, %v1587
      %v1647 = vadd.f32 %v1473, %v1589
      %v1648 = vadd.f32 %v1474, %v1591
      %v1649 = vadd.f32 %v1475, %v1593
      %v1650 = vld [vmem:[#allocation2 + $0x20] sm:$0xf8]
      %v1651 = vld [vmem:[#allocation2 + $0x1e0] sm:$0x7]
      %vm1654 = vcmask 1044480
      %v1655 = vrot.slane %v1650, 3
      %v1656 = vrot.slane %v1305, 3
      %v1657 = vsel %vm1654, %v1655, %v1656
      %v1658 = vrot.slane %v1306, 3
      %v1659 = vsel %vm1654, %v1656, %v1658
      %v1660 = vrot.slane %v1307, 3
      %v1661 = vsel %vm1654, %v1658, %v1660
      %v1662 = vrot.slane %v1308, 3
      %v1663 = vsel %vm1654, %v1660, %v1662
      %v1664 = vrot.slane %v1309, 3
      %v1665 = vsel %vm1654, %v1662, %v1664
      %v1666 = vrot.slane %v1310, 3
      %v1667 = vsel %vm1654, %v1664, %v1666
      %v1668 = vrot.slane %v1311, 3
      %v1669 = vsel %vm1654, %v1666, %v1668
      %v1670 = vrot.slane %v1312, 3
      %v1671 = vsel %vm1654, %v1668, %v1670
      %v1672 = vrot.slane %v1313, 3
      %v1673 = vsel %vm1654, %v1670, %v1672
      %v1674 = vrot.slane %v1314, 3
      %v1675 = vsel %vm1654, %v1672, %v1674
      %v1676 = vrot.slane %v1315, 3
      %v1677 = vsel %vm1654, %v1674, %v1676
      %v1678 = vrot.slane %v1316, 3
      %v1679 = vsel %vm1654, %v1676, %v1678
      %v1680 = vrot.slane %v1317, 3
      %v1681 = vsel %vm1654, %v1678, %v1680
      %v1682 = vrot.slane %v1318, 3
      %v1683 = vsel %vm1654, %v1680, %v1682
      %v1684 = vrot.slane %v1319, 3
      %v1685 = vsel %vm1654, %v1682, %v1684
      %v1686 = vrot.slane %v1320, 3
      %v1687 = vsel %vm1654, %v1684, %v1686
      %v1688 = vrot.slane %v1321, 3
      %v1689 = vsel %vm1654, %v1686, %v1688
      %v1690 = vrot.slane %v1322, 3
      %v1691 = vsel %vm1654, %v1688, %v1690
      %v1692 = vrot.slane %v1323, 3
      %v1693 = vsel %vm1654, %v1690, %v1692
      %v1694 = vrot.slane %v1324, 3
      %v1695 = vsel %vm1654, %v1692, %v1694
      %v1696 = vrot.slane %v1325, 3
      %v1697 = vsel %vm1654, %v1694, %v1696
      %v1698 = vrot.slane %v1326, 3
      %v1699 = vsel %vm1654, %v1696, %v1698
      %v1700 = vrot.slane %v1327, 3
      %v1701 = vsel %vm1654, %v1698, %v1700
      %v1702 = vrot.slane %v1328, 3
      %v1703 = vsel %vm1654, %v1700, %v1702
      %v1704 = vrot.slane %v1329, 3
      %v1705 = vsel %vm1654, %v1702, %v1704
      %v1706 = vrot.slane %v1330, 3
      %v1707 = vsel %vm1654, %v1704, %v1706
      %v1708 = vrot.slane %v1331, 3
      %v1709 = vsel %vm1654, %v1706, %v1708
      %v1710 = vrot.slane %v1651, 3
      %v1711 = vsel %vm1654, %v1708, %v1710
      %1712 = vrot.lane.b32.xlu0 %v1657, 96
      %v1713 = vpop.permute.xlu0 %1712
      %1714 = vrot.lane.b32.xlu0 %v1659, 96
      %v1715 = vpop.permute.xlu0 %1714
      %1716 = vrot.lane.b32.xlu0 %v1661, 96
      %v1717 = vpop.permute.xlu0 %1716
      %1718 = vrot.lane.b32.xlu0 %v1663, 96
      %v1719 = vpop.permute.xlu0 %1718
      %1720 = vrot.lane.b32.xlu0 %v1665, 96
      %v1721 = vpop.permute.xlu0 %1720
      %1722 = vrot.lane.b32.xlu0 %v1667, 96
      %v1723 = vpop.permute.xlu0 %1722
      %1724 = vrot.lane.b32.xlu0 %v1669, 96
      %v1725 = vpop.permute.xlu0 %1724
      %1726 = vrot.lane.b32.xlu0 %v1671, 96
      %v1727 = vpop.permute.xlu0 %1726
      %1728 = vrot.lane.b32.xlu0 %v1673, 96
      %v1729 = vpop.permute.xlu0 %1728
      %1730 = vrot.lane.b32.xlu0 %v1675, 96
      %v1731 = vpop.permute.xlu0 %1730
      %1732 = vrot.lane.b32.xlu0 %v1677, 96
      %v1733 = vpop.permute.xlu0 %1732
      %1734 = vrot.lane.b32.xlu0 %v1679, 96
      %v1735 = vpop.permute.xlu0 %1734
      %1736 = vrot.lane.b32.xlu0 %v1681, 96
      %v1737 = vpop.permute.xlu0 %1736
      %1738 = vrot.lane.b32.xlu0 %v1683, 96
      %v1739 = vpop.permute.xlu0 %1738
      %1740 = vrot.lane.b32.xlu0 %v1685, 96
      %v1741 = vpop.permute.xlu0 %1740
      %1742 = vrot.lane.b32.xlu0 %v1687, 96
      %v1743 = vpop.permute.xlu0 %1742
      %1744 = vrot.lane.b32.xlu0 %v1689, 96
      %v1745 = vpop.permute.xlu0 %1744
      %1746 = vrot.lane.b32.xlu0 %v1691, 96
      %v1747 = vpop.permute.xlu0 %1746
      %1748 = vrot.lane.b32.xlu0 %v1693, 96
      %v1749 = vpop.permute.xlu0 %1748
      %1750 = vrot.lane.b32.xlu0 %v1695, 96
      %v1751 = vpop.permute.xlu0 %1750
      %1752 = vrot.lane.b32.xlu0 %v1697, 96
      %v1753 = vpop.permute.xlu0 %1752
      %1754 = vrot.lane.b32.xlu0 %v1699, 96
      %v1755 = vpop.permute.xlu0 %1754
      %1756 = vrot.lane.b32.xlu0 %v1701, 96
      %v1757 = vpop.permute.xlu0 %1756
      %1758 = vrot.lane.b32.xlu0 %v1703, 96
      %v1759 = vpop.permute.xlu0 %1758
      %1760 = vrot.lane.b32.xlu0 %v1705, 96
      %v1761 = vpop.permute.xlu0 %1760
      %1762 = vrot.lane.b32.xlu0 %v1707, 96
      %v1763 = vpop.permute.xlu0 %1762
      %1764 = vrot.lane.b32.xlu0 %v1709, 96
      %v1765 = vpop.permute.xlu0 %1764
      %1766 = vrot.lane.b32.xlu0 %v1711, 96
      %v1767 = vpop.permute.xlu0 %1766
      %v1796 = vadd.f32 %v1622, %v1713
      %v1797 = vadd.f32 %v1623, %v1715
      %v1798 = vadd.f32 %v1624, %v1717
      %v1799 = vadd.f32 %v1625, %v1719
      %v1800 = vadd.f32 %v1626, %v1721
      %v1801 = vadd.f32 %v1627, %v1723
      %v1802 = vadd.f32 %v1628, %v1725
      %v1803 = vadd.f32 %v1629, %v1727
      %v1804 = vadd.f32 %v1630, %v1729
      %v1805 = vadd.f32 %v1631, %v1731
      %v1806 = vadd.f32 %v1632, %v1733
      %v1807 = vadd.f32 %v1633, %v1735
      %v1808 = vadd.f32 %v1634, %v1737
      %v1809 = vadd.f32 %v1635, %v1739
      %v1810 = vadd.f32 %v1636, %v1741
      %v1811 = vadd.f32 %v1637, %v1743
      %v1812 = vadd.f32 %v1638, %v1745
      %v1813 = vadd.f32 %v1639, %v1747
      %v1814 = vadd.f32 %v1640, %v1749
      %v1815 = vadd.f32 %v1641, %v1751
      %v1816 = vadd.f32 %v1642, %v1753
      %v1817 = vadd.f32 %v1643, %v1755
      %v1818 = vadd.f32 %v1644, %v1757
      %v1819 = vadd.f32 %v1645, %v1759
      %v1820 = vadd.f32 %v1646, %v1761
      %v1821 = vadd.f32 %v1647, %v1763
      %v1822 = vadd.f32 %v1648, %v1765
      %v1823 = vadd.f32 %v1649, %v1767
      %v1824 = vld [vmem:[#allocation2 + $0x40] sm:$0xfe]
      %v1825 = vld [vmem:[#allocation2 + $0x1e0] sm:$0xff]
      %v1826 = vld [vmem:[#allocation2 + $0x1f0] sm:$0xff]
      %v1827 = vld [vmem:[#allocation2 + $0x200] sm:$0x1]
      %v1832 = vrot.slane %v1824, 1
      %v1833 = vsel %vm1362, %v1832, %v1368
      %v1834 = vrot.slane %v1825, 1
      %v1835 = vsel %vm1362, %v1416, %v1834
      %v1836 = vrot.slane %v1826, 1
      %v1837 = vsel %vm1362, %v1834, %v1836
      %v1838 = vrot.slane %v1827, 1
      %v1839 = vsel %vm1362, %v1836, %v1838
      %1840 = vrot.lane.b32.xlu0 %v1833, 80
      %v1841 = vpop.permute.xlu0 %1840
      %1842 = vrot.lane.b32.xlu0 %v1371, 80
      %v1843 = vpop.permute.xlu0 %1842
      %1844 = vrot.lane.b32.xlu0 %v1373, 80
      %v1845 = vpop.permute.xlu0 %1844
      %1846 = vrot.lane.b32.xlu0 %v1375, 80
      %v1847 = vpop.permute.xlu0 %1846
      %1848 = vrot.lane.b32.xlu0 %v1377, 80
      %v1849 = vpop.permute.xlu0 %1848
      %1850 = vrot.lane.b32.xlu0 %v1379, 80
      %v1851 = vpop.permute.xlu0 %1850
      %1852 = vrot.lane.b32.xlu0 %v1381, 80
      %v1853 = vpop.permute.xlu0 %1852
      %1854 = vrot.lane.b32.xlu0 %v1383, 80
      %v1855 = vpop.permute.xlu0 %1854
      %1856 = vrot.lane.b32.xlu0 %v1385, 80
      %v1857 = vpop.permute.xlu0 %1856
      %1858 = vrot.lane.b32.xlu0 %v1387, 80
      %v1859 = vpop.permute.xlu0 %1858
      %1860 = vrot.lane.b32.xlu0 %v1389, 80
      %v1861 = vpop.permute.xlu0 %1860
      %1862 = vrot.lane.b32.xlu0 %v1391, 80
      %v1863 = vpop.permute.xlu0 %1862
      %1864 = vrot.lane.b32.xlu0 %v1393, 80
      %v1865 = vpop.permute.xlu0 %1864
      %1866 = vrot.lane.b32.xlu0 %v1395, 80
      %v1867 = vpop.permute.xlu0 %1866
      %1868 = vrot.lane.b32.xlu0 %v1397, 80
      %v1869 = vpop.permute.xlu0 %1868
      %1870 = vrot.lane.b32.xlu0 %v1399, 80
      %v1871 = vpop.permute.xlu0 %1870
      %1872 = vrot.lane.b32.xlu0 %v1401, 80
      %v1873 = vpop.permute.xlu0 %1872
      %1874 = vrot.lane.b32.xlu0 %v1403, 80
      %v1875 = vpop.permute.xlu0 %1874
      %1876 = vrot.lane.b32.xlu0 %v1405, 80
      %v1877 = vpop.permute.xlu0 %1876
      %1878 = vrot.lane.b32.xlu0 %v1407, 80
      %v1879 = vpop.permute.xlu0 %1878
      %1880 = vrot.lane.b32.xlu0 %v1409, 80
      %v1881 = vpop.permute.xlu0 %1880
      %1882 = vrot.lane.b32.xlu0 %v1411, 80
      %v1883 = vpop.permute.xlu0 %1882
      %1884 = vrot.lane.b32.xlu0 %v1413, 80
      %v1885 = vpop.permute.xlu0 %1884
      %1886 = vrot.lane.b32.xlu0 %v1415, 80
      %v1887 = vpop.permute.xlu0 %1886
      %1888 = vrot.lane.b32.xlu0 %v1417, 80
      %v1889 = vpop.permute.xlu0 %1888
      %1890 = vrot.lane.b32.xlu0 %v1835, 80
      %v1891 = vpop.permute.xlu0 %1890
      %1892 = vrot.lane.b32.xlu0 %v1837, 80
      %v1893 = vpop.permute.xlu0 %1892
      %1894 = vrot.lane.b32.xlu0 %v1839, 80
      %v1895 = vpop.permute.xlu0 %1894
      %v1924 = vadd.f32 %v1796, %v1841
      %v1925 = vadd.f32 %v1797, %v1843
      %v1926 = vadd.f32 %v1798, %v1845
      %v1927 = vadd.f32 %v1799, %v1847
      %v1928 = vadd.f32 %v1800, %v1849
      %v1929 = vadd.f32 %v1801, %v1851
      %v1930 = vadd.f32 %v1802, %v1853
      %v1931 = vadd.f32 %v1803, %v1855
      %v1932 = vadd.f32 %v1804, %v1857
      %v1933 = vadd.f32 %v1805, %v1859
      %v1934 = vadd.f32 %v1806, %v1861
      %v1935 = vadd.f32 %v1807, %v1863
      %v1936 = vadd.f32 %v1808, %v1865
      %v1937 = vadd.f32 %v1809, %v1867
      %v1938 = vadd.f32 %v1810, %v1869
      %v1939 = vadd.f32 %v1811, %v1871
      %v1940 = vadd.f32 %v1812, %v1873
      %v1941 = vadd.f32 %v1813, %v1875
      %v1942 = vadd.f32 %v1814, %v1877
      %v1943 = vadd.f32 %v1815, %v1879
      %v1944 = vadd.f32 %v1816, %v1881
      %v1945 = vadd.f32 %v1817, %v1883
      %v1946 = vadd.f32 %v1818, %v1885
      %v1947 = vadd.f32 %v1819, %v1887
      %v1948 = vadd.f32 %v1820, %v1889
      %v1949 = vadd.f32 %v1821, %v1891
      %v1950 = vadd.f32 %v1822, %v1893
      %v1951 = vadd.f32 %v1823, %v1895
      %v1952 = vld [vmem:[#allocation2 + $0x40] sm:$0xfc]
      %v1953 = vld [vmem:[#allocation2 + $0x200] sm:$0x3]
      %v1956 = vrot.slane %v1952, 2
      %v1957 = vsel %vm1480, %v1956, %v1486
      %v1958 = vrot.slane %v1825, 2
      %v1959 = vsel %vm1480, %v1534, %v1958
      %v1960 = vrot.slane %v1826, 2
      %v1961 = vsel %vm1480, %v1958, %v1960
      %v1962 = vrot.slane %v1953, 2
      %v1963 = vsel %vm1480, %v1960, %v1962
      %1964 = vrot.lane.b32.xlu0 %v1957, 64
      %v1965 = vpop.permute.xlu0 %1964
      %1966 = vrot.lane.b32.xlu0 %v1489, 64
      %v1967 = vpop.permute.xlu0 %1966
      %1968 = vrot.lane.b32.xlu0 %v1491, 64
      %v1969 = vpop.permute.xlu0 %1968
      %1970 = vrot.lane.b32.xlu0 %v1493, 64
      %v1971 = vpop.permute.xlu0 %1970
      %1972 = vrot.lane.b32.xlu0 %v1495, 64
      %v1973 = vpop.permute.xlu0 %1972
      %1974 = vrot.lane.b32.xlu0 %v1497, 64
      %v1975 = vpop.permute.xlu0 %1974
      %1976 = vrot.lane.b32.xlu0 %v1499, 64
      %v1977 = vpop.permute.xlu0 %1976
      %1978 = vrot.lane.b32.xlu0 %v1501, 64
      %v1979 = vpop.permute.xlu0 %1978
      %1980 = vrot.lane.b32.xlu0 %v1503, 64
      %v1981 = vpop.permute.xlu0 %1980
      %1982 = vrot.lane.b32.xlu0 %v1505, 64
      %v1983 = vpop.permute.xlu0 %1982
      %1984 = vrot.lane.b32.xlu0 %v1507, 64
      %v1985 = vpop.permute.xlu0 %1984
      %1986 = vrot.lane.b32.xlu0 %v1509, 64
      %v1987 = vpop.permute.xlu0 %1986
      %1988 = vrot.lane.b32.xlu0 %v1511, 64
      %v1989 = vpop.permute.xlu0 %1988
      %1990 = vrot.lane.b32.xlu0 %v1513, 64
      %v1991 = vpop.permute.xlu0 %1990
      %1992 = vrot.lane.b32.xlu0 %v1515, 64
      %v1993 = vpop.permute.xlu0 %1992
      %1994 = vrot.lane.b32.xlu0 %v1517, 64
      %v1995 = vpop.permute.xlu0 %1994
      %1996 = vrot.lane.b32.xlu0 %v1519, 64
      %v1997 = vpop.permute.xlu0 %1996
      %1998 = vrot.lane.b32.xlu0 %v1521, 64
      %v1999 = vpop.permute.xlu0 %1998
      %2000 = vrot.lane.b32.xlu0 %v1523, 64
      %v2001 = vpop.permute.xlu0 %2000
      %2002 = vrot.lane.b32.xlu0 %v1525, 64
      %v2003 = vpop.permute.xlu0 %2002
      %2004 = vrot.lane.b32.xlu0 %v1527, 64
      %v2005 = vpop.permute.xlu0 %2004
      %2006 = vrot.lane.b32.xlu0 %v1529, 64
      %v2007 = vpop.permute.xlu0 %2006
      %2008 = vrot.lane.b32.xlu0 %v1531, 64
      %v2009 = vpop.permute.xlu0 %2008
      %2010 = vrot.lane.b32.xlu0 %v1533, 64
      %v2011 = vpop.permute.xlu0 %2010
      %2012 = vrot.lane.b32.xlu0 %v1535, 64
      %v2013 = vpop.permute.xlu0 %2012
      %2014 = vrot.lane.b32.xlu0 %v1959, 64
      %v2015 = vpop.permute.xlu0 %2014
      %2016 = vrot.lane.b32.xlu0 %v1961, 64
      %v2017 = vpop.permute.xlu0 %2016
      %2018 = vrot.lane.b32.xlu0 %v1963, 64
      %v2019 = vpop.permute.xlu0 %2018
      %v2048 = vadd.f32 %v1924, %v1965
      %v2049 = vadd.f32 %v1925, %v1967
      %v2050 = vadd.f32 %v1926, %v1969
      %v2051 = vadd.f32 %v1927, %v1971
      %v2052 = vadd.f32 %v1928, %v1973
      %v2053 = vadd.f32 %v1929, %v1975
      %v2054 = vadd.f32 %v1930, %v1977
      %v2055 = vadd.f32 %v1931, %v1979
      %v2056 = vadd.f32 %v1932, %v1981
      %v2057 = vadd.f32 %v1933, %v1983
      %v2058 = vadd.f32 %v1934, %v1985
      %v2059 = vadd.f32 %v1935, %v1987
      %v2060 = vadd.f32 %v1936, %v1989
      %v2061 = vadd.f32 %v1937, %v1991
      %v2062 = vadd.f32 %v1938, %v1993
      %v2063 = vadd.f32 %v1939, %v1995
      %v2064 = vadd.f32 %v1940, %v1997
      %v2065 = vadd.f32 %v1941, %v1999
      %v2066 = vadd.f32 %v1942, %v2001
      %v2067 = vadd.f32 %v1943, %v2003
      %v2068 = vadd.f32 %v1944, %v2005
      %v2069 = vadd.f32 %v1945, %v2007
      %v2070 = vadd.f32 %v1946, %v2009
      %v2071 = vadd.f32 %v1947, %v2011
      %v2072 = vadd.f32 %v1948, %v2013
      %v2073 = vadd.f32 %v1949, %v2015
      %v2074 = vadd.f32 %v1950, %v2017
      %v2075 = vadd.f32 %v1951, %v2019
      %v2076 = vld [vmem:[#allocation2 + $0x40] sm:$0xf8]
      %v2077 = vld [vmem:[#allocation2 + $0x200] sm:$0x7]
      %v2080 = vrot.slane %v2076, 3
      %v2081 = vsel %vm1654, %v2080, %v1660
      %v2082 = vrot.slane %v1825, 3
      %v2083 = vsel %vm1654, %v1708, %v2082
      %v2084 = vrot.slane %v1826, 3
      %v2085 = vsel %vm1654, %v2082, %v2084
      %v2086 = vrot.slane %v2077, 3
      %v2087 = vsel %vm1654, %v2084, %v2086
      %2088 = vrot.lane.b32.xlu0 %v2081, 48
      %v2089 = vpop.permute.xlu0 %2088
      %2090 = vrot.lane.b32.xlu0 %v1663, 48
      %v2091 = vpop.permute.xlu0 %2090
      %2092 = vrot.lane.b32.xlu0 %v1665, 48
      %v2093 = vpop.permute.xlu0 %2092
      %2094 = vrot.lane.b32.xlu0 %v1667, 48
      %v2095 = vpop.permute.xlu0 %2094
      %2096 = vrot.lane.b32.xlu0 %v1669, 48
      %v2097 = vpop.permute.xlu0 %2096
      %2098 = vrot.lane.b32.xlu0 %v1671, 48
      %v2099 = vpop.permute.xlu0 %2098
      %2100 = vrot.lane.b32.xlu0 %v1673, 48
      %v2101 = vpop.permute.xlu0 %2100
      %2102 = vrot.lane.b32.xlu0 %v1675, 48
      %v2103 = vpop.permute.xlu0 %2102
      %2104 = vrot.lane.b32.xlu0 %v1677, 48
      %v2105 = vpop.permute.xlu0 %2104
      %2106 = vrot.lane.b32.xlu0 %v1679, 48
      %v2107 = vpop.permute.xlu0 %2106
      %2108 = vrot.lane.b32.xlu0 %v1681, 48
      %v2109 = vpop.permute.xlu0 %2108
      %2110 = vrot.lane.b32.xlu0 %v1683, 48
      %v2111 = vpop.permute.xlu0 %2110
      %2112 = vrot.lane.b32.xlu0 %v1685, 48
      %v2113 = vpop.permute.xlu0 %2112
      %2114 = vrot.lane.b32.xlu0 %v1687, 48
      %v2115 = vpop.permute.xlu0 %2114
      %2116 = vrot.lane.b32.xlu0 %v1689, 48
      %v2117 = vpop.permute.xlu0 %2116
      %2118 = vrot.lane.b32.xlu0 %v1691, 48
      %v2119 = vpop.permute.xlu0 %2118
      %2120 = vrot.lane.b32.xlu0 %v1693, 48
      %v2121 = vpop.permute.xlu0 %2120
      %2122 = vrot.lane.b32.xlu0 %v1695, 48
      %v2123 = vpop.permute.xlu0 %2122
      %2124 = vrot.lane.b32.xlu0 %v1697, 48
      %v2125 = vpop.permute.xlu0 %2124
      %2126 = vrot.lane.b32.xlu0 %v1699, 48
      %v2127 = vpop.permute.xlu0 %2126
      %2128 = vrot.lane.b32.xlu0 %v1701, 48
      %v2129 = vpop.permute.xlu0 %2128
      %2130 = vrot.lane.b32.xlu0 %v1703, 48
      %v2131 = vpop.permute.xlu0 %2130
      %2132 = vrot.lane.b32.xlu0 %v1705, 48
      %v2133 = vpop.permute.xlu0 %2132
      %2134 = vrot.lane.b32.xlu0 %v1707, 48
      %v2135 = vpop.permute.xlu0 %2134
      %2136 = vrot.lane.b32.xlu0 %v1709, 48
      %v2137 = vpop.permute.xlu0 %2136
      %2138 = vrot.lane.b32.xlu0 %v2083, 48
      %v2139 = vpop.permute.xlu0 %2138
      %2140 = vrot.lane.b32.xlu0 %v2085, 48
      %v2141 = vpop.permute.xlu0 %2140
      %2142 = vrot.lane.b32.xlu0 %v2087, 48
      %v2143 = vpop.permute.xlu0 %2142
      %v2172 = vadd.f32 %v2048, %v2089
      %v2173 = vadd.f32 %v2049, %v2091
      %v2174 = vadd.f32 %v2050, %v2093
      %v2175 = vadd.f32 %v2051, %v2095
      %v2176 = vadd.f32 %v2052, %v2097
      %v2177 = vadd.f32 %v2053, %v2099
      %v2178 = vadd.f32 %v2054, %v2101
      %v2179 = vadd.f32 %v2055, %v2103
      %v2180 = vadd.f32 %v2056, %v2105
      %v2181 = vadd.f32 %v2057, %v2107
      %v2182 = vadd.f32 %v2058, %v2109
      %v2183 = vadd.f32 %v2059, %v2111
      %v2184 = vadd.f32 %v2060, %v2113
      %v2185 = vadd.f32 %v2061, %v2115
      %v2186 = vadd.f32 %v2062, %v2117
      %v2187 = vadd.f32 %v2063, %v2119
      %v2188 = vadd.f32 %v2064, %v2121
      %v2189 = vadd.f32 %v2065, %v2123
      %v2190 = vadd.f32 %v2066, %v2125
      %v2191 = vadd.f32 %v2067, %v2127
      %v2192 = vadd.f32 %v2068, %v2129
      %v2193 = vadd.f32 %v2069, %v2131
      %v2194 = vadd.f32 %v2070, %v2133
      %v2195 = vadd.f32 %v2071, %v2135
      %v2196 = vadd.f32 %v2072, %v2137
      %v2197 = vadd.f32 %v2073, %v2139
      %v2198 = vadd.f32 %v2074, %v2141
      %v2199 = vadd.f32 %v2075, %v2143
      %v2200 = vld [vmem:[#allocation2 + $0x60] sm:$0xfe]
      %v2201 = vld [vmem:[#allocation2 + $0x200] sm:$0xff]
      %v2202 = vld [vmem:[#allocation2 + $0x210] sm:$0xff]
      %v2203 = vld [vmem:[#allocation2 + $0x220] sm:$0x1]
      %v2208 = vrot.slane %v2200, 1
      %v2209 = vsel %vm1362, %v2208, %v1372
      %v2210 = vrot.slane %v2201, 1
      %v2211 = vsel %vm1362, %v1836, %v2210
      %v2212 = vrot.slane %v2202, 1
      %v2213 = vsel %vm1362, %v2210, %v2212
      %v2214 = vrot.slane %v2203, 1
      %v2215 = vsel %vm1362, %v2212, %v2214
      %2216 = vrot.lane.b32.xlu0 %v2209, 32
      %v2217 = vpop.permute.xlu0 %2216
      %2218 = vrot.lane.b32.xlu0 %v1375, 32
      %v2219 = vpop.permute.xlu0 %2218
      %2220 = vrot.lane.b32.xlu0 %v1377, 32
      %v2221 = vpop.permute.xlu0 %2220
      %2222 = vrot.lane.b32.xlu0 %v1379, 32
      %v2223 = vpop.permute.xlu0 %2222
      %2224 = vrot.lane.b32.xlu0 %v1381, 32
      %v2225 = vpop.permute.xlu0 %2224
      %2226 = vrot.lane.b32.xlu0 %v1383, 32
      %v2227 = vpop.permute.xlu0 %2226
      %2228 = vrot.lane.b32.xlu0 %v1385, 32
      %v2229 = vpop.permute.xlu0 %2228
      %2230 = vrot.lane.b32.xlu0 %v1387, 32
      %v2231 = vpop.permute.xlu0 %2230
      %2232 = vrot.lane.b32.xlu0 %v1389, 32
      %v2233 = vpop.permute.xlu0 %2232
      %2234 = vrot.lane.b32.xlu0 %v1391, 32
      %v2235 = vpop.permute.xlu0 %2234
      %2236 = vrot.lane.b32.xlu0 %v1393, 32
      %v2237 = vpop.permute.xlu0 %2236
      %2238 = vrot.lane.b32.xlu0 %v1395, 32
      %v2239 = vpop.permute.xlu0 %2238
      %2240 = vrot.lane.b32.xlu0 %v1397, 32
      %v2241 = vpop.permute.xlu0 %2240
      %2242 = vrot.lane.b32.xlu0 %v1399, 32
      %v2243 = vpop.permute.xlu0 %2242
      %2244 = vrot.lane.b32.xlu0 %v1401, 32
      %v2245 = vpop.permute.xlu0 %2244
      %2246 = vrot.lane.b32.xlu0 %v1403, 32
      %v2247 = vpop.permute.xlu0 %2246
      %2248 = vrot.lane.b32.xlu0 %v1405, 32
      %v2249 = vpop.permute.xlu0 %2248
      %2250 = vrot.lane.b32.xlu0 %v1407, 32
      %v2251 = vpop.permute.xlu0 %2250
      %2252 = vrot.lane.b32.xlu0 %v1409, 32
      %v2253 = vpop.permute.xlu0 %2252
      %2254 = vrot.lane.b32.xlu0 %v1411, 32
      %v2255 = vpop.permute.xlu0 %2254
      %2256 = vrot.lane.b32.xlu0 %v1413, 32
      %v2257 = vpop.permute.xlu0 %2256
      %2258 = vrot.lane.b32.xlu0 %v1415, 32
      %v2259 = vpop.permute.xlu0 %2258
      %2260 = vrot.lane.b32.xlu0 %v1417, 32
      %v2261 = vpop.permute.xlu0 %2260
      %2262 = vrot.lane.b32.xlu0 %v1835, 32
      %v2263 = vpop.permute.xlu0 %2262
      %2264 = vrot.lane.b32.xlu0 %v1837, 32
      %v2265 = vpop.permute.xlu0 %2264
      %2266 = vrot.lane.b32.xlu0 %v2211, 32
      %v2267 = vpop.permute.xlu0 %2266
      %2268 = vrot.lane.b32.xlu0 %v2213, 32
      %v2269 = vpop.permute.xlu0 %2268
      %2270 = vrot.lane.b32.xlu0 %v2215, 32
      %v2271 = vpop.permute.xlu0 %2270
      %v2300 = vadd.f32 %v2172, %v2217
      %v2301 = vadd.f32 %v2173, %v2219
      %v2302 = vadd.f32 %v2174, %v2221
      %v2303 = vadd.f32 %v2175, %v2223
      %v2304 = vadd.f32 %v2176, %v2225
      %v2305 = vadd.f32 %v2177, %v2227
      %v2306 = vadd.f32 %v2178, %v2229
      %v2307 = vadd.f32 %v2179, %v2231
      %v2308 = vadd.f32 %v2180, %v2233
      %v2309 = vadd.f32 %v2181, %v2235
      %v2310 = vadd.f32 %v2182, %v2237
      %v2311 = vadd.f32 %v2183, %v2239
      %v2312 = vadd.f32 %v2184, %v2241
      %v2313 = vadd.f32 %v2185, %v2243
      %v2314 = vadd.f32 %v2186, %v2245
      %v2315 = vadd.f32 %v2187, %v2247
      %v2316 = vadd.f32 %v2188, %v2249
      %v2317 = vadd.f32 %v2189, %v2251
      %v2318 = vadd.f32 %v2190, %v2253
      %v2319 = vadd.f32 %v2191, %v2255
      %v2320 = vadd.f32 %v2192, %v2257
      %v2321 = vadd.f32 %v2193, %v2259
      %v2322 = vadd.f32 %v2194, %v2261
      %v2323 = vadd.f32 %v2195, %v2263
      %v2324 = vadd.f32 %v2196, %v2265
      %v2325 = vadd.f32 %v2197, %v2267
      %v2326 = vadd.f32 %v2198, %v2269
      %v2327 = vadd.f32 %v2199, %v2271
      %v2328 = vld [vmem:[#allocation2 + $0x60] sm:$0xfc]
      %v2329 = vld [vmem:[#allocation2 + $0x220] sm:$0x3]
      %v2332 = vrot.slane %v2328, 2
      %v2333 = vsel %vm1480, %v2332, %v1490
      %v2334 = vrot.slane %v2201, 2
      %v2335 = vsel %vm1480, %v1960, %v2334
      %v2336 = vrot.slane %v2202, 2
      %v2337 = vsel %vm1480, %v2334, %v2336
      %v2338 = vrot.slane %v2329, 2
      %v2339 = vsel %vm1480, %v2336, %v2338
      %2340 = vrot.lane.b32.xlu0 %v2333, 16
      %v2341 = vpop.permute.xlu0 %2340
      %2342 = vrot.lane.b32.xlu0 %v1493, 16
      %v2343 = vpop.permute.xlu0 %2342
      %2344 = vrot.lane.b32.xlu0 %v1495, 16
      %v2345 = vpop.permute.xlu0 %2344
      %2346 = vrot.lane.b32.xlu0 %v1497, 16
      %v2347 = vpop.permute.xlu0 %2346
      %2348 = vrot.lane.b32.xlu0 %v1499, 16
      %v2349 = vpop.permute.xlu0 %2348
      %2350 = vrot.lane.b32.xlu0 %v1501, 16
      %v2351 = vpop.permute.xlu0 %2350
      %2352 = vrot.lane.b32.xlu0 %v1503, 16
      %v2353 = vpop.permute.xlu0 %2352
      %2354 = vrot.lane.b32.xlu0 %v1505, 16
      %v2355 = vpop.permute.xlu0 %2354
      %2356 = vrot.lane.b32.xlu0 %v1507, 16
      %v2357 = vpop.permute.xlu0 %2356
      %2358 = vrot.lane.b32.xlu0 %v1509, 16
      %v2359 = vpop.permute.xlu0 %2358
      %2360 = vrot.lane.b32.xlu0 %v1511, 16
      %v2361 = vpop.permute.xlu0 %2360
      %2362 = vrot.lane.b32.xlu0 %v1513, 16
      %v2363 = vpop.permute.xlu0 %2362
      %2364 = vrot.lane.b32.xlu0 %v1515, 16
      %v2365 = vpop.permute.xlu0 %2364
      %2366 = vrot.lane.b32.xlu0 %v1517, 16
      %v2367 = vpop.permute.xlu0 %2366
      %2368 = vrot.lane.b32.xlu0 %v1519, 16
      %v2369 = vpop.permute.xlu0 %2368
      %2370 = vrot.lane.b32.xlu0 %v1521, 16
      %v2371 = vpop.permute.xlu0 %2370
      %2372 = vrot.lane.b32.xlu0 %v1523, 16
      %v2373 = vpop.permute.xlu0 %2372
      %2374 = vrot.lane.b32.xlu0 %v1525, 16
      %v2375 = vpop.permute.xlu0 %2374
      %2376 = vrot.lane.b32.xlu0 %v1527, 16
      %v2377 = vpop.permute.xlu0 %2376
      %2378 = vrot.lane.b32.xlu0 %v1529, 16
      %v2379 = vpop.permute.xlu0 %2378
      %2380 = vrot.lane.b32.xlu0 %v1531, 16
      %v2381 = vpop.permute.xlu0 %2380
      %2382 = vrot.lane.b32.xlu0 %v1533, 16
      %v2383 = vpop.permute.xlu0 %2382
      %2384 = vrot.lane.b32.xlu0 %v1535, 16
      %v2385 = vpop.permute.xlu0 %2384
      %2386 = vrot.lane.b32.xlu0 %v1959, 16
      %v2387 = vpop.permute.xlu0 %2386
      %2388 = vrot.lane.b32.xlu0 %v1961, 16
      %v2389 = vpop.permute.xlu0 %2388
      %2390 = vrot.lane.b32.xlu0 %v2335, 16
      %v2391 = vpop.permute.xlu0 %2390
      %2392 = vrot.lane.b32.xlu0 %v2337, 16
      %v2393 = vpop.permute.xlu0 %2392
      %2394 = vrot.lane.b32.xlu0 %v2339, 16
      %v2395 = vpop.permute.xlu0 %2394
      %v2424 = vadd.f32 %v2300, %v2341
      %v2425 = vadd.f32 %v2301, %v2343
      %v2426 = vadd.f32 %v2302, %v2345
      %v2427 = vadd.f32 %v2303, %v2347
      %v2428 = vadd.f32 %v2304, %v2349
      %v2429 = vadd.f32 %v2305, %v2351
      %v2430 = vadd.f32 %v2306, %v2353
      %v2431 = vadd.f32 %v2307, %v2355
      %v2432 = vadd.f32 %v2308, %v2357
      %v2433 = vadd.f32 %v2309, %v2359
      %v2434 = vadd.f32 %v2310, %v2361
      %v2435 = vadd.f32 %v2311, %v2363
      %v2436 = vadd.f32 %v2312, %v2365
      %v2437 = vadd.f32 %v2313, %v2367
      %v2438 = vadd.f32 %v2314, %v2369
      %v2439 = vadd.f32 %v2315, %v2371
      %v2440 = vadd.f32 %v2316, %v2373
      %v2441 = vadd.f32 %v2317, %v2375
      %v2442 = vadd.f32 %v2318, %v2377
      %v2443 = vadd.f32 %v2319, %v2379
      %v2444 = vadd.f32 %v2320, %v2381
      %v2445 = vadd.f32 %v2321, %v2383
      %v2446 = vadd.f32 %v2322, %v2385
      %v2447 = vadd.f32 %v2323, %v2387
      %v2448 = vadd.f32 %v2324, %v2389
      %v2449 = vadd.f32 %v2325, %v2391
      %v2450 = vadd.f32 %v2326, %v2393
      %v2451 = vadd.f32 %v2327, %v2395
      %v2452 = vld [vmem:[#allocation2 + $0x68] sm:$0xf8]
      %v2453 = vld [vmem:[#allocation2 + $0x78] sm:$0xff]
      %v2454 = vld [vmem:[#allocation2 + $0x88] sm:$0xff]
      %v2455 = vld [vmem:[#allocation2 + $0x98] sm:$0xff]
      %v2456 = vld [vmem:[#allocation2 + $0xa8] sm:$0xff]
      %v2457 = vld [vmem:[#allocation2 + $0xb8] sm:$0xff]
      %v2458 = vld [vmem:[#allocation2 + $0xc8] sm:$0xff]
      %v2459 = vld [vmem:[#allocation2 + $0xd8] sm:$0xff]
      %v2460 = vld [vmem:[#allocation2 + $0xe8] sm:$0xff]
      %v2461 = vld [vmem:[#allocation2 + $0xf8] sm:$0xff]
      %v2462 = vld [vmem:[#allocation2 + $0x108] sm:$0xff]
      %v2463 = vld [vmem:[#allocation2 + $0x118] sm:$0xff]
      %v2464 = vld [vmem:[#allocation2 + $0x128] sm:$0xff]
      %v2465 = vld [vmem:[#allocation2 + $0x138] sm:$0xff]
      %v2466 = vld [vmem:[#allocation2 + $0x148] sm:$0xff]
      %v2467 = vld [vmem:[#allocation2 + $0x158] sm:$0xff]
      %v2468 = vld [vmem:[#allocation2 + $0x168] sm:$0xff]
      %v2469 = vld [vmem:[#allocation2 + $0x178] sm:$0xff]
      %v2470 = vld [vmem:[#allocation2 + $0x188] sm:$0xff]
      %v2471 = vld [vmem:[#allocation2 + $0x198] sm:$0xff]
      %v2472 = vld [vmem:[#allocation2 + $0x1a8] sm:$0xff]
      %v2473 = vld [vmem:[#allocation2 + $0x1b8] sm:$0xff]
      %v2474 = vld [vmem:[#allocation2 + $0x1c8] sm:$0xff]
      %v2475 = vld [vmem:[#allocation2 + $0x1d8] sm:$0xff]
      %v2476 = vld [vmem:[#allocation2 + $0x1e8] sm:$0xff]
      %v2477 = vld [vmem:[#allocation2 + $0x1f8] sm:$0xff]
      %v2478 = vld [vmem:[#allocation2 + $0x208] sm:$0xff]
      %v2479 = vld [vmem:[#allocation2 + $0x218] sm:$0xff]
      %v2480 = vld [vmem:[#allocation2 + $0x228] sm:$0x7]
      %v2510 = vrot.slane %v2452, 3
      %v2511 = vrot.slane %v2453, 3
      %v2512 = vsel %vm1654, %v2510, %v2511
      %v2513 = vrot.slane %v2454, 3
      %v2514 = vsel %vm1654, %v2511, %v2513
      %v2515 = vrot.slane %v2455, 3
      %v2516 = vsel %vm1654, %v2513, %v2515
      %v2517 = vrot.slane %v2456, 3
      %v2518 = vsel %vm1654, %v2515, %v2517
      %v2519 = vrot.slane %v2457, 3
      %v2520 = vsel %vm1654, %v2517, %v2519
      %v2521 = vrot.slane %v2458, 3
      %v2522 = vsel %vm1654, %v2519, %v2521
      %v2523 = vrot.slane %v2459, 3
      %v2524 = vsel %vm1654, %v2521, %v2523
      %v2525 = vrot.slane %v2460, 3
      %v2526 = vsel %vm1654, %v2523, %v2525
      %v2527 = vrot.slane %v2461, 3
      %v2528 = vsel %vm1654, %v2525, %v2527
      %v2529 = vrot.slane %v2462, 3
      %v2530 = vsel %vm1654, %v2527, %v2529
      %v2531 = vrot.slane %v2463, 3
      %v2532 = vsel %vm1654, %v2529, %v2531
      %v2533 = vrot.slane %v2464, 3
      %v2534 = vsel %vm1654, %v2531, %v2533
      %v2535 = vrot.slane %v2465, 3
      %v2536 = vsel %vm1654, %v2533, %v2535
      %v2537 = vrot.slane %v2466, 3
      %v2538 = vsel %vm1654, %v2535, %v2537
      %v2539 = vrot.slane %v2467, 3
      %v2540 = vsel %vm1654, %v2537, %v2539
      %v2541 = vrot.slane %v2468, 3
      %v2542 = vsel %vm1654, %v2539, %v2541
      %v2543 = vrot.slane %v2469, 3
      %v2544 = vsel %vm1654, %v2541, %v2543
      %v2545 = vrot.slane %v2470, 3
      %v2546 = vsel %vm1654, %v2543, %v2545
      %v2547 = vrot.slane %v2471, 3
      %v2548 = vsel %vm1654, %v2545, %v2547
      %v2549 = vrot.slane %v2472, 3
      %v2550 = vsel %vm1654, %v2547, %v2549
      %v2551 = vrot.slane %v2473, 3
      %v2552 = vsel %vm1654, %v2549, %v2551
      %v2553 = vrot.slane %v2474, 3
      %v2554 = vsel %vm1654, %v2551, %v2553
      %v2555 = vrot.slane %v2475, 3
      %v2556 = vsel %vm1654, %v2553, %v2555
      %v2557 = vrot.slane %v2476, 3
      %v2558 = vsel %vm1654, %v2555, %v2557
      %v2559 = vrot.slane %v2477, 3
      %v2560 = vsel %vm1654, %v2557, %v2559
      %v2561 = vrot.slane %v2478, 3
      %v2562 = vsel %vm1654, %v2559, %v2561
      %v2563 = vrot.slane %v2479, 3
      %v2564 = vsel %vm1654, %v2561, %v2563
      %v2565 = vrot.slane %v2480, 3
      %v2566 = vsel %vm1654, %v2563, %v2565
      %v2595 = vadd.f32 %v2424, %v2512
      %v2596 = vadd.f32 %v2425, %v2514
      %v2597 = vadd.f32 %v2426, %v2516
      %v2598 = vadd.f32 %v2427, %v2518
      %v2599 = vadd.f32 %v2428, %v2520
      %v2600 = vadd.f32 %v2429, %v2522
      %v2601 = vadd.f32 %v2430, %v2524
      %v2602 = vadd.f32 %v2431, %v2526
      %v2603 = vadd.f32 %v2432, %v2528
      %v2604 = vadd.f32 %v2433, %v2530
      %v2605 = vadd.f32 %v2434, %v2532
      %v2606 = vadd.f32 %v2435, %v2534
      %v2607 = vadd.f32 %v2436, %v2536
      %v2608 = vadd.f32 %v2437, %v2538
      %v2609 = vadd.f32 %v2438, %v2540
      %v2610 = vadd.f32 %v2439, %v2542
      %v2611 = vadd.f32 %v2440, %v2544
      %v2612 = vadd.f32 %v2441, %v2546
      %v2613 = vadd.f32 %v2442, %v2548
      %v2614 = vadd.f32 %v2443, %v2550
      %v2615 = vadd.f32 %v2444, %v2552
      %v2616 = vadd.f32 %v2445, %v2554
      %v2617 = vadd.f32 %v2446, %v2556
      %v2618 = vadd.f32 %v2447, %v2558
      %v2619 = vadd.f32 %v2448, %v2560
      %v2620 = vadd.f32 %v2449, %v2562
      %v2621 = vadd.f32 %v2450, %v2564
      %v2622 = vadd.f32 %v2451, %v2566
      %v2623 = vmax.f32 %v2595, 0.0
      %v2624 = vmax.f32 %v2596, 0.0
      %v2625 = vmax.f32 %v2597, 0.0
      %v2626 = vmax.f32 %v2598, 0.0
      %v2627 = vmax.f32 %v2599, 0.0
      %v2628 = vmax.f32 %v2600, 0.0
      %v2629 = vmax.f32 %v2601, 0.0
      %v2630 = vmax.f32 %v2602, 0.0
      %v2631 = vmax.f32 %v2603, 0.0
      %v2632 = vmax.f32 %v2604, 0.0
      %v2633 = vmax.f32 %v2605, 0.0
      %v2634 = vmax.f32 %v2606, 0.0
      %v2635 = vmax.f32 %v2607, 0.0
      %v2636 = vmax.f32 %v2608, 0.0
      %v2637 = vmax.f32 %v2609, 0.0
      %v2638 = vmax.f32 %v2610, 0.0
      %v2639 = vmax.f32 %v2611, 0.0
      %v2640 = vmax.f32 %v2612, 0.0
      %v2641 = vmax.f32 %v2613, 0.0
      %v2642 = vmax.f32 %v2614, 0.0
      %v2643 = vmax.f32 %v2615, 0.0
      %v2644 = vmax.f32 %v2616, 0.0
      %v2645 = vmax.f32 %v2617, 0.0
      %v2646 = vmax.f32 %v2618, 0.0
      %v2647 = vmax.f32 %v2619, 0.0
      %v2648 = vmax.f32 %v2620, 0.0
      %v2649 = vmax.f32 %v2621, 0.0
      %v2650 = vmax.f32 %v2622, 0.0
      %v2651 = vmul.f32 %v2623, %v1276
      %v2652 = vmul.f32 %v2624, %v1277
      %v2653 = vmul.f32 %v2625, %v1278
      %v2654 = vmul.f32 %v2626, %v1279
      %v2655 = vmul.f32 %v2627, %v1280
      %v2656 = vmul.f32 %v2628, %v1281
      %v2657 = vmul.f32 %v2629, %v1282
      %v2658 = vmul.f32 %v2630, %v1283
      %v2659 = vmul.f32 %v2631, %v1284
      %v2660 = vmul.f32 %v2632, %v1285
      %v2661 = vmul.f32 %v2633, %v1286
      %v2662 = vmul.f32 %v2634, %v1287
      %v2663 = vmul.f32 %v2635, %v1288
      %v2664 = vmul.f32 %v2636, %v1289
      %v2665 = vmul.f32 %v2637, %v1290
      %v2666 = vmul.f32 %v2638, %v1291
      %v2667 = vmul.f32 %v2639, %v1292
      %v2668 = vmul.f32 %v2640, %v1293
      %v2669 = vmul.f32 %v2641, %v1294
      %v2670 = vmul.f32 %v2642, %v1295
      %v2671 = vmul.f32 %v2643, %v1296
      %v2672 = vmul.f32 %v2644, %v1297
      %v2673 = vmul.f32 %v2645, %v1298
      %v2674 = vmul.f32 %v2646, %v1299
      %v2675 = vmul.f32 %v2647, %v1300
      %v2676 = vmul.f32 %v2648, %v1301
      %v2677 = vmul.f32 %v2649, %v1302
      %v2678 = vmul.f32 %v2650, %v1303
      %v2679 = vpack.c.bf16 %v2651, %v2651
      %v2680 = vpack.c.bf16 %v2652, %v2652
      %v2681 = vpack.c.bf16 %v2653, %v2653
      %v2682 = vpack.c.bf16 %v2654, %v2654
      %v2683 = vpack.c.bf16 %v2655, %v2655
      %v2684 = vpack.c.bf16 %v2656, %v2656
      %v2685 = vpack.c.bf16 %v2657, %v2657
      %v2686 = vpack.c.bf16 %v2658, %v2658
      %v2687 = vpack.c.bf16 %v2659, %v2659
      %v2688 = vpack.c.bf16 %v2660, %v2660
      %v2689 = vpack.c.bf16 %v2661, %v2661
      %v2690 = vpack.c.bf16 %v2662, %v2662
      %v2691 = vpack.c.bf16 %v2663, %v2663
      %v2692 = vpack.c.bf16 %v2664, %v2664
      %v2693 = vpack.c.bf16 %v2665, %v2665
      %v2694 = vpack.c.bf16 %v2666, %v2666
      %v2695 = vpack.c.bf16 %v2667, %v2667
      %v2696 = vpack.c.bf16 %v2668, %v2668
      %v2697 = vpack.c.bf16 %v2669, %v2669
      %v2698 = vpack.c.bf16 %v2670, %v2670
      %v2699 = vpack.c.bf16 %v2671, %v2671
      %v2700 = vpack.c.bf16 %v2672, %v2672
      %v2701 = vpack.c.bf16 %v2673, %v2673
      %v2702 = vpack.c.bf16 %v2674, %v2674
      %v2703 = vpack.c.bf16 %v2675, %v2675
      %v2704 = vpack.c.bf16 %v2676, %v2676
      %v2705 = vpack.c.bf16 %v2677, %v2677
      %v2706 = vpack.c.bf16 %v2678, %v2678
      %vm2707 = vcmask 125952
      %2708 = vst.msk [vmem:[%s237] sm:$0xf] %vm2707, %v2679
      %2709 = vst.msk [vmem:[%s237 + $0x4] sm:$0xf] %vm2707, %v2680
      %2710 = vst.msk [vmem:[%s237 + $0x8] sm:$0xf] %vm2707, %v2681
      %2711 = vst.msk [vmem:[%s237 + $0xc] sm:$0xf] %vm2707, %v2682
      %2712 = vst.msk [vmem:[%s237 + $0x10] sm:$0xf] %vm2707, %v2683
      %2713 = vst.msk [vmem:[%s237 + $0x14] sm:$0xf] %vm2707, %v2684
      %2714 = vst.msk [vmem:[%s237 + $0x18] sm:$0xf] %vm2707, %v2685
      %2715 = vst.msk [vmem:[%s237 + $0x1c] sm:$0xf] %vm2707, %v2686
      %2716 = vst.msk [vmem:[%s237 + $0x20] sm:$0xf] %vm2707, %v2687
      %2717 = vst.msk [vmem:[%s237 + $0x24] sm:$0xf] %vm2707, %v2688
      %2718 = vst.msk [vmem:[%s237 + $0x28] sm:$0xf] %vm2707, %v2689
      %2719 = vst.msk [vmem:[%s237 + $0x2c] sm:$0xf] %vm2707, %v2690
      %2720 = vst.msk [vmem:[%s237 + $0x30] sm:$0xf] %vm2707, %v2691
      %2721 = vst.msk [vmem:[%s237 + $0x34] sm:$0xf] %vm2707, %v2692
      %2722 = vst.msk [vmem:[%s237 + $0x38] sm:$0xf] %vm2707, %v2693
      %2723 = vst.msk [vmem:[%s237 + $0x3c] sm:$0xf] %vm2707, %v2694
      %2724 = vst.msk [vmem:[%s237 + $0x40] sm:$0xf] %vm2707, %v2695
      %2725 = vst.msk [vmem:[%s237 + $0x44] sm:$0xf] %vm2707, %v2696
      %2726 = vst.msk [vmem:[%s237 + $0x48] sm:$0xf] %vm2707, %v2697
      %2727 = vst.msk [vmem:[%s237 + $0x4c] sm:$0xf] %vm2707, %v2698
      %2728 = vst.msk [vmem:[%s237 + $0x50] sm:$0xf] %vm2707, %v2699
      %2729 = vst.msk [vmem:[%s237 + $0x54] sm:$0xf] %vm2707, %v2700
      %2730 = vst.msk [vmem:[%s237 + $0x58] sm:$0xf] %vm2707, %v2701
      %2731 = vst.msk [vmem:[%s237 + $0x5c] sm:$0xf] %vm2707, %v2702
      %2732 = vst.msk [vmem:[%s237 + $0x60] sm:$0xf] %vm2707, %v2703
      %2733 = vst.msk [vmem:[%s237 + $0x64] sm:$0xf] %vm2707, %v2704
      %2734 = vst.msk [vmem:[%s237 + $0x68] sm:$0xf] %vm2707, %v2705
      %2735 = vst.msk [vmem:[%s237 + $0x6c] sm:$0xf] %vm2707, %v2706
      %2736 = vst.msk [vmem:[%s237 + $0x70] sm:$0xf] %vm2707, 0
      %2737 = vst.msk [vmem:[%s237 + $0x74] sm:$0xf] %vm2707, 0
      %2738 = vst.msk [vmem:[%s237 + $0x78] sm:$0xf] %vm2707, 0
      %2739 = vst.msk [vmem:[%s237 + $0x7c] sm:$0xf] %vm2707, 0
      %v2740 = vunpack.c.l.bf16 %v2679
      %v2741 = vunpack.c.l.bf16 %v2680
      %v2742 = vunpack.c.l.bf16 %v2681
      %v2743 = vunpack.c.l.bf16 %v2682
      %v2744 = vunpack.c.l.bf16 %v2683
      %v2745 = vunpack.c.l.bf16 %v2684
      %v2746 = vunpack.c.l.bf16 %v2685
      %v2747 = vunpack.c.l.bf16 %v2686
      %v2748 = vunpack.c.l.bf16 %v2687
      %v2749 = vunpack.c.l.bf16 %v2688
      %v2750 = vunpack.c.l.bf16 %v2689
      %v2751 = vunpack.c.l.bf16 %v2690
      %v2752 = vunpack.c.l.bf16 %v2691
      %v2753 = vunpack.c.l.bf16 %v2692
      %v2754 = vunpack.c.l.bf16 %v2693
      %v2755 = vunpack.c.l.bf16 %v2694
      %v2756 = vunpack.c.l.bf16 %v2695
      %v2757 = vunpack.c.l.bf16 %v2696
      %v2758 = vunpack.c.l.bf16 %v2697
      %v2759 = vunpack.c.l.bf16 %v2698
      %v2760 = vunpack.c.l.bf16 %v2699
      %v2761 = vunpack.c.l.bf16 %v2700
      %v2762 = vunpack.c.l.bf16 %v2701
      %v2763 = vunpack.c.l.bf16 %v2702
      %v2764 = vunpack.c.l.bf16 %v2703
      %v2765 = vunpack.c.l.bf16 %v2704
      %v2766 = vunpack.c.l.bf16 %v2705
      %v2767 = vunpack.c.l.bf16 %v2706
      %v2768 = vsel %vm695, %v2740, 0.0
      %v2769 = vsel %vm695, %v2741, 0.0
      %v2770 = vadd.f32 %v2768, %v2769
      %v2771 = vsel %vm695, %v2742, 0.0
      %v2772 = vadd.f32 %v2770, %v2771
      %v2773 = vsel %vm695, %v2743, 0.0
      %v2774 = vadd.f32 %v2772, %v2773
      %v2775 = vsel %vm695, %v2744, 0.0
      %v2776 = vadd.f32 %v2774, %v2775
      %v2777 = vsel %vm695, %v2745, 0.0
      %v2778 = vadd.f32 %v2776, %v2777
      %v2779 = vsel %vm695, %v2746, 0.0
      %v2780 = vadd.f32 %v2778, %v2779
      %v2781 = vsel %vm695, %v2747, 0.0
      %v2782 = vadd.f32 %v2780, %v2781
      %v2783 = vsel %vm695, %v2748, 0.0
      %v2784 = vadd.f32 %v2782, %v2783
      %v2785 = vsel %vm695, %v2749, 0.0
      %v2786 = vadd.f32 %v2784, %v2785
      %v2787 = vsel %vm695, %v2750, 0.0
      %v2788 = vadd.f32 %v2786, %v2787
      %v2789 = vsel %vm695, %v2751, 0.0
      %v2790 = vadd.f32 %v2788, %v2789
      %v2791 = vsel %vm695, %v2752, 0.0
      %v2792 = vadd.f32 %v2790, %v2791
      %v2793 = vsel %vm695, %v2753, 0.0
      %v2794 = vadd.f32 %v2792, %v2793
      %v2795 = vsel %vm695, %v2754, 0.0
      %v2796 = vadd.f32 %v2794, %v2795
      %v2797 = vsel %vm695, %v2755, 0.0
      %v2798 = vadd.f32 %v2796, %v2797
      %v2799 = vsel %vm695, %v2756, 0.0
      %v2800 = vadd.f32 %v2798, %v2799
      %v2801 = vsel %vm695, %v2757, 0.0
      %v2802 = vadd.f32 %v2800, %v2801
      %v2803 = vsel %vm695, %v2758, 0.0
      %v2804 = vadd.f32 %v2802, %v2803
      %v2805 = vsel %vm695, %v2759, 0.0
      %v2806 = vadd.f32 %v2804, %v2805
      %v2807 = vsel %vm695, %v2760, 0.0
      %v2808 = vadd.f32 %v2806, %v2807
      %v2809 = vsel %vm695, %v2761, 0.0
      %v2810 = vadd.f32 %v2808, %v2809
      %v2811 = vsel %vm695, %v2762, 0.0
      %v2812 = vadd.f32 %v2810, %v2811
      %v2813 = vsel %vm695, %v2763, 0.0
      %v2814 = vadd.f32 %v2812, %v2813
      %v2815 = vsel %vm695, %v2764, 0.0
      %v2816 = vadd.f32 %v2814, %v2815
      %v2817 = vsel %vm695, %v2765, 0.0
      %v2818 = vadd.f32 %v2816, %v2817
      %v2819 = vsel %vm695, %v2766, 0.0
      %v2820 = vadd.f32 %v2818, %v2819
      %v2821 = vsel %vm695, %v2767, 0.0
      %v2822 = vadd.f32 %v2820, %v2821
      %v2823 = vrot.slane %v2822, 4
      %v2824 = vadd.f32 %v2822, %v2823
      %v2825 = vrot.slane %v2824, 2
      %v2826 = vadd.f32 %v2824, %v2825
      %v2827 = vrot.slane %v2826, 1
      %v2828 = vadd.f32 %v2826, %v2827
      %v2829 = vadd.f32 %v2828, 0.0
      %v2830 = vmul.f32 %v2740, %v2740
      %v2831 = vmul.f32 %v2741, %v2741
      %v2832 = vmul.f32 %v2742, %v2742
      %v2833 = vmul.f32 %v2743, %v2743
      %v2834 = vmul.f32 %v2744, %v2744
      %v2835 = vmul.f32 %v2745, %v2745
      %v2836 = vmul.f32 %v2746, %v2746
      %v2837 = vmul.f32 %v2747, %v2747
      %v2838 = vmul.f32 %v2748, %v2748
      %v2839 = vmul.f32 %v2749, %v2749
      %v2840 = vmul.f32 %v2750, %v2750
      %v2841 = vmul.f32 %v2751, %v2751
      %v2842 = vmul.f32 %v2752, %v2752
      %v2843 = vmul.f32 %v2753, %v2753
      %v2844 = vmul.f32 %v2754, %v2754
      %v2845 = vmul.f32 %v2755, %v2755
      %v2846 = vmul.f32 %v2756, %v2756
      %v2847 = vmul.f32 %v2757, %v2757
      %v2848 = vmul.f32 %v2758, %v2758
      %v2849 = vmul.f32 %v2759, %v2759
      %v2850 = vmul.f32 %v2760, %v2760
      %v2851 = vmul.f32 %v2761, %v2761
      %v2852 = vmul.f32 %v2762, %v2762
      %v2853 = vmul.f32 %v2763, %v2763
      %v2854 = vmul.f32 %v2764, %v2764
      %v2855 = vmul.f32 %v2765, %v2765
      %v2856 = vmul.f32 %v2766, %v2766
      %v2857 = vmul.f32 %v2767, %v2767
      %v2858 = vsel %vm695, %v2830, 0.0
      %v2859 = vsel %vm695, %v2831, 0.0
      %v2860 = vadd.f32 %v2858, %v2859
      %v2861 = vsel %vm695, %v2832, 0.0
      %v2862 = vadd.f32 %v2860, %v2861
      %v2863 = vsel %vm695, %v2833, 0.0
      %v2864 = vadd.f32 %v2862, %v2863
      %v2865 = vsel %vm695, %v2834, 0.0
      %v2866 = vadd.f32 %v2864, %v2865
      %v2867 = vsel %vm695, %v2835, 0.0
      %v2868 = vadd.f32 %v2866, %v2867
      %v2869 = vsel %vm695, %v2836, 0.0
      %v2870 = vadd.f32 %v2868, %v2869
      %v2871 = vsel %vm695, %v2837, 0.0
      %v2872 = vadd.f32 %v2870, %v2871
      %v2873 = vsel %vm695, %v2838, 0.0
      %v2874 = vadd.f32 %v2872, %v2873
      %v2875 = vsel %vm695, %v2839, 0.0
      %v2876 = vadd.f32 %v2874, %v2875
      %v2877 = vsel %vm695, %v2840, 0.0
      %v2878 = vadd.f32 %v2876, %v2877
      %v2879 = vsel %vm695, %v2841, 0.0
      %v2880 = vadd.f32 %v2878, %v2879
      %v2881 = vsel %vm695, %v2842, 0.0
      %v2882 = vadd.f32 %v2880, %v2881
      %v2883 = vsel %vm695, %v2843, 0.0
      %v2884 = vadd.f32 %v2882, %v2883
      %v2885 = vsel %vm695, %v2844, 0.0
      %v2886 = vadd.f32 %v2884, %v2885
      %v2887 = vsel %vm695, %v2845, 0.0
      %v2888 = vadd.f32 %v2886, %v2887
      %v2889 = vsel %vm695, %v2846, 0.0
      %v2890 = vadd.f32 %v2888, %v2889
      %v2891 = vsel %vm695, %v2847, 0.0
      %v2892 = vadd.f32 %v2890, %v2891
      %v2893 = vsel %vm695, %v2848, 0.0
      %v2894 = vadd.f32 %v2892, %v2893
      %v2895 = vsel %vm695, %v2849, 0.0
      %v2896 = vadd.f32 %v2894, %v2895
      %v2897 = vsel %vm695, %v2850, 0.0
      %v2898 = vadd.f32 %v2896, %v2897
      %v2899 = vsel %vm695, %v2851, 0.0
      %v2900 = vadd.f32 %v2898, %v2899
      %v2901 = vsel %vm695, %v2852, 0.0
      %v2902 = vadd.f32 %v2900, %v2901
      %v2903 = vsel %vm695, %v2853, 0.0
      %v2904 = vadd.f32 %v2902, %v2903
      %v2905 = vsel %vm695, %v2854, 0.0
      %v2906 = vadd.f32 %v2904, %v2905
      %v2907 = vsel %vm695, %v2855, 0.0
      %v2908 = vadd.f32 %v2906, %v2907
      %v2909 = vsel %vm695, %v2856, 0.0
      %v2910 = vadd.f32 %v2908, %v2909
      %v2911 = vsel %vm695, %v2857, 0.0
      %v2912 = vadd.f32 %v2910, %v2911
      %v2913 = vrot.slane %v2912, 4
      %v2914 = vadd.f32 %v2912, %v2913
      %v2915 = vrot.slane %v2914, 2
      %v2916 = vadd.f32 %v2914, %v2915
      %v2917 = vrot.slane %v2916, 1
      %v2918 = vadd.f32 %v2916, %v2917
      %v2919 = vadd.f32 %v2918, 0.0
      %2920 = vst.msk [vmem:[%s241] sm:$0xff] %vm695, %v2829
      %2921 = vst.msk [vmem:[%s245] sm:$0xff] %vm695, %v2919
      %p2922 = scmp.lt.s32.totalorder %s17, 1
      %s2923 = scalar_select %p2922, %s17, 1
      %s2924 = smul.addr %s2923, 32
      %s2925 = smul.addr %s2924, 4
      %s2926 = scalar_lea.vmem %s3, %s2925
      %p2927 = scmp.lt.s32.totalorder %s17, 1
      %s2928 = scalar_select %p2927, %s17, 1
      %s2929 = smul.addr %s2928, 8
      %s2930 = scalar_lea.vmem %s4, %s2929
      %p2931 = scmp.lt.s32.totalorder %s17, 1
      %s2932 = scalar_select %p2931, %s17, 1
      %s2933 = smul.addr %s2932, 8
      %s2934 = scalar_lea.vmem %s5, %s2933
      // Predicated region
      $region33: #{decoder_forward.6} parent=31 // pred_check
        %p2935 = pneg %p103
      $region34: #{decoder_forward.6} parent=31 // pred_check_branch
        %2937 = sbr.rel (%p2935) target = $region36
      $region35: #{decoder_forward.6} parent=31 // pred_region
        _
      $region36: #{decoder_forward.6} parent=31 // pred_fallthru
        _
      // Predicated region
      $region37: #{decoder_forward.6} parent=31 // pred_check
        %p2938 = pneg %p129
      $region38: #{decoder_forward.6} parent=31 // pred_check_branch
        %2940 = sbr.rel (%p2938) target = $region40
      $region39: #{decoder_forward.6} parent=31 // pred_region
        _
      $region40: #{decoder_forward.6} parent=31 // pred_fallthru
        _
      // Predicated region
      $region41: #{decoder_forward.6} parent=31 // pred_check
        %p2941 = pneg %p155
      $region42: #{decoder_forward.6} parent=31 // pred_check_branch
        %2943 = sbr.rel (%p2941) target = $region44
      $region43: #{decoder_forward.6} parent=31 // pred_region
        _
      $region44: #{decoder_forward.6} parent=31 // pred_fallthru
        _
    $region32: #{decoder_forward.6} parent=5 // pred_fallthru
      _
    %p2944 = scmp.le.s32.totalorder 2, %s12
    // Predicated region
    $region45: #{decoder_forward.6} parent=5 // pred_check
      %p2945 = pneg %p2944
    $region46: #{decoder_forward.6} parent=5 // pred_check_branch
      %2947 = sbr.rel (%p2945) target = $region48
    $region47: #{decoder_forward.6} parent=5 // pred_region
      %s2948 = ssub.s32 %s12, 2
      // Predicated region
      $region49: #{decoder_forward.6} parent=47 // pred_check
        %p2949 = pneg %p109
      $region50: #{decoder_forward.6} parent=47 // pred_check_branch
        %2951 = sbr.rel (%p2949) target = $region52
      $region51: #{decoder_forward.6} parent=47 // pred_region
        %p2952 = scmp.lt.s32.totalorder %s18, 1
        %s2953 = scalar_select %p2952, %s18, 1
        %s2954 = smul.addr %s2953, 32
        %s2955 = smul.addr %s2954, 4
        %s2956 = scalar_lea.vmem %s3, %s2955
      $region52: #{decoder_forward.6} parent=47 // pred_fallthru
        _
      // Predicated region
      $region53: #{decoder_forward.6} parent=47 // pred_check
        %p2957 = pneg %p135
      $region54: #{decoder_forward.6} parent=47 // pred_check_branch
        %2959 = sbr.rel (%p2957) target = $region56
      $region55: #{decoder_forward.6} parent=47 // pred_region
        %p2960 = scmp.lt.s32.totalorder %s18, 1
        %s2961 = scalar_select %p2960, %s18, 1
        %s2962 = smul.addr %s2961, 8
        %s2963 = scalar_lea.vmem %s4, %s2962
      $region56: #{decoder_forward.6} parent=47 // pred_fallthru
        _
      // Predicated region
      $region57: #{decoder_forward.6} parent=47 // pred_check
        %p2964 = pneg %p161
      $region58: #{decoder_forward.6} parent=47 // pred_check_branch
        %2966 = sbr.rel (%p2964) target = $region60
      $region59: #{decoder_forward.6} parent=47 // pred_region
        %p2967 = scmp.lt.s32.totalorder %s18, 1
        %s2968 = scalar_select %p2967, %s18, 1
        %s2969 = smul.addr %s2968, 8
        %s2970 = scalar_lea.vmem %s5, %s2969
      $region60: #{decoder_forward.6} parent=47 // pred_fallthru
        _
    $region48: #{decoder_forward.6} parent=5 // pred_fallthru
      _
  $region6: #{decoder_forward.6} parent=0 // loop_footer
    %s16 = sadd.s32 1, %s12
  $region7: #{decoder_forward.6} parent=0 // loop_footer_branch
    %11 = sbr.rel target = $region3
  $region8: #{decoder_forward.6} parent=0 // loop_exit
    _

// kernel: decoder_forward.7
$region0: #{decoder_forward.7}
  #allocation0 [shape = 'u32[]', space=smem, size = 0x4, offset = 0x4, fixed_abs, tag = 'smem constant byte address 0x4 - core index']
  #allocation1 [shape = 'u32[72,128]{1,0:T(1,128)}', space=vmem, size = 0x9000, scoped, tag = 'internal scratch']
  %s0 = inlined_call_operand.vmem [shape: bf16[2,224,64], index: 0, kind: input, shape index: {}]
  %s1 = inlined_call_operand.vmem [shape: f32[64,4], index: 1, kind: input, shape index: {}]
  %s2 = inlined_call_operand.vmem [shape: f32[224,4], index: 2, kind: input, shape index: {}]
  %s3 = inlined_call_operand.vmem [shape: f32[2,224,4], index: 3, kind: output, shape index: {}]
  %s4 = sld [smem:[#allocation0]]
  $region45: #{decoder_forward.7} parent=0
    _
  %s6 = ssub.s32 1, %s4
  %s7 = scalar_select 0, %s6, %s4
  loop: start=0, step=1, limit=4
  $region2: #{decoder_forward.7} parent=0 // loop_pre_header
    _
  $region3: #{decoder_forward.7} parent=0 // loop_header
    %s9 = sphi 0, %s13
    %p10 = scmp.ge.s32.totalorder %s9, 4
    %s19 = sphi 0, %s21
    %s22 = sphi 0, %s19
    %s23 = sphi 0, %s22
    %s39 = sphi 0, %s23
    %s43 = sphi 0, %s43
    %s45 = sphi 0, %s43
    %s46 = sphi 0, %s45
    %s60 = sphi 0, %s46
    %s64 = sphi 0, %s64
    %s66 = sphi 0, %s64
    %s67 = sphi 0, %s66
    %s81 = sphi 0, %s67
    %s87 = sphi 0, %s89
    %s90 = sphi 0, %s87
    %s91 = sphi 0, %s90
    %s107 = sphi 0, %s91
  $region4: #{decoder_forward.7} parent=0 // loop_header_branch
    %12 = sbr.rel (%p10) target = $region8
  $region5: #{decoder_forward.7} parent=0 // loop_body
    %s14 = ssub.s32 %s9, 1
    %s15 = ssub.s32 %s9, 2
    %s16 = sadd.s32 %s9, 1
    %s17 = ssub.s32 %s9, %s16
    %p18 = scmp.eq.s32.totalorder %s17, 0
    %s20 = sadd.s32 %s19, 1
    %s21 = scalar_select %p18, %s19, %s20
    %p24 = pneg %p18
    %p25 = scmp.eq.s32.totalorder %s9, 1
    %p26 = por %p24, %p25
    %p27 = scmp.ne.s32.totalorder %s19, %s22
    %p28 = scmp.eq.s32.totalorder %s9, 0
    %p29 = por %p27, %p28
    %p30 = scmp.ne.s32.totalorder %s19, %s22
    %p31 = scmp.eq.s32.totalorder %s14, 1
    %p32 = por %p30, %p31
    %p33 = scmp.ne.s32.totalorder %s22, %s23
    %p34 = scmp.eq.s32.totalorder %s14, 0
    %p35 = por %p33, %p34
    %p36 = scmp.ne.s32.totalorder %s22, %s23
    %p37 = scmp.eq.s32.totalorder %s15, 1
    %p38 = por %p36, %p37
    %p40 = scmp.ne.s32.totalorder %s23, %s39
    %p41 = scmp.eq.s32.totalorder %s15, 0
    %p42 = por %p40, %p41
    %s44 = sadd.s32 %s43, 1
    %p47 = scmp.eq.s32.totalorder %s9, 1
    %p48 = scmp.ne.s32.totalorder %s43, %s45
    %p49 = scmp.eq.s32.totalorder %s9, 0
    %p50 = por %p48, %p49
    %p51 = scmp.ne.s32.totalorder %s43, %s45
    %p52 = scmp.eq.s32.totalorder %s14, 1
    %p53 = por %p51, %p52
    %p54 = scmp.ne.s32.totalorder %s45, %s46
    %p55 = scmp.eq.s32.totalorder %s14, 0
    %p56 = por %p54, %p55
    %p57 = scmp.ne.s32.totalorder %s45, %s46
    %p58 = scmp.eq.s32.totalorder %s15, 1
    %p59 = por %p57, %p58
    %p61 = scmp.ne.s32.totalorder %s46, %s60
    %p62 = scmp.eq.s32.totalorder %s15, 0
    %p63 = por %p61, %p62
    %s65 = sadd.s32 %s64, 1
    %p68 = scmp.eq.s32.totalorder %s9, 1
    %p69 = scmp.ne.s32.totalorder %s64, %s66
    %p70 = scmp.eq.s32.totalorder %s9, 0
    %p71 = por %p69, %p70
    %p72 = scmp.ne.s32.totalorder %s64, %s66
    %p73 = scmp.eq.s32.totalorder %s14, 1
    %p74 = por %p72, %p73
    %p75 = scmp.ne.s32.totalorder %s66, %s67
    %p76 = scmp.eq.s32.totalorder %s14, 0
    %p77 = por %p75, %p76
    %p78 = scmp.ne.s32.totalorder %s66, %s67
    %p79 = scmp.eq.s32.totalorder %s15, 1
    %p80 = por %p78, %p79
    %p82 = scmp.ne.s32.totalorder %s67, %s81
    %p83 = scmp.eq.s32.totalorder %s15, 0
    %p84 = por %p82, %p83
    %s85 = ssub.s32 %s9, %s16
    %p86 = scmp.eq.s32.totalorder %s85, 0
    %s88 = sadd.s32 %s87, 1
    %s89 = scalar_select %p86, %s87, %s88
    %p92 = pneg %p86
    %p93 = scmp.eq.s32.totalorder %s9, 1
    %p94 = por %p92, %p93
    %p95 = scmp.ne.s32.totalorder %s87, %s90
    %p96 = scmp.eq.s32.totalorder %s9, 0
    %p97 = por %p95, %p96
    %p98 = scmp.ne.s32.totalorder %s87, %s90
    %p99 = scmp.eq.s32.totalorder %s14, 1
    %p100 = por %p98, %p99
    %p101 = scmp.ne.s32.totalorder %s90, %s91
    %p102 = scmp.eq.s32.totalorder %s14, 0
    %p103 = por %p101, %p102
    %p104 = scmp.ne.s32.totalorder %s90, %s91
    %p105 = scmp.eq.s32.totalorder %s15, 1
    %p106 = por %p104, %p105
    %p108 = scmp.ne.s32.totalorder %s91, %s107
    %p109 = scmp.eq.s32.totalorder %s15, 0
    %p110 = por %p108, %p109
    %p111 = scmp.le.s32.totalorder 1, %s9
    %p112 = scmp.lt.s32.totalorder %s9, 3
    %p113 = pnand %p111, %p112
    %p114 = pneg %p113
    // Predicated region
    $region9: #{decoder_forward.7} parent=5 // pred_check
      _
    $region10: #{decoder_forward.7} parent=5 // pred_check_branch
      %116 = sbr.rel (%p113) target = $region12
    $region11: #{decoder_forward.7} parent=5 // pred_region
      %s117 = ssub.s32 %s9, 1
      // Predicated region
      $region13: #{decoder_forward.7} parent=11 // pred_check
        %p118 = pneg %p56
      $region14: #{decoder_forward.7} parent=11 // pred_check_branch
        %120 = sbr.rel (%p118) target = $region16
      $region15: #{decoder_forward.7} parent=11 // pred_region
        _
      $region16: #{decoder_forward.7} parent=11 // pred_fallthru
        _
      // Predicated region
      $region17: #{decoder_forward.7} parent=11 // pred_check
        %p121 = pneg %p77
      $region18: #{decoder_forward.7} parent=11 // pred_check_branch
        %123 = sbr.rel (%p121) target = $region20
      $region19: #{decoder_forward.7} parent=11 // pred_region
        _
      $region20: #{decoder_forward.7} parent=11 // pred_fallthru
        _
    $region12: #{decoder_forward.7} parent=5 // pred_fallthru
      _
    %p124 = scmp.lt.s32.totalorder %s9, 2
    // Predicated region
    $region21: #{decoder_forward.7} parent=5 // pred_check
      %p125 = pneg %p124
    $region22: #{decoder_forward.7} parent=5 // pred_check_branch
      %127 = sbr.rel (%p125) target = $region24
    $region23: #{decoder_forward.7} parent=5 // pred_region
      // Predicated region
      $region25: #{decoder_forward.7} parent=23 // pred_check
        %p128 = pneg %p29
      $region26: #{decoder_forward.7} parent=23 // pred_check_branch
        %130 = sbr.rel (%p128) target = $region28
      $region27: #{decoder_forward.7} parent=23 // pred_region
        %p131 = scmp.lt.s32.totalorder %s9, 1
        %s132 = scalar_select %p131, %s9, 1
        %s133 = smul.addr %s132, 28
        %s134 = smul.addr %s133, 4
        %s135 = scalar_lea.vmem %s0, %s134
      $region28: #{decoder_forward.7} parent=23 // pred_fallthru
        _
    $region24: #{decoder_forward.7} parent=5 // pred_fallthru
      _
    %p136 = scmp.le.s32.totalorder 1, %s9
    %p137 = scmp.lt.s32.totalorder %s9, 3
    %p138 = pnand %p136, %p137
    %p139 = pneg %p138
    // Predicated region
    $region29: #{decoder_forward.7} parent=5 // pred_check
      _
    $region30: #{decoder_forward.7} parent=5 // pred_check_branch
      %141 = sbr.rel (%p138) target = $region32
    $region31: #{decoder_forward.7} parent=5 // pred_region
      %s142 = ssub.s32 %s9, 1
      %p143 = scmp.lt.s32.totalorder %s14, 1
      %s144 = scalar_select %p143, %s14, 1
      %s145 = smul.addr %s144, 28
      %s146 = smul.addr %s145, 4
      %s147 = scalar_lea.vmem %s0, %s146
      %p148 = pneg %p35
      %p149 = pneg %p32
      %p150 = pneg %p56
      %p151 = pneg %p53
      %p152 = pneg %p77
      %p153 = pneg %p74
      %p154 = pneg %p103
      %p155 = pneg %p100
      %p156 = scmp.lt.s32.totalorder %s14, 1
      %s157 = scalar_select %p156, %s14, 1
      %s158 = smul.addr %s157, 28
      %s159 = smul.addr %s158, 8
      %s160 = scalar_lea.vmem %s3, %s159
      %p161 = scmp.lt.s32.totalorder %s14, 1
      %s162 = scalar_select %p161, %s14, 1
      %s163 = smul.addr %s162, 28
      %s164 = smul.addr %s163, 4
      %s165 = scalar_lea.vmem %s0, %s164
      %p166 = scmp.lt.s32.totalorder %s14, 1
      %s167 = scalar_select %p166, %s14, 1
      %s168 = smul.addr %s167, 28
      %s169 = smul.addr %s168, 8
      %s170 = scalar_lea.vmem %s3, %s169
      %v171 = vld [vmem:[%s165] sm:$0xf]
      %v172 = vld [vmem:[%s165 + $0x4] sm:$0xf]
      %v173 = vld [vmem:[%s165 + $0x8] sm:$0xf]
      %v174 = vld [vmem:[%s165 + $0xc] sm:$0xf]
      %v175 = vld [vmem:[%s165 + $0x10] sm:$0xf]
      %v176 = vld [vmem:[%s165 + $0x14] sm:$0xf]
      %v177 = vld [vmem:[%s165 + $0x18] sm:$0xf]
      %v178 = vld [vmem:[%s165 + $0x1c] sm:$0xf]
      %v179 = vld [vmem:[%s165 + $0x20] sm:$0xf]
      %v180 = vld [vmem:[%s165 + $0x24] sm:$0xf]
      %v181 = vld [vmem:[%s165 + $0x28] sm:$0xf]
      %v182 = vld [vmem:[%s165 + $0x2c] sm:$0xf]
      %v183 = vld [vmem:[%s165 + $0x30] sm:$0xf]
      %v184 = vld [vmem:[%s165 + $0x34] sm:$0xf]
      %v185 = vld [vmem:[%s165 + $0x38] sm:$0xf]
      %v186 = vld [vmem:[%s165 + $0x3c] sm:$0xf]
      %v187 = vld [vmem:[%s165 + $0x40] sm:$0xf]
      %v188 = vld [vmem:[%s165 + $0x44] sm:$0xf]
      %v189 = vld [vmem:[%s165 + $0x48] sm:$0xf]
      %v190 = vld [vmem:[%s165 + $0x4c] sm:$0xf]
      %v191 = vld [vmem:[%s165 + $0x50] sm:$0xf]
      %v192 = vld [vmem:[%s165 + $0x54] sm:$0xf]
      %v193 = vld [vmem:[%s165 + $0x58] sm:$0xf]
      %v194 = vld [vmem:[%s165 + $0x5c] sm:$0xf]
      %v195 = vld [vmem:[%s165 + $0x60] sm:$0xf]
      %v196 = vld [vmem:[%s165 + $0x64] sm:$0xf]
      %v197 = vld [vmem:[%s165 + $0x68] sm:$0xf]
      %v198 = vld [vmem:[%s165 + $0x6c] sm:$0xf]
      %v199 = vunpack.c.l.bf16 %v171
      %v200 = vunpack.c.l.bf16 %v172
      %v201 = vunpack.c.l.bf16 %v173
      %v202 = vunpack.c.l.bf16 %v174
      %v203 = vunpack.c.l.bf16 %v175
      %v204 = vunpack.c.l.bf16 %v176
      %v205 = vunpack.c.l.bf16 %v177
      %v206 = vunpack.c.l.bf16 %v178
      %v207 = vunpack.c.l.bf16 %v179
      %v208 = vunpack.c.l.bf16 %v180
      %v209 = vunpack.c.l.bf16 %v181
      %v210 = vunpack.c.l.bf16 %v182
      %v211 = vunpack.c.l.bf16 %v183
      %v212 = vunpack.c.l.bf16 %v184
      %v213 = vunpack.c.l.bf16 %v185
      %v214 = vunpack.c.l.bf16 %v186
      %v215 = vunpack.c.l.bf16 %v187
      %v216 = vunpack.c.l.bf16 %v188
      %v217 = vunpack.c.l.bf16 %v189
      %v218 = vunpack.c.l.bf16 %v190
      %v219 = vunpack.c.l.bf16 %v191
      %v220 = vunpack.c.l.bf16 %v192
      %v221 = vunpack.c.l.bf16 %v193
      %v222 = vunpack.c.l.bf16 %v194
      %v223 = vunpack.c.l.bf16 %v195
      %v224 = vunpack.c.l.bf16 %v196
      %v225 = vunpack.c.l.bf16 %v197
      %v226 = vunpack.c.l.bf16 %v198
      %v227 = vld [vmem:[%s1] sm:$0xff]
      %v228 = vld [vmem:[%s1 + $0x8] sm:$0xff]
      %v229 = vld [vmem:[%s1 + $0x10] sm:$0xff]
      %v230 = vld [vmem:[%s1 + $0x18] sm:$0xff]
      %v231 = vld [vmem:[%s1 + $0x20] sm:$0xff]
      %v232 = vld [vmem:[%s1 + $0x28] sm:$0xff]
      %v233 = vld [vmem:[%s1 + $0x30] sm:$0xff]
      %v234 = vld [vmem:[%s1 + $0x38] sm:$0xff]
      %vm235 = vcmask 523264
      %v237 = vsel %vm235, %v199, 0
      %v240 = vsel %vm235, %v200, 0
      %v243 = vsel %vm235, %v201, 0
      %v246 = vsel %vm235, %v202, 0
      %v249 = vsel %vm235, %v203, 0
      %v252 = vsel %vm235, %v204, 0
      %v255 = vsel %vm235, %v205, 0
      %v258 = vsel %vm235, %v206, 0
      %v261 = vsel %vm235, %v207, 0
      %v264 = vsel %vm235, %v208, 0
      %v267 = vsel %vm235, %v209, 0
      %v270 = vsel %vm235, %v210, 0
      %v273 = vsel %vm235, %v211, 0
      %v276 = vsel %vm235, %v212, 0
      %v279 = vsel %vm235, %v213, 0
      %v282 = vsel %vm235, %v214, 0
      %v285 = vsel %vm235, %v215, 0
      %v288 = vsel %vm235, %v216, 0
      %v291 = vsel %vm235, %v217, 0
      %v294 = vsel %vm235, %v218, 0
      %v297 = vsel %vm235, %v219, 0
      %v300 = vsel %vm235, %v220, 0
      %v303 = vsel %vm235, %v221, 0
      %v306 = vsel %vm235, %v222, 0
      %v309 = vsel %vm235, %v223, 0
      %v312 = vsel %vm235, %v224, 0
      %v315 = vsel %vm235, %v225, 0
      %v318 = vsel %vm235, %v226, 0
      %320 = vmatpush.msra.mxu0 0.0
      %321 = vmatpush.msra.mxu0 0.0
      %322 = vmatpush.msra.mxu0 0.0
      %323 = vmatpush.msra.mxu0 0.0
      %324 = vmatpush.msra.mxu0 0.0
      %325 = vmatpush.msra.mxu0 0.0
      %326 = vmatpush.msra.mxu0 0.0
      %327 = vmatpush.msra.mxu0 0.0
      %328 = vmatpush.msra.mxu0 %v234
      %329 = vmatpush.msra.mxu0 %v233
      %330 = vmatpush.msra.mxu0 %v232
      %331 = vmatpush.msra.mxu0 %v231
      %332 = vmatpush.msra.mxu0 %v230
      %333 = vmatpush.msra.mxu0 %v229
      %334 = vmatpush.msra.mxu0 %v228
      %335 = vmatpush.msra.mxu0 %v227
      %336 = vmatmul.f32.gmra.mxu0 %v237
      %v337 = vpop.f32.mrf.mxu0
      %v338 = vadd.f32 0.0, %v337
      %339 = vmatmul.f32.gmra.mxu0 %v240
      %v340 = vpop.f32.mrf.mxu0
      %v341 = vadd.f32 0.0, %v340
      %342 = vmatmul.f32.gmra.mxu0 %v243
      %v343 = vpop.f32.mrf.mxu0
      %v344 = vadd.f32 0.0, %v343
      %345 = vmatmul.f32.gmra.mxu0 %v246
      %v346 = vpop.f32.mrf.mxu0
      %v347 = vadd.f32 0.0, %v346
      %348 = vmatmul.f32.gmra.mxu0 %v249
      %v349 = vpop.f32.mrf.mxu0
      %v350 = vadd.f32 0.0, %v349
      %351 = vmatmul.f32.gmra.mxu0 %v252
      %v352 = vpop.f32.mrf.mxu0
      %v353 = vadd.f32 0.0, %v352
      %354 = vmatmul.f32.gmra.mxu0 %v255
      %v355 = vpop.f32.mrf.mxu0
      %v356 = vadd.f32 0.0, %v355
      %357 = vmatmul.f32.gmra.mxu0 %v258
      %v358 = vpop.f32.mrf.mxu0
      %v359 = vadd.f32 0.0, %v358
      %360 = vmatmul.f32.gmra.mxu0 %v261
      %v361 = vpop.f32.mrf.mxu0
      %v362 = vadd.f32 0.0, %v361
      %363 = vmatmul.f32.gmra.mxu0 %v264
      %v364 = vpop.f32.mrf.mxu0
      %v365 = vadd.f32 0.0, %v364
      %366 = vmatmul.f32.gmra.mxu0 %v267
      %v367 = vpop.f32.mrf.mxu0
      %v368 = vadd.f32 0.0, %v367
      %369 = vmatmul.f32.gmra.mxu0 %v270
      %v370 = vpop.f32.mrf.mxu0
      %v371 = vadd.f32 0.0, %v370
      %372 = vmatmul.f32.gmra.mxu0 %v273
      %v373 = vpop.f32.mrf.mxu0
      %v374 = vadd.f32 0.0, %v373
      %375 = vmatmul.f32.gmra.mxu0 %v276
      %v376 = vpop.f32.mrf.mxu0
      %v377 = vadd.f32 0.0, %v376
      %378 = vmatmul.f32.gmra.mxu0 %v279
      %v379 = vpop.f32.mrf.mxu0
      %v380 = vadd.f32 0.0, %v379
      %381 = vmatmul.f32.gmra.mxu0 %v282
      %v382 = vpop.f32.mrf.mxu0
      %v383 = vadd.f32 0.0, %v382
      %384 = vmatmul.f32.gmra.mxu0 %v285
      %v385 = vpop.f32.mrf.mxu0
      %v386 = vadd.f32 0.0, %v385
      %387 = vmatmul.f32.gmra.mxu0 %v288
      %v388 = vpop.f32.mrf.mxu0
      %v389 = vadd.f32 0.0, %v388
      %390 = vmatmul.f32.gmra.mxu0 %v291
      %v391 = vpop.f32.mrf.mxu0
      %v392 = vadd.f32 0.0, %v391
      %393 = vmatmul.f32.gmra.mxu0 %v294
      %v394 = vpop.f32.mrf.mxu0
      %v395 = vadd.f32 0.0, %v394
      %396 = vmatmul.f32.gmra.mxu0 %v297
      %v397 = vpop.f32.mrf.mxu0
      %v398 = vadd.f32 0.0, %v397
      %399 = vmatmul.f32.gmra.mxu0 %v300
      %v400 = vpop.f32.mrf.mxu0
      %v401 = vadd.f32 0.0, %v400
      %402 = vmatmul.f32.gmra.mxu0 %v303
      %v403 = vpop.f32.mrf.mxu0
      %v404 = vadd.f32 0.0, %v403
      %405 = vmatmul.f32.gmra.mxu0 %v306
      %v406 = vpop.f32.mrf.mxu0
      %v407 = vadd.f32 0.0, %v406
      %408 = vmatmul.f32.gmra.mxu0 %v309
      %v409 = vpop.f32.mrf.mxu0
      %v410 = vadd.f32 0.0, %v409
      %411 = vmatmul.f32.gmra.mxu0 %v312
      %v412 = vpop.f32.mrf.mxu0
      %v413 = vadd.f32 0.0, %v412
      %414 = vmatmul.f32.gmra.mxu0 %v315
      %v415 = vpop.f32.mrf.mxu0
      %v416 = vadd.f32 0.0, %v415
      %417 = vmatmul.f32.gmra.mxu0 %v318
      %v418 = vpop.f32.mrf.mxu0
      %v419 = vadd.f32 0.0, %v418
      %420 = vdwg.mxu0
      %v421 = vld [vmem:[%s2] sm:$0xff]
      %v422 = vld [vmem:[%s2 + $0x8] sm:$0xff]
      %v423 = vld [vmem:[%s2 + $0x10] sm:$0xff]
      %v424 = vld [vmem:[%s2 + $0x18] sm:$0xff]
      %v425 = vld [vmem:[%s2 + $0x20] sm:$0xff]
      %v426 = vld [vmem:[%s2 + $0x28] sm:$0xff]
      %v427 = vld [vmem:[%s2 + $0x30] sm:$0xff]
      %v428 = vld [vmem:[%s2 + $0x38] sm:$0xff]
      %v429 = vld [vmem:[%s2 + $0x40] sm:$0xff]
      %v430 = vld [vmem:[%s2 + $0x48] sm:$0xff]
      %v431 = vld [vmem:[%s2 + $0x50] sm:$0xff]
      %v432 = vld [vmem:[%s2 + $0x58] sm:$0xff]
      %v433 = vld [vmem:[%s2 + $0x60] sm:$0xff]
      %v434 = vld [vmem:[%s2 + $0x68] sm:$0xff]
      %v435 = vld [vmem:[%s2 + $0x70] sm:$0xff]
      %v436 = vld [vmem:[%s2 + $0x78] sm:$0xff]
      %v437 = vld [vmem:[%s2 + $0x80] sm:$0xff]
      %v438 = vld [vmem:[%s2 + $0x88] sm:$0xff]
      %v439 = vld [vmem:[%s2 + $0x90] sm:$0xff]
      %v440 = vld [vmem:[%s2 + $0x98] sm:$0xff]
      %v441 = vld [vmem:[%s2 + $0xa0] sm:$0xff]
      %v442 = vld [vmem:[%s2 + $0xa8] sm:$0xff]
      %v443 = vld [vmem:[%s2 + $0xb0] sm:$0xff]
      %v444 = vld [vmem:[%s2 + $0xb8] sm:$0xff]
      %v445 = vld [vmem:[%s2 + $0xc0] sm:$0xff]
      %v446 = vld [vmem:[%s2 + $0xc8] sm:$0xff]
      %v447 = vld [vmem:[%s2 + $0xd0] sm:$0xff]
      %v448 = vld [vmem:[%s2 + $0xd8] sm:$0xff]
      %v449 = vadd.f32 %v338, %v421
      %v450 = vadd.f32 %v341, %v422
      %v451 = vadd.f32 %v344, %v423
      %v452 = vadd.f32 %v347, %v424
      %v453 = vadd.f32 %v350, %v425
      %v454 = vadd.f32 %v353, %v426
      %v455 = vadd.f32 %v356, %v427
      %v456 = vadd.f32 %v359, %v428
      %v457 = vadd.f32 %v362, %v429
      %v458 = vadd.f32 %v365, %v430
      %v459 = vadd.f32 %v368, %v431
      %v460 = vadd.f32 %v371, %v432
      %v461 = vadd.f32 %v374, %v433
      %v462 = vadd.f32 %v377, %v434
      %v463 = vadd.f32 %v380, %v435
      %v464 = vadd.f32 %v383, %v436
      %v465 = vadd.f32 %v386, %v437
      %v466 = vadd.f32 %v389, %v438
      %v467 = vadd.f32 %v392, %v439
      %v468 = vadd.f32 %v395, %v440
      %v469 = vadd.f32 %v398, %v441
      %v470 = vadd.f32 %v401, %v442
      %v471 = vadd.f32 %v404, %v443
      %v472 = vadd.f32 %v407, %v444
      %v473 = vadd.f32 %v410, %v445
      %v474 = vadd.f32 %v413, %v446
      %v475 = vadd.f32 %v416, %v447
      %v476 = vadd.f32 %v419, %v448
      %v477 = vmax.f32 %v449, 0.0
      %v478 = vmax.f32 %v450, 0.0
      %v479 = vmax.f32 %v451, 0.0
      %v480 = vmax.f32 %v452, 0.0
      %v481 = vmax.f32 %v453, 0.0
      %v482 = vmax.f32 %v454, 0.0
      %v483 = vmax.f32 %v455, 0.0
      %v484 = vmax.f32 %v456, 0.0
      %v485 = vmax.f32 %v457, 0.0
      %v486 = vmax.f32 %v458, 0.0
      %v487 = vmax.f32 %v459, 0.0
      %v488 = vmax.f32 %v460, 0.0
      %v489 = vmax.f32 %v461, 0.0
      %v490 = vmax.f32 %v462, 0.0
      %v491 = vmax.f32 %v463, 0.0
      %v492 = vmax.f32 %v464, 0.0
      %v493 = vmax.f32 %v465, 0.0
      %v494 = vmax.f32 %v466, 0.0
      %v495 = vmax.f32 %v467, 0.0
      %v496 = vmax.f32 %v468, 0.0
      %v497 = vmax.f32 %v469, 0.0
      %v498 = vmax.f32 %v470, 0.0
      %v499 = vmax.f32 %v471, 0.0
      %v500 = vmax.f32 %v472, 0.0
      %v501 = vmax.f32 %v473, 0.0
      %v502 = vmax.f32 %v474, 0.0
      %v503 = vmax.f32 %v475, 0.0
      %v504 = vmax.f32 %v476, 0.0
      %vm505 = vcmask 31744
      %506 = vst.msk [vmem:[%s170] sm:$0xff] %vm505, %v477
      %507 = vst.msk [vmem:[%s170 + $0x8] sm:$0xff] %vm505, %v478
      %508 = vst.msk [vmem:[%s170 + $0x10] sm:$0xff] %vm505, %v479
      %509 = vst.msk [vmem:[%s170 + $0x18] sm:$0xff] %vm505, %v480
      %510 = vst.msk [vmem:[%s170 + $0x20] sm:$0xff] %vm505, %v481
      %511 = vst.msk [vmem:[%s170 + $0x28] sm:$0xff] %vm505, %v482
      %512 = vst.msk [vmem:[%s170 + $0x30] sm:$0xff] %vm505, %v483
      %513 = vst.msk [vmem:[%s170 + $0x38] sm:$0xff] %vm505, %v484
      %514 = vst.msk [vmem:[%s170 + $0x40] sm:$0xff] %vm505, %v485
      %515 = vst.msk [vmem:[%s170 + $0x48] sm:$0xff] %vm505, %v486
      %516 = vst.msk [vmem:[%s170 + $0x50] sm:$0xff] %vm505, %v487
      %517 = vst.msk [vmem:[%s170 + $0x58] sm:$0xff] %vm505, %v488
      %518 = vst.msk [vmem:[%s170 + $0x60] sm:$0xff] %vm505, %v489
      %519 = vst.msk [vmem:[%s170 + $0x68] sm:$0xff] %vm505, %v490
      %520 = vst.msk [vmem:[%s170 + $0x70] sm:$0xff] %vm505, %v491
      %521 = vst.msk [vmem:[%s170 + $0x78] sm:$0xff] %vm505, %v492
      %522 = vst.msk [vmem:[%s170 + $0x80] sm:$0xff] %vm505, %v493
      %523 = vst.msk [vmem:[%s170 + $0x88] sm:$0xff] %vm505, %v494
      %524 = vst.msk [vmem:[%s170 + $0x90] sm:$0xff] %vm505, %v495
      %525 = vst.msk [vmem:[%s170 + $0x98] sm:$0xff] %vm505, %v496
      %526 = vst.msk [vmem:[%s170 + $0xa0] sm:$0xff] %vm505, %v497
      %527 = vst.msk [vmem:[%s170 + $0xa8] sm:$0xff] %vm505, %v498
      %528 = vst.msk [vmem:[%s170 + $0xb0] sm:$0xff] %vm505, %v499
      %529 = vst.msk [vmem:[%s170 + $0xb8] sm:$0xff] %vm505, %v500
      %530 = vst.msk [vmem:[%s170 + $0xc0] sm:$0xff] %vm505, %v501
      %531 = vst.msk [vmem:[%s170 + $0xc8] sm:$0xff] %vm505, %v502
      %532 = vst.msk [vmem:[%s170 + $0xd0] sm:$0xff] %vm505, %v503
      %533 = vst.msk [vmem:[%s170 + $0xd8] sm:$0xff] %vm505, %v504
      %p534 = scmp.lt.s32.totalorder %s14, 1
      %s535 = scalar_select %p534, %s14, 1
      %s536 = smul.addr %s535, 28
      %s537 = smul.addr %s536, 8
      %s538 = scalar_lea.vmem %s3, %s537
      // Predicated region
      $region33: #{decoder_forward.7} parent=31 // pred_check
        %p539 = pneg %p100
      $region34: #{decoder_forward.7} parent=31 // pred_check_branch
        %541 = sbr.rel (%p539) target = $region36
      $region35: #{decoder_forward.7} parent=31 // pred_region
        _
      $region36: #{decoder_forward.7} parent=31 // pred_fallthru
        _
    $region32: #{decoder_forward.7} parent=5 // pred_fallthru
      _
    %p542 = scmp.le.s32.totalorder 2, %s9
    // Predicated region
    $region37: #{decoder_forward.7} parent=5 // pred_check
      %p543 = pneg %p542
    $region38: #{decoder_forward.7} parent=5 // pred_check_branch
      %545 = sbr.rel (%p543) target = $region40
    $region39: #{decoder_forward.7} parent=5 // pred_region
      %s546 = ssub.s32 %s9, 2
      // Predicated region
      $region41: #{decoder_forward.7} parent=39 // pred_check
        %p547 = pneg %p106
      $region42: #{decoder_forward.7} parent=39 // pred_check_branch
        %549 = sbr.rel (%p547) target = $region44
      $region43: #{decoder_forward.7} parent=39 // pred_region
        %p550 = scmp.lt.s32.totalorder %s15, 1
        %s551 = scalar_select %p550, %s15, 1
        %s552 = smul.addr %s551, 28
        %s553 = smul.addr %s552, 8
        %s554 = scalar_lea.vmem %s3, %s553
      $region44: #{decoder_forward.7} parent=39 // pred_fallthru
        _
    $region40: #{decoder_forward.7} parent=5 // pred_fallthru
      _
  $region6: #{decoder_forward.7} parent=0 // loop_footer
    %s13 = sadd.s32 1, %s9
  $region7: #{decoder_forward.7} parent=0 // loop_footer_branch
    %8 = sbr.rel target = $region3
  $region8: #{decoder_forward.7} parent=0 // loop_exit
    _

</llo_original>
